<compile_context>
chip_gen: v7x
topology: tpu7x:2x2x1
jax: 0.10.0
libtpu: 0.0.40
codegen_flags: <defaults>
</compile_context>

<pallas_src>
import functools

import jax
import jax.numpy as jnp
import numpy as np
from jax.experimental import pallas as pl
from jax.experimental.pallas import tpu as pltpu


def _transe_kernel(
    # scalar-prefetch index vectors (SMEM), each (B_pad,) int32
    ph_idx, pr_idx, pt_idx, nh_idx, nt_idx,
    # HBM-resident embedding tables (memory_space=pl.ANY -> no auto-DMA)
    ent_hbm, rel_hbm,
    # output block: per-sample hinge values, (TB, 1) f32
    hinge_ref,
    # scratch: 5 double-buffered gather buffers (2, TB, D) f32 + DMA sems (2, 5)
    ph_buf, pr_buf, pt_buf, nh_buf, nt_buf, sems,
    *, tb, margin,
):
    i = pl.program_id(0)
    nblk = pl.num_programs(0)
    slot = i % 2

    bufs = (ph_buf, pr_buf, pt_buf, nh_buf, nt_buf)
    idxs = (ph_idx, pr_idx, pt_idx, nh_idx, nt_idx)
    # stream j gathers rows from tables[j] (the negative triple reuses pos_r,
    # exactly like the PyTorch module).
    tables = (ent_hbm, rel_hbm, ent_hbm, ent_hbm, ent_hbm)

    def start_gather(block, to_slot):
        # Row-gather: 5 * TB small DMAs per tile. Statically unrolled -> keep
        # TB modest; for very large TB use lax.fori_loop instead.
        base = block * tb
        for j in range(5):
            for r in range(tb):
                pltpu.make_async_copy(
                    tables[j].at[idxs[j][base + r]],   # (D,) row in HBM
                    bufs[j].at[to_slot, r],            # (D,) row in VMEM
                    sems.at[to_slot, j],
                ).start()

    def wait_gather(from_slot):
        for j in range(5):
            for r in range(tb):
                pltpu.make_async_copy(
                    tables[j].at[0],                   # dummy src; wait keys off dst+sem
                    bufs[j].at[from_slot, r],
                    sems.at[from_slot, j],
                ).wait()

    # Prime the pipeline: fetch tile 0 into slot 0 on the first step.
    @pl.when(i == 0)
    def _():
        start_gather(i, slot)

    # Prefetch the next tile into the other slot (overlaps with this step's
    # wait + compute).
    @pl.when(i + 1 < nblk)
    def _():
        start_gather(i + 1, 1 - slot)

    # Wait for the current tile's gathered rows.
    wait_gather(slot)

    # pos = E[h] + R[r] - E[t];  neg = E[h'] + R[r] - E[t']
    pos = ph_buf[slot] + pr_buf[slot] - pt_buf[slot]          # (TB, D) f32
    neg = nh_buf[slot] + pr_buf[slot] - nt_buf[slot]          # (TB, D) f32

    # Single fused L1 reduction: ||pos||_1 - ||neg||_1 == sum(|pos| - |neg|).
    diff = jnp.sum(jnp.abs(pos) - jnp.abs(neg), axis=1, keepdims=True)  # (TB, 1)

    # Hinge per sample; mean (with padding mask) is done in the wrapper.
    hinge_ref[...] = jnp.maximum(diff + margin, 0.0)


def transe_loss_pallas(ent_w, rel_w, pos_h, pos_r, pos_t, neg_h, neg_t, margin,
                       *, tb=8):
    assert tb % 8 == 0, "batch tile must be a multiple of 8 (sublane granularity)"
    B = pos_h.shape[0]
    _, D = ent_w.shape
    assert D % 128 == 0, "embedding dim must be a multiple of 128 (lane granularity)"

    num_blocks = pl.cdiv(B, tb)
    b_pad = num_blocks * tb

    def prep(idx):
        idx = idx.astype(jnp.int32)
        if b_pad != B:
            # Padded rows gather row 0 (valid address); their hinge values are
            # sliced off before the mean, so they never affect the loss.
            idx = jnp.pad(idx, (0, b_pad - B))
        return idx

    ph, pr, pt, nh, nt = map(prep, (pos_h, pos_r, pos_t, neg_h, neg_t))

    kernel = functools.partial(_transe_kernel, tb=tb, margin=float(margin))

    grid_spec = pltpu.PrefetchScalarGridSpec(
        num_scalar_prefetch=5,                       # the 5 index vectors -> SMEM
        grid=(num_blocks,),
        in_specs=[
            pl.BlockSpec(memory_space=pl.ANY),       # ent_w stays in HBM
            pl.BlockSpec(memory_space=pl.ANY),       # rel_w stays in HBM
        ],
        out_specs=pl.BlockSpec((tb, 1), lambda i, *_: (i, 0)),
        scratch_shapes=[pltpu.VMEM((2, tb, D), jnp.float32)] * 5
                       + [pltpu.SemaphoreType.DMA((2, 5))],
    )

    hinge = pl.pallas_call(
        kernel,
        out_shape=jax.ShapeDtypeStruct((b_pad, 1), jnp.float32),
        grid_spec=grid_spec,
        compiler_params=pltpu.CompilerParams(
            # Manual double-buffering (slot = i % 2) relies on sequential grid
            # steps, so the batch axis is "arbitrary". For v7x 2-TC sharding,
            # drop the cross-step prefetch and mark it "parallel".
            dimension_semantics=("arbitrary",),
            # For production tiles, set vmem_limit_bytes here (5 tables x 2
            # slots x TB x D x 4 B must fit the scoped limit).
        ),
    )(ph, pr, pt, nh, nt, ent_w, rel_w)

    # Final mean over the real B samples (padded rows masked out by the slice).
    return jnp.mean(hinge[:B, 0])


def xavier_uniform(key, shape, dtype=jnp.float32):
    fan_in, fan_out = shape[0], shape[1]
    a = float(np.sqrt(6.0 / (fan_in + fan_out)))
    return jax.random.uniform(key, shape, dtype=dtype, minval=-a, maxval=a)


def transe_forward(ent_w, rel_w, pos_h, pos_r, pos_t, neg_h, neg_t, margin):
    # Gathers are fused inside the kernel; no [B, D] intermediates in HBM.
    return transe_loss_pallas(ent_w, rel_w, pos_h, pos_r, pos_t, neg_h, neg_t,
                              margin)


def transe_forward_ref(ent_w, rel_w, pos_h, pos_r, pos_t, neg_h, neg_t, margin):
    pos = ent_w[pos_h] + rel_w[pos_r] - ent_w[pos_t]
    neg = ent_w[neg_h] + rel_w[pos_r] - ent_w[neg_t]
    pos_s = jnp.sum(jnp.abs(pos), axis=1)
    neg_s = jnp.sum(jnp.abs(neg), axis=1)
    return jnp.mean(jax.nn.relu(pos_s - neg_s + margin))


if __name__ == "__main__":
    key = jax.random.PRNGKey(0)
    num_entities, num_relations, dim, margin = 64, 16, 128, 3.0
    batch = 20   # deliberately not a multiple of the 8-row tile -> exercises padding

    k_ent, k_rel, k1, k2, k3, k4, k5 = jax.random.split(key, 7)
    ent_w = xavier_uniform(k_ent, (num_entities, dim))
    rel_w = xavier_uniform(k_rel, (num_relations, dim))

    pos_h = jax.random.randint(k1, (batch,), 0, num_entities)
    pos_r = jax.random.randint(k2, (batch,), 0, num_relations)
    pos_t = jax.random.randint(k3, (batch,), 0, num_entities)
    neg_h = jax.random.randint(k4, (batch,), 0, num_entities)
    neg_t = jax.random.randint(k5, (batch,), 0, num_entities)

    loss = jax.block_until_ready(
        transe_forward(ent_w, rel_w, pos_h, pos_r, pos_t, neg_h, neg_t, margin)
    )
    loss_ref = jax.block_until_ready(
        transe_forward_ref(ent_w, rel_w, pos_h, pos_r, pos_t, neg_h, neg_t, margin)
    )

    assert np.allclose(np.asarray(loss), np.asarray(loss_ref), rtol=1e-5, atol=1e-5), (
        loss, loss_ref)
    print("KERNEL_OK")
</pallas_src>

<mosaic_0001>
module attributes {stable_mosaic.version = 11 : i64} {
  func.func @_transe_kernel(%arg0: i32, %arg1: memref<24xi32, #tpu.memory_space<smem>>, %arg2: memref<24xi32, #tpu.memory_space<smem>>, %arg3: memref<24xi32, #tpu.memory_space<smem>>, %arg4: memref<24xi32, #tpu.memory_space<smem>>, %arg5: memref<24xi32, #tpu.memory_space<smem>>, %arg6: memref<64x128xf32, #tpu.memory_space<any>>, %arg7: memref<16x128xf32, #tpu.memory_space<any>>, %arg8: memref<8x1xf32, #tpu.memory_space<vmem>>, %arg9: memref<2x8x128xf32, #tpu.memory_space<vmem>>, %arg10: memref<2x8x128xf32, #tpu.memory_space<vmem>>, %arg11: memref<2x8x128xf32, #tpu.memory_space<vmem>>, %arg12: memref<2x8x128xf32, #tpu.memory_space<vmem>>, %arg13: memref<2x8x128xf32, #tpu.memory_space<vmem>>, %arg14: memref<2x5x!tpu.dma_semaphore, #tpu.memory_space<semaphore_mem>>) attributes {dimension_semantics = [#tpu.dimension_semantics<arbitrary>], iteration_bounds = array<i64: 3>, scalar_prefetch = 5 : i64, scratch_operands = 6 : i64, tpu.core_type = #tpu.core_type<tc>, window_params = [{}, {}, {transform_indices = @transform_2, window_bounds = array<i64: 8, 1>}]} {
    %c2_i32 = arith.constant 2 : i32
    %c0_i32 = arith.constant 0 : i32
    %0 = arith.cmpi eq, %c2_i32, %c0_i32 : i32
    %c1_i32 = arith.constant 1 : i32
    %1 = arith.select %0, %c1_i32, %c2_i32 : i32
    %2 = arith.remsi %arg0, %1 : i32
    %c0_i32_0 = arith.constant 0 : i32
    %3 = arith.cmpi ne, %2, %c0_i32_0 : i32
    %c0_i32_1 = arith.constant 0 : i32
    %4 = arith.cmpi slt, %2, %c0_i32_1 : i32
    %c0_i32_2 = arith.constant 0 : i32
    %5 = arith.cmpi slt, %1, %c0_i32_2 : i32
    %6 = arith.xori %4, %5 : i1
    %7 = arith.andi %6, %3 : i1
    %8 = arith.addi %2, %1 : i32
    %9 = arith.select %7, %8, %2 : i32
    %c0_i32_3 = arith.constant 0 : i32
    %10 = arith.cmpi eq, %arg0, %c0_i32_3 : i32
    %11 = arith.extui %10 : i1 to i32
    %c0_i32_4 = arith.constant 0 : i32
    %12 = arith.cmpi ne, %11, %c0_i32_4 : i32
    scf.if %12 {
      %c8_i32 = arith.constant 8 : i32
      %289 = arith.muli %arg0, %c8_i32 : i32
      %c0_i32_218 = arith.constant 0 : i32
      %290 = arith.addi %289, %c0_i32_218 : i32
      %291 = arith.index_cast %290 : i32 to index
      %292 = memref.load %arg1[%291] : memref<24xi32, #tpu.memory_space<smem>>
      %c0_i32_219 = arith.constant 0 : i32
      %c0_i32_220 = arith.constant 0 : i32
      %c0_i32_221 = arith.constant 0 : i32
      %293 = tpu.memref_slice %arg6[%292, %c0_i32_221] : memref<64x128xf32, #tpu.memory_space<any>> -> memref<1x128xf32, #tpu.memory_space<any>>
      %294 = tpu.memref_squeeze %293 : memref<1x128xf32, #tpu.memory_space<any>> -> memref<128xf32, #tpu.memory_space<any>>
      %c0_i32_222 = arith.constant 0 : i32
      %295 = tpu.memref_slice %arg9[%9, %c0_i32_219, %c0_i32_222] : memref<2x8x128xf32, #tpu.memory_space<vmem>> -> memref<1x1x128xf32, #tpu.memory_space<vmem>>
      %296 = tpu.memref_squeeze %295 : memref<1x1x128xf32, #tpu.memory_space<vmem>> -> memref<128xf32, #tpu.memory_space<vmem>>
      %297 = tpu.memref_slice %arg14[%9, %c0_i32_220] : memref<2x5x!tpu.dma_semaphore, #tpu.memory_space<semaphore_mem>> -> memref<1x1x!tpu.dma_semaphore, #tpu.memory_space<semaphore_mem>>
      %298 = tpu.memref_squeeze %297 : memref<1x1x!tpu.dma_semaphore, #tpu.memory_space<semaphore_mem>> -> memref<!tpu.dma_semaphore, #tpu.memory_space<semaphore_mem>>
      tpu.enqueue_dma source(%294 : memref<128xf32, #tpu.memory_space<any>>) target(%296 : memref<128xf32, #tpu.memory_space<vmem>>) target_semaphore(%298 : memref<!tpu.dma_semaphore, #tpu.memory_space<semaphore_mem>>)
      %c1_i32_223 = arith.constant 1 : i32
      %299 = arith.addi %289, %c1_i32_223 : i32
      %300 = arith.index_cast %299 : i32 to index
      %301 = memref.load %arg1[%300] : memref<24xi32, #tpu.memory_space<smem>>
      %c1_i32_224 = arith.constant 1 : i32
      %c0_i32_225 = arith.constant 0 : i32
      %c0_i32_226 = arith.constant 0 : i32
      %302 = tpu.memref_slice %arg6[%301, %c0_i32_226] : memref<64x128xf32, #tpu.memory_space<any>> -> memref<1x128xf32, #tpu.memory_space<any>>
      %303 = tpu.memref_squeeze %302 : memref<1x128xf32, #tpu.memory_space<any>> -> memref<128xf32, #tpu.memory_space<any>>
      %c0_i32_227 = arith.constant 0 : i32
      %304 = tpu.memref_slice %arg9[%9, %c1_i32_224, %c0_i32_227] : memref<2x8x128xf32, #tpu.memory_space<vmem>> -> memref<1x1x128xf32, #tpu.memory_space<vmem>>
      %305 = tpu.memref_squeeze %304 : memref<1x1x128xf32, #tpu.memory_space<vmem>> -> memref<128xf32, #tpu.memory_space<vmem>>
      %306 = tpu.memref_slice %arg14[%9, %c0_i32_225] : memref<2x5x!tpu.dma_semaphore, #tpu.memory_space<semaphore_mem>> -> memref<1x1x!tpu.dma_semaphore, #tpu.memory_space<semaphore_mem>>
      %307 = tpu.memref_squeeze %306 : memref<1x1x!tpu.dma_semaphore, #tpu.memory_space<semaphore_mem>> -> memref<!tpu.dma_semaphore, #tpu.memory_space<semaphore_mem>>
      tpu.enqueue_dma source(%303 : memref<128xf32, #tpu.memory_space<any>>) target(%305 : memref<128xf32, #tpu.memory_space<vmem>>) target_semaphore(%307 : memref<!tpu.dma_semaphore, #tpu.memory_space<semaphore_mem>>)
      %c2_i32_228 = arith.constant 2 : i32
      %308 = arith.addi %289, %c2_i32_228 : i32
      %309 = arith.index_cast %308 : i32 to index
      %310 = memref.load %arg1[%309] : memref<24xi32, #tpu.memory_space<smem>>
      %c2_i32_229 = arith.constant 2 : i32
      %c0_i32_230 = arith.constant 0 : i32
      %c0_i32_231 = arith.constant 0 : i32
      %311 = tpu.memref_slice %arg6[%310, %c0_i32_231] : memref<64x128xf32, #tpu.memory_space<any>> -> memref<1x128xf32, #tpu.memory_space<any>>
      %312 = tpu.memref_squeeze %311 : memref<1x128xf32, #tpu.memory_space<any>> -> memref<128xf32, #tpu.memory_space<any>>
      %c0_i32_232 = arith.constant 0 : i32
      %313 = tpu.memref_slice %arg9[%9, %c2_i32_229, %c0_i32_232] : memref<2x8x128xf32, #tpu.memory_space<vmem>> -> memref<1x1x128xf32, #tpu.memory_space<vmem>>
      %314 = tpu.memref_squeeze %313 : memref<1x1x128xf32, #tpu.memory_space<vmem>> -> memref<128xf32, #tpu.memory_space<vmem>>
      %315 = tpu.memref_slice %arg14[%9, %c0_i32_230] : memref<2x5x!tpu.dma_semaphore, #tpu.memory_space<semaphore_mem>> -> memref<1x1x!tpu.dma_semaphore, #tpu.memory_space<semaphore_mem>>
      %316 = tpu.memref_squeeze %315 : memref<1x1x!tpu.dma_semaphore, #tpu.memory_space<semaphore_mem>> -> memref<!tpu.dma_semaphore, #tpu.memory_space<semaphore_mem>>
      tpu.enqueue_dma source(%312 : memref<128xf32, #tpu.memory_space<any>>) target(%314 : memref<128xf32, #tpu.memory_space<vmem>>) target_semaphore(%316 : memref<!tpu.dma_semaphore, #tpu.memory_space<semaphore_mem>>)
      %c3_i32_233 = arith.constant 3 : i32
      %317 = arith.addi %289, %c3_i32_233 : i32
      %318 = arith.index_cast %317 : i32 to index
      %319 = memref.load %arg1[%318] : memref<24xi32, #tpu.memory_space<smem>>
      %c3_i32_234 = arith.constant 3 : i32
      %c0_i32_235 = arith.constant 0 : i32
      %c0_i32_236 = arith.constant 0 : i32
      %320 = tpu.memref_slice %arg6[%319, %c0_i32_236] : memref<64x128xf32, #tpu.memory_space<any>> -> memref<1x128xf32, #tpu.memory_space<any>>
      %321 = tpu.memref_squeeze %320 : memref<1x128xf32, #tpu.memory_space<any>> -> memref<128xf32, #tpu.memory_space<any>>
      %c0_i32_237 = arith.constant 0 : i32
      %322 = tpu.memref_slice %arg9[%9, %c3_i32_234, %c0_i32_237] : memref<2x8x128xf32, #tpu.memory_space<vmem>> -> memref<1x1x128xf32, #tpu.memory_space<vmem>>
      %323 = tpu.memref_squeeze %322 : memref<1x1x128xf32, #tpu.memory_space<vmem>> -> memref<128xf32, #tpu.memory_space<vmem>>
      %324 = tpu.memref_slice %arg14[%9, %c0_i32_235] : memref<2x5x!tpu.dma_semaphore, #tpu.memory_space<semaphore_mem>> -> memref<1x1x!tpu.dma_semaphore, #tpu.memory_space<semaphore_mem>>
      %325 = tpu.memref_squeeze %324 : memref<1x1x!tpu.dma_semaphore, #tpu.memory_space<semaphore_mem>> -> memref<!tpu.dma_semaphore, #tpu.memory_space<semaphore_mem>>
      tpu.enqueue_dma source(%321 : memref<128xf32, #tpu.memory_space<any>>) target(%323 : memref<128xf32, #tpu.memory_space<vmem>>) target_semaphore(%325 : memref<!tpu.dma_semaphore, #tpu.memory_space<semaphore_mem>>)
      %c4_i32_238 = arith.constant 4 : i32
      %326 = arith.addi %289, %c4_i32_238 : i32
      %327 = arith.index_cast %326 : i32 to index
      %328 = memref.load %arg1[%327] : memref<24xi32, #tpu.memory_space<smem>>
      %c4_i32_239 = arith.constant 4 : i32
      %c0_i32_240 = arith.constant 0 : i32
      %c0_i32_241 = arith.constant 0 : i32
      %329 = tpu.memref_slice %arg6[%328, %c0_i32_241] : memref<64x128xf32, #tpu.memory_space<any>> -> memref<1x128xf32, #tpu.memory_space<any>>
      %330 = tpu.memref_squeeze %329 : memref<1x128xf32, #tpu.memory_space<any>> -> memref<128xf32, #tpu.memory_space<any>>
      %c0_i32_242 = arith.constant 0 : i32
      %331 = tpu.memref_slice %arg9[%9, %c4_i32_239, %c0_i32_242] : memref<2x8x128xf32, #tpu.memory_space<vmem>> -> memref<1x1x128xf32, #tpu.memory_space<vmem>>
      %332 = tpu.memref_squeeze %331 : memref<1x1x128xf32, #tpu.memory_space<vmem>> -> memref<128xf32, #tpu.memory_space<vmem>>
      %333 = tpu.memref_slice %arg14[%9, %c0_i32_240] : memref<2x5x!tpu.dma_semaphore, #tpu.memory_space<semaphore_mem>> -> memref<1x1x!tpu.dma_semaphore, #tpu.memory_space<semaphore_mem>>
      %334 = tpu.memref_squeeze %333 : memref<1x1x!tpu.dma_semaphore, #tpu.memory_space<semaphore_mem>> -> memref<!tpu.dma_semaphore, #tpu.memory_space<semaphore_mem>>
      tpu.enqueue_dma source(%330 : memref<128xf32, #tpu.memory_space<any>>) target(%332 : memref<128xf32, #tpu.memory_space<vmem>>) target_semaphore(%334 : memref<!tpu.dma_semaphore, #tpu.memory_space<semaphore_mem>>)
      %c5_i32_243 = arith.constant 5 : i32
      %335 = arith.addi %289, %c5_i32_243 : i32
      %336 = arith.index_cast %335 : i32 to index
      %337 = memref.load %arg1[%336] : memref<24xi32, #tpu.memory_space<smem>>
      %c5_i32_244 = arith.constant 5 : i32
      %c0_i32_245 = arith.constant 0 : i32
      %c0_i32_246 = arith.constant 0 : i32
      %338 = tpu.memref_slice %arg6[%337, %c0_i32_246] : memref<64x128xf32, #tpu.memory_space<any>> -> memref<1x128xf32, #tpu.memory_space<any>>
      %339 = tpu.memref_squeeze %338 : memref<1x128xf32, #tpu.memory_space<any>> -> memref<128xf32, #tpu.memory_space<any>>
      %c0_i32_247 = arith.constant 0 : i32
      %340 = tpu.memref_slice %arg9[%9, %c5_i32_244, %c0_i32_247] : memref<2x8x128xf32, #tpu.memory_space<vmem>> -> memref<1x1x128xf32, #tpu.memory_space<vmem>>
      %341 = tpu.memref_squeeze %340 : memref<1x1x128xf32, #tpu.memory_space<vmem>> -> memref<128xf32, #tpu.memory_space<vmem>>
      %342 = tpu.memref_slice %arg14[%9, %c0_i32_245] : memref<2x5x!tpu.dma_semaphore, #tpu.memory_space<semaphore_mem>> -> memref<1x1x!tpu.dma_semaphore, #tpu.memory_space<semaphore_mem>>
      %343 = tpu.memref_squeeze %342 : memref<1x1x!tpu.dma_semaphore, #tpu.memory_space<semaphore_mem>> -> memref<!tpu.dma_semaphore, #tpu.memory_space<semaphore_mem>>
      tpu.enqueue_dma source(%339 : memref<128xf32, #tpu.memory_space<any>>) target(%341 : memref<128xf32, #tpu.memory_space<vmem>>) target_semaphore(%343 : memref<!tpu.dma_semaphore, #tpu.memory_space<semaphore_mem>>)
      %c6_i32_248 = arith.constant 6 : i32
      %344 = arith.addi %289, %c6_i32_248 : i32
      %345 = arith.index_cast %344 : i32 to index
      %346 = memref.load %arg1[%345] : memref<24xi32, #tpu.memory_space<smem>>
      %c6_i32_249 = arith.constant 6 : i32
      %c0_i32_250 = arith.constant 0 : i32
      %c0_i32_251 = arith.constant 0 : i32
      %347 = tpu.memref_slice %arg6[%346, %c0_i32_251] : memref<64x128xf32, #tpu.memory_space<any>> -> memref<1x128xf32, #tpu.memory_space<any>>
      %348 = tpu.memref_squeeze %347 : memref<1x128xf32, #tpu.memory_space<any>> -> memref<128xf32, #tpu.memory_space<any>>
      %c0_i32_252 = arith.constant 0 : i32
      %349 = tpu.memref_slice %arg9[%9, %c6_i32_249, %c0_i32_252] : memref<2x8x128xf32, #tpu.memory_space<vmem>> -> memref<1x1x128xf32, #tpu.memory_space<vmem>>
      %350 = tpu.memref_squeeze %349 : memref<1x1x128xf32, #tpu.memory_space<vmem>> -> memref<128xf32, #tpu.memory_space<vmem>>
      %351 = tpu.memref_slice %arg14[%9, %c0_i32_250] : memref<2x5x!tpu.dma_semaphore, #tpu.memory_space<semaphore_mem>> -> memref<1x1x!tpu.dma_semaphore, #tpu.memory_space<semaphore_mem>>
      %352 = tpu.memref_squeeze %351 : memref<1x1x!tpu.dma_semaphore, #tpu.memory_space<semaphore_mem>> -> memref<!tpu.dma_semaphore, #tpu.memory_space<semaphore_mem>>
      tpu.enqueue_dma source(%348 : memref<128xf32, #tpu.memory_space<any>>) target(%350 : memref<128xf32, #tpu.memory_space<vmem>>) target_semaphore(%352 : memref<!tpu.dma_semaphore, #tpu.memory_space<semaphore_mem>>)
      %c7_i32_253 = arith.constant 7 : i32
      %353 = arith.addi %289, %c7_i32_253 : i32
      %354 = arith.index_cast %353 : i32 to index
      %355 = memref.load %arg1[%354] : memref<24xi32, #tpu.memory_space<smem>>
      %c7_i32_254 = arith.constant 7 : i32
      %c0_i32_255 = arith.constant 0 : i32
      %c0_i32_256 = arith.constant 0 : i32
      %356 = tpu.memref_slice %arg6[%355, %c0_i32_256] : memref<64x128xf32, #tpu.memory_space<any>> -> memref<1x128xf32, #tpu.memory_space<any>>
      %357 = tpu.memref_squeeze %356 : memref<1x128xf32, #tpu.memory_space<any>> -> memref<128xf32, #tpu.memory_space<any>>
      %c0_i32_257 = arith.constant 0 : i32
      %358 = tpu.memref_slice %arg9[%9, %c7_i32_254, %c0_i32_257] : memref<2x8x128xf32, #tpu.memory_space<vmem>> -> memref<1x1x128xf32, #tpu.memory_space<vmem>>
      %359 = tpu.memref_squeeze %358 : memref<1x1x128xf32, #tpu.memory_space<vmem>> -> memref<128xf32, #tpu.memory_space<vmem>>
      %360 = tpu.memref_slice %arg14[%9, %c0_i32_255] : memref<2x5x!tpu.dma_semaphore, #tpu.memory_space<semaphore_mem>> -> memref<1x1x!tpu.dma_semaphore, #tpu.memory_space<semaphore_mem>>
      %361 = tpu.memref_squeeze %360 : memref<1x1x!tpu.dma_semaphore, #tpu.memory_space<semaphore_mem>> -> memref<!tpu.dma_semaphore, #tpu.memory_space<semaphore_mem>>
      tpu.enqueue_dma source(%357 : memref<128xf32, #tpu.memory_space<any>>) target(%359 : memref<128xf32, #tpu.memory_space<vmem>>) target_semaphore(%361 : memref<!tpu.dma_semaphore, #tpu.memory_space<semaphore_mem>>)
      %c0_i32_258 = arith.constant 0 : i32
      %362 = arith.addi %289, %c0_i32_258 : i32
      %363 = arith.index_cast %362 : i32 to index
      %364 = memref.load %arg2[%363] : memref<24xi32, #tpu.memory_space<smem>>
      %c0_i32_259 = arith.constant 0 : i32
      %c1_i32_260 = arith.constant 1 : i32
      %c0_i32_261 = arith.constant 0 : i32
      %365 = tpu.memref_slice %arg7[%364, %c0_i32_261] : memref<16x128xf32, #tpu.memory_space<any>> -> memref<1x128xf32, #tpu.memory_space<any>>
      %366 = tpu.memref_squeeze %365 : memref<1x128xf32, #tpu.memory_space<any>> -> memref<128xf32, #tpu.memory_space<any>>
      %c0_i32_262 = arith.constant 0 : i32
      %367 = tpu.memref_slice %arg10[%9, %c0_i32_259, %c0_i32_262] : memref<2x8x128xf32, #tpu.memory_space<vmem>> -> memref<1x1x128xf32, #tpu.memory_space<vmem>>
      %368 = tpu.memref_squeeze %367 : memref<1x1x128xf32, #tpu.memory_space<vmem>> -> memref<128xf32, #tpu.memory_space<vmem>>
      %369 = tpu.memref_slice %arg14[%9, %c1_i32_260] : memref<2x5x!tpu.dma_semaphore, #tpu.memory_space<semaphore_mem>> -> memref<1x1x!tpu.dma_semaphore, #tpu.memory_space<semaphore_mem>>
      %370 = tpu.memref_squeeze %369 : memref<1x1x!tpu.dma_semaphore, #tpu.memory_space<semaphore_mem>> -> memref<!tpu.dma_semaphore, #tpu.memory_space<semaphore_mem>>
      tpu.enqueue_dma source(%366 : memref<128xf32, #tpu.memory_space<any>>) target(%368 : memref<128xf32, #tpu.memory_space<vmem>>) target_semaphore(%370 : memref<!tpu.dma_semaphore, #tpu.memory_space<semaphore_mem>>)
      %c1_i32_263 = arith.constant 1 : i32
      %371 = arith.addi %289, %c1_i32_263 : i32
      %372 = arith.index_cast %371 : i32 to index
      %373 = memref.load %arg2[%372] : memref<24xi32, #tpu.memory_space<smem>>
      %c1_i32_264 = arith.constant 1 : i32
      %c1_i32_265 = arith.constant 1 : i32
      %c0_i32_266 = arith.constant 0 : i32
      %374 = tpu.memref_slice %arg7[%373, %c0_i32_266] : memref<16x128xf32, #tpu.memory_space<any>> -> memref<1x128xf32, #tpu.memory_space<any>>
      %375 = tpu.memref_squeeze %374 : memref<1x128xf32, #tpu.memory_space<any>> -> memref<128xf32, #tpu.memory_space<any>>
      %c0_i32_267 = arith.constant 0 : i32
      %376 = tpu.memref_slice %arg10[%9, %c1_i32_264, %c0_i32_267] : memref<2x8x128xf32, #tpu.memory_space<vmem>> -> memref<1x1x128xf32, #tpu.memory_space<vmem>>
      %377 = tpu.memref_squeeze %376 : memref<1x1x128xf32, #tpu.memory_space<vmem>> -> memref<128xf32, #tpu.memory_space<vmem>>
      %378 = tpu.memref_slice %arg14[%9, %c1_i32_265] : memref<2x5x!tpu.dma_semaphore, #tpu.memory_space<semaphore_mem>> -> memref<1x1x!tpu.dma_semaphore, #tpu.memory_space<semaphore_mem>>
      %379 = tpu.memref_squeeze %378 : memref<1x1x!tpu.dma_semaphore, #tpu.memory_space<semaphore_mem>> -> memref<!tpu.dma_semaphore, #tpu.memory_space<semaphore_mem>>
      tpu.enqueue_dma source(%375 : memref<128xf32, #tpu.memory_space<any>>) target(%377 : memref<128xf32, #tpu.memory_space<vmem>>) target_semaphore(%379 : memref<!tpu.dma_semaphore, #tpu.memory_space<semaphore_mem>>)
      %c2_i32_268 = arith.constant 2 : i32
      %380 = arith.addi %289, %c2_i32_268 : i32
      %381 = arith.index_cast %380 : i32 to index
      %382 = memref.load %arg2[%381] : memref<24xi32, #tpu.memory_space<smem>>
      %c2_i32_269 = arith.constant 2 : i32
      %c1_i32_270 = arith.constant 1 : i32
      %c0_i32_271 = arith.constant 0 : i32
      %383 = tpu.memref_slice %arg7[%382, %c0_i32_271] : memref<16x128xf32, #tpu.memory_space<any>> -> memref<1x128xf32, #tpu.memory_space<any>>
      %384 = tpu.memref_squeeze %383 : memref<1x128xf32, #tpu.memory_space<any>> -> memref<128xf32, #tpu.memory_space<any>>
      %c0_i32_272 = arith.constant 0 : i32
      %385 = tpu.memref_slice %arg10[%9, %c2_i32_269, %c0_i32_272] : memref<2x8x128xf32, #tpu.memory_space<vmem>> -> memref<1x1x128xf32, #tpu.memory_space<vmem>>
      %386 = tpu.memref_squeeze %385 : memref<1x1x128xf32, #tpu.memory_space<vmem>> -> memref<128xf32, #tpu.memory_space<vmem>>
      %387 = tpu.memref_slice %arg14[%9, %c1_i32_270] : memref<2x5x!tpu.dma_semaphore, #tpu.memory_space<semaphore_mem>> -> memref<1x1x!tpu.dma_semaphore, #tpu.memory_space<semaphore_mem>>
      %388 = tpu.memref_squeeze %387 : memref<1x1x!tpu.dma_semaphore, #tpu.memory_space<semaphore_mem>> -> memref<!tpu.dma_semaphore, #tpu.memory_space<semaphore_mem>>
      tpu.enqueue_dma source(%384 : memref<128xf32, #tpu.memory_space<any>>) target(%386 : memref<128xf32, #tpu.memory_space<vmem>>) target_semaphore(%388 : memref<!tpu.dma_semaphore, #tpu.memory_space<semaphore_mem>>)
      %c3_i32_273 = arith.constant 3 : i32
      %389 = arith.addi %289, %c3_i32_273 : i32
      %390 = arith.index_cast %389 : i32 to index
      %391 = memref.load %arg2[%390] : memref<24xi32, #tpu.memory_space<smem>>
      %c3_i32_274 = arith.constant 3 : i32
      %c1_i32_275 = arith.constant 1 : i32
      %c0_i32_276 = arith.constant 0 : i32
      %392 = tpu.memref_slice %arg7[%391, %c0_i32_276] : memref<16x128xf32, #tpu.memory_space<any>> -> memref<1x128xf32, #tpu.memory_space<any>>
      %393 = tpu.memref_squeeze %392 : memref<1x128xf32, #tpu.memory_space<any>> -> memref<128xf32, #tpu.memory_space<any>>
      %c0_i32_277 = arith.constant 0 : i32
      %394 = tpu.memref_slice %arg10[%9, %c3_i32_274, %c0_i32_277] : memref<2x8x128xf32, #tpu.memory_space<vmem>> -> memref<1x1x128xf32, #tpu.memory_space<vmem>>
      %395 = tpu.memref_squeeze %394 : memref<1x1x128xf32, #tpu.memory_space<vmem>> -> memref<128xf32, #tpu.memory_space<vmem>>
      %396 = tpu.memref_slice %arg14[%9, %c1_i32_275] : memref<2x5x!tpu.dma_semaphore, #tpu.memory_space<semaphore_mem>> -> memref<1x1x!tpu.dma_semaphore, #tpu.memory_space<semaphore_mem>>
      %397 = tpu.memref_squeeze %396 : memref<1x1x!tpu.dma_semaphore, #tpu.memory_space<semaphore_mem>> -> memref<!tpu.dma_semaphore, #tpu.memory_space<semaphore_mem>>
      tpu.enqueue_dma source(%393 : memref<128xf32, #tpu.memory_space<any>>) target(%395 : memref<128xf32, #tpu.memory_space<vmem>>) target_semaphore(%397 : memref<!tpu.dma_semaphore, #tpu.memory_space<semaphore_mem>>)
      %c4_i32_278 = arith.constant 4 : i32
      %398 = arith.addi %289, %c4_i32_278 : i32
      %399 = arith.index_cast %398 : i32 to index
      %400 = memref.load %arg2[%399] : memref<24xi32, #tpu.memory_space<smem>>
      %c4_i32_279 = arith.constant 4 : i32
      %c1_i32_280 = arith.constant 1 : i32
      %c0_i32_281 = arith.constant 0 : i32
      %401 = tpu.memref_slice %arg7[%400, %c0_i32_281] : memref<16x128xf32, #tpu.memory_space<any>> -> memref<1x128xf32, #tpu.memory_space<any>>
      %402 = tpu.memref_squeeze %401 : memref<1x128xf32, #tpu.memory_space<any>> -> memref<128xf32, #tpu.memory_space<any>>
      %c0_i32_282 = arith.constant 0 : i32
      %403 = tpu.memref_slice %arg10[%9, %c4_i32_279, %c0_i32_282] : memref<2x8x128xf32, #tpu.memory_space<vmem>> -> memref<1x1x128xf32, #tpu.memory_space<vmem>>
      %404 = tpu.memref_squeeze %403 : memref<1x1x128xf32, #tpu.memory_space<vmem>> -> memref<128xf32, #tpu.memory_space<vmem>>
      %405 = tpu.memref_slice %arg14[%9, %c1_i32_280] : memref<2x5x!tpu.dma_semaphore, #tpu.memory_space<semaphore_mem>> -> memref<1x1x!tpu.dma_semaphore, #tpu.memory_space<semaphore_mem>>
      %406 = tpu.memref_squeeze %405 : memref<1x1x!tpu.dma_semaphore, #tpu.memory_space<semaphore_mem>> -> memref<!tpu.dma_semaphore, #tpu.memory_space<semaphore_mem>>
      tpu.enqueue_dma source(%402 : memref<128xf32, #tpu.memory_space<any>>) target(%404 : memref<128xf32, #tpu.memory_space<vmem>>) target_semaphore(%406 : memref<!tpu.dma_semaphore, #tpu.memory_space<semaphore_mem>>)
      %c5_i32_283 = arith.constant 5 : i32
      %407 = arith.addi %289, %c5_i32_283 : i32
      %408 = arith.index_cast %407 : i32 to index
      %409 = memref.load %arg2[%408] : memref<24xi32, #tpu.memory_space<smem>>
      %c5_i32_284 = arith.constant 5 : i32
      %c1_i32_285 = arith.constant 1 : i32
      %c0_i32_286 = arith.constant 0 : i32
      %410 = tpu.memref_slice %arg7[%409, %c0_i32_286] : memref<16x128xf32, #tpu.memory_space<any>> -> memref<1x128xf32, #tpu.memory_space<any>>
      %411 = tpu.memref_squeeze %410 : memref<1x128xf32, #tpu.memory_space<any>> -> memref<128xf32, #tpu.memory_space<any>>
      %c0_i32_287 = arith.constant 0 : i32
      %412 = tpu.memref_slice %arg10[%9, %c5_i32_284, %c0_i32_287] : memref<2x8x128xf32, #tpu.memory_space<vmem>> -> memref<1x1x128xf32, #tpu.memory_space<vmem>>
      %413 = tpu.memref_squeeze %412 : memref<1x1x128xf32, #tpu.memory_space<vmem>> -> memref<128xf32, #tpu.memory_space<vmem>>
      %414 = tpu.memref_slice %arg14[%9, %c1_i32_285] : memref<2x5x!tpu.dma_semaphore, #tpu.memory_space<semaphore_mem>> -> memref<1x1x!tpu.dma_semaphore, #tpu.memory_space<semaphore_mem>>
      %415 = tpu.memref_squeeze %414 : memref<1x1x!tpu.dma_semaphore, #tpu.memory_space<semaphore_mem>> -> memref<!tpu.dma_semaphore, #tpu.memory_space<semaphore_mem>>
      tpu.enqueue_dma source(%411 : memref<128xf32, #tpu.memory_space<any>>) target(%413 : memref<128xf32, #tpu.memory_space<vmem>>) target_semaphore(%415 : memref<!tpu.dma_semaphore, #tpu.memory_space<semaphore_mem>>)
      %c6_i32_288 = arith.constant 6 : i32
      %416 = arith.addi %289, %c6_i32_288 : i32
      %417 = arith.index_cast %416 : i32 to index
      %418 = memref.load %arg2[%417] : memref<24xi32, #tpu.memory_space<smem>>
      %c6_i32_289 = arith.constant 6 : i32
      %c1_i32_290 = arith.constant 1 : i32
      %c0_i32_291 = arith.constant 0 : i32
      %419 = tpu.memref_slice %arg7[%418, %c0_i32_291] : memref<16x128xf32, #tpu.memory_space<any>> -> memref<1x128xf32, #tpu.memory_space<any>>
      %420 = tpu.memref_squeeze %419 : memref<1x128xf32, #tpu.memory_space<any>> -> memref<128xf32, #tpu.memory_space<any>>
      %c0_i32_292 = arith.constant 0 : i32
      %421 = tpu.memref_slice %arg10[%9, %c6_i32_289, %c0_i32_292] : memref<2x8x128xf32, #tpu.memory_space<vmem>> -> memref<1x1x128xf32, #tpu.memory_space<vmem>>
      %422 = tpu.memref_squeeze %421 : memref<1x1x128xf32, #tpu.memory_space<vmem>> -> memref<128xf32, #tpu.memory_space<vmem>>
      %423 = tpu.memref_slice %arg14[%9, %c1_i32_290] : memref<2x5x!tpu.dma_semaphore, #tpu.memory_space<semaphore_mem>> -> memref<1x1x!tpu.dma_semaphore, #tpu.memory_space<semaphore_mem>>
      %424 = tpu.memref_squeeze %423 : memref<1x1x!tpu.dma_semaphore, #tpu.memory_space<semaphore_mem>> -> memref<!tpu.dma_semaphore, #tpu.memory_space<semaphore_mem>>
      tpu.enqueue_dma source(%420 : memref<128xf32, #tpu.memory_space<any>>) target(%422 : memref<128xf32, #tpu.memory_space<vmem>>) target_semaphore(%424 : memref<!tpu.dma_semaphore, #tpu.memory_space<semaphore_mem>>)
      %c7_i32_293 = arith.constant 7 : i32
      %425 = arith.addi %289, %c7_i32_293 : i32
      %426 = arith.index_cast %425 : i32 to index
      %427 = memref.load %arg2[%426] : memref<24xi32, #tpu.memory_space<smem>>
      %c7_i32_294 = arith.constant 7 : i32
      %c1_i32_295 = arith.constant 1 : i32
      %c0_i32_296 = arith.constant 0 : i32
      %428 = tpu.memref_slice %arg7[%427, %c0_i32_296] : memref<16x128xf32, #tpu.memory_space<any>> -> memref<1x128xf32, #tpu.memory_space<any>>
      %429 = tpu.memref_squeeze %428 : memref<1x128xf32, #tpu.memory_space<any>> -> memref<128xf32, #tpu.memory_space<any>>
      %c0_i32_297 = arith.constant 0 : i32
      %430 = tpu.memref_slice %arg10[%9, %c7_i32_294, %c0_i32_297] : memref<2x8x128xf32, #tpu.memory_space<vmem>> -> memref<1x1x128xf32, #tpu.memory_space<vmem>>
      %431 = tpu.memref_squeeze %430 : memref<1x1x128xf32, #tpu.memory_space<vmem>> -> memref<128xf32, #tpu.memory_space<vmem>>
      %432 = tpu.memref_slice %arg14[%9, %c1_i32_295] : memref<2x5x!tpu.dma_semaphore, #tpu.memory_space<semaphore_mem>> -> memref<1x1x!tpu.dma_semaphore, #tpu.memory_space<semaphore_mem>>
      %433 = tpu.memref_squeeze %432 : memref<1x1x!tpu.dma_semaphore, #tpu.memory_space<semaphore_mem>> -> memref<!tpu.dma_semaphore, #tpu.memory_space<semaphore_mem>>
      tpu.enqueue_dma source(%429 : memref<128xf32, #tpu.memory_space<any>>) target(%431 : memref<128xf32, #tpu.memory_space<vmem>>) target_semaphore(%433 : memref<!tpu.dma_semaphore, #tpu.memory_space<semaphore_mem>>)
      %c0_i32_298 = arith.constant 0 : i32
      %434 = arith.addi %289, %c0_i32_298 : i32
      %435 = arith.index_cast %434 : i32 to index
      %436 = memref.load %arg3[%435] : memref<24xi32, #tpu.memory_space<smem>>
      %c0_i32_299 = arith.constant 0 : i32
      %c2_i32_300 = arith.constant 2 : i32
      %c0_i32_301 = arith.constant 0 : i32
      %437 = tpu.memref_slice %arg6[%436, %c0_i32_301] : memref<64x128xf32, #tpu.memory_space<any>> -> memref<1x128xf32, #tpu.memory_space<any>>
      %438 = tpu.memref_squeeze %437 : memref<1x128xf32, #tpu.memory_space<any>> -> memref<128xf32, #tpu.memory_space<any>>
      %c0_i32_302 = arith.constant 0 : i32
      %439 = tpu.memref_slice %arg11[%9, %c0_i32_299, %c0_i32_302] : memref<2x8x128xf32, #tpu.memory_space<vmem>> -> memref<1x1x128xf32, #tpu.memory_space<vmem>>
      %440 = tpu.memref_squeeze %439 : memref<1x1x128xf32, #tpu.memory_space<vmem>> -> memref<128xf32, #tpu.memory_space<vmem>>
      %441 = tpu.memref_slice %arg14[%9, %c2_i32_300] : memref<2x5x!tpu.dma_semaphore, #tpu.memory_space<semaphore_mem>> -> memref<1x1x!tpu.dma_semaphore, #tpu.memory_space<semaphore_mem>>
      %442 = tpu.memref_squeeze %441 : memref<1x1x!tpu.dma_semaphore, #tpu.memory_space<semaphore_mem>> -> memref<!tpu.dma_semaphore, #tpu.memory_space<semaphore_mem>>
      tpu.enqueue_dma source(%438 : memref<128xf32, #tpu.memory_space<any>>) target(%440 : memref<128xf32, #tpu.memory_space<vmem>>) target_semaphore(%442 : memref<!tpu.dma_semaphore, #tpu.memory_space<semaphore_mem>>)
      %c1_i32_303 = arith.constant 1 : i32
      %443 = arith.addi %289, %c1_i32_303 : i32
      %444 = arith.index_cast %443 : i32 to index
      %445 = memref.load %arg3[%444] : memref<24xi32, #tpu.memory_space<smem>>
      %c1_i32_304 = arith.constant 1 : i32
      %c2_i32_305 = arith.constant 2 : i32
      %c0_i32_306 = arith.constant 0 : i32
      %446 = tpu.memref_slice %arg6[%445, %c0_i32_306] : memref<64x128xf32, #tpu.memory_space<any>> -> memref<1x128xf32, #tpu.memory_space<any>>
      %447 = tpu.memref_squeeze %446 : memref<1x128xf32, #tpu.memory_space<any>> -> memref<128xf32, #tpu.memory_space<any>>
      %c0_i32_307 = arith.constant 0 : i32
      %448 = tpu.memref_slice %arg11[%9, %c1_i32_304, %c0_i32_307] : memref<2x8x128xf32, #tpu.memory_space<vmem>> -> memref<1x1x128xf32, #tpu.memory_space<vmem>>
      %449 = tpu.memref_squeeze %448 : memref<1x1x128xf32, #tpu.memory_space<vmem>> -> memref<128xf32, #tpu.memory_space<vmem>>
      %450 = tpu.memref_slice %arg14[%9, %c2_i32_305] : memref<2x5x!tpu.dma_semaphore, #tpu.memory_space<semaphore_mem>> -> memref<1x1x!tpu.dma_semaphore, #tpu.memory_space<semaphore_mem>>
      %451 = tpu.memref_squeeze %450 : memref<1x1x!tpu.dma_semaphore, #tpu.memory_space<semaphore_mem>> -> memref<!tpu.dma_semaphore, #tpu.memory_space<semaphore_mem>>
      tpu.enqueue_dma source(%447 : memref<128xf32, #tpu.memory_space<any>>) target(%449 : memref<128xf32, #tpu.memory_space<vmem>>) target_semaphore(%451 : memref<!tpu.dma_semaphore, #tpu.memory_space<semaphore_mem>>)
      %c2_i32_308 = arith.constant 2 : i32
      %452 = arith.addi %289, %c2_i32_308 : i32
      %453 = arith.index_cast %452 : i32 to index
      %454 = memref.load %arg3[%453] : memref<24xi32, #tpu.memory_space<smem>>
      %c2_i32_309 = arith.constant 2 : i32
      %c2_i32_310 = arith.constant 2 : i32
      %c0_i32_311 = arith.constant 0 : i32
      %455 = tpu.memref_slice %arg6[%454, %c0_i32_311] : memref<64x128xf32, #tpu.memory_space<any>> -> memref<1x128xf32, #tpu.memory_space<any>>
      %456 = tpu.memref_squeeze %455 : memref<1x128xf32, #tpu.memory_space<any>> -> memref<128xf32, #tpu.memory_space<any>>
      %c0_i32_312 = arith.constant 0 : i32
      %457 = tpu.memref_slice %arg11[%9, %c2_i32_309, %c0_i32_312] : memref<2x8x128xf32, #tpu.memory_space<vmem>> -> memref<1x1x128xf32, #tpu.memory_space<vmem>>
      %458 = tpu.memref_squeeze %457 : memref<1x1x128xf32, #tpu.memory_space<vmem>> -> memref<128xf32, #tpu.memory_space<vmem>>
      %459 = tpu.memref_slice %arg14[%9, %c2_i32_310] : memref<2x5x!tpu.dma_semaphore, #tpu.memory_space<semaphore_mem>> -> memref<1x1x!tpu.dma_semaphore, #tpu.memory_space<semaphore_mem>>
      %460 = tpu.memref_squeeze %459 : memref<1x1x!tpu.dma_semaphore, #tpu.memory_space<semaphore_mem>> -> memref<!tpu.dma_semaphore, #tpu.memory_space<semaphore_mem>>
      tpu.enqueue_dma source(%456 : memref<128xf32, #tpu.memory_space<any>>) target(%458 : memref<128xf32, #tpu.memory_space<vmem>>) target_semaphore(%460 : memref<!tpu.dma_semaphore, #tpu.memory_space<semaphore_mem>>)
      %c3_i32_313 = arith.constant 3 : i32
      %461 = arith.addi %289, %c3_i32_313 : i32
      %462 = arith.index_cast %461 : i32 to index
      %463 = memref.load %arg3[%462] : memref<24xi32, #tpu.memory_space<smem>>
      %c3_i32_314 = arith.constant 3 : i32
      %c2_i32_315 = arith.constant 2 : i32
      %c0_i32_316 = arith.constant 0 : i32
      %464 = tpu.memref_slice %arg6[%463, %c0_i32_316] : memref<64x128xf32, #tpu.memory_space<any>> -> memref<1x128xf32, #tpu.memory_space<any>>
      %465 = tpu.memref_squeeze %464 : memref<1x128xf32, #tpu.memory_space<any>> -> memref<128xf32, #tpu.memory_space<any>>
      %c0_i32_317 = arith.constant 0 : i32
      %466 = tpu.memref_slice %arg11[%9, %c3_i32_314, %c0_i32_317] : memref<2x8x128xf32, #tpu.memory_space<vmem>> -> memref<1x1x128xf32, #tpu.memory_space<vmem>>
      %467 = tpu.memref_squeeze %466 : memref<1x1x128xf32, #tpu.memory_space<vmem>> -> memref<128xf32, #tpu.memory_space<vmem>>
      %468 = tpu.memref_slice %arg14[%9, %c2_i32_315] : memref<2x5x!tpu.dma_semaphore, #tpu.memory_space<semaphore_mem>> -> memref<1x1x!tpu.dma_semaphore, #tpu.memory_space<semaphore_mem>>
      %469 = tpu.memref_squeeze %468 : memref<1x1x!tpu.dma_semaphore, #tpu.memory_space<semaphore_mem>> -> memref<!tpu.dma_semaphore, #tpu.memory_space<semaphore_mem>>
      tpu.enqueue_dma source(%465 : memref<128xf32, #tpu.memory_space<any>>) target(%467 : memref<128xf32, #tpu.memory_space<vmem>>) target_semaphore(%469 : memref<!tpu.dma_semaphore, #tpu.memory_space<semaphore_mem>>)
      %c4_i32_318 = arith.constant 4 : i32
      %470 = arith.addi %289, %c4_i32_318 : i32
      %471 = arith.index_cast %470 : i32 to index
      %472 = memref.load %arg3[%471] : memref<24xi32, #tpu.memory_space<smem>>
      %c4_i32_319 = arith.constant 4 : i32
      %c2_i32_320 = arith.constant 2 : i32
      %c0_i32_321 = arith.constant 0 : i32
      %473 = tpu.memref_slice %arg6[%472, %c0_i32_321] : memref<64x128xf32, #tpu.memory_space<any>> -> memref<1x128xf32, #tpu.memory_space<any>>
      %474 = tpu.memref_squeeze %473 : memref<1x128xf32, #tpu.memory_space<any>> -> memref<128xf32, #tpu.memory_space<any>>
      %c0_i32_322 = arith.constant 0 : i32
      %475 = tpu.memref_slice %arg11[%9, %c4_i32_319, %c0_i32_322] : memref<2x8x128xf32, #tpu.memory_space<vmem>> -> memref<1x1x128xf32, #tpu.memory_space<vmem>>
      %476 = tpu.memref_squeeze %475 : memref<1x1x128xf32, #tpu.memory_space<vmem>> -> memref<128xf32, #tpu.memory_space<vmem>>
      %477 = tpu.memref_slice %arg14[%9, %c2_i32_320] : memref<2x5x!tpu.dma_semaphore, #tpu.memory_space<semaphore_mem>> -> memref<1x1x!tpu.dma_semaphore, #tpu.memory_space<semaphore_mem>>
      %478 = tpu.memref_squeeze %477 : memref<1x1x!tpu.dma_semaphore, #tpu.memory_space<semaphore_mem>> -> memref<!tpu.dma_semaphore, #tpu.memory_space<semaphore_mem>>
      tpu.enqueue_dma source(%474 : memref<128xf32, #tpu.memory_space<any>>) target(%476 : memref<128xf32, #tpu.memory_space<vmem>>) target_semaphore(%478 : memref<!tpu.dma_semaphore, #tpu.memory_space<semaphore_mem>>)
      %c5_i32_323 = arith.constant 5 : i32
      %479 = arith.addi %289, %c5_i32_323 : i32
      %480 = arith.index_cast %479 : i32 to index
      %481 = memref.load %arg3[%480] : memref<24xi32, #tpu.memory_space<smem>>
      %c5_i32_324 = arith.constant 5 : i32
      %c2_i32_325 = arith.constant 2 : i32
      %c0_i32_326 = arith.constant 0 : i32
      %482 = tpu.memref_slice %arg6[%481, %c0_i32_326] : memref<64x128xf32, #tpu.memory_space<any>> -> memref<1x128xf32, #tpu.memory_space<any>>
      %483 = tpu.memref_squeeze %482 : memref<1x128xf32, #tpu.memory_space<any>> -> memref<128xf32, #tpu.memory_space<any>>
      %c0_i32_327 = arith.constant 0 : i32
      %484 = tpu.memref_slice %arg11[%9, %c5_i32_324, %c0_i32_327] : memref<2x8x128xf32, #tpu.memory_space<vmem>> -> memref<1x1x128xf32, #tpu.memory_space<vmem>>
      %485 = tpu.memref_squeeze %484 : memref<1x1x128xf32, #tpu.memory_space<vmem>> -> memref<128xf32, #tpu.memory_space<vmem>>
      %486 = tpu.memref_slice %arg14[%9, %c2_i32_325] : memref<2x5x!tpu.dma_semaphore, #tpu.memory_space<semaphore_mem>> -> memref<1x1x!tpu.dma_semaphore, #tpu.memory_space<semaphore_mem>>
      %487 = tpu.memref_squeeze %486 : memref<1x1x!tpu.dma_semaphore, #tpu.memory_space<semaphore_mem>> -> memref<!tpu.dma_semaphore, #tpu.memory_space<semaphore_mem>>
      tpu.enqueue_dma source(%483 : memref<128xf32, #tpu.memory_space<any>>) target(%485 : memref<128xf32, #tpu.memory_space<vmem>>) target_semaphore(%487 : memref<!tpu.dma_semaphore, #tpu.memory_space<semaphore_mem>>)
      %c6_i32_328 = arith.constant 6 : i32
      %488 = arith.addi %289, %c6_i32_328 : i32
      %489 = arith.index_cast %488 : i32 to index
      %490 = memref.load %arg3[%489] : memref<24xi32, #tpu.memory_space<smem>>
      %c6_i32_329 = arith.constant 6 : i32
      %c2_i32_330 = arith.constant 2 : i32
      %c0_i32_331 = arith.constant 0 : i32
      %491 = tpu.memref_slice %arg6[%490, %c0_i32_331] : memref<64x128xf32, #tpu.memory_space<any>> -> memref<1x128xf32, #tpu.memory_space<any>>
      %492 = tpu.memref_squeeze %491 : memref<1x128xf32, #tpu.memory_space<any>> -> memref<128xf32, #tpu.memory_space<any>>
      %c0_i32_332 = arith.constant 0 : i32
      %493 = tpu.memref_slice %arg11[%9, %c6_i32_329, %c0_i32_332] : memref<2x8x128xf32, #tpu.memory_space<vmem>> -> memref<1x1x128xf32, #tpu.memory_space<vmem>>
      %494 = tpu.memref_squeeze %493 : memref<1x1x128xf32, #tpu.memory_space<vmem>> -> memref<128xf32, #tpu.memory_space<vmem>>
      %495 = tpu.memref_slice %arg14[%9, %c2_i32_330] : memref<2x5x!tpu.dma_semaphore, #tpu.memory_space<semaphore_mem>> -> memref<1x1x!tpu.dma_semaphore, #tpu.memory_space<semaphore_mem>>
      %496 = tpu.memref_squeeze %495 : memref<1x1x!tpu.dma_semaphore, #tpu.memory_space<semaphore_mem>> -> memref<!tpu.dma_semaphore, #tpu.memory_space<semaphore_mem>>
      tpu.enqueue_dma source(%492 : memref<128xf32, #tpu.memory_space<any>>) target(%494 : memref<128xf32, #tpu.memory_space<vmem>>) target_semaphore(%496 : memref<!tpu.dma_semaphore, #tpu.memory_space<semaphore_mem>>)
      %c7_i32_333 = arith.constant 7 : i32
      %497 = arith.addi %289, %c7_i32_333 : i32
      %498 = arith.index_cast %497 : i32 to index
      %499 = memref.load %arg3[%498] : memref<24xi32, #tpu.memory_space<smem>>
      %c7_i32_334 = arith.constant 7 : i32
      %c2_i32_335 = arith.constant 2 : i32
      %c0_i32_336 = arith.constant 0 : i32
      %500 = tpu.memref_slice %arg6[%499, %c0_i32_336] : memref<64x128xf32, #tpu.memory_space<any>> -> memref<1x128xf32, #tpu.memory_space<any>>
      %501 = tpu.memref_squeeze %500 : memref<1x128xf32, #tpu.memory_space<any>> -> memref<128xf32, #tpu.memory_space<any>>
      %c0_i32_337 = arith.constant 0 : i32
      %502 = tpu.memref_slice %arg11[%9, %c7_i32_334, %c0_i32_337] : memref<2x8x128xf32, #tpu.memory_space<vmem>> -> memref<1x1x128xf32, #tpu.memory_space<vmem>>
      %503 = tpu.memref_squeeze %502 : memref<1x1x128xf32, #tpu.memory_space<vmem>> -> memref<128xf32, #tpu.memory_space<vmem>>
      %504 = tpu.memref_slice %arg14[%9, %c2_i32_335] : memref<2x5x!tpu.dma_semaphore, #tpu.memory_space<semaphore_mem>> -> memref<1x1x!tpu.dma_semaphore, #tpu.memory_space<semaphore_mem>>
      %505 = tpu.memref_squeeze %504 : memref<1x1x!tpu.dma_semaphore, #tpu.memory_space<semaphore_mem>> -> memref<!tpu.dma_semaphore, #tpu.memory_space<semaphore_mem>>
      tpu.enqueue_dma source(%501 : memref<128xf32, #tpu.memory_space<any>>) target(%503 : memref<128xf32, #tpu.memory_space<vmem>>) target_semaphore(%505 : memref<!tpu.dma_semaphore, #tpu.memory_space<semaphore_mem>>)
      %c0_i32_338 = arith.constant 0 : i32
      %506 = arith.addi %289, %c0_i32_338 : i32
      %507 = arith.index_cast %506 : i32 to index
      %508 = memref.load %arg4[%507] : memref<24xi32, #tpu.memory_space<smem>>
      %c0_i32_339 = arith.constant 0 : i32
      %c3_i32_340 = arith.constant 3 : i32
      %c0_i32_341 = arith.constant 0 : i32
      %509 = tpu.memref_slice %arg6[%508, %c0_i32_341] : memref<64x128xf32, #tpu.memory_space<any>> -> memref<1x128xf32, #tpu.memory_space<any>>
      %510 = tpu.memref_squeeze %509 : memref<1x128xf32, #tpu.memory_space<any>> -> memref<128xf32, #tpu.memory_space<any>>
      %c0_i32_342 = arith.constant 0 : i32
      %511 = tpu.memref_slice %arg12[%9, %c0_i32_339, %c0_i32_342] : memref<2x8x128xf32, #tpu.memory_space<vmem>> -> memref<1x1x128xf32, #tpu.memory_space<vmem>>
      %512 = tpu.memref_squeeze %511 : memref<1x1x128xf32, #tpu.memory_space<vmem>> -> memref<128xf32, #tpu.memory_space<vmem>>
      %513 = tpu.memref_slice %arg14[%9, %c3_i32_340] : memref<2x5x!tpu.dma_semaphore, #tpu.memory_space<semaphore_mem>> -> memref<1x1x!tpu.dma_semaphore, #tpu.memory_space<semaphore_mem>>
      %514 = tpu.memref_squeeze %513 : memref<1x1x!tpu.dma_semaphore, #tpu.memory_space<semaphore_mem>> -> memref<!tpu.dma_semaphore, #tpu.memory_space<semaphore_mem>>
      tpu.enqueue_dma source(%510 : memref<128xf32, #tpu.memory_space<any>>) target(%512 : memref<128xf32, #tpu.memory_space<vmem>>) target_semaphore(%514 : memref<!tpu.dma_semaphore, #tpu.memory_space<semaphore_mem>>)
      %c1_i32_343 = arith.constant 1 : i32
      %515 = arith.addi %289, %c1_i32_343 : i32
      %516 = arith.index_cast %515 : i32 to index
      %517 = memref.load %arg4[%516] : memref<24xi32, #tpu.memory_space<smem>>
      %c1_i32_344 = arith.constant 1 : i32
      %c3_i32_345 = arith.constant 3 : i32
      %c0_i32_346 = arith.constant 0 : i32
      %518 = tpu.memref_slice %arg6[%517, %c0_i32_346] : memref<64x128xf32, #tpu.memory_space<any>> -> memref<1x128xf32, #tpu.memory_space<any>>
      %519 = tpu.memref_squeeze %518 : memref<1x128xf32, #tpu.memory_space<any>> -> memref<128xf32, #tpu.memory_space<any>>
      %c0_i32_347 = arith.constant 0 : i32
      %520 = tpu.memref_slice %arg12[%9, %c1_i32_344, %c0_i32_347] : memref<2x8x128xf32, #tpu.memory_space<vmem>> -> memref<1x1x128xf32, #tpu.memory_space<vmem>>
      %521 = tpu.memref_squeeze %520 : memref<1x1x128xf32, #tpu.memory_space<vmem>> -> memref<128xf32, #tpu.memory_space<vmem>>
      %522 = tpu.memref_slice %arg14[%9, %c3_i32_345] : memref<2x5x!tpu.dma_semaphore, #tpu.memory_space<semaphore_mem>> -> memref<1x1x!tpu.dma_semaphore, #tpu.memory_space<semaphore_mem>>
      %523 = tpu.memref_squeeze %522 : memref<1x1x!tpu.dma_semaphore, #tpu.memory_space<semaphore_mem>> -> memref<!tpu.dma_semaphore, #tpu.memory_space<semaphore_mem>>
      tpu.enqueue_dma source(%519 : memref<128xf32, #tpu.memory_space<any>>) target(%521 : memref<128xf32, #tpu.memory_space<vmem>>) target_semaphore(%523 : memref<!tpu.dma_semaphore, #tpu.memory_space<semaphore_mem>>)
      %c2_i32_348 = arith.constant 2 : i32
      %524 = arith.addi %289, %c2_i32_348 : i32
      %525 = arith.index_cast %524 : i32 to index
      %526 = memref.load %arg4[%525] : memref<24xi32, #tpu.memory_space<smem>>
      %c2_i32_349 = arith.constant 2 : i32
      %c3_i32_350 = arith.constant 3 : i32
      %c0_i32_351 = arith.constant 0 : i32
      %527 = tpu.memref_slice %arg6[%526, %c0_i32_351] : memref<64x128xf32, #tpu.memory_space<any>> -> memref<1x128xf32, #tpu.memory_space<any>>
      %528 = tpu.memref_squeeze %527 : memref<1x128xf32, #tpu.memory_space<any>> -> memref<128xf32, #tpu.memory_space<any>>
      %c0_i32_352 = arith.constant 0 : i32
      %529 = tpu.memref_slice %arg12[%9, %c2_i32_349, %c0_i32_352] : memref<2x8x128xf32, #tpu.memory_space<vmem>> -> memref<1x1x128xf32, #tpu.memory_space<vmem>>
      %530 = tpu.memref_squeeze %529 : memref<1x1x128xf32, #tpu.memory_space<vmem>> -> memref<128xf32, #tpu.memory_space<vmem>>
      %531 = tpu.memref_slice %arg14[%9, %c3_i32_350] : memref<2x5x!tpu.dma_semaphore, #tpu.memory_space<semaphore_mem>> -> memref<1x1x!tpu.dma_semaphore, #tpu.memory_space<semaphore_mem>>
      %532 = tpu.memref_squeeze %531 : memref<1x1x!tpu.dma_semaphore, #tpu.memory_space<semaphore_mem>> -> memref<!tpu.dma_semaphore, #tpu.memory_space<semaphore_mem>>
      tpu.enqueue_dma source(%528 : memref<128xf32, #tpu.memory_space<any>>) target(%530 : memref<128xf32, #tpu.memory_space<vmem>>) target_semaphore(%532 : memref<!tpu.dma_semaphore, #tpu.memory_space<semaphore_mem>>)
      %c3_i32_353 = arith.constant 3 : i32
      %533 = arith.addi %289, %c3_i32_353 : i32
      %534 = arith.index_cast %533 : i32 to index
      %535 = memref.load %arg4[%534] : memref<24xi32, #tpu.memory_space<smem>>
      %c3_i32_354 = arith.constant 3 : i32
      %c3_i32_355 = arith.constant 3 : i32
      %c0_i32_356 = arith.constant 0 : i32
      %536 = tpu.memref_slice %arg6[%535, %c0_i32_356] : memref<64x128xf32, #tpu.memory_space<any>> -> memref<1x128xf32, #tpu.memory_space<any>>
      %537 = tpu.memref_squeeze %536 : memref<1x128xf32, #tpu.memory_space<any>> -> memref<128xf32, #tpu.memory_space<any>>
      %c0_i32_357 = arith.constant 0 : i32
      %538 = tpu.memref_slice %arg12[%9, %c3_i32_354, %c0_i32_357] : memref<2x8x128xf32, #tpu.memory_space<vmem>> -> memref<1x1x128xf32, #tpu.memory_space<vmem>>
      %539 = tpu.memref_squeeze %538 : memref<1x1x128xf32, #tpu.memory_space<vmem>> -> memref<128xf32, #tpu.memory_space<vmem>>
      %540 = tpu.memref_slice %arg14[%9, %c3_i32_355] : memref<2x5x!tpu.dma_semaphore, #tpu.memory_space<semaphore_mem>> -> memref<1x1x!tpu.dma_semaphore, #tpu.memory_space<semaphore_mem>>
      %541 = tpu.memref_squeeze %540 : memref<1x1x!tpu.dma_semaphore, #tpu.memory_space<semaphore_mem>> -> memref<!tpu.dma_semaphore, #tpu.memory_space<semaphore_mem>>
      tpu.enqueue_dma source(%537 : memref<128xf32, #tpu.memory_space<any>>) target(%539 : memref<128xf32, #tpu.memory_space<vmem>>) target_semaphore(%541 : memref<!tpu.dma_semaphore, #tpu.memory_space<semaphore_mem>>)
      %c4_i32_358 = arith.constant 4 : i32
      %542 = arith.addi %289, %c4_i32_358 : i32
      %543 = arith.index_cast %542 : i32 to index
      %544 = memref.load %arg4[%543] : memref<24xi32, #tpu.memory_space<smem>>
      %c4_i32_359 = arith.constant 4 : i32
      %c3_i32_360 = arith.constant 3 : i32
      %c0_i32_361 = arith.constant 0 : i32
      %545 = tpu.memref_slice %arg6[%544, %c0_i32_361] : memref<64x128xf32, #tpu.memory_space<any>> -> memref<1x128xf32, #tpu.memory_space<any>>
      %546 = tpu.memref_squeeze %545 : memref<1x128xf32, #tpu.memory_space<any>> -> memref<128xf32, #tpu.memory_space<any>>
      %c0_i32_362 = arith.constant 0 : i32
      %547 = tpu.memref_slice %arg12[%9, %c4_i32_359, %c0_i32_362] : memref<2x8x128xf32, #tpu.memory_space<vmem>> -> memref<1x1x128xf32, #tpu.memory_space<vmem>>
      %548 = tpu.memref_squeeze %547 : memref<1x1x128xf32, #tpu.memory_space<vmem>> -> memref<128xf32, #tpu.memory_space<vmem>>
      %549 = tpu.memref_slice %arg14[%9, %c3_i32_360] : memref<2x5x!tpu.dma_semaphore, #tpu.memory_space<semaphore_mem>> -> memref<1x1x!tpu.dma_semaphore, #tpu.memory_space<semaphore_mem>>
      %550 = tpu.memref_squeeze %549 : memref<1x1x!tpu.dma_semaphore, #tpu.memory_space<semaphore_mem>> -> memref<!tpu.dma_semaphore, #tpu.memory_space<semaphore_mem>>
      tpu.enqueue_dma source(%546 : memref<128xf32, #tpu.memory_space<any>>) target(%548 : memref<128xf32, #tpu.memory_space<vmem>>) target_semaphore(%550 : memref<!tpu.dma_semaphore, #tpu.memory_space<semaphore_mem>>)
      %c5_i32_363 = arith.constant 5 : i32
      %551 = arith.addi %289, %c5_i32_363 : i32
      %552 = arith.index_cast %551 : i32 to index
      %553 = memref.load %arg4[%552] : memref<24xi32, #tpu.memory_space<smem>>
      %c5_i32_364 = arith.constant 5 : i32
      %c3_i32_365 = arith.constant 3 : i32
      %c0_i32_366 = arith.constant 0 : i32
      %554 = tpu.memref_slice %arg6[%553, %c0_i32_366] : memref<64x128xf32, #tpu.memory_space<any>> -> memref<1x128xf32, #tpu.memory_space<any>>
      %555 = tpu.memref_squeeze %554 : memref<1x128xf32, #tpu.memory_space<any>> -> memref<128xf32, #tpu.memory_space<any>>
      %c0_i32_367 = arith.constant 0 : i32
      %556 = tpu.memref_slice %arg12[%9, %c5_i32_364, %c0_i32_367] : memref<2x8x128xf32, #tpu.memory_space<vmem>> -> memref<1x1x128xf32, #tpu.memory_space<vmem>>
      %557 = tpu.memref_squeeze %556 : memref<1x1x128xf32, #tpu.memory_space<vmem>> -> memref<128xf32, #tpu.memory_space<vmem>>
      %558 = tpu.memref_slice %arg14[%9, %c3_i32_365] : memref<2x5x!tpu.dma_semaphore, #tpu.memory_space<semaphore_mem>> -> memref<1x1x!tpu.dma_semaphore, #tpu.memory_space<semaphore_mem>>
      %559 = tpu.memref_squeeze %558 : memref<1x1x!tpu.dma_semaphore, #tpu.memory_space<semaphore_mem>> -> memref<!tpu.dma_semaphore, #tpu.memory_space<semaphore_mem>>
      tpu.enqueue_dma source(%555 : memref<128xf32, #tpu.memory_space<any>>) target(%557 : memref<128xf32, #tpu.memory_space<vmem>>) target_semaphore(%559 : memref<!tpu.dma_semaphore, #tpu.memory_space<semaphore_mem>>)
      %c6_i32_368 = arith.constant 6 : i32
      %560 = arith.addi %289, %c6_i32_368 : i32
      %561 = arith.index_cast %560 : i32 to index
      %562 = memref.load %arg4[%561] : memref<24xi32, #tpu.memory_space<smem>>
      %c6_i32_369 = arith.constant 6 : i32
      %c3_i32_370 = arith.constant 3 : i32
      %c0_i32_371 = arith.constant 0 : i32
      %563 = tpu.memref_slice %arg6[%562, %c0_i32_371] : memref<64x128xf32, #tpu.memory_space<any>> -> memref<1x128xf32, #tpu.memory_space<any>>
      %564 = tpu.memref_squeeze %563 : memref<1x128xf32, #tpu.memory_space<any>> -> memref<128xf32, #tpu.memory_space<any>>
      %c0_i32_372 = arith.constant 0 : i32
      %565 = tpu.memref_slice %arg12[%9, %c6_i32_369, %c0_i32_372] : memref<2x8x128xf32, #tpu.memory_space<vmem>> -> memref<1x1x128xf32, #tpu.memory_space<vmem>>
      %566 = tpu.memref_squeeze %565 : memref<1x1x128xf32, #tpu.memory_space<vmem>> -> memref<128xf32, #tpu.memory_space<vmem>>
      %567 = tpu.memref_slice %arg14[%9, %c3_i32_370] : memref<2x5x!tpu.dma_semaphore, #tpu.memory_space<semaphore_mem>> -> memref<1x1x!tpu.dma_semaphore, #tpu.memory_space<semaphore_mem>>
      %568 = tpu.memref_squeeze %567 : memref<1x1x!tpu.dma_semaphore, #tpu.memory_space<semaphore_mem>> -> memref<!tpu.dma_semaphore, #tpu.memory_space<semaphore_mem>>
      tpu.enqueue_dma source(%564 : memref<128xf32, #tpu.memory_space<any>>) target(%566 : memref<128xf32, #tpu.memory_space<vmem>>) target_semaphore(%568 : memref<!tpu.dma_semaphore, #tpu.memory_space<semaphore_mem>>)
      %c7_i32_373 = arith.constant 7 : i32
      %569 = arith.addi %289, %c7_i32_373 : i32
      %570 = arith.index_cast %569 : i32 to index
      %571 = memref.load %arg4[%570] : memref<24xi32, #tpu.memory_space<smem>>
      %c7_i32_374 = arith.constant 7 : i32
      %c3_i32_375 = arith.constant 3 : i32
      %c0_i32_376 = arith.constant 0 : i32
      %572 = tpu.memref_slice %arg6[%571, %c0_i32_376] : memref<64x128xf32, #tpu.memory_space<any>> -> memref<1x128xf32, #tpu.memory_space<any>>
      %573 = tpu.memref_squeeze %572 : memref<1x128xf32, #tpu.memory_space<any>> -> memref<128xf32, #tpu.memory_space<any>>
      %c0_i32_377 = arith.constant 0 : i32
      %574 = tpu.memref_slice %arg12[%9, %c7_i32_374, %c0_i32_377] : memref<2x8x128xf32, #tpu.memory_space<vmem>> -> memref<1x1x128xf32, #tpu.memory_space<vmem>>
      %575 = tpu.memref_squeeze %574 : memref<1x1x128xf32, #tpu.memory_space<vmem>> -> memref<128xf32, #tpu.memory_space<vmem>>
      %576 = tpu.memref_slice %arg14[%9, %c3_i32_375] : memref<2x5x!tpu.dma_semaphore, #tpu.memory_space<semaphore_mem>> -> memref<1x1x!tpu.dma_semaphore, #tpu.memory_space<semaphore_mem>>
      %577 = tpu.memref_squeeze %576 : memref<1x1x!tpu.dma_semaphore, #tpu.memory_space<semaphore_mem>> -> memref<!tpu.dma_semaphore, #tpu.memory_space<semaphore_mem>>
      tpu.enqueue_dma source(%573 : memref<128xf32, #tpu.memory_space<any>>) target(%575 : memref<128xf32, #tpu.memory_space<vmem>>) target_semaphore(%577 : memref<!tpu.dma_semaphore, #tpu.memory_space<semaphore_mem>>)
      %c0_i32_378 = arith.constant 0 : i32
      %578 = arith.addi %289, %c0_i32_378 : i32
      %579 = arith.index_cast %578 : i32 to index
      %580 = memref.load %arg5[%579] : memref<24xi32, #tpu.memory_space<smem>>
      %c0_i32_379 = arith.constant 0 : i32
      %c4_i32_380 = arith.constant 4 : i32
      %c0_i32_381 = arith.constant 0 : i32
      %581 = tpu.memref_slice %arg6[%580, %c0_i32_381] : memref<64x128xf32, #tpu.memory_space<any>> -> memref<1x128xf32, #tpu.memory_space<any>>
      %582 = tpu.memref_squeeze %581 : memref<1x128xf32, #tpu.memory_space<any>> -> memref<128xf32, #tpu.memory_space<any>>
      %c0_i32_382 = arith.constant 0 : i32
      %583 = tpu.memref_slice %arg13[%9, %c0_i32_379, %c0_i32_382] : memref<2x8x128xf32, #tpu.memory_space<vmem>> -> memref<1x1x128xf32, #tpu.memory_space<vmem>>
      %584 = tpu.memref_squeeze %583 : memref<1x1x128xf32, #tpu.memory_space<vmem>> -> memref<128xf32, #tpu.memory_space<vmem>>
      %585 = tpu.memref_slice %arg14[%9, %c4_i32_380] : memref<2x5x!tpu.dma_semaphore, #tpu.memory_space<semaphore_mem>> -> memref<1x1x!tpu.dma_semaphore, #tpu.memory_space<semaphore_mem>>
      %586 = tpu.memref_squeeze %585 : memref<1x1x!tpu.dma_semaphore, #tpu.memory_space<semaphore_mem>> -> memref<!tpu.dma_semaphore, #tpu.memory_space<semaphore_mem>>
      tpu.enqueue_dma source(%582 : memref<128xf32, #tpu.memory_space<any>>) target(%584 : memref<128xf32, #tpu.memory_space<vmem>>) target_semaphore(%586 : memref<!tpu.dma_semaphore, #tpu.memory_space<semaphore_mem>>)
      %c1_i32_383 = arith.constant 1 : i32
      %587 = arith.addi %289, %c1_i32_383 : i32
      %588 = arith.index_cast %587 : i32 to index
      %589 = memref.load %arg5[%588] : memref<24xi32, #tpu.memory_space<smem>>
      %c1_i32_384 = arith.constant 1 : i32
      %c4_i32_385 = arith.constant 4 : i32
      %c0_i32_386 = arith.constant 0 : i32
      %590 = tpu.memref_slice %arg6[%589, %c0_i32_386] : memref<64x128xf32, #tpu.memory_space<any>> -> memref<1x128xf32, #tpu.memory_space<any>>
      %591 = tpu.memref_squeeze %590 : memref<1x128xf32, #tpu.memory_space<any>> -> memref<128xf32, #tpu.memory_space<any>>
      %c0_i32_387 = arith.constant 0 : i32
      %592 = tpu.memref_slice %arg13[%9, %c1_i32_384, %c0_i32_387] : memref<2x8x128xf32, #tpu.memory_space<vmem>> -> memref<1x1x128xf32, #tpu.memory_space<vmem>>
      %593 = tpu.memref_squeeze %592 : memref<1x1x128xf32, #tpu.memory_space<vmem>> -> memref<128xf32, #tpu.memory_space<vmem>>
      %594 = tpu.memref_slice %arg14[%9, %c4_i32_385] : memref<2x5x!tpu.dma_semaphore, #tpu.memory_space<semaphore_mem>> -> memref<1x1x!tpu.dma_semaphore, #tpu.memory_space<semaphore_mem>>
      %595 = tpu.memref_squeeze %594 : memref<1x1x!tpu.dma_semaphore, #tpu.memory_space<semaphore_mem>> -> memref<!tpu.dma_semaphore, #tpu.memory_space<semaphore_mem>>
      tpu.enqueue_dma source(%591 : memref<128xf32, #tpu.memory_space<any>>) target(%593 : memref<128xf32, #tpu.memory_space<vmem>>) target_semaphore(%595 : memref<!tpu.dma_semaphore, #tpu.memory_space<semaphore_mem>>)
      %c2_i32_388 = arith.constant 2 : i32
      %596 = arith.addi %289, %c2_i32_388 : i32
      %597 = arith.index_cast %596 : i32 to index
      %598 = memref.load %arg5[%597] : memref<24xi32, #tpu.memory_space<smem>>
      %c2_i32_389 = arith.constant 2 : i32
      %c4_i32_390 = arith.constant 4 : i32
      %c0_i32_391 = arith.constant 0 : i32
      %599 = tpu.memref_slice %arg6[%598, %c0_i32_391] : memref<64x128xf32, #tpu.memory_space<any>> -> memref<1x128xf32, #tpu.memory_space<any>>
      %600 = tpu.memref_squeeze %599 : memref<1x128xf32, #tpu.memory_space<any>> -> memref<128xf32, #tpu.memory_space<any>>
      %c0_i32_392 = arith.constant 0 : i32
      %601 = tpu.memref_slice %arg13[%9, %c2_i32_389, %c0_i32_392] : memref<2x8x128xf32, #tpu.memory_space<vmem>> -> memref<1x1x128xf32, #tpu.memory_space<vmem>>
      %602 = tpu.memref_squeeze %601 : memref<1x1x128xf32, #tpu.memory_space<vmem>> -> memref<128xf32, #tpu.memory_space<vmem>>
      %603 = tpu.memref_slice %arg14[%9, %c4_i32_390] : memref<2x5x!tpu.dma_semaphore, #tpu.memory_space<semaphore_mem>> -> memref<1x1x!tpu.dma_semaphore, #tpu.memory_space<semaphore_mem>>
      %604 = tpu.memref_squeeze %603 : memref<1x1x!tpu.dma_semaphore, #tpu.memory_space<semaphore_mem>> -> memref<!tpu.dma_semaphore, #tpu.memory_space<semaphore_mem>>
      tpu.enqueue_dma source(%600 : memref<128xf32, #tpu.memory_space<any>>) target(%602 : memref<128xf32, #tpu.memory_space<vmem>>) target_semaphore(%604 : memref<!tpu.dma_semaphore, #tpu.memory_space<semaphore_mem>>)
      %c3_i32_393 = arith.constant 3 : i32
      %605 = arith.addi %289, %c3_i32_393 : i32
      %606 = arith.index_cast %605 : i32 to index
      %607 = memref.load %arg5[%606] : memref<24xi32, #tpu.memory_space<smem>>
      %c3_i32_394 = arith.constant 3 : i32
      %c4_i32_395 = arith.constant 4 : i32
      %c0_i32_396 = arith.constant 0 : i32
      %608 = tpu.memref_slice %arg6[%607, %c0_i32_396] : memref<64x128xf32, #tpu.memory_space<any>> -> memref<1x128xf32, #tpu.memory_space<any>>
      %609 = tpu.memref_squeeze %608 : memref<1x128xf32, #tpu.memory_space<any>> -> memref<128xf32, #tpu.memory_space<any>>
      %c0_i32_397 = arith.constant 0 : i32
      %610 = tpu.memref_slice %arg13[%9, %c3_i32_394, %c0_i32_397] : memref<2x8x128xf32, #tpu.memory_space<vmem>> -> memref<1x1x128xf32, #tpu.memory_space<vmem>>
      %611 = tpu.memref_squeeze %610 : memref<1x1x128xf32, #tpu.memory_space<vmem>> -> memref<128xf32, #tpu.memory_space<vmem>>
      %612 = tpu.memref_slice %arg14[%9, %c4_i32_395] : memref<2x5x!tpu.dma_semaphore, #tpu.memory_space<semaphore_mem>> -> memref<1x1x!tpu.dma_semaphore, #tpu.memory_space<semaphore_mem>>
      %613 = tpu.memref_squeeze %612 : memref<1x1x!tpu.dma_semaphore, #tpu.memory_space<semaphore_mem>> -> memref<!tpu.dma_semaphore, #tpu.memory_space<semaphore_mem>>
      tpu.enqueue_dma source(%609 : memref<128xf32, #tpu.memory_space<any>>) target(%611 : memref<128xf32, #tpu.memory_space<vmem>>) target_semaphore(%613 : memref<!tpu.dma_semaphore, #tpu.memory_space<semaphore_mem>>)
      %c4_i32_398 = arith.constant 4 : i32
      %614 = arith.addi %289, %c4_i32_398 : i32
      %615 = arith.index_cast %614 : i32 to index
      %616 = memref.load %arg5[%615] : memref<24xi32, #tpu.memory_space<smem>>
      %c4_i32_399 = arith.constant 4 : i32
      %c4_i32_400 = arith.constant 4 : i32
      %c0_i32_401 = arith.constant 0 : i32
      %617 = tpu.memref_slice %arg6[%616, %c0_i32_401] : memref<64x128xf32, #tpu.memory_space<any>> -> memref<1x128xf32, #tpu.memory_space<any>>
      %618 = tpu.memref_squeeze %617 : memref<1x128xf32, #tpu.memory_space<any>> -> memref<128xf32, #tpu.memory_space<any>>
      %c0_i32_402 = arith.constant 0 : i32
      %619 = tpu.memref_slice %arg13[%9, %c4_i32_399, %c0_i32_402] : memref<2x8x128xf32, #tpu.memory_space<vmem>> -> memref<1x1x128xf32, #tpu.memory_space<vmem>>
      %620 = tpu.memref_squeeze %619 : memref<1x1x128xf32, #tpu.memory_space<vmem>> -> memref<128xf32, #tpu.memory_space<vmem>>
      %621 = tpu.memref_slice %arg14[%9, %c4_i32_400] : memref<2x5x!tpu.dma_semaphore, #tpu.memory_space<semaphore_mem>> -> memref<1x1x!tpu.dma_semaphore, #tpu.memory_space<semaphore_mem>>
      %622 = tpu.memref_squeeze %621 : memref<1x1x!tpu.dma_semaphore, #tpu.memory_space<semaphore_mem>> -> memref<!tpu.dma_semaphore, #tpu.memory_space<semaphore_mem>>
      tpu.enqueue_dma source(%618 : memref<128xf32, #tpu.memory_space<any>>) target(%620 : memref<128xf32, #tpu.memory_space<vmem>>) target_semaphore(%622 : memref<!tpu.dma_semaphore, #tpu.memory_space<semaphore_mem>>)
      %c5_i32_403 = arith.constant 5 : i32
      %623 = arith.addi %289, %c5_i32_403 : i32
      %624 = arith.index_cast %623 : i32 to index
      %625 = memref.load %arg5[%624] : memref<24xi32, #tpu.memory_space<smem>>
      %c5_i32_404 = arith.constant 5 : i32
      %c4_i32_405 = arith.constant 4 : i32
      %c0_i32_406 = arith.constant 0 : i32
      %626 = tpu.memref_slice %arg6[%625, %c0_i32_406] : memref<64x128xf32, #tpu.memory_space<any>> -> memref<1x128xf32, #tpu.memory_space<any>>
      %627 = tpu.memref_squeeze %626 : memref<1x128xf32, #tpu.memory_space<any>> -> memref<128xf32, #tpu.memory_space<any>>
      %c0_i32_407 = arith.constant 0 : i32
      %628 = tpu.memref_slice %arg13[%9, %c5_i32_404, %c0_i32_407] : memref<2x8x128xf32, #tpu.memory_space<vmem>> -> memref<1x1x128xf32, #tpu.memory_space<vmem>>
      %629 = tpu.memref_squeeze %628 : memref<1x1x128xf32, #tpu.memory_space<vmem>> -> memref<128xf32, #tpu.memory_space<vmem>>
      %630 = tpu.memref_slice %arg14[%9, %c4_i32_405] : memref<2x5x!tpu.dma_semaphore, #tpu.memory_space<semaphore_mem>> -> memref<1x1x!tpu.dma_semaphore, #tpu.memory_space<semaphore_mem>>
      %631 = tpu.memref_squeeze %630 : memref<1x1x!tpu.dma_semaphore, #tpu.memory_space<semaphore_mem>> -> memref<!tpu.dma_semaphore, #tpu.memory_space<semaphore_mem>>
      tpu.enqueue_dma source(%627 : memref<128xf32, #tpu.memory_space<any>>) target(%629 : memref<128xf32, #tpu.memory_space<vmem>>) target_semaphore(%631 : memref<!tpu.dma_semaphore, #tpu.memory_space<semaphore_mem>>)
      %c6_i32_408 = arith.constant 6 : i32
      %632 = arith.addi %289, %c6_i32_408 : i32
      %633 = arith.index_cast %632 : i32 to index
      %634 = memref.load %arg5[%633] : memref<24xi32, #tpu.memory_space<smem>>
      %c6_i32_409 = arith.constant 6 : i32
      %c4_i32_410 = arith.constant 4 : i32
      %c0_i32_411 = arith.constant 0 : i32
      %635 = tpu.memref_slice %arg6[%634, %c0_i32_411] : memref<64x128xf32, #tpu.memory_space<any>> -> memref<1x128xf32, #tpu.memory_space<any>>
      %636 = tpu.memref_squeeze %635 : memref<1x128xf32, #tpu.memory_space<any>> -> memref<128xf32, #tpu.memory_space<any>>
      %c0_i32_412 = arith.constant 0 : i32
      %637 = tpu.memref_slice %arg13[%9, %c6_i32_409, %c0_i32_412] : memref<2x8x128xf32, #tpu.memory_space<vmem>> -> memref<1x1x128xf32, #tpu.memory_space<vmem>>
      %638 = tpu.memref_squeeze %637 : memref<1x1x128xf32, #tpu.memory_space<vmem>> -> memref<128xf32, #tpu.memory_space<vmem>>
      %639 = tpu.memref_slice %arg14[%9, %c4_i32_410] : memref<2x5x!tpu.dma_semaphore, #tpu.memory_space<semaphore_mem>> -> memref<1x1x!tpu.dma_semaphore, #tpu.memory_space<semaphore_mem>>
      %640 = tpu.memref_squeeze %639 : memref<1x1x!tpu.dma_semaphore, #tpu.memory_space<semaphore_mem>> -> memref<!tpu.dma_semaphore, #tpu.memory_space<semaphore_mem>>
      tpu.enqueue_dma source(%636 : memref<128xf32, #tpu.memory_space<any>>) target(%638 : memref<128xf32, #tpu.memory_space<vmem>>) target_semaphore(%640 : memref<!tpu.dma_semaphore, #tpu.memory_space<semaphore_mem>>)
      %c7_i32_413 = arith.constant 7 : i32
      %641 = arith.addi %289, %c7_i32_413 : i32
      %642 = arith.index_cast %641 : i32 to index
      %643 = memref.load %arg5[%642] : memref<24xi32, #tpu.memory_space<smem>>
      %c7_i32_414 = arith.constant 7 : i32
      %c4_i32_415 = arith.constant 4 : i32
      %c0_i32_416 = arith.constant 0 : i32
      %644 = tpu.memref_slice %arg6[%643, %c0_i32_416] : memref<64x128xf32, #tpu.memory_space<any>> -> memref<1x128xf32, #tpu.memory_space<any>>
      %645 = tpu.memref_squeeze %644 : memref<1x128xf32, #tpu.memory_space<any>> -> memref<128xf32, #tpu.memory_space<any>>
      %c0_i32_417 = arith.constant 0 : i32
      %646 = tpu.memref_slice %arg13[%9, %c7_i32_414, %c0_i32_417] : memref<2x8x128xf32, #tpu.memory_space<vmem>> -> memref<1x1x128xf32, #tpu.memory_space<vmem>>
      %647 = tpu.memref_squeeze %646 : memref<1x1x128xf32, #tpu.memory_space<vmem>> -> memref<128xf32, #tpu.memory_space<vmem>>
      %648 = tpu.memref_slice %arg14[%9, %c4_i32_415] : memref<2x5x!tpu.dma_semaphore, #tpu.memory_space<semaphore_mem>> -> memref<1x1x!tpu.dma_semaphore, #tpu.memory_space<semaphore_mem>>
      %649 = tpu.memref_squeeze %648 : memref<1x1x!tpu.dma_semaphore, #tpu.memory_space<semaphore_mem>> -> memref<!tpu.dma_semaphore, #tpu.memory_space<semaphore_mem>>
      tpu.enqueue_dma source(%645 : memref<128xf32, #tpu.memory_space<any>>) target(%647 : memref<128xf32, #tpu.memory_space<vmem>>) target_semaphore(%649 : memref<!tpu.dma_semaphore, #tpu.memory_space<semaphore_mem>>)
    } else {
    }
    %c1_i32_5 = arith.constant 1 : i32
    %13 = arith.addi %arg0, %c1_i32_5 : i32
    %c3_i32 = arith.constant 3 : i32
    %14 = arith.cmpi slt, %13, %c3_i32 : i32
    %15 = arith.extui %14 : i1 to i32
    %c0_i32_6 = arith.constant 0 : i32
    %16 = arith.cmpi ne, %15, %c0_i32_6 : i32
    scf.if %16 {
      %c1_i32_218 = arith.constant 1 : i32
      %289 = arith.addi %arg0, %c1_i32_218 : i32
      %c1_i32_219 = arith.constant 1 : i32
      %290 = arith.subi %c1_i32_219, %9 : i32
      %c8_i32 = arith.constant 8 : i32
      %291 = arith.muli %289, %c8_i32 : i32
      %c0_i32_220 = arith.constant 0 : i32
      %292 = arith.addi %291, %c0_i32_220 : i32
      %293 = arith.index_cast %292 : i32 to index
      %294 = memref.load %arg1[%293] : memref<24xi32, #tpu.memory_space<smem>>
      %c0_i32_221 = arith.constant 0 : i32
      %c0_i32_222 = arith.constant 0 : i32
      %c0_i32_223 = arith.constant 0 : i32
      %295 = tpu.memref_slice %arg6[%294, %c0_i32_223] : memref<64x128xf32, #tpu.memory_space<any>> -> memref<1x128xf32, #tpu.memory_space<any>>
      %296 = tpu.memref_squeeze %295 : memref<1x128xf32, #tpu.memory_space<any>> -> memref<128xf32, #tpu.memory_space<any>>
      %c0_i32_224 = arith.constant 0 : i32
      %297 = tpu.memref_slice %arg9[%290, %c0_i32_221, %c0_i32_224] : memref<2x8x128xf32, #tpu.memory_space<vmem>> -> memref<1x1x128xf32, #tpu.memory_space<vmem>>
      %298 = tpu.memref_squeeze %297 : memref<1x1x128xf32, #tpu.memory_space<vmem>> -> memref<128xf32, #tpu.memory_space<vmem>>
      %299 = tpu.memref_slice %arg14[%290, %c0_i32_222] : memref<2x5x!tpu.dma_semaphore, #tpu.memory_space<semaphore_mem>> -> memref<1x1x!tpu.dma_semaphore, #tpu.memory_space<semaphore_mem>>
      %300 = tpu.memref_squeeze %299 : memref<1x1x!tpu.dma_semaphore, #tpu.memory_space<semaphore_mem>> -> memref<!tpu.dma_semaphore, #tpu.memory_space<semaphore_mem>>
      tpu.enqueue_dma source(%296 : memref<128xf32, #tpu.memory_space<any>>) target(%298 : memref<128xf32, #tpu.memory_space<vmem>>) target_semaphore(%300 : memref<!tpu.dma_semaphore, #tpu.memory_space<semaphore_mem>>)
      %c1_i32_225 = arith.constant 1 : i32
      %301 = arith.addi %291, %c1_i32_225 : i32
      %302 = arith.index_cast %301 : i32 to index
      %303 = memref.load %arg1[%302] : memref<24xi32, #tpu.memory_space<smem>>
      %c1_i32_226 = arith.constant 1 : i32
      %c0_i32_227 = arith.constant 0 : i32
      %c0_i32_228 = arith.constant 0 : i32
      %304 = tpu.memref_slice %arg6[%303, %c0_i32_228] : memref<64x128xf32, #tpu.memory_space<any>> -> memref<1x128xf32, #tpu.memory_space<any>>
      %305 = tpu.memref_squeeze %304 : memref<1x128xf32, #tpu.memory_space<any>> -> memref<128xf32, #tpu.memory_space<any>>
      %c0_i32_229 = arith.constant 0 : i32
      %306 = tpu.memref_slice %arg9[%290, %c1_i32_226, %c0_i32_229] : memref<2x8x128xf32, #tpu.memory_space<vmem>> -> memref<1x1x128xf32, #tpu.memory_space<vmem>>
      %307 = tpu.memref_squeeze %306 : memref<1x1x128xf32, #tpu.memory_space<vmem>> -> memref<128xf32, #tpu.memory_space<vmem>>
      %308 = tpu.memref_slice %arg14[%290, %c0_i32_227] : memref<2x5x!tpu.dma_semaphore, #tpu.memory_space<semaphore_mem>> -> memref<1x1x!tpu.dma_semaphore, #tpu.memory_space<semaphore_mem>>
      %309 = tpu.memref_squeeze %308 : memref<1x1x!tpu.dma_semaphore, #tpu.memory_space<semaphore_mem>> -> memref<!tpu.dma_semaphore, #tpu.memory_space<semaphore_mem>>
      tpu.enqueue_dma source(%305 : memref<128xf32, #tpu.memory_space<any>>) target(%307 : memref<128xf32, #tpu.memory_space<vmem>>) target_semaphore(%309 : memref<!tpu.dma_semaphore, #tpu.memory_space<semaphore_mem>>)
      %c2_i32_230 = arith.constant 2 : i32
      %310 = arith.addi %291, %c2_i32_230 : i32
      %311 = arith.index_cast %310 : i32 to index
      %312 = memref.load %arg1[%311] : memref<24xi32, #tpu.memory_space<smem>>
      %c2_i32_231 = arith.constant 2 : i32
      %c0_i32_232 = arith.constant 0 : i32
      %c0_i32_233 = arith.constant 0 : i32
      %313 = tpu.memref_slice %arg6[%312, %c0_i32_233] : memref<64x128xf32, #tpu.memory_space<any>> -> memref<1x128xf32, #tpu.memory_space<any>>
      %314 = tpu.memref_squeeze %313 : memref<1x128xf32, #tpu.memory_space<any>> -> memref<128xf32, #tpu.memory_space<any>>
      %c0_i32_234 = arith.constant 0 : i32
      %315 = tpu.memref_slice %arg9[%290, %c2_i32_231, %c0_i32_234] : memref<2x8x128xf32, #tpu.memory_space<vmem>> -> memref<1x1x128xf32, #tpu.memory_space<vmem>>
      %316 = tpu.memref_squeeze %315 : memref<1x1x128xf32, #tpu.memory_space<vmem>> -> memref<128xf32, #tpu.memory_space<vmem>>
      %317 = tpu.memref_slice %arg14[%290, %c0_i32_232] : memref<2x5x!tpu.dma_semaphore, #tpu.memory_space<semaphore_mem>> -> memref<1x1x!tpu.dma_semaphore, #tpu.memory_space<semaphore_mem>>
      %318 = tpu.memref_squeeze %317 : memref<1x1x!tpu.dma_semaphore, #tpu.memory_space<semaphore_mem>> -> memref<!tpu.dma_semaphore, #tpu.memory_space<semaphore_mem>>
      tpu.enqueue_dma source(%314 : memref<128xf32, #tpu.memory_space<any>>) target(%316 : memref<128xf32, #tpu.memory_space<vmem>>) target_semaphore(%318 : memref<!tpu.dma_semaphore, #tpu.memory_space<semaphore_mem>>)
      %c3_i32_235 = arith.constant 3 : i32
      %319 = arith.addi %291, %c3_i32_235 : i32
      %320 = arith.index_cast %319 : i32 to index
      %321 = memref.load %arg1[%320] : memref<24xi32, #tpu.memory_space<smem>>
      %c3_i32_236 = arith.constant 3 : i32
      %c0_i32_237 = arith.constant 0 : i32
      %c0_i32_238 = arith.constant 0 : i32
      %322 = tpu.memref_slice %arg6[%321, %c0_i32_238] : memref<64x128xf32, #tpu.memory_space<any>> -> memref<1x128xf32, #tpu.memory_space<any>>
      %323 = tpu.memref_squeeze %322 : memref<1x128xf32, #tpu.memory_space<any>> -> memref<128xf32, #tpu.memory_space<any>>
      %c0_i32_239 = arith.constant 0 : i32
      %324 = tpu.memref_slice %arg9[%290, %c3_i32_236, %c0_i32_239] : memref<2x8x128xf32, #tpu.memory_space<vmem>> -> memref<1x1x128xf32, #tpu.memory_space<vmem>>
      %325 = tpu.memref_squeeze %324 : memref<1x1x128xf32, #tpu.memory_space<vmem>> -> memref<128xf32, #tpu.memory_space<vmem>>
      %326 = tpu.memref_slice %arg14[%290, %c0_i32_237] : memref<2x5x!tpu.dma_semaphore, #tpu.memory_space<semaphore_mem>> -> memref<1x1x!tpu.dma_semaphore, #tpu.memory_space<semaphore_mem>>
      %327 = tpu.memref_squeeze %326 : memref<1x1x!tpu.dma_semaphore, #tpu.memory_space<semaphore_mem>> -> memref<!tpu.dma_semaphore, #tpu.memory_space<semaphore_mem>>
      tpu.enqueue_dma source(%323 : memref<128xf32, #tpu.memory_space<any>>) target(%325 : memref<128xf32, #tpu.memory_space<vmem>>) target_semaphore(%327 : memref<!tpu.dma_semaphore, #tpu.memory_space<semaphore_mem>>)
      %c4_i32_240 = arith.constant 4 : i32
      %328 = arith.addi %291, %c4_i32_240 : i32
      %329 = arith.index_cast %328 : i32 to index
      %330 = memref.load %arg1[%329] : memref<24xi32, #tpu.memory_space<smem>>
      %c4_i32_241 = arith.constant 4 : i32
      %c0_i32_242 = arith.constant 0 : i32
      %c0_i32_243 = arith.constant 0 : i32
      %331 = tpu.memref_slice %arg6[%330, %c0_i32_243] : memref<64x128xf32, #tpu.memory_space<any>> -> memref<1x128xf32, #tpu.memory_space<any>>
      %332 = tpu.memref_squeeze %331 : memref<1x128xf32, #tpu.memory_space<any>> -> memref<128xf32, #tpu.memory_space<any>>
      %c0_i32_244 = arith.constant 0 : i32
      %333 = tpu.memref_slice %arg9[%290, %c4_i32_241, %c0_i32_244] : memref<2x8x128xf32, #tpu.memory_space<vmem>> -> memref<1x1x128xf32, #tpu.memory_space<vmem>>
      %334 = tpu.memref_squeeze %333 : memref<1x1x128xf32, #tpu.memory_space<vmem>> -> memref<128xf32, #tpu.memory_space<vmem>>
      %335 = tpu.memref_slice %arg14[%290, %c0_i32_242] : memref<2x5x!tpu.dma_semaphore, #tpu.memory_space<semaphore_mem>> -> memref<1x1x!tpu.dma_semaphore, #tpu.memory_space<semaphore_mem>>
      %336 = tpu.memref_squeeze %335 : memref<1x1x!tpu.dma_semaphore, #tpu.memory_space<semaphore_mem>> -> memref<!tpu.dma_semaphore, #tpu.memory_space<semaphore_mem>>
      tpu.enqueue_dma source(%332 : memref<128xf32, #tpu.memory_space<any>>) target(%334 : memref<128xf32, #tpu.memory_space<vmem>>) target_semaphore(%336 : memref<!tpu.dma_semaphore, #tpu.memory_space<semaphore_mem>>)
      %c5_i32_245 = arith.constant 5 : i32
      %337 = arith.addi %291, %c5_i32_245 : i32
      %338 = arith.index_cast %337 : i32 to index
      %339 = memref.load %arg1[%338] : memref<24xi32, #tpu.memory_space<smem>>
      %c5_i32_246 = arith.constant 5 : i32
      %c0_i32_247 = arith.constant 0 : i32
      %c0_i32_248 = arith.constant 0 : i32
      %340 = tpu.memref_slice %arg6[%339, %c0_i32_248] : memref<64x128xf32, #tpu.memory_space<any>> -> memref<1x128xf32, #tpu.memory_space<any>>
      %341 = tpu.memref_squeeze %340 : memref<1x128xf32, #tpu.memory_space<any>> -> memref<128xf32, #tpu.memory_space<any>>
      %c0_i32_249 = arith.constant 0 : i32
      %342 = tpu.memref_slice %arg9[%290, %c5_i32_246, %c0_i32_249] : memref<2x8x128xf32, #tpu.memory_space<vmem>> -> memref<1x1x128xf32, #tpu.memory_space<vmem>>
      %343 = tpu.memref_squeeze %342 : memref<1x1x128xf32, #tpu.memory_space<vmem>> -> memref<128xf32, #tpu.memory_space<vmem>>
      %344 = tpu.memref_slice %arg14[%290, %c0_i32_247] : memref<2x5x!tpu.dma_semaphore, #tpu.memory_space<semaphore_mem>> -> memref<1x1x!tpu.dma_semaphore, #tpu.memory_space<semaphore_mem>>
      %345 = tpu.memref_squeeze %344 : memref<1x1x!tpu.dma_semaphore, #tpu.memory_space<semaphore_mem>> -> memref<!tpu.dma_semaphore, #tpu.memory_space<semaphore_mem>>
      tpu.enqueue_dma source(%341 : memref<128xf32, #tpu.memory_space<any>>) target(%343 : memref<128xf32, #tpu.memory_space<vmem>>) target_semaphore(%345 : memref<!tpu.dma_semaphore, #tpu.memory_space<semaphore_mem>>)
      %c6_i32_250 = arith.constant 6 : i32
      %346 = arith.addi %291, %c6_i32_250 : i32
      %347 = arith.index_cast %346 : i32 to index
      %348 = memref.load %arg1[%347] : memref<24xi32, #tpu.memory_space<smem>>
      %c6_i32_251 = arith.constant 6 : i32
      %c0_i32_252 = arith.constant 0 : i32
      %c0_i32_253 = arith.constant 0 : i32
      %349 = tpu.memref_slice %arg6[%348, %c0_i32_253] : memref<64x128xf32, #tpu.memory_space<any>> -> memref<1x128xf32, #tpu.memory_space<any>>
      %350 = tpu.memref_squeeze %349 : memref<1x128xf32, #tpu.memory_space<any>> -> memref<128xf32, #tpu.memory_space<any>>
      %c0_i32_254 = arith.constant 0 : i32
      %351 = tpu.memref_slice %arg9[%290, %c6_i32_251, %c0_i32_254] : memref<2x8x128xf32, #tpu.memory_space<vmem>> -> memref<1x1x128xf32, #tpu.memory_space<vmem>>
      %352 = tpu.memref_squeeze %351 : memref<1x1x128xf32, #tpu.memory_space<vmem>> -> memref<128xf32, #tpu.memory_space<vmem>>
      %353 = tpu.memref_slice %arg14[%290, %c0_i32_252] : memref<2x5x!tpu.dma_semaphore, #tpu.memory_space<semaphore_mem>> -> memref<1x1x!tpu.dma_semaphore, #tpu.memory_space<semaphore_mem>>
      %354 = tpu.memref_squeeze %353 : memref<1x1x!tpu.dma_semaphore, #tpu.memory_space<semaphore_mem>> -> memref<!tpu.dma_semaphore, #tpu.memory_space<semaphore_mem>>
      tpu.enqueue_dma source(%350 : memref<128xf32, #tpu.memory_space<any>>) target(%352 : memref<128xf32, #tpu.memory_space<vmem>>) target_semaphore(%354 : memref<!tpu.dma_semaphore, #tpu.memory_space<semaphore_mem>>)
      %c7_i32_255 = arith.constant 7 : i32
      %355 = arith.addi %291, %c7_i32_255 : i32
      %356 = arith.index_cast %355 : i32 to index
      %357 = memref.load %arg1[%356] : memref<24xi32, #tpu.memory_space<smem>>
      %c7_i32_256 = arith.constant 7 : i32
      %c0_i32_257 = arith.constant 0 : i32
      %c0_i32_258 = arith.constant 0 : i32
      %358 = tpu.memref_slice %arg6[%357, %c0_i32_258] : memref<64x128xf32, #tpu.memory_space<any>> -> memref<1x128xf32, #tpu.memory_space<any>>
      %359 = tpu.memref_squeeze %358 : memref<1x128xf32, #tpu.memory_space<any>> -> memref<128xf32, #tpu.memory_space<any>>
      %c0_i32_259 = arith.constant 0 : i32
      %360 = tpu.memref_slice %arg9[%290, %c7_i32_256, %c0_i32_259] : memref<2x8x128xf32, #tpu.memory_space<vmem>> -> memref<1x1x128xf32, #tpu.memory_space<vmem>>
      %361 = tpu.memref_squeeze %360 : memref<1x1x128xf32, #tpu.memory_space<vmem>> -> memref<128xf32, #tpu.memory_space<vmem>>
      %362 = tpu.memref_slice %arg14[%290, %c0_i32_257] : memref<2x5x!tpu.dma_semaphore, #tpu.memory_space<semaphore_mem>> -> memref<1x1x!tpu.dma_semaphore, #tpu.memory_space<semaphore_mem>>
      %363 = tpu.memref_squeeze %362 : memref<1x1x!tpu.dma_semaphore, #tpu.memory_space<semaphore_mem>> -> memref<!tpu.dma_semaphore, #tpu.memory_space<semaphore_mem>>
      tpu.enqueue_dma source(%359 : memref<128xf32, #tpu.memory_space<any>>) target(%361 : memref<128xf32, #tpu.memory_space<vmem>>) target_semaphore(%363 : memref<!tpu.dma_semaphore, #tpu.memory_space<semaphore_mem>>)
      %c0_i32_260 = arith.constant 0 : i32
      %364 = arith.addi %291, %c0_i32_260 : i32
      %365 = arith.index_cast %364 : i32 to index
      %366 = memref.load %arg2[%365] : memref<24xi32, #tpu.memory_space<smem>>
      %c0_i32_261 = arith.constant 0 : i32
      %c1_i32_262 = arith.constant 1 : i32
      %c0_i32_263 = arith.constant 0 : i32
      %367 = tpu.memref_slice %arg7[%366, %c0_i32_263] : memref<16x128xf32, #tpu.memory_space<any>> -> memref<1x128xf32, #tpu.memory_space<any>>
      %368 = tpu.memref_squeeze %367 : memref<1x128xf32, #tpu.memory_space<any>> -> memref<128xf32, #tpu.memory_space<any>>
      %c0_i32_264 = arith.constant 0 : i32
      %369 = tpu.memref_slice %arg10[%290, %c0_i32_261, %c0_i32_264] : memref<2x8x128xf32, #tpu.memory_space<vmem>> -> memref<1x1x128xf32, #tpu.memory_space<vmem>>
      %370 = tpu.memref_squeeze %369 : memref<1x1x128xf32, #tpu.memory_space<vmem>> -> memref<128xf32, #tpu.memory_space<vmem>>
      %371 = tpu.memref_slice %arg14[%290, %c1_i32_262] : memref<2x5x!tpu.dma_semaphore, #tpu.memory_space<semaphore_mem>> -> memref<1x1x!tpu.dma_semaphore, #tpu.memory_space<semaphore_mem>>
      %372 = tpu.memref_squeeze %371 : memref<1x1x!tpu.dma_semaphore, #tpu.memory_space<semaphore_mem>> -> memref<!tpu.dma_semaphore, #tpu.memory_space<semaphore_mem>>
      tpu.enqueue_dma source(%368 : memref<128xf32, #tpu.memory_space<any>>) target(%370 : memref<128xf32, #tpu.memory_space<vmem>>) target_semaphore(%372 : memref<!tpu.dma_semaphore, #tpu.memory_space<semaphore_mem>>)
      %c1_i32_265 = arith.constant 1 : i32
      %373 = arith.addi %291, %c1_i32_265 : i32
      %374 = arith.index_cast %373 : i32 to index
      %375 = memref.load %arg2[%374] : memref<24xi32, #tpu.memory_space<smem>>
      %c1_i32_266 = arith.constant 1 : i32
      %c1_i32_267 = arith.constant 1 : i32
      %c0_i32_268 = arith.constant 0 : i32
      %376 = tpu.memref_slice %arg7[%375, %c0_i32_268] : memref<16x128xf32, #tpu.memory_space<any>> -> memref<1x128xf32, #tpu.memory_space<any>>
      %377 = tpu.memref_squeeze %376 : memref<1x128xf32, #tpu.memory_space<any>> -> memref<128xf32, #tpu.memory_space<any>>
      %c0_i32_269 = arith.constant 0 : i32
      %378 = tpu.memref_slice %arg10[%290, %c1_i32_266, %c0_i32_269] : memref<2x8x128xf32, #tpu.memory_space<vmem>> -> memref<1x1x128xf32, #tpu.memory_space<vmem>>
      %379 = tpu.memref_squeeze %378 : memref<1x1x128xf32, #tpu.memory_space<vmem>> -> memref<128xf32, #tpu.memory_space<vmem>>
      %380 = tpu.memref_slice %arg14[%290, %c1_i32_267] : memref<2x5x!tpu.dma_semaphore, #tpu.memory_space<semaphore_mem>> -> memref<1x1x!tpu.dma_semaphore, #tpu.memory_space<semaphore_mem>>
      %381 = tpu.memref_squeeze %380 : memref<1x1x!tpu.dma_semaphore, #tpu.memory_space<semaphore_mem>> -> memref<!tpu.dma_semaphore, #tpu.memory_space<semaphore_mem>>
      tpu.enqueue_dma source(%377 : memref<128xf32, #tpu.memory_space<any>>) target(%379 : memref<128xf32, #tpu.memory_space<vmem>>) target_semaphore(%381 : memref<!tpu.dma_semaphore, #tpu.memory_space<semaphore_mem>>)
      %c2_i32_270 = arith.constant 2 : i32
      %382 = arith.addi %291, %c2_i32_270 : i32
      %383 = arith.index_cast %382 : i32 to index
      %384 = memref.load %arg2[%383] : memref<24xi32, #tpu.memory_space<smem>>
      %c2_i32_271 = arith.constant 2 : i32
      %c1_i32_272 = arith.constant 1 : i32
      %c0_i32_273 = arith.constant 0 : i32
      %385 = tpu.memref_slice %arg7[%384, %c0_i32_273] : memref<16x128xf32, #tpu.memory_space<any>> -> memref<1x128xf32, #tpu.memory_space<any>>
      %386 = tpu.memref_squeeze %385 : memref<1x128xf32, #tpu.memory_space<any>> -> memref<128xf32, #tpu.memory_space<any>>
      %c0_i32_274 = arith.constant 0 : i32
      %387 = tpu.memref_slice %arg10[%290, %c2_i32_271, %c0_i32_274] : memref<2x8x128xf32, #tpu.memory_space<vmem>> -> memref<1x1x128xf32, #tpu.memory_space<vmem>>
      %388 = tpu.memref_squeeze %387 : memref<1x1x128xf32, #tpu.memory_space<vmem>> -> memref<128xf32, #tpu.memory_space<vmem>>
      %389 = tpu.memref_slice %arg14[%290, %c1_i32_272] : memref<2x5x!tpu.dma_semaphore, #tpu.memory_space<semaphore_mem>> -> memref<1x1x!tpu.dma_semaphore, #tpu.memory_space<semaphore_mem>>
      %390 = tpu.memref_squeeze %389 : memref<1x1x!tpu.dma_semaphore, #tpu.memory_space<semaphore_mem>> -> memref<!tpu.dma_semaphore, #tpu.memory_space<semaphore_mem>>
      tpu.enqueue_dma source(%386 : memref<128xf32, #tpu.memory_space<any>>) target(%388 : memref<128xf32, #tpu.memory_space<vmem>>) target_semaphore(%390 : memref<!tpu.dma_semaphore, #tpu.memory_space<semaphore_mem>>)
      %c3_i32_275 = arith.constant 3 : i32
      %391 = arith.addi %291, %c3_i32_275 : i32
      %392 = arith.index_cast %391 : i32 to index
      %393 = memref.load %arg2[%392] : memref<24xi32, #tpu.memory_space<smem>>
      %c3_i32_276 = arith.constant 3 : i32
      %c1_i32_277 = arith.constant 1 : i32
      %c0_i32_278 = arith.constant 0 : i32
      %394 = tpu.memref_slice %arg7[%393, %c0_i32_278] : memref<16x128xf32, #tpu.memory_space<any>> -> memref<1x128xf32, #tpu.memory_space<any>>
      %395 = tpu.memref_squeeze %394 : memref<1x128xf32, #tpu.memory_space<any>> -> memref<128xf32, #tpu.memory_space<any>>
      %c0_i32_279 = arith.constant 0 : i32
      %396 = tpu.memref_slice %arg10[%290, %c3_i32_276, %c0_i32_279] : memref<2x8x128xf32, #tpu.memory_space<vmem>> -> memref<1x1x128xf32, #tpu.memory_space<vmem>>
      %397 = tpu.memref_squeeze %396 : memref<1x1x128xf32, #tpu.memory_space<vmem>> -> memref<128xf32, #tpu.memory_space<vmem>>
      %398 = tpu.memref_slice %arg14[%290, %c1_i32_277] : memref<2x5x!tpu.dma_semaphore, #tpu.memory_space<semaphore_mem>> -> memref<1x1x!tpu.dma_semaphore, #tpu.memory_space<semaphore_mem>>
      %399 = tpu.memref_squeeze %398 : memref<1x1x!tpu.dma_semaphore, #tpu.memory_space<semaphore_mem>> -> memref<!tpu.dma_semaphore, #tpu.memory_space<semaphore_mem>>
      tpu.enqueue_dma source(%395 : memref<128xf32, #tpu.memory_space<any>>) target(%397 : memref<128xf32, #tpu.memory_space<vmem>>) target_semaphore(%399 : memref<!tpu.dma_semaphore, #tpu.memory_space<semaphore_mem>>)
      %c4_i32_280 = arith.constant 4 : i32
      %400 = arith.addi %291, %c4_i32_280 : i32
      %401 = arith.index_cast %400 : i32 to index
      %402 = memref.load %arg2[%401] : memref<24xi32, #tpu.memory_space<smem>>
      %c4_i32_281 = arith.constant 4 : i32
      %c1_i32_282 = arith.constant 1 : i32
      %c0_i32_283 = arith.constant 0 : i32
      %403 = tpu.memref_slice %arg7[%402, %c0_i32_283] : memref<16x128xf32, #tpu.memory_space<any>> -> memref<1x128xf32, #tpu.memory_space<any>>
      %404 = tpu.memref_squeeze %403 : memref<1x128xf32, #tpu.memory_space<any>> -> memref<128xf32, #tpu.memory_space<any>>
      %c0_i32_284 = arith.constant 0 : i32
      %405 = tpu.memref_slice %arg10[%290, %c4_i32_281, %c0_i32_284] : memref<2x8x128xf32, #tpu.memory_space<vmem>> -> memref<1x1x128xf32, #tpu.memory_space<vmem>>
      %406 = tpu.memref_squeeze %405 : memref<1x1x128xf32, #tpu.memory_space<vmem>> -> memref<128xf32, #tpu.memory_space<vmem>>
      %407 = tpu.memref_slice %arg14[%290, %c1_i32_282] : memref<2x5x!tpu.dma_semaphore, #tpu.memory_space<semaphore_mem>> -> memref<1x1x!tpu.dma_semaphore, #tpu.memory_space<semaphore_mem>>
      %408 = tpu.memref_squeeze %407 : memref<1x1x!tpu.dma_semaphore, #tpu.memory_space<semaphore_mem>> -> memref<!tpu.dma_semaphore, #tpu.memory_space<semaphore_mem>>
      tpu.enqueue_dma source(%404 : memref<128xf32, #tpu.memory_space<any>>) target(%406 : memref<128xf32, #tpu.memory_space<vmem>>) target_semaphore(%408 : memref<!tpu.dma_semaphore, #tpu.memory_space<semaphore_mem>>)
      %c5_i32_285 = arith.constant 5 : i32
      %409 = arith.addi %291, %c5_i32_285 : i32
      %410 = arith.index_cast %409 : i32 to index
      %411 = memref.load %arg2[%410] : memref<24xi32, #tpu.memory_space<smem>>
      %c5_i32_286 = arith.constant 5 : i32
      %c1_i32_287 = arith.constant 1 : i32
      %c0_i32_288 = arith.constant 0 : i32
      %412 = tpu.memref_slice %arg7[%411, %c0_i32_288] : memref<16x128xf32, #tpu.memory_space<any>> -> memref<1x128xf32, #tpu.memory_space<any>>
      %413 = tpu.memref_squeeze %412 : memref<1x128xf32, #tpu.memory_space<any>> -> memref<128xf32, #tpu.memory_space<any>>
      %c0_i32_289 = arith.constant 0 : i32
      %414 = tpu.memref_slice %arg10[%290, %c5_i32_286, %c0_i32_289] : memref<2x8x128xf32, #tpu.memory_space<vmem>> -> memref<1x1x128xf32, #tpu.memory_space<vmem>>
      %415 = tpu.memref_squeeze %414 : memref<1x1x128xf32, #tpu.memory_space<vmem>> -> memref<128xf32, #tpu.memory_space<vmem>>
      %416 = tpu.memref_slice %arg14[%290, %c1_i32_287] : memref<2x5x!tpu.dma_semaphore, #tpu.memory_space<semaphore_mem>> -> memref<1x1x!tpu.dma_semaphore, #tpu.memory_space<semaphore_mem>>
      %417 = tpu.memref_squeeze %416 : memref<1x1x!tpu.dma_semaphore, #tpu.memory_space<semaphore_mem>> -> memref<!tpu.dma_semaphore, #tpu.memory_space<semaphore_mem>>
      tpu.enqueue_dma source(%413 : memref<128xf32, #tpu.memory_space<any>>) target(%415 : memref<128xf32, #tpu.memory_space<vmem>>) target_semaphore(%417 : memref<!tpu.dma_semaphore, #tpu.memory_space<semaphore_mem>>)
      %c6_i32_290 = arith.constant 6 : i32
      %418 = arith.addi %291, %c6_i32_290 : i32
      %419 = arith.index_cast %418 : i32 to index
      %420 = memref.load %arg2[%419] : memref<24xi32, #tpu.memory_space<smem>>
      %c6_i32_291 = arith.constant 6 : i32
      %c1_i32_292 = arith.constant 1 : i32
      %c0_i32_293 = arith.constant 0 : i32
      %421 = tpu.memref_slice %arg7[%420, %c0_i32_293] : memref<16x128xf32, #tpu.memory_space<any>> -> memref<1x128xf32, #tpu.memory_space<any>>
      %422 = tpu.memref_squeeze %421 : memref<1x128xf32, #tpu.memory_space<any>> -> memref<128xf32, #tpu.memory_space<any>>
      %c0_i32_294 = arith.constant 0 : i32
      %423 = tpu.memref_slice %arg10[%290, %c6_i32_291, %c0_i32_294] : memref<2x8x128xf32, #tpu.memory_space<vmem>> -> memref<1x1x128xf32, #tpu.memory_space<vmem>>
      %424 = tpu.memref_squeeze %423 : memref<1x1x128xf32, #tpu.memory_space<vmem>> -> memref<128xf32, #tpu.memory_space<vmem>>
      %425 = tpu.memref_slice %arg14[%290, %c1_i32_292] : memref<2x5x!tpu.dma_semaphore, #tpu.memory_space<semaphore_mem>> -> memref<1x1x!tpu.dma_semaphore, #tpu.memory_space<semaphore_mem>>
      %426 = tpu.memref_squeeze %425 : memref<1x1x!tpu.dma_semaphore, #tpu.memory_space<semaphore_mem>> -> memref<!tpu.dma_semaphore, #tpu.memory_space<semaphore_mem>>
      tpu.enqueue_dma source(%422 : memref<128xf32, #tpu.memory_space<any>>) target(%424 : memref<128xf32, #tpu.memory_space<vmem>>) target_semaphore(%426 : memref<!tpu.dma_semaphore, #tpu.memory_space<semaphore_mem>>)
      %c7_i32_295 = arith.constant 7 : i32
      %427 = arith.addi %291, %c7_i32_295 : i32
      %428 = arith.index_cast %427 : i32 to index
      %429 = memref.load %arg2[%428] : memref<24xi32, #tpu.memory_space<smem>>
      %c7_i32_296 = arith.constant 7 : i32
      %c1_i32_297 = arith.constant 1 : i32
      %c0_i32_298 = arith.constant 0 : i32
      %430 = tpu.memref_slice %arg7[%429, %c0_i32_298] : memref<16x128xf32, #tpu.memory_space<any>> -> memref<1x128xf32, #tpu.memory_space<any>>
      %431 = tpu.memref_squeeze %430 : memref<1x128xf32, #tpu.memory_space<any>> -> memref<128xf32, #tpu.memory_space<any>>
      %c0_i32_299 = arith.constant 0 : i32
      %432 = tpu.memref_slice %arg10[%290, %c7_i32_296, %c0_i32_299] : memref<2x8x128xf32, #tpu.memory_space<vmem>> -> memref<1x1x128xf32, #tpu.memory_space<vmem>>
      %433 = tpu.memref_squeeze %432 : memref<1x1x128xf32, #tpu.memory_space<vmem>> -> memref<128xf32, #tpu.memory_space<vmem>>
      %434 = tpu.memref_slice %arg14[%290, %c1_i32_297] : memref<2x5x!tpu.dma_semaphore, #tpu.memory_space<semaphore_mem>> -> memref<1x1x!tpu.dma_semaphore, #tpu.memory_space<semaphore_mem>>
      %435 = tpu.memref_squeeze %434 : memref<1x1x!tpu.dma_semaphore, #tpu.memory_space<semaphore_mem>> -> memref<!tpu.dma_semaphore, #tpu.memory_space<semaphore_mem>>
      tpu.enqueue_dma source(%431 : memref<128xf32, #tpu.memory_space<any>>) target(%433 : memref<128xf32, #tpu.memory_space<vmem>>) target_semaphore(%435 : memref<!tpu.dma_semaphore, #tpu.memory_space<semaphore_mem>>)
      %c0_i32_300 = arith.constant 0 : i32
      %436 = arith.addi %291, %c0_i32_300 : i32
      %437 = arith.index_cast %436 : i32 to index
      %438 = memref.load %arg3[%437] : memref<24xi32, #tpu.memory_space<smem>>
      %c0_i32_301 = arith.constant 0 : i32
      %c2_i32_302 = arith.constant 2 : i32
      %c0_i32_303 = arith.constant 0 : i32
      %439 = tpu.memref_slice %arg6[%438, %c0_i32_303] : memref<64x128xf32, #tpu.memory_space<any>> -> memref<1x128xf32, #tpu.memory_space<any>>
      %440 = tpu.memref_squeeze %439 : memref<1x128xf32, #tpu.memory_space<any>> -> memref<128xf32, #tpu.memory_space<any>>
      %c0_i32_304 = arith.constant 0 : i32
      %441 = tpu.memref_slice %arg11[%290, %c0_i32_301, %c0_i32_304] : memref<2x8x128xf32, #tpu.memory_space<vmem>> -> memref<1x1x128xf32, #tpu.memory_space<vmem>>
      %442 = tpu.memref_squeeze %441 : memref<1x1x128xf32, #tpu.memory_space<vmem>> -> memref<128xf32, #tpu.memory_space<vmem>>
      %443 = tpu.memref_slice %arg14[%290, %c2_i32_302] : memref<2x5x!tpu.dma_semaphore, #tpu.memory_space<semaphore_mem>> -> memref<1x1x!tpu.dma_semaphore, #tpu.memory_space<semaphore_mem>>
      %444 = tpu.memref_squeeze %443 : memref<1x1x!tpu.dma_semaphore, #tpu.memory_space<semaphore_mem>> -> memref<!tpu.dma_semaphore, #tpu.memory_space<semaphore_mem>>
      tpu.enqueue_dma source(%440 : memref<128xf32, #tpu.memory_space<any>>) target(%442 : memref<128xf32, #tpu.memory_space<vmem>>) target_semaphore(%444 : memref<!tpu.dma_semaphore, #tpu.memory_space<semaphore_mem>>)
      %c1_i32_305 = arith.constant 1 : i32
      %445 = arith.addi %291, %c1_i32_305 : i32
      %446 = arith.index_cast %445 : i32 to index
      %447 = memref.load %arg3[%446] : memref<24xi32, #tpu.memory_space<smem>>
      %c1_i32_306 = arith.constant 1 : i32
      %c2_i32_307 = arith.constant 2 : i32
      %c0_i32_308 = arith.constant 0 : i32
      %448 = tpu.memref_slice %arg6[%447, %c0_i32_308] : memref<64x128xf32, #tpu.memory_space<any>> -> memref<1x128xf32, #tpu.memory_space<any>>
      %449 = tpu.memref_squeeze %448 : memref<1x128xf32, #tpu.memory_space<any>> -> memref<128xf32, #tpu.memory_space<any>>
      %c0_i32_309 = arith.constant 0 : i32
      %450 = tpu.memref_slice %arg11[%290, %c1_i32_306, %c0_i32_309] : memref<2x8x128xf32, #tpu.memory_space<vmem>> -> memref<1x1x128xf32, #tpu.memory_space<vmem>>
      %451 = tpu.memref_squeeze %450 : memref<1x1x128xf32, #tpu.memory_space<vmem>> -> memref<128xf32, #tpu.memory_space<vmem>>
      %452 = tpu.memref_slice %arg14[%290, %c2_i32_307] : memref<2x5x!tpu.dma_semaphore, #tpu.memory_space<semaphore_mem>> -> memref<1x1x!tpu.dma_semaphore, #tpu.memory_space<semaphore_mem>>
      %453 = tpu.memref_squeeze %452 : memref<1x1x!tpu.dma_semaphore, #tpu.memory_space<semaphore_mem>> -> memref<!tpu.dma_semaphore, #tpu.memory_space<semaphore_mem>>
      tpu.enqueue_dma source(%449 : memref<128xf32, #tpu.memory_space<any>>) target(%451 : memref<128xf32, #tpu.memory_space<vmem>>) target_semaphore(%453 : memref<!tpu.dma_semaphore, #tpu.memory_space<semaphore_mem>>)
      %c2_i32_310 = arith.constant 2 : i32
      %454 = arith.addi %291, %c2_i32_310 : i32
      %455 = arith.index_cast %454 : i32 to index
      %456 = memref.load %arg3[%455] : memref<24xi32, #tpu.memory_space<smem>>
      %c2_i32_311 = arith.constant 2 : i32
      %c2_i32_312 = arith.constant 2 : i32
      %c0_i32_313 = arith.constant 0 : i32
      %457 = tpu.memref_slice %arg6[%456, %c0_i32_313] : memref<64x128xf32, #tpu.memory_space<any>> -> memref<1x128xf32, #tpu.memory_space<any>>
      %458 = tpu.memref_squeeze %457 : memref<1x128xf32, #tpu.memory_space<any>> -> memref<128xf32, #tpu.memory_space<any>>
      %c0_i32_314 = arith.constant 0 : i32
      %459 = tpu.memref_slice %arg11[%290, %c2_i32_311, %c0_i32_314] : memref<2x8x128xf32, #tpu.memory_space<vmem>> -> memref<1x1x128xf32, #tpu.memory_space<vmem>>
      %460 = tpu.memref_squeeze %459 : memref<1x1x128xf32, #tpu.memory_space<vmem>> -> memref<128xf32, #tpu.memory_space<vmem>>
      %461 = tpu.memref_slice %arg14[%290, %c2_i32_312] : memref<2x5x!tpu.dma_semaphore, #tpu.memory_space<semaphore_mem>> -> memref<1x1x!tpu.dma_semaphore, #tpu.memory_space<semaphore_mem>>
      %462 = tpu.memref_squeeze %461 : memref<1x1x!tpu.dma_semaphore, #tpu.memory_space<semaphore_mem>> -> memref<!tpu.dma_semaphore, #tpu.memory_space<semaphore_mem>>
      tpu.enqueue_dma source(%458 : memref<128xf32, #tpu.memory_space<any>>) target(%460 : memref<128xf32, #tpu.memory_space<vmem>>) target_semaphore(%462 : memref<!tpu.dma_semaphore, #tpu.memory_space<semaphore_mem>>)
      %c3_i32_315 = arith.constant 3 : i32
      %463 = arith.addi %291, %c3_i32_315 : i32
      %464 = arith.index_cast %463 : i32 to index
      %465 = memref.load %arg3[%464] : memref<24xi32, #tpu.memory_space<smem>>
      %c3_i32_316 = arith.constant 3 : i32
      %c2_i32_317 = arith.constant 2 : i32
      %c0_i32_318 = arith.constant 0 : i32
      %466 = tpu.memref_slice %arg6[%465, %c0_i32_318] : memref<64x128xf32, #tpu.memory_space<any>> -> memref<1x128xf32, #tpu.memory_space<any>>
      %467 = tpu.memref_squeeze %466 : memref<1x128xf32, #tpu.memory_space<any>> -> memref<128xf32, #tpu.memory_space<any>>
      %c0_i32_319 = arith.constant 0 : i32
      %468 = tpu.memref_slice %arg11[%290, %c3_i32_316, %c0_i32_319] : memref<2x8x128xf32, #tpu.memory_space<vmem>> -> memref<1x1x128xf32, #tpu.memory_space<vmem>>
      %469 = tpu.memref_squeeze %468 : memref<1x1x128xf32, #tpu.memory_space<vmem>> -> memref<128xf32, #tpu.memory_space<vmem>>
      %470 = tpu.memref_slice %arg14[%290, %c2_i32_317] : memref<2x5x!tpu.dma_semaphore, #tpu.memory_space<semaphore_mem>> -> memref<1x1x!tpu.dma_semaphore, #tpu.memory_space<semaphore_mem>>
      %471 = tpu.memref_squeeze %470 : memref<1x1x!tpu.dma_semaphore, #tpu.memory_space<semaphore_mem>> -> memref<!tpu.dma_semaphore, #tpu.memory_space<semaphore_mem>>
      tpu.enqueue_dma source(%467 : memref<128xf32, #tpu.memory_space<any>>) target(%469 : memref<128xf32, #tpu.memory_space<vmem>>) target_semaphore(%471 : memref<!tpu.dma_semaphore, #tpu.memory_space<semaphore_mem>>)
      %c4_i32_320 = arith.constant 4 : i32
      %472 = arith.addi %291, %c4_i32_320 : i32
      %473 = arith.index_cast %472 : i32 to index
      %474 = memref.load %arg3[%473] : memref<24xi32, #tpu.memory_space<smem>>
      %c4_i32_321 = arith.constant 4 : i32
      %c2_i32_322 = arith.constant 2 : i32
      %c0_i32_323 = arith.constant 0 : i32
      %475 = tpu.memref_slice %arg6[%474, %c0_i32_323] : memref<64x128xf32, #tpu.memory_space<any>> -> memref<1x128xf32, #tpu.memory_space<any>>
      %476 = tpu.memref_squeeze %475 : memref<1x128xf32, #tpu.memory_space<any>> -> memref<128xf32, #tpu.memory_space<any>>
      %c0_i32_324 = arith.constant 0 : i32
      %477 = tpu.memref_slice %arg11[%290, %c4_i32_321, %c0_i32_324] : memref<2x8x128xf32, #tpu.memory_space<vmem>> -> memref<1x1x128xf32, #tpu.memory_space<vmem>>
      %478 = tpu.memref_squeeze %477 : memref<1x1x128xf32, #tpu.memory_space<vmem>> -> memref<128xf32, #tpu.memory_space<vmem>>
      %479 = tpu.memref_slice %arg14[%290, %c2_i32_322] : memref<2x5x!tpu.dma_semaphore, #tpu.memory_space<semaphore_mem>> -> memref<1x1x!tpu.dma_semaphore, #tpu.memory_space<semaphore_mem>>
      %480 = tpu.memref_squeeze %479 : memref<1x1x!tpu.dma_semaphore, #tpu.memory_space<semaphore_mem>> -> memref<!tpu.dma_semaphore, #tpu.memory_space<semaphore_mem>>
      tpu.enqueue_dma source(%476 : memref<128xf32, #tpu.memory_space<any>>) target(%478 : memref<128xf32, #tpu.memory_space<vmem>>) target_semaphore(%480 : memref<!tpu.dma_semaphore, #tpu.memory_space<semaphore_mem>>)
      %c5_i32_325 = arith.constant 5 : i32
      %481 = arith.addi %291, %c5_i32_325 : i32
      %482 = arith.index_cast %481 : i32 to index
      %483 = memref.load %arg3[%482] : memref<24xi32, #tpu.memory_space<smem>>
      %c5_i32_326 = arith.constant 5 : i32
      %c2_i32_327 = arith.constant 2 : i32
      %c0_i32_328 = arith.constant 0 : i32
      %484 = tpu.memref_slice %arg6[%483, %c0_i32_328] : memref<64x128xf32, #tpu.memory_space<any>> -> memref<1x128xf32, #tpu.memory_space<any>>
      %485 = tpu.memref_squeeze %484 : memref<1x128xf32, #tpu.memory_space<any>> -> memref<128xf32, #tpu.memory_space<any>>
      %c0_i32_329 = arith.constant 0 : i32
      %486 = tpu.memref_slice %arg11[%290, %c5_i32_326, %c0_i32_329] : memref<2x8x128xf32, #tpu.memory_space<vmem>> -> memref<1x1x128xf32, #tpu.memory_space<vmem>>
      %487 = tpu.memref_squeeze %486 : memref<1x1x128xf32, #tpu.memory_space<vmem>> -> memref<128xf32, #tpu.memory_space<vmem>>
      %488 = tpu.memref_slice %arg14[%290, %c2_i32_327] : memref<2x5x!tpu.dma_semaphore, #tpu.memory_space<semaphore_mem>> -> memref<1x1x!tpu.dma_semaphore, #tpu.memory_space<semaphore_mem>>
      %489 = tpu.memref_squeeze %488 : memref<1x1x!tpu.dma_semaphore, #tpu.memory_space<semaphore_mem>> -> memref<!tpu.dma_semaphore, #tpu.memory_space<semaphore_mem>>
      tpu.enqueue_dma source(%485 : memref<128xf32, #tpu.memory_space<any>>) target(%487 : memref<128xf32, #tpu.memory_space<vmem>>) target_semaphore(%489 : memref<!tpu.dma_semaphore, #tpu.memory_space<semaphore_mem>>)
      %c6_i32_330 = arith.constant 6 : i32
      %490 = arith.addi %291, %c6_i32_330 : i32
      %491 = arith.index_cast %490 : i32 to index
      %492 = memref.load %arg3[%491] : memref<24xi32, #tpu.memory_space<smem>>
      %c6_i32_331 = arith.constant 6 : i32
      %c2_i32_332 = arith.constant 2 : i32
      %c0_i32_333 = arith.constant 0 : i32
      %493 = tpu.memref_slice %arg6[%492, %c0_i32_333] : memref<64x128xf32, #tpu.memory_space<any>> -> memref<1x128xf32, #tpu.memory_space<any>>
      %494 = tpu.memref_squeeze %493 : memref<1x128xf32, #tpu.memory_space<any>> -> memref<128xf32, #tpu.memory_space<any>>
      %c0_i32_334 = arith.constant 0 : i32
      %495 = tpu.memref_slice %arg11[%290, %c6_i32_331, %c0_i32_334] : memref<2x8x128xf32, #tpu.memory_space<vmem>> -> memref<1x1x128xf32, #tpu.memory_space<vmem>>
      %496 = tpu.memref_squeeze %495 : memref<1x1x128xf32, #tpu.memory_space<vmem>> -> memref<128xf32, #tpu.memory_space<vmem>>
      %497 = tpu.memref_slice %arg14[%290, %c2_i32_332] : memref<2x5x!tpu.dma_semaphore, #tpu.memory_space<semaphore_mem>> -> memref<1x1x!tpu.dma_semaphore, #tpu.memory_space<semaphore_mem>>
      %498 = tpu.memref_squeeze %497 : memref<1x1x!tpu.dma_semaphore, #tpu.memory_space<semaphore_mem>> -> memref<!tpu.dma_semaphore, #tpu.memory_space<semaphore_mem>>
      tpu.enqueue_dma source(%494 : memref<128xf32, #tpu.memory_space<any>>) target(%496 : memref<128xf32, #tpu.memory_space<vmem>>) target_semaphore(%498 : memref<!tpu.dma_semaphore, #tpu.memory_space<semaphore_mem>>)
      %c7_i32_335 = arith.constant 7 : i32
      %499 = arith.addi %291, %c7_i32_335 : i32
      %500 = arith.index_cast %499 : i32 to index
      %501 = memref.load %arg3[%500] : memref<24xi32, #tpu.memory_space<smem>>
      %c7_i32_336 = arith.constant 7 : i32
      %c2_i32_337 = arith.constant 2 : i32
      %c0_i32_338 = arith.constant 0 : i32
      %502 = tpu.memref_slice %arg6[%501, %c0_i32_338] : memref<64x128xf32, #tpu.memory_space<any>> -> memref<1x128xf32, #tpu.memory_space<any>>
      %503 = tpu.memref_squeeze %502 : memref<1x128xf32, #tpu.memory_space<any>> -> memref<128xf32, #tpu.memory_space<any>>
      %c0_i32_339 = arith.constant 0 : i32
      %504 = tpu.memref_slice %arg11[%290, %c7_i32_336, %c0_i32_339] : memref<2x8x128xf32, #tpu.memory_space<vmem>> -> memref<1x1x128xf32, #tpu.memory_space<vmem>>
      %505 = tpu.memref_squeeze %504 : memref<1x1x128xf32, #tpu.memory_space<vmem>> -> memref<128xf32, #tpu.memory_space<vmem>>
      %506 = tpu.memref_slice %arg14[%290, %c2_i32_337] : memref<2x5x!tpu.dma_semaphore, #tpu.memory_space<semaphore_mem>> -> memref<1x1x!tpu.dma_semaphore, #tpu.memory_space<semaphore_mem>>
      %507 = tpu.memref_squeeze %506 : memref<1x1x!tpu.dma_semaphore, #tpu.memory_space<semaphore_mem>> -> memref<!tpu.dma_semaphore, #tpu.memory_space<semaphore_mem>>
      tpu.enqueue_dma source(%503 : memref<128xf32, #tpu.memory_space<any>>) target(%505 : memref<128xf32, #tpu.memory_space<vmem>>) target_semaphore(%507 : memref<!tpu.dma_semaphore, #tpu.memory_space<semaphore_mem>>)
      %c0_i32_340 = arith.constant 0 : i32
      %508 = arith.addi %291, %c0_i32_340 : i32
      %509 = arith.index_cast %508 : i32 to index
      %510 = memref.load %arg4[%509] : memref<24xi32, #tpu.memory_space<smem>>
      %c0_i32_341 = arith.constant 0 : i32
      %c3_i32_342 = arith.constant 3 : i32
      %c0_i32_343 = arith.constant 0 : i32
      %511 = tpu.memref_slice %arg6[%510, %c0_i32_343] : memref<64x128xf32, #tpu.memory_space<any>> -> memref<1x128xf32, #tpu.memory_space<any>>
      %512 = tpu.memref_squeeze %511 : memref<1x128xf32, #tpu.memory_space<any>> -> memref<128xf32, #tpu.memory_space<any>>
      %c0_i32_344 = arith.constant 0 : i32
      %513 = tpu.memref_slice %arg12[%290, %c0_i32_341, %c0_i32_344] : memref<2x8x128xf32, #tpu.memory_space<vmem>> -> memref<1x1x128xf32, #tpu.memory_space<vmem>>
      %514 = tpu.memref_squeeze %513 : memref<1x1x128xf32, #tpu.memory_space<vmem>> -> memref<128xf32, #tpu.memory_space<vmem>>
      %515 = tpu.memref_slice %arg14[%290, %c3_i32_342] : memref<2x5x!tpu.dma_semaphore, #tpu.memory_space<semaphore_mem>> -> memref<1x1x!tpu.dma_semaphore, #tpu.memory_space<semaphore_mem>>
      %516 = tpu.memref_squeeze %515 : memref<1x1x!tpu.dma_semaphore, #tpu.memory_space<semaphore_mem>> -> memref<!tpu.dma_semaphore, #tpu.memory_space<semaphore_mem>>
      tpu.enqueue_dma source(%512 : memref<128xf32, #tpu.memory_space<any>>) target(%514 : memref<128xf32, #tpu.memory_space<vmem>>) target_semaphore(%516 : memref<!tpu.dma_semaphore, #tpu.memory_space<semaphore_mem>>)
      %c1_i32_345 = arith.constant 1 : i32
      %517 = arith.addi %291, %c1_i32_345 : i32
      %518 = arith.index_cast %517 : i32 to index
      %519 = memref.load %arg4[%518] : memref<24xi32, #tpu.memory_space<smem>>
      %c1_i32_346 = arith.constant 1 : i32
      %c3_i32_347 = arith.constant 3 : i32
      %c0_i32_348 = arith.constant 0 : i32
      %520 = tpu.memref_slice %arg6[%519, %c0_i32_348] : memref<64x128xf32, #tpu.memory_space<any>> -> memref<1x128xf32, #tpu.memory_space<any>>
      %521 = tpu.memref_squeeze %520 : memref<1x128xf32, #tpu.memory_space<any>> -> memref<128xf32, #tpu.memory_space<any>>
      %c0_i32_349 = arith.constant 0 : i32
      %522 = tpu.memref_slice %arg12[%290, %c1_i32_346, %c0_i32_349] : memref<2x8x128xf32, #tpu.memory_space<vmem>> -> memref<1x1x128xf32, #tpu.memory_space<vmem>>
      %523 = tpu.memref_squeeze %522 : memref<1x1x128xf32, #tpu.memory_space<vmem>> -> memref<128xf32, #tpu.memory_space<vmem>>
      %524 = tpu.memref_slice %arg14[%290, %c3_i32_347] : memref<2x5x!tpu.dma_semaphore, #tpu.memory_space<semaphore_mem>> -> memref<1x1x!tpu.dma_semaphore, #tpu.memory_space<semaphore_mem>>
      %525 = tpu.memref_squeeze %524 : memref<1x1x!tpu.dma_semaphore, #tpu.memory_space<semaphore_mem>> -> memref<!tpu.dma_semaphore, #tpu.memory_space<semaphore_mem>>
      tpu.enqueue_dma source(%521 : memref<128xf32, #tpu.memory_space<any>>) target(%523 : memref<128xf32, #tpu.memory_space<vmem>>) target_semaphore(%525 : memref<!tpu.dma_semaphore, #tpu.memory_space<semaphore_mem>>)
      %c2_i32_350 = arith.constant 2 : i32
      %526 = arith.addi %291, %c2_i32_350 : i32
      %527 = arith.index_cast %526 : i32 to index
      %528 = memref.load %arg4[%527] : memref<24xi32, #tpu.memory_space<smem>>
      %c2_i32_351 = arith.constant 2 : i32
      %c3_i32_352 = arith.constant 3 : i32
      %c0_i32_353 = arith.constant 0 : i32
      %529 = tpu.memref_slice %arg6[%528, %c0_i32_353] : memref<64x128xf32, #tpu.memory_space<any>> -> memref<1x128xf32, #tpu.memory_space<any>>
      %530 = tpu.memref_squeeze %529 : memref<1x128xf32, #tpu.memory_space<any>> -> memref<128xf32, #tpu.memory_space<any>>
      %c0_i32_354 = arith.constant 0 : i32
      %531 = tpu.memref_slice %arg12[%290, %c2_i32_351, %c0_i32_354] : memref<2x8x128xf32, #tpu.memory_space<vmem>> -> memref<1x1x128xf32, #tpu.memory_space<vmem>>
      %532 = tpu.memref_squeeze %531 : memref<1x1x128xf32, #tpu.memory_space<vmem>> -> memref<128xf32, #tpu.memory_space<vmem>>
      %533 = tpu.memref_slice %arg14[%290, %c3_i32_352] : memref<2x5x!tpu.dma_semaphore, #tpu.memory_space<semaphore_mem>> -> memref<1x1x!tpu.dma_semaphore, #tpu.memory_space<semaphore_mem>>
      %534 = tpu.memref_squeeze %533 : memref<1x1x!tpu.dma_semaphore, #tpu.memory_space<semaphore_mem>> -> memref<!tpu.dma_semaphore, #tpu.memory_space<semaphore_mem>>
      tpu.enqueue_dma source(%530 : memref<128xf32, #tpu.memory_space<any>>) target(%532 : memref<128xf32, #tpu.memory_space<vmem>>) target_semaphore(%534 : memref<!tpu.dma_semaphore, #tpu.memory_space<semaphore_mem>>)
      %c3_i32_355 = arith.constant 3 : i32
      %535 = arith.addi %291, %c3_i32_355 : i32
      %536 = arith.index_cast %535 : i32 to index
      %537 = memref.load %arg4[%536] : memref<24xi32, #tpu.memory_space<smem>>
      %c3_i32_356 = arith.constant 3 : i32
      %c3_i32_357 = arith.constant 3 : i32
      %c0_i32_358 = arith.constant 0 : i32
      %538 = tpu.memref_slice %arg6[%537, %c0_i32_358] : memref<64x128xf32, #tpu.memory_space<any>> -> memref<1x128xf32, #tpu.memory_space<any>>
      %539 = tpu.memref_squeeze %538 : memref<1x128xf32, #tpu.memory_space<any>> -> memref<128xf32, #tpu.memory_space<any>>
      %c0_i32_359 = arith.constant 0 : i32
      %540 = tpu.memref_slice %arg12[%290, %c3_i32_356, %c0_i32_359] : memref<2x8x128xf32, #tpu.memory_space<vmem>> -> memref<1x1x128xf32, #tpu.memory_space<vmem>>
      %541 = tpu.memref_squeeze %540 : memref<1x1x128xf32, #tpu.memory_space<vmem>> -> memref<128xf32, #tpu.memory_space<vmem>>
      %542 = tpu.memref_slice %arg14[%290, %c3_i32_357] : memref<2x5x!tpu.dma_semaphore, #tpu.memory_space<semaphore_mem>> -> memref<1x1x!tpu.dma_semaphore, #tpu.memory_space<semaphore_mem>>
      %543 = tpu.memref_squeeze %542 : memref<1x1x!tpu.dma_semaphore, #tpu.memory_space<semaphore_mem>> -> memref<!tpu.dma_semaphore, #tpu.memory_space<semaphore_mem>>
      tpu.enqueue_dma source(%539 : memref<128xf32, #tpu.memory_space<any>>) target(%541 : memref<128xf32, #tpu.memory_space<vmem>>) target_semaphore(%543 : memref<!tpu.dma_semaphore, #tpu.memory_space<semaphore_mem>>)
      %c4_i32_360 = arith.constant 4 : i32
      %544 = arith.addi %291, %c4_i32_360 : i32
      %545 = arith.index_cast %544 : i32 to index
      %546 = memref.load %arg4[%545] : memref<24xi32, #tpu.memory_space<smem>>
      %c4_i32_361 = arith.constant 4 : i32
      %c3_i32_362 = arith.constant 3 : i32
      %c0_i32_363 = arith.constant 0 : i32
      %547 = tpu.memref_slice %arg6[%546, %c0_i32_363] : memref<64x128xf32, #tpu.memory_space<any>> -> memref<1x128xf32, #tpu.memory_space<any>>
      %548 = tpu.memref_squeeze %547 : memref<1x128xf32, #tpu.memory_space<any>> -> memref<128xf32, #tpu.memory_space<any>>
      %c0_i32_364 = arith.constant 0 : i32
      %549 = tpu.memref_slice %arg12[%290, %c4_i32_361, %c0_i32_364] : memref<2x8x128xf32, #tpu.memory_space<vmem>> -> memref<1x1x128xf32, #tpu.memory_space<vmem>>
      %550 = tpu.memref_squeeze %549 : memref<1x1x128xf32, #tpu.memory_space<vmem>> -> memref<128xf32, #tpu.memory_space<vmem>>
      %551 = tpu.memref_slice %arg14[%290, %c3_i32_362] : memref<2x5x!tpu.dma_semaphore, #tpu.memory_space<semaphore_mem>> -> memref<1x1x!tpu.dma_semaphore, #tpu.memory_space<semaphore_mem>>
      %552 = tpu.memref_squeeze %551 : memref<1x1x!tpu.dma_semaphore, #tpu.memory_space<semaphore_mem>> -> memref<!tpu.dma_semaphore, #tpu.memory_space<semaphore_mem>>
      tpu.enqueue_dma source(%548 : memref<128xf32, #tpu.memory_space<any>>) target(%550 : memref<128xf32, #tpu.memory_space<vmem>>) target_semaphore(%552 : memref<!tpu.dma_semaphore, #tpu.memory_space<semaphore_mem>>)
      %c5_i32_365 = arith.constant 5 : i32
      %553 = arith.addi %291, %c5_i32_365 : i32
      %554 = arith.index_cast %553 : i32 to index
      %555 = memref.load %arg4[%554] : memref<24xi32, #tpu.memory_space<smem>>
      %c5_i32_366 = arith.constant 5 : i32
      %c3_i32_367 = arith.constant 3 : i32
      %c0_i32_368 = arith.constant 0 : i32
      %556 = tpu.memref_slice %arg6[%555, %c0_i32_368] : memref<64x128xf32, #tpu.memory_space<any>> -> memref<1x128xf32, #tpu.memory_space<any>>
      %557 = tpu.memref_squeeze %556 : memref<1x128xf32, #tpu.memory_space<any>> -> memref<128xf32, #tpu.memory_space<any>>
      %c0_i32_369 = arith.constant 0 : i32
      %558 = tpu.memref_slice %arg12[%290, %c5_i32_366, %c0_i32_369] : memref<2x8x128xf32, #tpu.memory_space<vmem>> -> memref<1x1x128xf32, #tpu.memory_space<vmem>>
      %559 = tpu.memref_squeeze %558 : memref<1x1x128xf32, #tpu.memory_space<vmem>> -> memref<128xf32, #tpu.memory_space<vmem>>
      %560 = tpu.memref_slice %arg14[%290, %c3_i32_367] : memref<2x5x!tpu.dma_semaphore, #tpu.memory_space<semaphore_mem>> -> memref<1x1x!tpu.dma_semaphore, #tpu.memory_space<semaphore_mem>>
      %561 = tpu.memref_squeeze %560 : memref<1x1x!tpu.dma_semaphore, #tpu.memory_space<semaphore_mem>> -> memref<!tpu.dma_semaphore, #tpu.memory_space<semaphore_mem>>
      tpu.enqueue_dma source(%557 : memref<128xf32, #tpu.memory_space<any>>) target(%559 : memref<128xf32, #tpu.memory_space<vmem>>) target_semaphore(%561 : memref<!tpu.dma_semaphore, #tpu.memory_space<semaphore_mem>>)
      %c6_i32_370 = arith.constant 6 : i32
      %562 = arith.addi %291, %c6_i32_370 : i32
      %563 = arith.index_cast %562 : i32 to index
      %564 = memref.load %arg4[%563] : memref<24xi32, #tpu.memory_space<smem>>
      %c6_i32_371 = arith.constant 6 : i32
      %c3_i32_372 = arith.constant 3 : i32
      %c0_i32_373 = arith.constant 0 : i32
      %565 = tpu.memref_slice %arg6[%564, %c0_i32_373] : memref<64x128xf32, #tpu.memory_space<any>> -> memref<1x128xf32, #tpu.memory_space<any>>
      %566 = tpu.memref_squeeze %565 : memref<1x128xf32, #tpu.memory_space<any>> -> memref<128xf32, #tpu.memory_space<any>>
      %c0_i32_374 = arith.constant 0 : i32
      %567 = tpu.memref_slice %arg12[%290, %c6_i32_371, %c0_i32_374] : memref<2x8x128xf32, #tpu.memory_space<vmem>> -> memref<1x1x128xf32, #tpu.memory_space<vmem>>
      %568 = tpu.memref_squeeze %567 : memref<1x1x128xf32, #tpu.memory_space<vmem>> -> memref<128xf32, #tpu.memory_space<vmem>>
      %569 = tpu.memref_slice %arg14[%290, %c3_i32_372] : memref<2x5x!tpu.dma_semaphore, #tpu.memory_space<semaphore_mem>> -> memref<1x1x!tpu.dma_semaphore, #tpu.memory_space<semaphore_mem>>
      %570 = tpu.memref_squeeze %569 : memref<1x1x!tpu.dma_semaphore, #tpu.memory_space<semaphore_mem>> -> memref<!tpu.dma_semaphore, #tpu.memory_space<semaphore_mem>>
      tpu.enqueue_dma source(%566 : memref<128xf32, #tpu.memory_space<any>>) target(%568 : memref<128xf32, #tpu.memory_space<vmem>>) target_semaphore(%570 : memref<!tpu.dma_semaphore, #tpu.memory_space<semaphore_mem>>)
      %c7_i32_375 = arith.constant 7 : i32
      %571 = arith.addi %291, %c7_i32_375 : i32
      %572 = arith.index_cast %571 : i32 to index
      %573 = memref.load %arg4[%572] : memref<24xi32, #tpu.memory_space<smem>>
      %c7_i32_376 = arith.constant 7 : i32
      %c3_i32_377 = arith.constant 3 : i32
      %c0_i32_378 = arith.constant 0 : i32
      %574 = tpu.memref_slice %arg6[%573, %c0_i32_378] : memref<64x128xf32, #tpu.memory_space<any>> -> memref<1x128xf32, #tpu.memory_space<any>>
      %575 = tpu.memref_squeeze %574 : memref<1x128xf32, #tpu.memory_space<any>> -> memref<128xf32, #tpu.memory_space<any>>
      %c0_i32_379 = arith.constant 0 : i32
      %576 = tpu.memref_slice %arg12[%290, %c7_i32_376, %c0_i32_379] : memref<2x8x128xf32, #tpu.memory_space<vmem>> -> memref<1x1x128xf32, #tpu.memory_space<vmem>>
      %577 = tpu.memref_squeeze %576 : memref<1x1x128xf32, #tpu.memory_space<vmem>> -> memref<128xf32, #tpu.memory_space<vmem>>
      %578 = tpu.memref_slice %arg14[%290, %c3_i32_377] : memref<2x5x!tpu.dma_semaphore, #tpu.memory_space<semaphore_mem>> -> memref<1x1x!tpu.dma_semaphore, #tpu.memory_space<semaphore_mem>>
      %579 = tpu.memref_squeeze %578 : memref<1x1x!tpu.dma_semaphore, #tpu.memory_space<semaphore_mem>> -> memref<!tpu.dma_semaphore, #tpu.memory_space<semaphore_mem>>
      tpu.enqueue_dma source(%575 : memref<128xf32, #tpu.memory_space<any>>) target(%577 : memref<128xf32, #tpu.memory_space<vmem>>) target_semaphore(%579 : memref<!tpu.dma_semaphore, #tpu.memory_space<semaphore_mem>>)
      %c0_i32_380 = arith.constant 0 : i32
      %580 = arith.addi %291, %c0_i32_380 : i32
      %581 = arith.index_cast %580 : i32 to index
      %582 = memref.load %arg5[%581] : memref<24xi32, #tpu.memory_space<smem>>
      %c0_i32_381 = arith.constant 0 : i32
      %c4_i32_382 = arith.constant 4 : i32
      %c0_i32_383 = arith.constant 0 : i32
      %583 = tpu.memref_slice %arg6[%582, %c0_i32_383] : memref<64x128xf32, #tpu.memory_space<any>> -> memref<1x128xf32, #tpu.memory_space<any>>
      %584 = tpu.memref_squeeze %583 : memref<1x128xf32, #tpu.memory_space<any>> -> memref<128xf32, #tpu.memory_space<any>>
      %c0_i32_384 = arith.constant 0 : i32
      %585 = tpu.memref_slice %arg13[%290, %c0_i32_381, %c0_i32_384] : memref<2x8x128xf32, #tpu.memory_space<vmem>> -> memref<1x1x128xf32, #tpu.memory_space<vmem>>
      %586 = tpu.memref_squeeze %585 : memref<1x1x128xf32, #tpu.memory_space<vmem>> -> memref<128xf32, #tpu.memory_space<vmem>>
      %587 = tpu.memref_slice %arg14[%290, %c4_i32_382] : memref<2x5x!tpu.dma_semaphore, #tpu.memory_space<semaphore_mem>> -> memref<1x1x!tpu.dma_semaphore, #tpu.memory_space<semaphore_mem>>
      %588 = tpu.memref_squeeze %587 : memref<1x1x!tpu.dma_semaphore, #tpu.memory_space<semaphore_mem>> -> memref<!tpu.dma_semaphore, #tpu.memory_space<semaphore_mem>>
      tpu.enqueue_dma source(%584 : memref<128xf32, #tpu.memory_space<any>>) target(%586 : memref<128xf32, #tpu.memory_space<vmem>>) target_semaphore(%588 : memref<!tpu.dma_semaphore, #tpu.memory_space<semaphore_mem>>)
      %c1_i32_385 = arith.constant 1 : i32
      %589 = arith.addi %291, %c1_i32_385 : i32
      %590 = arith.index_cast %589 : i32 to index
      %591 = memref.load %arg5[%590] : memref<24xi32, #tpu.memory_space<smem>>
      %c1_i32_386 = arith.constant 1 : i32
      %c4_i32_387 = arith.constant 4 : i32
      %c0_i32_388 = arith.constant 0 : i32
      %592 = tpu.memref_slice %arg6[%591, %c0_i32_388] : memref<64x128xf32, #tpu.memory_space<any>> -> memref<1x128xf32, #tpu.memory_space<any>>
      %593 = tpu.memref_squeeze %592 : memref<1x128xf32, #tpu.memory_space<any>> -> memref<128xf32, #tpu.memory_space<any>>
      %c0_i32_389 = arith.constant 0 : i32
      %594 = tpu.memref_slice %arg13[%290, %c1_i32_386, %c0_i32_389] : memref<2x8x128xf32, #tpu.memory_space<vmem>> -> memref<1x1x128xf32, #tpu.memory_space<vmem>>
      %595 = tpu.memref_squeeze %594 : memref<1x1x128xf32, #tpu.memory_space<vmem>> -> memref<128xf32, #tpu.memory_space<vmem>>
      %596 = tpu.memref_slice %arg14[%290, %c4_i32_387] : memref<2x5x!tpu.dma_semaphore, #tpu.memory_space<semaphore_mem>> -> memref<1x1x!tpu.dma_semaphore, #tpu.memory_space<semaphore_mem>>
      %597 = tpu.memref_squeeze %596 : memref<1x1x!tpu.dma_semaphore, #tpu.memory_space<semaphore_mem>> -> memref<!tpu.dma_semaphore, #tpu.memory_space<semaphore_mem>>
      tpu.enqueue_dma source(%593 : memref<128xf32, #tpu.memory_space<any>>) target(%595 : memref<128xf32, #tpu.memory_space<vmem>>) target_semaphore(%597 : memref<!tpu.dma_semaphore, #tpu.memory_space<semaphore_mem>>)
      %c2_i32_390 = arith.constant 2 : i32
      %598 = arith.addi %291, %c2_i32_390 : i32
      %599 = arith.index_cast %598 : i32 to index
      %600 = memref.load %arg5[%599] : memref<24xi32, #tpu.memory_space<smem>>
      %c2_i32_391 = arith.constant 2 : i32
      %c4_i32_392 = arith.constant 4 : i32
      %c0_i32_393 = arith.constant 0 : i32
      %601 = tpu.memref_slice %arg6[%600, %c0_i32_393] : memref<64x128xf32, #tpu.memory_space<any>> -> memref<1x128xf32, #tpu.memory_space<any>>
      %602 = tpu.memref_squeeze %601 : memref<1x128xf32, #tpu.memory_space<any>> -> memref<128xf32, #tpu.memory_space<any>>
      %c0_i32_394 = arith.constant 0 : i32
      %603 = tpu.memref_slice %arg13[%290, %c2_i32_391, %c0_i32_394] : memref<2x8x128xf32, #tpu.memory_space<vmem>> -> memref<1x1x128xf32, #tpu.memory_space<vmem>>
      %604 = tpu.memref_squeeze %603 : memref<1x1x128xf32, #tpu.memory_space<vmem>> -> memref<128xf32, #tpu.memory_space<vmem>>
      %605 = tpu.memref_slice %arg14[%290, %c4_i32_392] : memref<2x5x!tpu.dma_semaphore, #tpu.memory_space<semaphore_mem>> -> memref<1x1x!tpu.dma_semaphore, #tpu.memory_space<semaphore_mem>>
      %606 = tpu.memref_squeeze %605 : memref<1x1x!tpu.dma_semaphore, #tpu.memory_space<semaphore_mem>> -> memref<!tpu.dma_semaphore, #tpu.memory_space<semaphore_mem>>
      tpu.enqueue_dma source(%602 : memref<128xf32, #tpu.memory_space<any>>) target(%604 : memref<128xf32, #tpu.memory_space<vmem>>) target_semaphore(%606 : memref<!tpu.dma_semaphore, #tpu.memory_space<semaphore_mem>>)
      %c3_i32_395 = arith.constant 3 : i32
      %607 = arith.addi %291, %c3_i32_395 : i32
      %608 = arith.index_cast %607 : i32 to index
      %609 = memref.load %arg5[%608] : memref<24xi32, #tpu.memory_space<smem>>
      %c3_i32_396 = arith.constant 3 : i32
      %c4_i32_397 = arith.constant 4 : i32
      %c0_i32_398 = arith.constant 0 : i32
      %610 = tpu.memref_slice %arg6[%609, %c0_i32_398] : memref<64x128xf32, #tpu.memory_space<any>> -> memref<1x128xf32, #tpu.memory_space<any>>
      %611 = tpu.memref_squeeze %610 : memref<1x128xf32, #tpu.memory_space<any>> -> memref<128xf32, #tpu.memory_space<any>>
      %c0_i32_399 = arith.constant 0 : i32
      %612 = tpu.memref_slice %arg13[%290, %c3_i32_396, %c0_i32_399] : memref<2x8x128xf32, #tpu.memory_space<vmem>> -> memref<1x1x128xf32, #tpu.memory_space<vmem>>
      %613 = tpu.memref_squeeze %612 : memref<1x1x128xf32, #tpu.memory_space<vmem>> -> memref<128xf32, #tpu.memory_space<vmem>>
      %614 = tpu.memref_slice %arg14[%290, %c4_i32_397] : memref<2x5x!tpu.dma_semaphore, #tpu.memory_space<semaphore_mem>> -> memref<1x1x!tpu.dma_semaphore, #tpu.memory_space<semaphore_mem>>
      %615 = tpu.memref_squeeze %614 : memref<1x1x!tpu.dma_semaphore, #tpu.memory_space<semaphore_mem>> -> memref<!tpu.dma_semaphore, #tpu.memory_space<semaphore_mem>>
      tpu.enqueue_dma source(%611 : memref<128xf32, #tpu.memory_space<any>>) target(%613 : memref<128xf32, #tpu.memory_space<vmem>>) target_semaphore(%615 : memref<!tpu.dma_semaphore, #tpu.memory_space<semaphore_mem>>)
      %c4_i32_400 = arith.constant 4 : i32
      %616 = arith.addi %291, %c4_i32_400 : i32
      %617 = arith.index_cast %616 : i32 to index
      %618 = memref.load %arg5[%617] : memref<24xi32, #tpu.memory_space<smem>>
      %c4_i32_401 = arith.constant 4 : i32
      %c4_i32_402 = arith.constant 4 : i32
      %c0_i32_403 = arith.constant 0 : i32
      %619 = tpu.memref_slice %arg6[%618, %c0_i32_403] : memref<64x128xf32, #tpu.memory_space<any>> -> memref<1x128xf32, #tpu.memory_space<any>>
      %620 = tpu.memref_squeeze %619 : memref<1x128xf32, #tpu.memory_space<any>> -> memref<128xf32, #tpu.memory_space<any>>
      %c0_i32_404 = arith.constant 0 : i32
      %621 = tpu.memref_slice %arg13[%290, %c4_i32_401, %c0_i32_404] : memref<2x8x128xf32, #tpu.memory_space<vmem>> -> memref<1x1x128xf32, #tpu.memory_space<vmem>>
      %622 = tpu.memref_squeeze %621 : memref<1x1x128xf32, #tpu.memory_space<vmem>> -> memref<128xf32, #tpu.memory_space<vmem>>
      %623 = tpu.memref_slice %arg14[%290, %c4_i32_402] : memref<2x5x!tpu.dma_semaphore, #tpu.memory_space<semaphore_mem>> -> memref<1x1x!tpu.dma_semaphore, #tpu.memory_space<semaphore_mem>>
      %624 = tpu.memref_squeeze %623 : memref<1x1x!tpu.dma_semaphore, #tpu.memory_space<semaphore_mem>> -> memref<!tpu.dma_semaphore, #tpu.memory_space<semaphore_mem>>
      tpu.enqueue_dma source(%620 : memref<128xf32, #tpu.memory_space<any>>) target(%622 : memref<128xf32, #tpu.memory_space<vmem>>) target_semaphore(%624 : memref<!tpu.dma_semaphore, #tpu.memory_space<semaphore_mem>>)
      %c5_i32_405 = arith.constant 5 : i32
      %625 = arith.addi %291, %c5_i32_405 : i32
      %626 = arith.index_cast %625 : i32 to index
      %627 = memref.load %arg5[%626] : memref<24xi32, #tpu.memory_space<smem>>
      %c5_i32_406 = arith.constant 5 : i32
      %c4_i32_407 = arith.constant 4 : i32
      %c0_i32_408 = arith.constant 0 : i32
      %628 = tpu.memref_slice %arg6[%627, %c0_i32_408] : memref<64x128xf32, #tpu.memory_space<any>> -> memref<1x128xf32, #tpu.memory_space<any>>
      %629 = tpu.memref_squeeze %628 : memref<1x128xf32, #tpu.memory_space<any>> -> memref<128xf32, #tpu.memory_space<any>>
      %c0_i32_409 = arith.constant 0 : i32
      %630 = tpu.memref_slice %arg13[%290, %c5_i32_406, %c0_i32_409] : memref<2x8x128xf32, #tpu.memory_space<vmem>> -> memref<1x1x128xf32, #tpu.memory_space<vmem>>
      %631 = tpu.memref_squeeze %630 : memref<1x1x128xf32, #tpu.memory_space<vmem>> -> memref<128xf32, #tpu.memory_space<vmem>>
      %632 = tpu.memref_slice %arg14[%290, %c4_i32_407] : memref<2x5x!tpu.dma_semaphore, #tpu.memory_space<semaphore_mem>> -> memref<1x1x!tpu.dma_semaphore, #tpu.memory_space<semaphore_mem>>
      %633 = tpu.memref_squeeze %632 : memref<1x1x!tpu.dma_semaphore, #tpu.memory_space<semaphore_mem>> -> memref<!tpu.dma_semaphore, #tpu.memory_space<semaphore_mem>>
      tpu.enqueue_dma source(%629 : memref<128xf32, #tpu.memory_space<any>>) target(%631 : memref<128xf32, #tpu.memory_space<vmem>>) target_semaphore(%633 : memref<!tpu.dma_semaphore, #tpu.memory_space<semaphore_mem>>)
      %c6_i32_410 = arith.constant 6 : i32
      %634 = arith.addi %291, %c6_i32_410 : i32
      %635 = arith.index_cast %634 : i32 to index
      %636 = memref.load %arg5[%635] : memref<24xi32, #tpu.memory_space<smem>>
      %c6_i32_411 = arith.constant 6 : i32
      %c4_i32_412 = arith.constant 4 : i32
      %c0_i32_413 = arith.constant 0 : i32
      %637 = tpu.memref_slice %arg6[%636, %c0_i32_413] : memref<64x128xf32, #tpu.memory_space<any>> -> memref<1x128xf32, #tpu.memory_space<any>>
      %638 = tpu.memref_squeeze %637 : memref<1x128xf32, #tpu.memory_space<any>> -> memref<128xf32, #tpu.memory_space<any>>
      %c0_i32_414 = arith.constant 0 : i32
      %639 = tpu.memref_slice %arg13[%290, %c6_i32_411, %c0_i32_414] : memref<2x8x128xf32, #tpu.memory_space<vmem>> -> memref<1x1x128xf32, #tpu.memory_space<vmem>>
      %640 = tpu.memref_squeeze %639 : memref<1x1x128xf32, #tpu.memory_space<vmem>> -> memref<128xf32, #tpu.memory_space<vmem>>
      %641 = tpu.memref_slice %arg14[%290, %c4_i32_412] : memref<2x5x!tpu.dma_semaphore, #tpu.memory_space<semaphore_mem>> -> memref<1x1x!tpu.dma_semaphore, #tpu.memory_space<semaphore_mem>>
      %642 = tpu.memref_squeeze %641 : memref<1x1x!tpu.dma_semaphore, #tpu.memory_space<semaphore_mem>> -> memref<!tpu.dma_semaphore, #tpu.memory_space<semaphore_mem>>
      tpu.enqueue_dma source(%638 : memref<128xf32, #tpu.memory_space<any>>) target(%640 : memref<128xf32, #tpu.memory_space<vmem>>) target_semaphore(%642 : memref<!tpu.dma_semaphore, #tpu.memory_space<semaphore_mem>>)
      %c7_i32_415 = arith.constant 7 : i32
      %643 = arith.addi %291, %c7_i32_415 : i32
      %644 = arith.index_cast %643 : i32 to index
      %645 = memref.load %arg5[%644] : memref<24xi32, #tpu.memory_space<smem>>
      %c7_i32_416 = arith.constant 7 : i32
      %c4_i32_417 = arith.constant 4 : i32
      %c0_i32_418 = arith.constant 0 : i32
      %646 = tpu.memref_slice %arg6[%645, %c0_i32_418] : memref<64x128xf32, #tpu.memory_space<any>> -> memref<1x128xf32, #tpu.memory_space<any>>
      %647 = tpu.memref_squeeze %646 : memref<1x128xf32, #tpu.memory_space<any>> -> memref<128xf32, #tpu.memory_space<any>>
      %c0_i32_419 = arith.constant 0 : i32
      %648 = tpu.memref_slice %arg13[%290, %c7_i32_416, %c0_i32_419] : memref<2x8x128xf32, #tpu.memory_space<vmem>> -> memref<1x1x128xf32, #tpu.memory_space<vmem>>
      %649 = tpu.memref_squeeze %648 : memref<1x1x128xf32, #tpu.memory_space<vmem>> -> memref<128xf32, #tpu.memory_space<vmem>>
      %650 = tpu.memref_slice %arg14[%290, %c4_i32_417] : memref<2x5x!tpu.dma_semaphore, #tpu.memory_space<semaphore_mem>> -> memref<1x1x!tpu.dma_semaphore, #tpu.memory_space<semaphore_mem>>
      %651 = tpu.memref_squeeze %650 : memref<1x1x!tpu.dma_semaphore, #tpu.memory_space<semaphore_mem>> -> memref<!tpu.dma_semaphore, #tpu.memory_space<semaphore_mem>>
      tpu.enqueue_dma source(%647 : memref<128xf32, #tpu.memory_space<any>>) target(%649 : memref<128xf32, #tpu.memory_space<vmem>>) target_semaphore(%651 : memref<!tpu.dma_semaphore, #tpu.memory_space<semaphore_mem>>)
    } else {
    }
    %c0_i32_7 = arith.constant 0 : i32
    %c0_i32_8 = arith.constant 0 : i32
    %c0_i32_9 = arith.constant 0 : i32
    %c0_i32_10 = arith.constant 0 : i32
    %17 = tpu.memref_slice %arg6[%c0_i32_7, %c0_i32_10] : memref<64x128xf32, #tpu.memory_space<any>> -> memref<1x128xf32, #tpu.memory_space<any>>
    %18 = tpu.memref_squeeze %17 : memref<1x128xf32, #tpu.memory_space<any>> -> memref<128xf32, #tpu.memory_space<any>>
    %c0_i32_11 = arith.constant 0 : i32
    %19 = tpu.memref_slice %arg9[%9, %c0_i32_8, %c0_i32_11] : memref<2x8x128xf32, #tpu.memory_space<vmem>> -> memref<1x1x128xf32, #tpu.memory_space<vmem>>
    %20 = tpu.memref_squeeze %19 : memref<1x1x128xf32, #tpu.memory_space<vmem>> -> memref<128xf32, #tpu.memory_space<vmem>>
    %21 = tpu.memref_slice %arg14[%9, %c0_i32_9] : memref<2x5x!tpu.dma_semaphore, #tpu.memory_space<semaphore_mem>> -> memref<1x1x!tpu.dma_semaphore, #tpu.memory_space<semaphore_mem>>
    %22 = tpu.memref_squeeze %21 : memref<1x1x!tpu.dma_semaphore, #tpu.memory_space<semaphore_mem>> -> memref<!tpu.dma_semaphore, #tpu.memory_space<semaphore_mem>>
    tpu.wait_dma2 semaphore(%22 : memref<!tpu.dma_semaphore, #tpu.memory_space<semaphore_mem>>) src(%18 : memref<128xf32, #tpu.memory_space<any>>) dst(%20 : memref<128xf32, #tpu.memory_space<vmem>>)
    %c0_i32_12 = arith.constant 0 : i32
    %c1_i32_13 = arith.constant 1 : i32
    %c0_i32_14 = arith.constant 0 : i32
    %c0_i32_15 = arith.constant 0 : i32
    %23 = tpu.memref_slice %arg6[%c0_i32_12, %c0_i32_15] : memref<64x128xf32, #tpu.memory_space<any>> -> memref<1x128xf32, #tpu.memory_space<any>>
    %24 = tpu.memref_squeeze %23 : memref<1x128xf32, #tpu.memory_space<any>> -> memref<128xf32, #tpu.memory_space<any>>
    %c0_i32_16 = arith.constant 0 : i32
    %25 = tpu.memref_slice %arg9[%9, %c1_i32_13, %c0_i32_16] : memref<2x8x128xf32, #tpu.memory_space<vmem>> -> memref<1x1x128xf32, #tpu.memory_space<vmem>>
    %26 = tpu.memref_squeeze %25 : memref<1x1x128xf32, #tpu.memory_space<vmem>> -> memref<128xf32, #tpu.memory_space<vmem>>
    %27 = tpu.memref_slice %arg14[%9, %c0_i32_14] : memref<2x5x!tpu.dma_semaphore, #tpu.memory_space<semaphore_mem>> -> memref<1x1x!tpu.dma_semaphore, #tpu.memory_space<semaphore_mem>>
    %28 = tpu.memref_squeeze %27 : memref<1x1x!tpu.dma_semaphore, #tpu.memory_space<semaphore_mem>> -> memref<!tpu.dma_semaphore, #tpu.memory_space<semaphore_mem>>
    tpu.wait_dma2 semaphore(%28 : memref<!tpu.dma_semaphore, #tpu.memory_space<semaphore_mem>>) src(%24 : memref<128xf32, #tpu.memory_space<any>>) dst(%26 : memref<128xf32, #tpu.memory_space<vmem>>)
    %c0_i32_17 = arith.constant 0 : i32
    %c2_i32_18 = arith.constant 2 : i32
    %c0_i32_19 = arith.constant 0 : i32
    %c0_i32_20 = arith.constant 0 : i32
    %29 = tpu.memref_slice %arg6[%c0_i32_17, %c0_i32_20] : memref<64x128xf32, #tpu.memory_space<any>> -> memref<1x128xf32, #tpu.memory_space<any>>
    %30 = tpu.memref_squeeze %29 : memref<1x128xf32, #tpu.memory_space<any>> -> memref<128xf32, #tpu.memory_space<any>>
    %c0_i32_21 = arith.constant 0 : i32
    %31 = tpu.memref_slice %arg9[%9, %c2_i32_18, %c0_i32_21] : memref<2x8x128xf32, #tpu.memory_space<vmem>> -> memref<1x1x128xf32, #tpu.memory_space<vmem>>
    %32 = tpu.memref_squeeze %31 : memref<1x1x128xf32, #tpu.memory_space<vmem>> -> memref<128xf32, #tpu.memory_space<vmem>>
    %33 = tpu.memref_slice %arg14[%9, %c0_i32_19] : memref<2x5x!tpu.dma_semaphore, #tpu.memory_space<semaphore_mem>> -> memref<1x1x!tpu.dma_semaphore, #tpu.memory_space<semaphore_mem>>
    %34 = tpu.memref_squeeze %33 : memref<1x1x!tpu.dma_semaphore, #tpu.memory_space<semaphore_mem>> -> memref<!tpu.dma_semaphore, #tpu.memory_space<semaphore_mem>>
    tpu.wait_dma2 semaphore(%34 : memref<!tpu.dma_semaphore, #tpu.memory_space<semaphore_mem>>) src(%30 : memref<128xf32, #tpu.memory_space<any>>) dst(%32 : memref<128xf32, #tpu.memory_space<vmem>>)
    %c0_i32_22 = arith.constant 0 : i32
    %c3_i32_23 = arith.constant 3 : i32
    %c0_i32_24 = arith.constant 0 : i32
    %c0_i32_25 = arith.constant 0 : i32
    %35 = tpu.memref_slice %arg6[%c0_i32_22, %c0_i32_25] : memref<64x128xf32, #tpu.memory_space<any>> -> memref<1x128xf32, #tpu.memory_space<any>>
    %36 = tpu.memref_squeeze %35 : memref<1x128xf32, #tpu.memory_space<any>> -> memref<128xf32, #tpu.memory_space<any>>
    %c0_i32_26 = arith.constant 0 : i32
    %37 = tpu.memref_slice %arg9[%9, %c3_i32_23, %c0_i32_26] : memref<2x8x128xf32, #tpu.memory_space<vmem>> -> memref<1x1x128xf32, #tpu.memory_space<vmem>>
    %38 = tpu.memref_squeeze %37 : memref<1x1x128xf32, #tpu.memory_space<vmem>> -> memref<128xf32, #tpu.memory_space<vmem>>
    %39 = tpu.memref_slice %arg14[%9, %c0_i32_24] : memref<2x5x!tpu.dma_semaphore, #tpu.memory_space<semaphore_mem>> -> memref<1x1x!tpu.dma_semaphore, #tpu.memory_space<semaphore_mem>>
    %40 = tpu.memref_squeeze %39 : memref<1x1x!tpu.dma_semaphore, #tpu.memory_space<semaphore_mem>> -> memref<!tpu.dma_semaphore, #tpu.memory_space<semaphore_mem>>
    tpu.wait_dma2 semaphore(%40 : memref<!tpu.dma_semaphore, #tpu.memory_space<semaphore_mem>>) src(%36 : memref<128xf32, #tpu.memory_space<any>>) dst(%38 : memref<128xf32, #tpu.memory_space<vmem>>)
    %c0_i32_27 = arith.constant 0 : i32
    %c4_i32 = arith.constant 4 : i32
    %c0_i32_28 = arith.constant 0 : i32
    %c0_i32_29 = arith.constant 0 : i32
    %41 = tpu.memref_slice %arg6[%c0_i32_27, %c0_i32_29] : memref<64x128xf32, #tpu.memory_space<any>> -> memref<1x128xf32, #tpu.memory_space<any>>
    %42 = tpu.memref_squeeze %41 : memref<1x128xf32, #tpu.memory_space<any>> -> memref<128xf32, #tpu.memory_space<any>>
    %c0_i32_30 = arith.constant 0 : i32
    %43 = tpu.memref_slice %arg9[%9, %c4_i32, %c0_i32_30] : memref<2x8x128xf32, #tpu.memory_space<vmem>> -> memref<1x1x128xf32, #tpu.memory_space<vmem>>
    %44 = tpu.memref_squeeze %43 : memref<1x1x128xf32, #tpu.memory_space<vmem>> -> memref<128xf32, #tpu.memory_space<vmem>>
    %45 = tpu.memref_slice %arg14[%9, %c0_i32_28] : memref<2x5x!tpu.dma_semaphore, #tpu.memory_space<semaphore_mem>> -> memref<1x1x!tpu.dma_semaphore, #tpu.memory_space<semaphore_mem>>
    %46 = tpu.memref_squeeze %45 : memref<1x1x!tpu.dma_semaphore, #tpu.memory_space<semaphore_mem>> -> memref<!tpu.dma_semaphore, #tpu.memory_space<semaphore_mem>>
    tpu.wait_dma2 semaphore(%46 : memref<!tpu.dma_semaphore, #tpu.memory_space<semaphore_mem>>) src(%42 : memref<128xf32, #tpu.memory_space<any>>) dst(%44 : memref<128xf32, #tpu.memory_space<vmem>>)
    %c0_i32_31 = arith.constant 0 : i32
    %c5_i32 = arith.constant 5 : i32
    %c0_i32_32 = arith.constant 0 : i32
    %c0_i32_33 = arith.constant 0 : i32
    %47 = tpu.memref_slice %arg6[%c0_i32_31, %c0_i32_33] : memref<64x128xf32, #tpu.memory_space<any>> -> memref<1x128xf32, #tpu.memory_space<any>>
    %48 = tpu.memref_squeeze %47 : memref<1x128xf32, #tpu.memory_space<any>> -> memref<128xf32, #tpu.memory_space<any>>
    %c0_i32_34 = arith.constant 0 : i32
    %49 = tpu.memref_slice %arg9[%9, %c5_i32, %c0_i32_34] : memref<2x8x128xf32, #tpu.memory_space<vmem>> -> memref<1x1x128xf32, #tpu.memory_space<vmem>>
    %50 = tpu.memref_squeeze %49 : memref<1x1x128xf32, #tpu.memory_space<vmem>> -> memref<128xf32, #tpu.memory_space<vmem>>
    %51 = tpu.memref_slice %arg14[%9, %c0_i32_32] : memref<2x5x!tpu.dma_semaphore, #tpu.memory_space<semaphore_mem>> -> memref<1x1x!tpu.dma_semaphore, #tpu.memory_space<semaphore_mem>>
    %52 = tpu.memref_squeeze %51 : memref<1x1x!tpu.dma_semaphore, #tpu.memory_space<semaphore_mem>> -> memref<!tpu.dma_semaphore, #tpu.memory_space<semaphore_mem>>
    tpu.wait_dma2 semaphore(%52 : memref<!tpu.dma_semaphore, #tpu.memory_space<semaphore_mem>>) src(%48 : memref<128xf32, #tpu.memory_space<any>>) dst(%50 : memref<128xf32, #tpu.memory_space<vmem>>)
    %c0_i32_35 = arith.constant 0 : i32
    %c6_i32 = arith.constant 6 : i32
    %c0_i32_36 = arith.constant 0 : i32
    %c0_i32_37 = arith.constant 0 : i32
    %53 = tpu.memref_slice %arg6[%c0_i32_35, %c0_i32_37] : memref<64x128xf32, #tpu.memory_space<any>> -> memref<1x128xf32, #tpu.memory_space<any>>
    %54 = tpu.memref_squeeze %53 : memref<1x128xf32, #tpu.memory_space<any>> -> memref<128xf32, #tpu.memory_space<any>>
    %c0_i32_38 = arith.constant 0 : i32
    %55 = tpu.memref_slice %arg9[%9, %c6_i32, %c0_i32_38] : memref<2x8x128xf32, #tpu.memory_space<vmem>> -> memref<1x1x128xf32, #tpu.memory_space<vmem>>
    %56 = tpu.memref_squeeze %55 : memref<1x1x128xf32, #tpu.memory_space<vmem>> -> memref<128xf32, #tpu.memory_space<vmem>>
    %57 = tpu.memref_slice %arg14[%9, %c0_i32_36] : memref<2x5x!tpu.dma_semaphore, #tpu.memory_space<semaphore_mem>> -> memref<1x1x!tpu.dma_semaphore, #tpu.memory_space<semaphore_mem>>
    %58 = tpu.memref_squeeze %57 : memref<1x1x!tpu.dma_semaphore, #tpu.memory_space<semaphore_mem>> -> memref<!tpu.dma_semaphore, #tpu.memory_space<semaphore_mem>>
    tpu.wait_dma2 semaphore(%58 : memref<!tpu.dma_semaphore, #tpu.memory_space<semaphore_mem>>) src(%54 : memref<128xf32, #tpu.memory_space<any>>) dst(%56 : memref<128xf32, #tpu.memory_space<vmem>>)
    %c0_i32_39 = arith.constant 0 : i32
    %c7_i32 = arith.constant 7 : i32
    %c0_i32_40 = arith.constant 0 : i32
    %c0_i32_41 = arith.constant 0 : i32
    %59 = tpu.memref_slice %arg6[%c0_i32_39, %c0_i32_41] : memref<64x128xf32, #tpu.memory_space<any>> -> memref<1x128xf32, #tpu.memory_space<any>>
    %60 = tpu.memref_squeeze %59 : memref<1x128xf32, #tpu.memory_space<any>> -> memref<128xf32, #tpu.memory_space<any>>
    %c0_i32_42 = arith.constant 0 : i32
    %61 = tpu.memref_slice %arg9[%9, %c7_i32, %c0_i32_42] : memref<2x8x128xf32, #tpu.memory_space<vmem>> -> memref<1x1x128xf32, #tpu.memory_space<vmem>>
    %62 = tpu.memref_squeeze %61 : memref<1x1x128xf32, #tpu.memory_space<vmem>> -> memref<128xf32, #tpu.memory_space<vmem>>
    %63 = tpu.memref_slice %arg14[%9, %c0_i32_40] : memref<2x5x!tpu.dma_semaphore, #tpu.memory_space<semaphore_mem>> -> memref<1x1x!tpu.dma_semaphore, #tpu.memory_space<semaphore_mem>>
    %64 = tpu.memref_squeeze %63 : memref<1x1x!tpu.dma_semaphore, #tpu.memory_space<semaphore_mem>> -> memref<!tpu.dma_semaphore, #tpu.memory_space<semaphore_mem>>
    tpu.wait_dma2 semaphore(%64 : memref<!tpu.dma_semaphore, #tpu.memory_space<semaphore_mem>>) src(%60 : memref<128xf32, #tpu.memory_space<any>>) dst(%62 : memref<128xf32, #tpu.memory_space<vmem>>)
    %c0_i32_43 = arith.constant 0 : i32
    %c0_i32_44 = arith.constant 0 : i32
    %c1_i32_45 = arith.constant 1 : i32
    %c0_i32_46 = arith.constant 0 : i32
    %65 = tpu.memref_slice %arg7[%c0_i32_43, %c0_i32_46] : memref<16x128xf32, #tpu.memory_space<any>> -> memref<1x128xf32, #tpu.memory_space<any>>
    %66 = tpu.memref_squeeze %65 : memref<1x128xf32, #tpu.memory_space<any>> -> memref<128xf32, #tpu.memory_space<any>>
    %c0_i32_47 = arith.constant 0 : i32
    %67 = tpu.memref_slice %arg10[%9, %c0_i32_44, %c0_i32_47] : memref<2x8x128xf32, #tpu.memory_space<vmem>> -> memref<1x1x128xf32, #tpu.memory_space<vmem>>
    %68 = tpu.memref_squeeze %67 : memref<1x1x128xf32, #tpu.memory_space<vmem>> -> memref<128xf32, #tpu.memory_space<vmem>>
    %69 = tpu.memref_slice %arg14[%9, %c1_i32_45] : memref<2x5x!tpu.dma_semaphore, #tpu.memory_space<semaphore_mem>> -> memref<1x1x!tpu.dma_semaphore, #tpu.memory_space<semaphore_mem>>
    %70 = tpu.memref_squeeze %69 : memref<1x1x!tpu.dma_semaphore, #tpu.memory_space<semaphore_mem>> -> memref<!tpu.dma_semaphore, #tpu.memory_space<semaphore_mem>>
    tpu.wait_dma2 semaphore(%70 : memref<!tpu.dma_semaphore, #tpu.memory_space<semaphore_mem>>) src(%66 : memref<128xf32, #tpu.memory_space<any>>) dst(%68 : memref<128xf32, #tpu.memory_space<vmem>>)
    %c0_i32_48 = arith.constant 0 : i32
    %c1_i32_49 = arith.constant 1 : i32
    %c1_i32_50 = arith.constant 1 : i32
    %c0_i32_51 = arith.constant 0 : i32
    %71 = tpu.memref_slice %arg7[%c0_i32_48, %c0_i32_51] : memref<16x128xf32, #tpu.memory_space<any>> -> memref<1x128xf32, #tpu.memory_space<any>>
    %72 = tpu.memref_squeeze %71 : memref<1x128xf32, #tpu.memory_space<any>> -> memref<128xf32, #tpu.memory_space<any>>
    %c0_i32_52 = arith.constant 0 : i32
    %73 = tpu.memref_slice %arg10[%9, %c1_i32_49, %c0_i32_52] : memref<2x8x128xf32, #tpu.memory_space<vmem>> -> memref<1x1x128xf32, #tpu.memory_space<vmem>>
    %74 = tpu.memref_squeeze %73 : memref<1x1x128xf32, #tpu.memory_space<vmem>> -> memref<128xf32, #tpu.memory_space<vmem>>
    %75 = tpu.memref_slice %arg14[%9, %c1_i32_50] : memref<2x5x!tpu.dma_semaphore, #tpu.memory_space<semaphore_mem>> -> memref<1x1x!tpu.dma_semaphore, #tpu.memory_space<semaphore_mem>>
    %76 = tpu.memref_squeeze %75 : memref<1x1x!tpu.dma_semaphore, #tpu.memory_space<semaphore_mem>> -> memref<!tpu.dma_semaphore, #tpu.memory_space<semaphore_mem>>
    tpu.wait_dma2 semaphore(%76 : memref<!tpu.dma_semaphore, #tpu.memory_space<semaphore_mem>>) src(%72 : memref<128xf32, #tpu.memory_space<any>>) dst(%74 : memref<128xf32, #tpu.memory_space<vmem>>)
    %c0_i32_53 = arith.constant 0 : i32
    %c2_i32_54 = arith.constant 2 : i32
    %c1_i32_55 = arith.constant 1 : i32
    %c0_i32_56 = arith.constant 0 : i32
    %77 = tpu.memref_slice %arg7[%c0_i32_53, %c0_i32_56] : memref<16x128xf32, #tpu.memory_space<any>> -> memref<1x128xf32, #tpu.memory_space<any>>
    %78 = tpu.memref_squeeze %77 : memref<1x128xf32, #tpu.memory_space<any>> -> memref<128xf32, #tpu.memory_space<any>>
    %c0_i32_57 = arith.constant 0 : i32
    %79 = tpu.memref_slice %arg10[%9, %c2_i32_54, %c0_i32_57] : memref<2x8x128xf32, #tpu.memory_space<vmem>> -> memref<1x1x128xf32, #tpu.memory_space<vmem>>
    %80 = tpu.memref_squeeze %79 : memref<1x1x128xf32, #tpu.memory_space<vmem>> -> memref<128xf32, #tpu.memory_space<vmem>>
    %81 = tpu.memref_slice %arg14[%9, %c1_i32_55] : memref<2x5x!tpu.dma_semaphore, #tpu.memory_space<semaphore_mem>> -> memref<1x1x!tpu.dma_semaphore, #tpu.memory_space<semaphore_mem>>
    %82 = tpu.memref_squeeze %81 : memref<1x1x!tpu.dma_semaphore, #tpu.memory_space<semaphore_mem>> -> memref<!tpu.dma_semaphore, #tpu.memory_space<semaphore_mem>>
    tpu.wait_dma2 semaphore(%82 : memref<!tpu.dma_semaphore, #tpu.memory_space<semaphore_mem>>) src(%78 : memref<128xf32, #tpu.memory_space<any>>) dst(%80 : memref<128xf32, #tpu.memory_space<vmem>>)
    %c0_i32_58 = arith.constant 0 : i32
    %c3_i32_59 = arith.constant 3 : i32
    %c1_i32_60 = arith.constant 1 : i32
    %c0_i32_61 = arith.constant 0 : i32
    %83 = tpu.memref_slice %arg7[%c0_i32_58, %c0_i32_61] : memref<16x128xf32, #tpu.memory_space<any>> -> memref<1x128xf32, #tpu.memory_space<any>>
    %84 = tpu.memref_squeeze %83 : memref<1x128xf32, #tpu.memory_space<any>> -> memref<128xf32, #tpu.memory_space<any>>
    %c0_i32_62 = arith.constant 0 : i32
    %85 = tpu.memref_slice %arg10[%9, %c3_i32_59, %c0_i32_62] : memref<2x8x128xf32, #tpu.memory_space<vmem>> -> memref<1x1x128xf32, #tpu.memory_space<vmem>>
    %86 = tpu.memref_squeeze %85 : memref<1x1x128xf32, #tpu.memory_space<vmem>> -> memref<128xf32, #tpu.memory_space<vmem>>
    %87 = tpu.memref_slice %arg14[%9, %c1_i32_60] : memref<2x5x!tpu.dma_semaphore, #tpu.memory_space<semaphore_mem>> -> memref<1x1x!tpu.dma_semaphore, #tpu.memory_space<semaphore_mem>>
    %88 = tpu.memref_squeeze %87 : memref<1x1x!tpu.dma_semaphore, #tpu.memory_space<semaphore_mem>> -> memref<!tpu.dma_semaphore, #tpu.memory_space<semaphore_mem>>
    tpu.wait_dma2 semaphore(%88 : memref<!tpu.dma_semaphore, #tpu.memory_space<semaphore_mem>>) src(%84 : memref<128xf32, #tpu.memory_space<any>>) dst(%86 : memref<128xf32, #tpu.memory_space<vmem>>)
    %c0_i32_63 = arith.constant 0 : i32
    %c4_i32_64 = arith.constant 4 : i32
    %c1_i32_65 = arith.constant 1 : i32
    %c0_i32_66 = arith.constant 0 : i32
    %89 = tpu.memref_slice %arg7[%c0_i32_63, %c0_i32_66] : memref<16x128xf32, #tpu.memory_space<any>> -> memref<1x128xf32, #tpu.memory_space<any>>
    %90 = tpu.memref_squeeze %89 : memref<1x128xf32, #tpu.memory_space<any>> -> memref<128xf32, #tpu.memory_space<any>>
    %c0_i32_67 = arith.constant 0 : i32
    %91 = tpu.memref_slice %arg10[%9, %c4_i32_64, %c0_i32_67] : memref<2x8x128xf32, #tpu.memory_space<vmem>> -> memref<1x1x128xf32, #tpu.memory_space<vmem>>
    %92 = tpu.memref_squeeze %91 : memref<1x1x128xf32, #tpu.memory_space<vmem>> -> memref<128xf32, #tpu.memory_space<vmem>>
    %93 = tpu.memref_slice %arg14[%9, %c1_i32_65] : memref<2x5x!tpu.dma_semaphore, #tpu.memory_space<semaphore_mem>> -> memref<1x1x!tpu.dma_semaphore, #tpu.memory_space<semaphore_mem>>
    %94 = tpu.memref_squeeze %93 : memref<1x1x!tpu.dma_semaphore, #tpu.memory_space<semaphore_mem>> -> memref<!tpu.dma_semaphore, #tpu.memory_space<semaphore_mem>>
    tpu.wait_dma2 semaphore(%94 : memref<!tpu.dma_semaphore, #tpu.memory_space<semaphore_mem>>) src(%90 : memref<128xf32, #tpu.memory_space<any>>) dst(%92 : memref<128xf32, #tpu.memory_space<vmem>>)
    %c0_i32_68 = arith.constant 0 : i32
    %c5_i32_69 = arith.constant 5 : i32
    %c1_i32_70 = arith.constant 1 : i32
    %c0_i32_71 = arith.constant 0 : i32
    %95 = tpu.memref_slice %arg7[%c0_i32_68, %c0_i32_71] : memref<16x128xf32, #tpu.memory_space<any>> -> memref<1x128xf32, #tpu.memory_space<any>>
    %96 = tpu.memref_squeeze %95 : memref<1x128xf32, #tpu.memory_space<any>> -> memref<128xf32, #tpu.memory_space<any>>
    %c0_i32_72 = arith.constant 0 : i32
    %97 = tpu.memref_slice %arg10[%9, %c5_i32_69, %c0_i32_72] : memref<2x8x128xf32, #tpu.memory_space<vmem>> -> memref<1x1x128xf32, #tpu.memory_space<vmem>>
    %98 = tpu.memref_squeeze %97 : memref<1x1x128xf32, #tpu.memory_space<vmem>> -> memref<128xf32, #tpu.memory_space<vmem>>
    %99 = tpu.memref_slice %arg14[%9, %c1_i32_70] : memref<2x5x!tpu.dma_semaphore, #tpu.memory_space<semaphore_mem>> -> memref<1x1x!tpu.dma_semaphore, #tpu.memory_space<semaphore_mem>>
    %100 = tpu.memref_squeeze %99 : memref<1x1x!tpu.dma_semaphore, #tpu.memory_space<semaphore_mem>> -> memref<!tpu.dma_semaphore, #tpu.memory_space<semaphore_mem>>
    tpu.wait_dma2 semaphore(%100 : memref<!tpu.dma_semaphore, #tpu.memory_space<semaphore_mem>>) src(%96 : memref<128xf32, #tpu.memory_space<any>>) dst(%98 : memref<128xf32, #tpu.memory_space<vmem>>)
    %c0_i32_73 = arith.constant 0 : i32
    %c6_i32_74 = arith.constant 6 : i32
    %c1_i32_75 = arith.constant 1 : i32
    %c0_i32_76 = arith.constant 0 : i32
    %101 = tpu.memref_slice %arg7[%c0_i32_73, %c0_i32_76] : memref<16x128xf32, #tpu.memory_space<any>> -> memref<1x128xf32, #tpu.memory_space<any>>
    %102 = tpu.memref_squeeze %101 : memref<1x128xf32, #tpu.memory_space<any>> -> memref<128xf32, #tpu.memory_space<any>>
    %c0_i32_77 = arith.constant 0 : i32
    %103 = tpu.memref_slice %arg10[%9, %c6_i32_74, %c0_i32_77] : memref<2x8x128xf32, #tpu.memory_space<vmem>> -> memref<1x1x128xf32, #tpu.memory_space<vmem>>
    %104 = tpu.memref_squeeze %103 : memref<1x1x128xf32, #tpu.memory_space<vmem>> -> memref<128xf32, #tpu.memory_space<vmem>>
    %105 = tpu.memref_slice %arg14[%9, %c1_i32_75] : memref<2x5x!tpu.dma_semaphore, #tpu.memory_space<semaphore_mem>> -> memref<1x1x!tpu.dma_semaphore, #tpu.memory_space<semaphore_mem>>
    %106 = tpu.memref_squeeze %105 : memref<1x1x!tpu.dma_semaphore, #tpu.memory_space<semaphore_mem>> -> memref<!tpu.dma_semaphore, #tpu.memory_space<semaphore_mem>>
    tpu.wait_dma2 semaphore(%106 : memref<!tpu.dma_semaphore, #tpu.memory_space<semaphore_mem>>) src(%102 : memref<128xf32, #tpu.memory_space<any>>) dst(%104 : memref<128xf32, #tpu.memory_space<vmem>>)
    %c0_i32_78 = arith.constant 0 : i32
    %c7_i32_79 = arith.constant 7 : i32
    %c1_i32_80 = arith.constant 1 : i32
    %c0_i32_81 = arith.constant 0 : i32
    %107 = tpu.memref_slice %arg7[%c0_i32_78, %c0_i32_81] : memref<16x128xf32, #tpu.memory_space<any>> -> memref<1x128xf32, #tpu.memory_space<any>>
    %108 = tpu.memref_squeeze %107 : memref<1x128xf32, #tpu.memory_space<any>> -> memref<128xf32, #tpu.memory_space<any>>
    %c0_i32_82 = arith.constant 0 : i32
    %109 = tpu.memref_slice %arg10[%9, %c7_i32_79, %c0_i32_82] : memref<2x8x128xf32, #tpu.memory_space<vmem>> -> memref<1x1x128xf32, #tpu.memory_space<vmem>>
    %110 = tpu.memref_squeeze %109 : memref<1x1x128xf32, #tpu.memory_space<vmem>> -> memref<128xf32, #tpu.memory_space<vmem>>
    %111 = tpu.memref_slice %arg14[%9, %c1_i32_80] : memref<2x5x!tpu.dma_semaphore, #tpu.memory_space<semaphore_mem>> -> memref<1x1x!tpu.dma_semaphore, #tpu.memory_space<semaphore_mem>>
    %112 = tpu.memref_squeeze %111 : memref<1x1x!tpu.dma_semaphore, #tpu.memory_space<semaphore_mem>> -> memref<!tpu.dma_semaphore, #tpu.memory_space<semaphore_mem>>
    tpu.wait_dma2 semaphore(%112 : memref<!tpu.dma_semaphore, #tpu.memory_space<semaphore_mem>>) src(%108 : memref<128xf32, #tpu.memory_space<any>>) dst(%110 : memref<128xf32, #tpu.memory_space<vmem>>)
    %c0_i32_83 = arith.constant 0 : i32
    %c0_i32_84 = arith.constant 0 : i32
    %c2_i32_85 = arith.constant 2 : i32
    %c0_i32_86 = arith.constant 0 : i32
    %113 = tpu.memref_slice %arg6[%c0_i32_83, %c0_i32_86] : memref<64x128xf32, #tpu.memory_space<any>> -> memref<1x128xf32, #tpu.memory_space<any>>
    %114 = tpu.memref_squeeze %113 : memref<1x128xf32, #tpu.memory_space<any>> -> memref<128xf32, #tpu.memory_space<any>>
    %c0_i32_87 = arith.constant 0 : i32
    %115 = tpu.memref_slice %arg11[%9, %c0_i32_84, %c0_i32_87] : memref<2x8x128xf32, #tpu.memory_space<vmem>> -> memref<1x1x128xf32, #tpu.memory_space<vmem>>
    %116 = tpu.memref_squeeze %115 : memref<1x1x128xf32, #tpu.memory_space<vmem>> -> memref<128xf32, #tpu.memory_space<vmem>>
    %117 = tpu.memref_slice %arg14[%9, %c2_i32_85] : memref<2x5x!tpu.dma_semaphore, #tpu.memory_space<semaphore_mem>> -> memref<1x1x!tpu.dma_semaphore, #tpu.memory_space<semaphore_mem>>
    %118 = tpu.memref_squeeze %117 : memref<1x1x!tpu.dma_semaphore, #tpu.memory_space<semaphore_mem>> -> memref<!tpu.dma_semaphore, #tpu.memory_space<semaphore_mem>>
    tpu.wait_dma2 semaphore(%118 : memref<!tpu.dma_semaphore, #tpu.memory_space<semaphore_mem>>) src(%114 : memref<128xf32, #tpu.memory_space<any>>) dst(%116 : memref<128xf32, #tpu.memory_space<vmem>>)
    %c0_i32_88 = arith.constant 0 : i32
    %c1_i32_89 = arith.constant 1 : i32
    %c2_i32_90 = arith.constant 2 : i32
    %c0_i32_91 = arith.constant 0 : i32
    %119 = tpu.memref_slice %arg6[%c0_i32_88, %c0_i32_91] : memref<64x128xf32, #tpu.memory_space<any>> -> memref<1x128xf32, #tpu.memory_space<any>>
    %120 = tpu.memref_squeeze %119 : memref<1x128xf32, #tpu.memory_space<any>> -> memref<128xf32, #tpu.memory_space<any>>
    %c0_i32_92 = arith.constant 0 : i32
    %121 = tpu.memref_slice %arg11[%9, %c1_i32_89, %c0_i32_92] : memref<2x8x128xf32, #tpu.memory_space<vmem>> -> memref<1x1x128xf32, #tpu.memory_space<vmem>>
    %122 = tpu.memref_squeeze %121 : memref<1x1x128xf32, #tpu.memory_space<vmem>> -> memref<128xf32, #tpu.memory_space<vmem>>
    %123 = tpu.memref_slice %arg14[%9, %c2_i32_90] : memref<2x5x!tpu.dma_semaphore, #tpu.memory_space<semaphore_mem>> -> memref<1x1x!tpu.dma_semaphore, #tpu.memory_space<semaphore_mem>>
    %124 = tpu.memref_squeeze %123 : memref<1x1x!tpu.dma_semaphore, #tpu.memory_space<semaphore_mem>> -> memref<!tpu.dma_semaphore, #tpu.memory_space<semaphore_mem>>
    tpu.wait_dma2 semaphore(%124 : memref<!tpu.dma_semaphore, #tpu.memory_space<semaphore_mem>>) src(%120 : memref<128xf32, #tpu.memory_space<any>>) dst(%122 : memref<128xf32, #tpu.memory_space<vmem>>)
    %c0_i32_93 = arith.constant 0 : i32
    %c2_i32_94 = arith.constant 2 : i32
    %c2_i32_95 = arith.constant 2 : i32
    %c0_i32_96 = arith.constant 0 : i32
    %125 = tpu.memref_slice %arg6[%c0_i32_93, %c0_i32_96] : memref<64x128xf32, #tpu.memory_space<any>> -> memref<1x128xf32, #tpu.memory_space<any>>
    %126 = tpu.memref_squeeze %125 : memref<1x128xf32, #tpu.memory_space<any>> -> memref<128xf32, #tpu.memory_space<any>>
    %c0_i32_97 = arith.constant 0 : i32
    %127 = tpu.memref_slice %arg11[%9, %c2_i32_94, %c0_i32_97] : memref<2x8x128xf32, #tpu.memory_space<vmem>> -> memref<1x1x128xf32, #tpu.memory_space<vmem>>
    %128 = tpu.memref_squeeze %127 : memref<1x1x128xf32, #tpu.memory_space<vmem>> -> memref<128xf32, #tpu.memory_space<vmem>>
    %129 = tpu.memref_slice %arg14[%9, %c2_i32_95] : memref<2x5x!tpu.dma_semaphore, #tpu.memory_space<semaphore_mem>> -> memref<1x1x!tpu.dma_semaphore, #tpu.memory_space<semaphore_mem>>
    %130 = tpu.memref_squeeze %129 : memref<1x1x!tpu.dma_semaphore, #tpu.memory_space<semaphore_mem>> -> memref<!tpu.dma_semaphore, #tpu.memory_space<semaphore_mem>>
    tpu.wait_dma2 semaphore(%130 : memref<!tpu.dma_semaphore, #tpu.memory_space<semaphore_mem>>) src(%126 : memref<128xf32, #tpu.memory_space<any>>) dst(%128 : memref<128xf32, #tpu.memory_space<vmem>>)
    %c0_i32_98 = arith.constant 0 : i32
    %c3_i32_99 = arith.constant 3 : i32
    %c2_i32_100 = arith.constant 2 : i32
    %c0_i32_101 = arith.constant 0 : i32
    %131 = tpu.memref_slice %arg6[%c0_i32_98, %c0_i32_101] : memref<64x128xf32, #tpu.memory_space<any>> -> memref<1x128xf32, #tpu.memory_space<any>>
    %132 = tpu.memref_squeeze %131 : memref<1x128xf32, #tpu.memory_space<any>> -> memref<128xf32, #tpu.memory_space<any>>
    %c0_i32_102 = arith.constant 0 : i32
    %133 = tpu.memref_slice %arg11[%9, %c3_i32_99, %c0_i32_102] : memref<2x8x128xf32, #tpu.memory_space<vmem>> -> memref<1x1x128xf32, #tpu.memory_space<vmem>>
    %134 = tpu.memref_squeeze %133 : memref<1x1x128xf32, #tpu.memory_space<vmem>> -> memref<128xf32, #tpu.memory_space<vmem>>
    %135 = tpu.memref_slice %arg14[%9, %c2_i32_100] : memref<2x5x!tpu.dma_semaphore, #tpu.memory_space<semaphore_mem>> -> memref<1x1x!tpu.dma_semaphore, #tpu.memory_space<semaphore_mem>>
    %136 = tpu.memref_squeeze %135 : memref<1x1x!tpu.dma_semaphore, #tpu.memory_space<semaphore_mem>> -> memref<!tpu.dma_semaphore, #tpu.memory_space<semaphore_mem>>
    tpu.wait_dma2 semaphore(%136 : memref<!tpu.dma_semaphore, #tpu.memory_space<semaphore_mem>>) src(%132 : memref<128xf32, #tpu.memory_space<any>>) dst(%134 : memref<128xf32, #tpu.memory_space<vmem>>)
    %c0_i32_103 = arith.constant 0 : i32
    %c4_i32_104 = arith.constant 4 : i32
    %c2_i32_105 = arith.constant 2 : i32
    %c0_i32_106 = arith.constant 0 : i32
    %137 = tpu.memref_slice %arg6[%c0_i32_103, %c0_i32_106] : memref<64x128xf32, #tpu.memory_space<any>> -> memref<1x128xf32, #tpu.memory_space<any>>
    %138 = tpu.memref_squeeze %137 : memref<1x128xf32, #tpu.memory_space<any>> -> memref<128xf32, #tpu.memory_space<any>>
    %c0_i32_107 = arith.constant 0 : i32
    %139 = tpu.memref_slice %arg11[%9, %c4_i32_104, %c0_i32_107] : memref<2x8x128xf32, #tpu.memory_space<vmem>> -> memref<1x1x128xf32, #tpu.memory_space<vmem>>
    %140 = tpu.memref_squeeze %139 : memref<1x1x128xf32, #tpu.memory_space<vmem>> -> memref<128xf32, #tpu.memory_space<vmem>>
    %141 = tpu.memref_slice %arg14[%9, %c2_i32_105] : memref<2x5x!tpu.dma_semaphore, #tpu.memory_space<semaphore_mem>> -> memref<1x1x!tpu.dma_semaphore, #tpu.memory_space<semaphore_mem>>
    %142 = tpu.memref_squeeze %141 : memref<1x1x!tpu.dma_semaphore, #tpu.memory_space<semaphore_mem>> -> memref<!tpu.dma_semaphore, #tpu.memory_space<semaphore_mem>>
    tpu.wait_dma2 semaphore(%142 : memref<!tpu.dma_semaphore, #tpu.memory_space<semaphore_mem>>) src(%138 : memref<128xf32, #tpu.memory_space<any>>) dst(%140 : memref<128xf32, #tpu.memory_space<vmem>>)
    %c0_i32_108 = arith.constant 0 : i32
    %c5_i32_109 = arith.constant 5 : i32
    %c2_i32_110 = arith.constant 2 : i32
    %c0_i32_111 = arith.constant 0 : i32
    %143 = tpu.memref_slice %arg6[%c0_i32_108, %c0_i32_111] : memref<64x128xf32, #tpu.memory_space<any>> -> memref<1x128xf32, #tpu.memory_space<any>>
    %144 = tpu.memref_squeeze %143 : memref<1x128xf32, #tpu.memory_space<any>> -> memref<128xf32, #tpu.memory_space<any>>
    %c0_i32_112 = arith.constant 0 : i32
    %145 = tpu.memref_slice %arg11[%9, %c5_i32_109, %c0_i32_112] : memref<2x8x128xf32, #tpu.memory_space<vmem>> -> memref<1x1x128xf32, #tpu.memory_space<vmem>>
    %146 = tpu.memref_squeeze %145 : memref<1x1x128xf32, #tpu.memory_space<vmem>> -> memref<128xf32, #tpu.memory_space<vmem>>
    %147 = tpu.memref_slice %arg14[%9, %c2_i32_110] : memref<2x5x!tpu.dma_semaphore, #tpu.memory_space<semaphore_mem>> -> memref<1x1x!tpu.dma_semaphore, #tpu.memory_space<semaphore_mem>>
    %148 = tpu.memref_squeeze %147 : memref<1x1x!tpu.dma_semaphore, #tpu.memory_space<semaphore_mem>> -> memref<!tpu.dma_semaphore, #tpu.memory_space<semaphore_mem>>
    tpu.wait_dma2 semaphore(%148 : memref<!tpu.dma_semaphore, #tpu.memory_space<semaphore_mem>>) src(%144 : memref<128xf32, #tpu.memory_space<any>>) dst(%146 : memref<128xf32, #tpu.memory_space<vmem>>)
    %c0_i32_113 = arith.constant 0 : i32
    %c6_i32_114 = arith.constant 6 : i32
    %c2_i32_115 = arith.constant 2 : i32
    %c0_i32_116 = arith.constant 0 : i32
    %149 = tpu.memref_slice %arg6[%c0_i32_113, %c0_i32_116] : memref<64x128xf32, #tpu.memory_space<any>> -> memref<1x128xf32, #tpu.memory_space<any>>
    %150 = tpu.memref_squeeze %149 : memref<1x128xf32, #tpu.memory_space<any>> -> memref<128xf32, #tpu.memory_space<any>>
    %c0_i32_117 = arith.constant 0 : i32
    %151 = tpu.memref_slice %arg11[%9, %c6_i32_114, %c0_i32_117] : memref<2x8x128xf32, #tpu.memory_space<vmem>> -> memref<1x1x128xf32, #tpu.memory_space<vmem>>
    %152 = tpu.memref_squeeze %151 : memref<1x1x128xf32, #tpu.memory_space<vmem>> -> memref<128xf32, #tpu.memory_space<vmem>>
    %153 = tpu.memref_slice %arg14[%9, %c2_i32_115] : memref<2x5x!tpu.dma_semaphore, #tpu.memory_space<semaphore_mem>> -> memref<1x1x!tpu.dma_semaphore, #tpu.memory_space<semaphore_mem>>
    %154 = tpu.memref_squeeze %153 : memref<1x1x!tpu.dma_semaphore, #tpu.memory_space<semaphore_mem>> -> memref<!tpu.dma_semaphore, #tpu.memory_space<semaphore_mem>>
    tpu.wait_dma2 semaphore(%154 : memref<!tpu.dma_semaphore, #tpu.memory_space<semaphore_mem>>) src(%150 : memref<128xf32, #tpu.memory_space<any>>) dst(%152 : memref<128xf32, #tpu.memory_space<vmem>>)
    %c0_i32_118 = arith.constant 0 : i32
    %c7_i32_119 = arith.constant 7 : i32
    %c2_i32_120 = arith.constant 2 : i32
    %c0_i32_121 = arith.constant 0 : i32
    %155 = tpu.memref_slice %arg6[%c0_i32_118, %c0_i32_121] : memref<64x128xf32, #tpu.memory_space<any>> -> memref<1x128xf32, #tpu.memory_space<any>>
    %156 = tpu.memref_squeeze %155 : memref<1x128xf32, #tpu.memory_space<any>> -> memref<128xf32, #tpu.memory_space<any>>
    %c0_i32_122 = arith.constant 0 : i32
    %157 = tpu.memref_slice %arg11[%9, %c7_i32_119, %c0_i32_122] : memref<2x8x128xf32, #tpu.memory_space<vmem>> -> memref<1x1x128xf32, #tpu.memory_space<vmem>>
    %158 = tpu.memref_squeeze %157 : memref<1x1x128xf32, #tpu.memory_space<vmem>> -> memref<128xf32, #tpu.memory_space<vmem>>
    %159 = tpu.memref_slice %arg14[%9, %c2_i32_120] : memref<2x5x!tpu.dma_semaphore, #tpu.memory_space<semaphore_mem>> -> memref<1x1x!tpu.dma_semaphore, #tpu.memory_space<semaphore_mem>>
    %160 = tpu.memref_squeeze %159 : memref<1x1x!tpu.dma_semaphore, #tpu.memory_space<semaphore_mem>> -> memref<!tpu.dma_semaphore, #tpu.memory_space<semaphore_mem>>
    tpu.wait_dma2 semaphore(%160 : memref<!tpu.dma_semaphore, #tpu.memory_space<semaphore_mem>>) src(%156 : memref<128xf32, #tpu.memory_space<any>>) dst(%158 : memref<128xf32, #tpu.memory_space<vmem>>)
    %c0_i32_123 = arith.constant 0 : i32
    %c0_i32_124 = arith.constant 0 : i32
    %c3_i32_125 = arith.constant 3 : i32
    %c0_i32_126 = arith.constant 0 : i32
    %161 = tpu.memref_slice %arg6[%c0_i32_123, %c0_i32_126] : memref<64x128xf32, #tpu.memory_space<any>> -> memref<1x128xf32, #tpu.memory_space<any>>
    %162 = tpu.memref_squeeze %161 : memref<1x128xf32, #tpu.memory_space<any>> -> memref<128xf32, #tpu.memory_space<any>>
    %c0_i32_127 = arith.constant 0 : i32
    %163 = tpu.memref_slice %arg12[%9, %c0_i32_124, %c0_i32_127] : memref<2x8x128xf32, #tpu.memory_space<vmem>> -> memref<1x1x128xf32, #tpu.memory_space<vmem>>
    %164 = tpu.memref_squeeze %163 : memref<1x1x128xf32, #tpu.memory_space<vmem>> -> memref<128xf32, #tpu.memory_space<vmem>>
    %165 = tpu.memref_slice %arg14[%9, %c3_i32_125] : memref<2x5x!tpu.dma_semaphore, #tpu.memory_space<semaphore_mem>> -> memref<1x1x!tpu.dma_semaphore, #tpu.memory_space<semaphore_mem>>
    %166 = tpu.memref_squeeze %165 : memref<1x1x!tpu.dma_semaphore, #tpu.memory_space<semaphore_mem>> -> memref<!tpu.dma_semaphore, #tpu.memory_space<semaphore_mem>>
    tpu.wait_dma2 semaphore(%166 : memref<!tpu.dma_semaphore, #tpu.memory_space<semaphore_mem>>) src(%162 : memref<128xf32, #tpu.memory_space<any>>) dst(%164 : memref<128xf32, #tpu.memory_space<vmem>>)
    %c0_i32_128 = arith.constant 0 : i32
    %c1_i32_129 = arith.constant 1 : i32
    %c3_i32_130 = arith.constant 3 : i32
    %c0_i32_131 = arith.constant 0 : i32
    %167 = tpu.memref_slice %arg6[%c0_i32_128, %c0_i32_131] : memref<64x128xf32, #tpu.memory_space<any>> -> memref<1x128xf32, #tpu.memory_space<any>>
    %168 = tpu.memref_squeeze %167 : memref<1x128xf32, #tpu.memory_space<any>> -> memref<128xf32, #tpu.memory_space<any>>
    %c0_i32_132 = arith.constant 0 : i32
    %169 = tpu.memref_slice %arg12[%9, %c1_i32_129, %c0_i32_132] : memref<2x8x128xf32, #tpu.memory_space<vmem>> -> memref<1x1x128xf32, #tpu.memory_space<vmem>>
    %170 = tpu.memref_squeeze %169 : memref<1x1x128xf32, #tpu.memory_space<vmem>> -> memref<128xf32, #tpu.memory_space<vmem>>
    %171 = tpu.memref_slice %arg14[%9, %c3_i32_130] : memref<2x5x!tpu.dma_semaphore, #tpu.memory_space<semaphore_mem>> -> memref<1x1x!tpu.dma_semaphore, #tpu.memory_space<semaphore_mem>>
    %172 = tpu.memref_squeeze %171 : memref<1x1x!tpu.dma_semaphore, #tpu.memory_space<semaphore_mem>> -> memref<!tpu.dma_semaphore, #tpu.memory_space<semaphore_mem>>
    tpu.wait_dma2 semaphore(%172 : memref<!tpu.dma_semaphore, #tpu.memory_space<semaphore_mem>>) src(%168 : memref<128xf32, #tpu.memory_space<any>>) dst(%170 : memref<128xf32, #tpu.memory_space<vmem>>)
    %c0_i32_133 = arith.constant 0 : i32
    %c2_i32_134 = arith.constant 2 : i32
    %c3_i32_135 = arith.constant 3 : i32
    %c0_i32_136 = arith.constant 0 : i32
    %173 = tpu.memref_slice %arg6[%c0_i32_133, %c0_i32_136] : memref<64x128xf32, #tpu.memory_space<any>> -> memref<1x128xf32, #tpu.memory_space<any>>
    %174 = tpu.memref_squeeze %173 : memref<1x128xf32, #tpu.memory_space<any>> -> memref<128xf32, #tpu.memory_space<any>>
    %c0_i32_137 = arith.constant 0 : i32
    %175 = tpu.memref_slice %arg12[%9, %c2_i32_134, %c0_i32_137] : memref<2x8x128xf32, #tpu.memory_space<vmem>> -> memref<1x1x128xf32, #tpu.memory_space<vmem>>
    %176 = tpu.memref_squeeze %175 : memref<1x1x128xf32, #tpu.memory_space<vmem>> -> memref<128xf32, #tpu.memory_space<vmem>>
    %177 = tpu.memref_slice %arg14[%9, %c3_i32_135] : memref<2x5x!tpu.dma_semaphore, #tpu.memory_space<semaphore_mem>> -> memref<1x1x!tpu.dma_semaphore, #tpu.memory_space<semaphore_mem>>
    %178 = tpu.memref_squeeze %177 : memref<1x1x!tpu.dma_semaphore, #tpu.memory_space<semaphore_mem>> -> memref<!tpu.dma_semaphore, #tpu.memory_space<semaphore_mem>>
    tpu.wait_dma2 semaphore(%178 : memref<!tpu.dma_semaphore, #tpu.memory_space<semaphore_mem>>) src(%174 : memref<128xf32, #tpu.memory_space<any>>) dst(%176 : memref<128xf32, #tpu.memory_space<vmem>>)
    %c0_i32_138 = arith.constant 0 : i32
    %c3_i32_139 = arith.constant 3 : i32
    %c3_i32_140 = arith.constant 3 : i32
    %c0_i32_141 = arith.constant 0 : i32
    %179 = tpu.memref_slice %arg6[%c0_i32_138, %c0_i32_141] : memref<64x128xf32, #tpu.memory_space<any>> -> memref<1x128xf32, #tpu.memory_space<any>>
    %180 = tpu.memref_squeeze %179 : memref<1x128xf32, #tpu.memory_space<any>> -> memref<128xf32, #tpu.memory_space<any>>
    %c0_i32_142 = arith.constant 0 : i32
    %181 = tpu.memref_slice %arg12[%9, %c3_i32_139, %c0_i32_142] : memref<2x8x128xf32, #tpu.memory_space<vmem>> -> memref<1x1x128xf32, #tpu.memory_space<vmem>>
    %182 = tpu.memref_squeeze %181 : memref<1x1x128xf32, #tpu.memory_space<vmem>> -> memref<128xf32, #tpu.memory_space<vmem>>
    %183 = tpu.memref_slice %arg14[%9, %c3_i32_140] : memref<2x5x!tpu.dma_semaphore, #tpu.memory_space<semaphore_mem>> -> memref<1x1x!tpu.dma_semaphore, #tpu.memory_space<semaphore_mem>>
    %184 = tpu.memref_squeeze %183 : memref<1x1x!tpu.dma_semaphore, #tpu.memory_space<semaphore_mem>> -> memref<!tpu.dma_semaphore, #tpu.memory_space<semaphore_mem>>
    tpu.wait_dma2 semaphore(%184 : memref<!tpu.dma_semaphore, #tpu.memory_space<semaphore_mem>>) src(%180 : memref<128xf32, #tpu.memory_space<any>>) dst(%182 : memref<128xf32, #tpu.memory_space<vmem>>)
    %c0_i32_143 = arith.constant 0 : i32
    %c4_i32_144 = arith.constant 4 : i32
    %c3_i32_145 = arith.constant 3 : i32
    %c0_i32_146 = arith.constant 0 : i32
    %185 = tpu.memref_slice %arg6[%c0_i32_143, %c0_i32_146] : memref<64x128xf32, #tpu.memory_space<any>> -> memref<1x128xf32, #tpu.memory_space<any>>
    %186 = tpu.memref_squeeze %185 : memref<1x128xf32, #tpu.memory_space<any>> -> memref<128xf32, #tpu.memory_space<any>>
    %c0_i32_147 = arith.constant 0 : i32
    %187 = tpu.memref_slice %arg12[%9, %c4_i32_144, %c0_i32_147] : memref<2x8x128xf32, #tpu.memory_space<vmem>> -> memref<1x1x128xf32, #tpu.memory_space<vmem>>
    %188 = tpu.memref_squeeze %187 : memref<1x1x128xf32, #tpu.memory_space<vmem>> -> memref<128xf32, #tpu.memory_space<vmem>>
    %189 = tpu.memref_slice %arg14[%9, %c3_i32_145] : memref<2x5x!tpu.dma_semaphore, #tpu.memory_space<semaphore_mem>> -> memref<1x1x!tpu.dma_semaphore, #tpu.memory_space<semaphore_mem>>
    %190 = tpu.memref_squeeze %189 : memref<1x1x!tpu.dma_semaphore, #tpu.memory_space<semaphore_mem>> -> memref<!tpu.dma_semaphore, #tpu.memory_space<semaphore_mem>>
    tpu.wait_dma2 semaphore(%190 : memref<!tpu.dma_semaphore, #tpu.memory_space<semaphore_mem>>) src(%186 : memref<128xf32, #tpu.memory_space<any>>) dst(%188 : memref<128xf32, #tpu.memory_space<vmem>>)
    %c0_i32_148 = arith.constant 0 : i32
    %c5_i32_149 = arith.constant 5 : i32
    %c3_i32_150 = arith.constant 3 : i32
    %c0_i32_151 = arith.constant 0 : i32
    %191 = tpu.memref_slice %arg6[%c0_i32_148, %c0_i32_151] : memref<64x128xf32, #tpu.memory_space<any>> -> memref<1x128xf32, #tpu.memory_space<any>>
    %192 = tpu.memref_squeeze %191 : memref<1x128xf32, #tpu.memory_space<any>> -> memref<128xf32, #tpu.memory_space<any>>
    %c0_i32_152 = arith.constant 0 : i32
    %193 = tpu.memref_slice %arg12[%9, %c5_i32_149, %c0_i32_152] : memref<2x8x128xf32, #tpu.memory_space<vmem>> -> memref<1x1x128xf32, #tpu.memory_space<vmem>>
    %194 = tpu.memref_squeeze %193 : memref<1x1x128xf32, #tpu.memory_space<vmem>> -> memref<128xf32, #tpu.memory_space<vmem>>
    %195 = tpu.memref_slice %arg14[%9, %c3_i32_150] : memref<2x5x!tpu.dma_semaphore, #tpu.memory_space<semaphore_mem>> -> memref<1x1x!tpu.dma_semaphore, #tpu.memory_space<semaphore_mem>>
    %196 = tpu.memref_squeeze %195 : memref<1x1x!tpu.dma_semaphore, #tpu.memory_space<semaphore_mem>> -> memref<!tpu.dma_semaphore, #tpu.memory_space<semaphore_mem>>
    tpu.wait_dma2 semaphore(%196 : memref<!tpu.dma_semaphore, #tpu.memory_space<semaphore_mem>>) src(%192 : memref<128xf32, #tpu.memory_space<any>>) dst(%194 : memref<128xf32, #tpu.memory_space<vmem>>)
    %c0_i32_153 = arith.constant 0 : i32
    %c6_i32_154 = arith.constant 6 : i32
    %c3_i32_155 = arith.constant 3 : i32
    %c0_i32_156 = arith.constant 0 : i32
    %197 = tpu.memref_slice %arg6[%c0_i32_153, %c0_i32_156] : memref<64x128xf32, #tpu.memory_space<any>> -> memref<1x128xf32, #tpu.memory_space<any>>
    %198 = tpu.memref_squeeze %197 : memref<1x128xf32, #tpu.memory_space<any>> -> memref<128xf32, #tpu.memory_space<any>>
    %c0_i32_157 = arith.constant 0 : i32
    %199 = tpu.memref_slice %arg12[%9, %c6_i32_154, %c0_i32_157] : memref<2x8x128xf32, #tpu.memory_space<vmem>> -> memref<1x1x128xf32, #tpu.memory_space<vmem>>
    %200 = tpu.memref_squeeze %199 : memref<1x1x128xf32, #tpu.memory_space<vmem>> -> memref<128xf32, #tpu.memory_space<vmem>>
    %201 = tpu.memref_slice %arg14[%9, %c3_i32_155] : memref<2x5x!tpu.dma_semaphore, #tpu.memory_space<semaphore_mem>> -> memref<1x1x!tpu.dma_semaphore, #tpu.memory_space<semaphore_mem>>
    %202 = tpu.memref_squeeze %201 : memref<1x1x!tpu.dma_semaphore, #tpu.memory_space<semaphore_mem>> -> memref<!tpu.dma_semaphore, #tpu.memory_space<semaphore_mem>>
    tpu.wait_dma2 semaphore(%202 : memref<!tpu.dma_semaphore, #tpu.memory_space<semaphore_mem>>) src(%198 : memref<128xf32, #tpu.memory_space<any>>) dst(%200 : memref<128xf32, #tpu.memory_space<vmem>>)
    %c0_i32_158 = arith.constant 0 : i32
    %c7_i32_159 = arith.constant 7 : i32
    %c3_i32_160 = arith.constant 3 : i32
    %c0_i32_161 = arith.constant 0 : i32
    %203 = tpu.memref_slice %arg6[%c0_i32_158, %c0_i32_161] : memref<64x128xf32, #tpu.memory_space<any>> -> memref<1x128xf32, #tpu.memory_space<any>>
    %204 = tpu.memref_squeeze %203 : memref<1x128xf32, #tpu.memory_space<any>> -> memref<128xf32, #tpu.memory_space<any>>
    %c0_i32_162 = arith.constant 0 : i32
    %205 = tpu.memref_slice %arg12[%9, %c7_i32_159, %c0_i32_162] : memref<2x8x128xf32, #tpu.memory_space<vmem>> -> memref<1x1x128xf32, #tpu.memory_space<vmem>>
    %206 = tpu.memref_squeeze %205 : memref<1x1x128xf32, #tpu.memory_space<vmem>> -> memref<128xf32, #tpu.memory_space<vmem>>
    %207 = tpu.memref_slice %arg14[%9, %c3_i32_160] : memref<2x5x!tpu.dma_semaphore, #tpu.memory_space<semaphore_mem>> -> memref<1x1x!tpu.dma_semaphore, #tpu.memory_space<semaphore_mem>>
    %208 = tpu.memref_squeeze %207 : memref<1x1x!tpu.dma_semaphore, #tpu.memory_space<semaphore_mem>> -> memref<!tpu.dma_semaphore, #tpu.memory_space<semaphore_mem>>
    tpu.wait_dma2 semaphore(%208 : memref<!tpu.dma_semaphore, #tpu.memory_space<semaphore_mem>>) src(%204 : memref<128xf32, #tpu.memory_space<any>>) dst(%206 : memref<128xf32, #tpu.memory_space<vmem>>)
    %c0_i32_163 = arith.constant 0 : i32
    %c0_i32_164 = arith.constant 0 : i32
    %c4_i32_165 = arith.constant 4 : i32
    %c0_i32_166 = arith.constant 0 : i32
    %209 = tpu.memref_slice %arg6[%c0_i32_163, %c0_i32_166] : memref<64x128xf32, #tpu.memory_space<any>> -> memref<1x128xf32, #tpu.memory_space<any>>
    %210 = tpu.memref_squeeze %209 : memref<1x128xf32, #tpu.memory_space<any>> -> memref<128xf32, #tpu.memory_space<any>>
    %c0_i32_167 = arith.constant 0 : i32
    %211 = tpu.memref_slice %arg13[%9, %c0_i32_164, %c0_i32_167] : memref<2x8x128xf32, #tpu.memory_space<vmem>> -> memref<1x1x128xf32, #tpu.memory_space<vmem>>
    %212 = tpu.memref_squeeze %211 : memref<1x1x128xf32, #tpu.memory_space<vmem>> -> memref<128xf32, #tpu.memory_space<vmem>>
    %213 = tpu.memref_slice %arg14[%9, %c4_i32_165] : memref<2x5x!tpu.dma_semaphore, #tpu.memory_space<semaphore_mem>> -> memref<1x1x!tpu.dma_semaphore, #tpu.memory_space<semaphore_mem>>
    %214 = tpu.memref_squeeze %213 : memref<1x1x!tpu.dma_semaphore, #tpu.memory_space<semaphore_mem>> -> memref<!tpu.dma_semaphore, #tpu.memory_space<semaphore_mem>>
    tpu.wait_dma2 semaphore(%214 : memref<!tpu.dma_semaphore, #tpu.memory_space<semaphore_mem>>) src(%210 : memref<128xf32, #tpu.memory_space<any>>) dst(%212 : memref<128xf32, #tpu.memory_space<vmem>>)
    %c0_i32_168 = arith.constant 0 : i32
    %c1_i32_169 = arith.constant 1 : i32
    %c4_i32_170 = arith.constant 4 : i32
    %c0_i32_171 = arith.constant 0 : i32
    %215 = tpu.memref_slice %arg6[%c0_i32_168, %c0_i32_171] : memref<64x128xf32, #tpu.memory_space<any>> -> memref<1x128xf32, #tpu.memory_space<any>>
    %216 = tpu.memref_squeeze %215 : memref<1x128xf32, #tpu.memory_space<any>> -> memref<128xf32, #tpu.memory_space<any>>
    %c0_i32_172 = arith.constant 0 : i32
    %217 = tpu.memref_slice %arg13[%9, %c1_i32_169, %c0_i32_172] : memref<2x8x128xf32, #tpu.memory_space<vmem>> -> memref<1x1x128xf32, #tpu.memory_space<vmem>>
    %218 = tpu.memref_squeeze %217 : memref<1x1x128xf32, #tpu.memory_space<vmem>> -> memref<128xf32, #tpu.memory_space<vmem>>
    %219 = tpu.memref_slice %arg14[%9, %c4_i32_170] : memref<2x5x!tpu.dma_semaphore, #tpu.memory_space<semaphore_mem>> -> memref<1x1x!tpu.dma_semaphore, #tpu.memory_space<semaphore_mem>>
    %220 = tpu.memref_squeeze %219 : memref<1x1x!tpu.dma_semaphore, #tpu.memory_space<semaphore_mem>> -> memref<!tpu.dma_semaphore, #tpu.memory_space<semaphore_mem>>
    tpu.wait_dma2 semaphore(%220 : memref<!tpu.dma_semaphore, #tpu.memory_space<semaphore_mem>>) src(%216 : memref<128xf32, #tpu.memory_space<any>>) dst(%218 : memref<128xf32, #tpu.memory_space<vmem>>)
    %c0_i32_173 = arith.constant 0 : i32
    %c2_i32_174 = arith.constant 2 : i32
    %c4_i32_175 = arith.constant 4 : i32
    %c0_i32_176 = arith.constant 0 : i32
    %221 = tpu.memref_slice %arg6[%c0_i32_173, %c0_i32_176] : memref<64x128xf32, #tpu.memory_space<any>> -> memref<1x128xf32, #tpu.memory_space<any>>
    %222 = tpu.memref_squeeze %221 : memref<1x128xf32, #tpu.memory_space<any>> -> memref<128xf32, #tpu.memory_space<any>>
    %c0_i32_177 = arith.constant 0 : i32
    %223 = tpu.memref_slice %arg13[%9, %c2_i32_174, %c0_i32_177] : memref<2x8x128xf32, #tpu.memory_space<vmem>> -> memref<1x1x128xf32, #tpu.memory_space<vmem>>
    %224 = tpu.memref_squeeze %223 : memref<1x1x128xf32, #tpu.memory_space<vmem>> -> memref<128xf32, #tpu.memory_space<vmem>>
    %225 = tpu.memref_slice %arg14[%9, %c4_i32_175] : memref<2x5x!tpu.dma_semaphore, #tpu.memory_space<semaphore_mem>> -> memref<1x1x!tpu.dma_semaphore, #tpu.memory_space<semaphore_mem>>
    %226 = tpu.memref_squeeze %225 : memref<1x1x!tpu.dma_semaphore, #tpu.memory_space<semaphore_mem>> -> memref<!tpu.dma_semaphore, #tpu.memory_space<semaphore_mem>>
    tpu.wait_dma2 semaphore(%226 : memref<!tpu.dma_semaphore, #tpu.memory_space<semaphore_mem>>) src(%222 : memref<128xf32, #tpu.memory_space<any>>) dst(%224 : memref<128xf32, #tpu.memory_space<vmem>>)
    %c0_i32_178 = arith.constant 0 : i32
    %c3_i32_179 = arith.constant 3 : i32
    %c4_i32_180 = arith.constant 4 : i32
    %c0_i32_181 = arith.constant 0 : i32
    %227 = tpu.memref_slice %arg6[%c0_i32_178, %c0_i32_181] : memref<64x128xf32, #tpu.memory_space<any>> -> memref<1x128xf32, #tpu.memory_space<any>>
    %228 = tpu.memref_squeeze %227 : memref<1x128xf32, #tpu.memory_space<any>> -> memref<128xf32, #tpu.memory_space<any>>
    %c0_i32_182 = arith.constant 0 : i32
    %229 = tpu.memref_slice %arg13[%9, %c3_i32_179, %c0_i32_182] : memref<2x8x128xf32, #tpu.memory_space<vmem>> -> memref<1x1x128xf32, #tpu.memory_space<vmem>>
    %230 = tpu.memref_squeeze %229 : memref<1x1x128xf32, #tpu.memory_space<vmem>> -> memref<128xf32, #tpu.memory_space<vmem>>
    %231 = tpu.memref_slice %arg14[%9, %c4_i32_180] : memref<2x5x!tpu.dma_semaphore, #tpu.memory_space<semaphore_mem>> -> memref<1x1x!tpu.dma_semaphore, #tpu.memory_space<semaphore_mem>>
    %232 = tpu.memref_squeeze %231 : memref<1x1x!tpu.dma_semaphore, #tpu.memory_space<semaphore_mem>> -> memref<!tpu.dma_semaphore, #tpu.memory_space<semaphore_mem>>
    tpu.wait_dma2 semaphore(%232 : memref<!tpu.dma_semaphore, #tpu.memory_space<semaphore_mem>>) src(%228 : memref<128xf32, #tpu.memory_space<any>>) dst(%230 : memref<128xf32, #tpu.memory_space<vmem>>)
    %c0_i32_183 = arith.constant 0 : i32
    %c4_i32_184 = arith.constant 4 : i32
    %c4_i32_185 = arith.constant 4 : i32
    %c0_i32_186 = arith.constant 0 : i32
    %233 = tpu.memref_slice %arg6[%c0_i32_183, %c0_i32_186] : memref<64x128xf32, #tpu.memory_space<any>> -> memref<1x128xf32, #tpu.memory_space<any>>
    %234 = tpu.memref_squeeze %233 : memref<1x128xf32, #tpu.memory_space<any>> -> memref<128xf32, #tpu.memory_space<any>>
    %c0_i32_187 = arith.constant 0 : i32
    %235 = tpu.memref_slice %arg13[%9, %c4_i32_184, %c0_i32_187] : memref<2x8x128xf32, #tpu.memory_space<vmem>> -> memref<1x1x128xf32, #tpu.memory_space<vmem>>
    %236 = tpu.memref_squeeze %235 : memref<1x1x128xf32, #tpu.memory_space<vmem>> -> memref<128xf32, #tpu.memory_space<vmem>>
    %237 = tpu.memref_slice %arg14[%9, %c4_i32_185] : memref<2x5x!tpu.dma_semaphore, #tpu.memory_space<semaphore_mem>> -> memref<1x1x!tpu.dma_semaphore, #tpu.memory_space<semaphore_mem>>
    %238 = tpu.memref_squeeze %237 : memref<1x1x!tpu.dma_semaphore, #tpu.memory_space<semaphore_mem>> -> memref<!tpu.dma_semaphore, #tpu.memory_space<semaphore_mem>>
    tpu.wait_dma2 semaphore(%238 : memref<!tpu.dma_semaphore, #tpu.memory_space<semaphore_mem>>) src(%234 : memref<128xf32, #tpu.memory_space<any>>) dst(%236 : memref<128xf32, #tpu.memory_space<vmem>>)
    %c0_i32_188 = arith.constant 0 : i32
    %c5_i32_189 = arith.constant 5 : i32
    %c4_i32_190 = arith.constant 4 : i32
    %c0_i32_191 = arith.constant 0 : i32
    %239 = tpu.memref_slice %arg6[%c0_i32_188, %c0_i32_191] : memref<64x128xf32, #tpu.memory_space<any>> -> memref<1x128xf32, #tpu.memory_space<any>>
    %240 = tpu.memref_squeeze %239 : memref<1x128xf32, #tpu.memory_space<any>> -> memref<128xf32, #tpu.memory_space<any>>
    %c0_i32_192 = arith.constant 0 : i32
    %241 = tpu.memref_slice %arg13[%9, %c5_i32_189, %c0_i32_192] : memref<2x8x128xf32, #tpu.memory_space<vmem>> -> memref<1x1x128xf32, #tpu.memory_space<vmem>>
    %242 = tpu.memref_squeeze %241 : memref<1x1x128xf32, #tpu.memory_space<vmem>> -> memref<128xf32, #tpu.memory_space<vmem>>
    %243 = tpu.memref_slice %arg14[%9, %c4_i32_190] : memref<2x5x!tpu.dma_semaphore, #tpu.memory_space<semaphore_mem>> -> memref<1x1x!tpu.dma_semaphore, #tpu.memory_space<semaphore_mem>>
    %244 = tpu.memref_squeeze %243 : memref<1x1x!tpu.dma_semaphore, #tpu.memory_space<semaphore_mem>> -> memref<!tpu.dma_semaphore, #tpu.memory_space<semaphore_mem>>
    tpu.wait_dma2 semaphore(%244 : memref<!tpu.dma_semaphore, #tpu.memory_space<semaphore_mem>>) src(%240 : memref<128xf32, #tpu.memory_space<any>>) dst(%242 : memref<128xf32, #tpu.memory_space<vmem>>)
    %c0_i32_193 = arith.constant 0 : i32
    %c6_i32_194 = arith.constant 6 : i32
    %c4_i32_195 = arith.constant 4 : i32
    %c0_i32_196 = arith.constant 0 : i32
    %245 = tpu.memref_slice %arg6[%c0_i32_193, %c0_i32_196] : memref<64x128xf32, #tpu.memory_space<any>> -> memref<1x128xf32, #tpu.memory_space<any>>
    %246 = tpu.memref_squeeze %245 : memref<1x128xf32, #tpu.memory_space<any>> -> memref<128xf32, #tpu.memory_space<any>>
    %c0_i32_197 = arith.constant 0 : i32
    %247 = tpu.memref_slice %arg13[%9, %c6_i32_194, %c0_i32_197] : memref<2x8x128xf32, #tpu.memory_space<vmem>> -> memref<1x1x128xf32, #tpu.memory_space<vmem>>
    %248 = tpu.memref_squeeze %247 : memref<1x1x128xf32, #tpu.memory_space<vmem>> -> memref<128xf32, #tpu.memory_space<vmem>>
    %249 = tpu.memref_slice %arg14[%9, %c4_i32_195] : memref<2x5x!tpu.dma_semaphore, #tpu.memory_space<semaphore_mem>> -> memref<1x1x!tpu.dma_semaphore, #tpu.memory_space<semaphore_mem>>
    %250 = tpu.memref_squeeze %249 : memref<1x1x!tpu.dma_semaphore, #tpu.memory_space<semaphore_mem>> -> memref<!tpu.dma_semaphore, #tpu.memory_space<semaphore_mem>>
    tpu.wait_dma2 semaphore(%250 : memref<!tpu.dma_semaphore, #tpu.memory_space<semaphore_mem>>) src(%246 : memref<128xf32, #tpu.memory_space<any>>) dst(%248 : memref<128xf32, #tpu.memory_space<vmem>>)
    %c0_i32_198 = arith.constant 0 : i32
    %c7_i32_199 = arith.constant 7 : i32
    %c4_i32_200 = arith.constant 4 : i32
    %c0_i32_201 = arith.constant 0 : i32
    %251 = tpu.memref_slice %arg6[%c0_i32_198, %c0_i32_201] : memref<64x128xf32, #tpu.memory_space<any>> -> memref<1x128xf32, #tpu.memory_space<any>>
    %252 = tpu.memref_squeeze %251 : memref<1x128xf32, #tpu.memory_space<any>> -> memref<128xf32, #tpu.memory_space<any>>
    %c0_i32_202 = arith.constant 0 : i32
    %253 = tpu.memref_slice %arg13[%9, %c7_i32_199, %c0_i32_202] : memref<2x8x128xf32, #tpu.memory_space<vmem>> -> memref<1x1x128xf32, #tpu.memory_space<vmem>>
    %254 = tpu.memref_squeeze %253 : memref<1x1x128xf32, #tpu.memory_space<vmem>> -> memref<128xf32, #tpu.memory_space<vmem>>
    %255 = tpu.memref_slice %arg14[%9, %c4_i32_200] : memref<2x5x!tpu.dma_semaphore, #tpu.memory_space<semaphore_mem>> -> memref<1x1x!tpu.dma_semaphore, #tpu.memory_space<semaphore_mem>>
    %256 = tpu.memref_squeeze %255 : memref<1x1x!tpu.dma_semaphore, #tpu.memory_space<semaphore_mem>> -> memref<!tpu.dma_semaphore, #tpu.memory_space<semaphore_mem>>
    tpu.wait_dma2 semaphore(%256 : memref<!tpu.dma_semaphore, #tpu.memory_space<semaphore_mem>>) src(%252 : memref<128xf32, #tpu.memory_space<any>>) dst(%254 : memref<128xf32, #tpu.memory_space<vmem>>)
    %257 = arith.index_cast %9 : i32 to index
    %c0 = arith.constant 0 : index
    %c0_203 = arith.constant 0 : index
    %258 = vector.load %arg9[%257, %c0, %c0_203] : memref<2x8x128xf32, #tpu.memory_space<vmem>>, vector<1x8x128xf32>
    %259 = vector.shape_cast %258 : vector<1x8x128xf32> to vector<8x128xf32>
    %260 = arith.index_cast %9 : i32 to index
    %c0_204 = arith.constant 0 : index
    %c0_205 = arith.constant 0 : index
    %261 = vector.load %arg10[%260, %c0_204, %c0_205] : memref<2x8x128xf32, #tpu.memory_space<vmem>>, vector<1x8x128xf32>
    %262 = vector.shape_cast %261 : vector<1x8x128xf32> to vector<8x128xf32>
    %263 = arith.addf %259, %262 : vector<8x128xf32>
    %264 = arith.index_cast %9 : i32 to index
    %c0_206 = arith.constant 0 : index
    %c0_207 = arith.constant 0 : index
    %265 = vector.load %arg11[%264, %c0_206, %c0_207] : memref<2x8x128xf32, #tpu.memory_space<vmem>>, vector<1x8x128xf32>
    %266 = vector.shape_cast %265 : vector<1x8x128xf32> to vector<8x128xf32>
    %267 = arith.subf %263, %266 : vector<8x128xf32>
    %268 = arith.index_cast %9 : i32 to index
    %c0_208 = arith.constant 0 : index
    %c0_209 = arith.constant 0 : index
    %269 = vector.load %arg12[%268, %c0_208, %c0_209] : memref<2x8x128xf32, #tpu.memory_space<vmem>>, vector<1x8x128xf32>
    %270 = vector.shape_cast %269 : vector<1x8x128xf32> to vector<8x128xf32>
    %271 = arith.index_cast %9 : i32 to index
    %c0_210 = arith.constant 0 : index
    %c0_211 = arith.constant 0 : index
    %272 = vector.load %arg10[%271, %c0_210, %c0_211] : memref<2x8x128xf32, #tpu.memory_space<vmem>>, vector<1x8x128xf32>
    %273 = vector.shape_cast %272 : vector<1x8x128xf32> to vector<8x128xf32>
    %274 = arith.addf %270, %273 : vector<8x128xf32>
    %275 = arith.index_cast %9 : i32 to index
    %c0_212 = arith.constant 0 : index
    %c0_213 = arith.constant 0 : index
    %276 = vector.load %arg13[%275, %c0_212, %c0_213] : memref<2x8x128xf32, #tpu.memory_space<vmem>>, vector<1x8x128xf32>
    %277 = vector.shape_cast %276 : vector<1x8x128xf32> to vector<8x128xf32>
    %278 = arith.subf %274, %277 : vector<8x128xf32>
    %279 = math.absf %267 : vector<8x128xf32>
    %280 = math.absf %278 : vector<8x128xf32>
    %281 = arith.subf %279, %280 : vector<8x128xf32>
    %cst = arith.constant dense<0.000000e+00> : vector<8xf32>
    %282 = vector.multi_reduction <add>, %281, %cst [1] : vector<8x128xf32> to vector<8xf32>
    %283 = vector.shape_cast %282 : vector<8xf32> to vector<8x1xf32>
    %cst_214 = arith.constant 3.000000e+00 : f32
    %284 = vector.broadcast %cst_214 : f32 to vector<8x1xf32>
    %285 = arith.addf %283, %284 : vector<8x1xf32>
    %cst_215 = arith.constant 0.000000e+00 : f32
    %286 = vector.broadcast %cst_215 : f32 to vector<8x1xf32>
    %287 = arith.maximumf %285, %286 : vector<8x1xf32>
    %c0_216 = arith.constant 0 : index
    %c0_217 = arith.constant 0 : index
    %288 = vector.load %arg8[%c0_216, %c0_217] : memref<8x1xf32, #tpu.memory_space<vmem>>, vector<8x1xf32>
    tpu.vector_store %arg8[%c0_216, %c0_217], %287 {strides = array<i32>} : memref<8x1xf32, #tpu.memory_space<vmem>>, vector<8x1xf32>,
    return
  }
  func.func @transform_2(%arg0: i32, %arg1: memref<24xi32, #tpu.memory_space<smem>>, %arg2: memref<24xi32, #tpu.memory_space<smem>>, %arg3: memref<24xi32, #tpu.memory_space<smem>>, %arg4: memref<24xi32, #tpu.memory_space<smem>>, %arg5: memref<24xi32, #tpu.memory_space<smem>>) -> (i32, i32) {
    %c0_i32 = arith.constant 0 : i32
    %c0_i32_0 = arith.constant 0 : i32
    return %arg0, %c0_i32 : i32, i32
  }
}

</mosaic_0001>

<llo_original>
// kernel: tpu_custom_call.1
$region0: #{tpu_custom_call.1}
  #allocation0 [shape = 'u32[]', space=smem, size = 0x4, offset = 0x4, fixed_abs, tag = 'smem constant byte address 0x4 - core index']
  #allocation1 [shape = 'u32[144,128]{1,0:T(1,128)}', space=vmem, size = 0x12000, scoped, tag = 'internal scratch']
  #allocation2 [shape = 'f32[2,8,128]{2,1,0:T(8,128)}', space=vmem, size = 0x2000, scoped, tag = 'scratch operand']
  #allocation3 [shape = 'f32[2,8,128]{2,1,0:T(8,128)}', space=vmem, size = 0x2000, scoped, tag = 'scratch operand']
  #allocation4 [shape = 'f32[2,8,128]{2,1,0:T(8,128)}', space=vmem, size = 0x2000, scoped, tag = 'scratch operand']
  #allocation5 [shape = 'f32[2,8,128]{2,1,0:T(8,128)}', space=vmem, size = 0x2000, scoped, tag = 'scratch operand']
  #allocation6 [shape = 'f32[2,8,128]{2,1,0:T(8,128)}', space=vmem, size = 0x2000, scoped, tag = 'scratch operand']
  #allocation7 [shape = 's32[10]{0}', space=sflag, size = 0x28, scoped, tag = 'scratch operand']
  #allocation8 [shape = 's32[1]{0}', space=sflag, size = 0x4, scoped, tag = 'scoped memory for tpu_custom_call.1']
  #allocation9 [shape = 'u8[512]{0}', space=smem, size = 0x200, scoped, tag = 'prefetched SMEM operand 0']
  #allocation10 [shape = 'u8[512]{0}', space=smem, size = 0x200, scoped, tag = 'prefetched SMEM operand 1']
  #allocation11 [shape = 'u8[512]{0}', space=smem, size = 0x200, scoped, tag = 'prefetched SMEM operand 2']
  #allocation12 [shape = 'u8[512]{0}', space=smem, size = 0x200, scoped, tag = 'prefetched SMEM operand 3']
  #allocation13 [shape = 'u8[512]{0}', space=smem, size = 0x200, scoped, tag = 'prefetched SMEM operand 4']
  #allocation14 [shape = 's32[]', space=sflag, size = 0x4, offset = 0, fixed_abs, tag = 'sflag constant byte address 0x0 - dummy sync flag']
  #allocation15 [shape = 's32[]', space=sflag, size = 0x4, offset = 0, fixed_abs, tag = 'sflag constant byte address 0x0 - dummy sync flag']
  #allocation16 [shape = 'u32[]', space=smem, size = 0x4, offset = 0x44, fixed_abs, tag = 'smem constant byte address 0x44 - assertion arg 0']
  #allocation17 [shape = 'u32[]', space=smem, size = 0x4, offset = 0x48, fixed_abs, tag = 'smem constant byte address 0x48 - assertion arg 1']
  #allocation18 [shape = 's32[]', space=sflag, size = 0x4, offset = 0, fixed_abs, tag = 'sflag constant byte address 0x0 - dummy sync flag']
  #allocation19 [shape = 's32[]', space=sflag, size = 0x4, offset = 0, fixed_abs, tag = 'sflag constant byte address 0x0 - dummy sync flag']
  #allocation20 [shape = 's32[]', space=sflag, size = 0x4, offset = 0, fixed_abs, tag = 'sflag constant byte address 0x0 - dummy sync flag']
  #allocation21 [shape = 's32[]', space=sflag, size = 0x4, offset = 0, fixed_abs, tag = 'sflag constant byte address 0x0 - dummy sync flag']
  #allocation22 [shape = 's32[]', space=sflag, size = 0x4, offset = 0, fixed_abs, tag = 'sflag constant byte address 0x0 - dummy sync flag']
  #allocation23 [shape = 's32[]', space=sflag, size = 0x4, offset = 0, fixed_abs, tag = 'sflag constant byte address 0x0 - dummy sync flag']
  #allocation24 [shape = 's32[]', space=sflag, size = 0x4, offset = 0, fixed_abs, tag = 'sflag constant byte address 0x0 - dummy sync flag']
  #allocation25 [shape = 's32[]', space=sflag, size = 0x4, offset = 0, fixed_abs, tag = 'sflag constant byte address 0x0 - dummy sync flag']
  #allocation26 [shape = 's32[]', space=sflag, size = 0x4, offset = 0, fixed_abs, tag = 'sflag constant byte address 0x0 - dummy sync flag']
  #allocation27 [shape = 's32[]', space=sflag, size = 0x4, offset = 0, fixed_abs, tag = 'sflag constant byte address 0x0 - dummy sync flag']
  #allocation28 [shape = 's32[]', space=sflag, size = 0x4, offset = 0, fixed_abs, tag = 'sflag constant byte address 0x0 - dummy sync flag']
  #allocation29 [shape = 's32[]', space=sflag, size = 0x4, offset = 0, fixed_abs, tag = 'sflag constant byte address 0x0 - dummy sync flag']
  #allocation30 [shape = 's32[]', space=sflag, size = 0x4, offset = 0, fixed_abs, tag = 'sflag constant byte address 0x0 - dummy sync flag']
  #allocation31 [shape = 's32[]', space=sflag, size = 0x4, offset = 0, fixed_abs, tag = 'sflag constant byte address 0x0 - dummy sync flag']
  #allocation32 [shape = 's32[]', space=sflag, size = 0x4, offset = 0, fixed_abs, tag = 'sflag constant byte address 0x0 - dummy sync flag']
  #allocation33 [shape = 's32[]', space=sflag, size = 0x4, offset = 0, fixed_abs, tag = 'sflag constant byte address 0x0 - dummy sync flag']
  #allocation34 [shape = 's32[]', space=sflag, size = 0x4, offset = 0, fixed_abs, tag = 'sflag constant byte address 0x0 - dummy sync flag']
  #allocation35 [shape = 's32[]', space=sflag, size = 0x4, offset = 0, fixed_abs, tag = 'sflag constant byte address 0x0 - dummy sync flag']
  #allocation36 [shape = 's32[]', space=sflag, size = 0x4, offset = 0, fixed_abs, tag = 'sflag constant byte address 0x0 - dummy sync flag']
  #allocation37 [shape = 's32[]', space=sflag, size = 0x4, offset = 0, fixed_abs, tag = 'sflag constant byte address 0x0 - dummy sync flag']
  #allocation38 [shape = 's32[]', space=sflag, size = 0x4, offset = 0, fixed_abs, tag = 'sflag constant byte address 0x0 - dummy sync flag']
  #allocation39 [shape = 's32[]', space=sflag, size = 0x4, offset = 0, fixed_abs, tag = 'sflag constant byte address 0x0 - dummy sync flag']
  #allocation40 [shape = 's32[]', space=sflag, size = 0x4, offset = 0, fixed_abs, tag = 'sflag constant byte address 0x0 - dummy sync flag']
  #allocation41 [shape = 's32[]', space=sflag, size = 0x4, offset = 0, fixed_abs, tag = 'sflag constant byte address 0x0 - dummy sync flag']
  #allocation42 [shape = 's32[]', space=sflag, size = 0x4, offset = 0, fixed_abs, tag = 'sflag constant byte address 0x0 - dummy sync flag']
  #allocation43 [shape = 's32[]', space=sflag, size = 0x4, offset = 0, fixed_abs, tag = 'sflag constant byte address 0x0 - dummy sync flag']
  #allocation44 [shape = 's32[]', space=sflag, size = 0x4, offset = 0, fixed_abs, tag = 'sflag constant byte address 0x0 - dummy sync flag']
  #allocation45 [shape = 's32[]', space=sflag, size = 0x4, offset = 0, fixed_abs, tag = 'sflag constant byte address 0x0 - dummy sync flag']
  #allocation46 [shape = 's32[]', space=sflag, size = 0x4, offset = 0, fixed_abs, tag = 'sflag constant byte address 0x0 - dummy sync flag']
  #allocation47 [shape = 's32[]', space=sflag, size = 0x4, offset = 0, fixed_abs, tag = 'sflag constant byte address 0x0 - dummy sync flag']
  #allocation48 [shape = 's32[]', space=sflag, size = 0x4, offset = 0, fixed_abs, tag = 'sflag constant byte address 0x0 - dummy sync flag']
  #allocation49 [shape = 's32[]', space=sflag, size = 0x4, offset = 0, fixed_abs, tag = 'sflag constant byte address 0x0 - dummy sync flag']
  #allocation50 [shape = 's32[]', space=sflag, size = 0x4, offset = 0, fixed_abs, tag = 'sflag constant byte address 0x0 - dummy sync flag']
  #allocation51 [shape = 's32[]', space=sflag, size = 0x4, offset = 0, fixed_abs, tag = 'sflag constant byte address 0x0 - dummy sync flag']
  #allocation52 [shape = 's32[]', space=sflag, size = 0x4, offset = 0, fixed_abs, tag = 'sflag constant byte address 0x0 - dummy sync flag']
  #allocation53 [shape = 's32[]', space=sflag, size = 0x4, offset = 0, fixed_abs, tag = 'sflag constant byte address 0x0 - dummy sync flag']
  #allocation54 [shape = 's32[]', space=sflag, size = 0x4, offset = 0, fixed_abs, tag = 'sflag constant byte address 0x0 - dummy sync flag']
  #allocation55 [shape = 's32[]', space=sflag, size = 0x4, offset = 0, fixed_abs, tag = 'sflag constant byte address 0x0 - dummy sync flag']
  #allocation56 [shape = 's32[]', space=sflag, size = 0x4, offset = 0, fixed_abs, tag = 'sflag constant byte address 0x0 - dummy sync flag']
  #allocation57 [shape = 's32[]', space=sflag, size = 0x4, offset = 0, fixed_abs, tag = 'sflag constant byte address 0x0 - dummy sync flag']
  #allocation58 [shape = 's32[]', space=sflag, size = 0x4, offset = 0, fixed_abs, tag = 'sflag constant byte address 0x0 - dummy sync flag']
  #allocation59 [shape = 's32[]', space=sflag, size = 0x4, offset = 0, fixed_abs, tag = 'sflag constant byte address 0x0 - dummy sync flag']
  #allocation60 [shape = 's32[]', space=sflag, size = 0x4, offset = 0, fixed_abs, tag = 'sflag constant byte address 0x0 - dummy sync flag']
  #allocation61 [shape = 's32[]', space=sflag, size = 0x4, offset = 0, fixed_abs, tag = 'sflag constant byte address 0x0 - dummy sync flag']
  #allocation62 [shape = 's32[]', space=sflag, size = 0x4, offset = 0, fixed_abs, tag = 'sflag constant byte address 0x0 - dummy sync flag']
  #allocation63 [shape = 's32[]', space=sflag, size = 0x4, offset = 0, fixed_abs, tag = 'sflag constant byte address 0x0 - dummy sync flag']
  #allocation64 [shape = 's32[]', space=sflag, size = 0x4, offset = 0, fixed_abs, tag = 'sflag constant byte address 0x0 - dummy sync flag']
  #allocation65 [shape = 's32[]', space=sflag, size = 0x4, offset = 0, fixed_abs, tag = 'sflag constant byte address 0x0 - dummy sync flag']
  #allocation66 [shape = 's32[]', space=sflag, size = 0x4, offset = 0, fixed_abs, tag = 'sflag constant byte address 0x0 - dummy sync flag']
  #allocation67 [shape = 's32[]', space=sflag, size = 0x4, offset = 0, fixed_abs, tag = 'sflag constant byte address 0x0 - dummy sync flag']
  #allocation68 [shape = 's32[]', space=sflag, size = 0x4, offset = 0, fixed_abs, tag = 'sflag constant byte address 0x0 - dummy sync flag']
  #allocation69 [shape = 's32[]', space=sflag, size = 0x4, offset = 0, fixed_abs, tag = 'sflag constant byte address 0x0 - dummy sync flag']
  #allocation70 [shape = 's32[]', space=sflag, size = 0x4, offset = 0, fixed_abs, tag = 'sflag constant byte address 0x0 - dummy sync flag']
  #allocation71 [shape = 's32[]', space=sflag, size = 0x4, offset = 0, fixed_abs, tag = 'sflag constant byte address 0x0 - dummy sync flag']
  #allocation72 [shape = 's32[]', space=sflag, size = 0x4, offset = 0, fixed_abs, tag = 'sflag constant byte address 0x0 - dummy sync flag']
  #allocation73 [shape = 's32[]', space=sflag, size = 0x4, offset = 0, fixed_abs, tag = 'sflag constant byte address 0x0 - dummy sync flag']
  #allocation74 [shape = 's32[]', space=sflag, size = 0x4, offset = 0, fixed_abs, tag = 'sflag constant byte address 0x0 - dummy sync flag']
  #allocation75 [shape = 's32[]', space=sflag, size = 0x4, offset = 0, fixed_abs, tag = 'sflag constant byte address 0x0 - dummy sync flag']
  #allocation76 [shape = 's32[]', space=sflag, size = 0x4, offset = 0, fixed_abs, tag = 'sflag constant byte address 0x0 - dummy sync flag']
  #allocation77 [shape = 's32[]', space=sflag, size = 0x4, offset = 0, fixed_abs, tag = 'sflag constant byte address 0x0 - dummy sync flag']
  #allocation78 [shape = 's32[]', space=sflag, size = 0x4, offset = 0, fixed_abs, tag = 'sflag constant byte address 0x0 - dummy sync flag']
  #allocation79 [shape = 's32[]', space=sflag, size = 0x4, offset = 0, fixed_abs, tag = 'sflag constant byte address 0x0 - dummy sync flag']
  #allocation80 [shape = 's32[]', space=sflag, size = 0x4, offset = 0, fixed_abs, tag = 'sflag constant byte address 0x0 - dummy sync flag']
  #allocation81 [shape = 's32[]', space=sflag, size = 0x4, offset = 0, fixed_abs, tag = 'sflag constant byte address 0x0 - dummy sync flag']
  #allocation82 [shape = 's32[]', space=sflag, size = 0x4, offset = 0, fixed_abs, tag = 'sflag constant byte address 0x0 - dummy sync flag']
  #allocation83 [shape = 's32[]', space=sflag, size = 0x4, offset = 0, fixed_abs, tag = 'sflag constant byte address 0x0 - dummy sync flag']
  #allocation84 [shape = 's32[]', space=sflag, size = 0x4, offset = 0, fixed_abs, tag = 'sflag constant byte address 0x0 - dummy sync flag']
  #allocation85 [shape = 's32[]', space=sflag, size = 0x4, offset = 0, fixed_abs, tag = 'sflag constant byte address 0x0 - dummy sync flag']
  #allocation86 [shape = 's32[]', space=sflag, size = 0x4, offset = 0, fixed_abs, tag = 'sflag constant byte address 0x0 - dummy sync flag']
  #allocation87 [shape = 's32[]', space=sflag, size = 0x4, offset = 0, fixed_abs, tag = 'sflag constant byte address 0x0 - dummy sync flag']
  #allocation88 [shape = 's32[]', space=sflag, size = 0x4, offset = 0, fixed_abs, tag = 'sflag constant byte address 0x0 - dummy sync flag']
  #allocation89 [shape = 's32[]', space=sflag, size = 0x4, offset = 0, fixed_abs, tag = 'sflag constant byte address 0x0 - dummy sync flag']
  #allocation90 [shape = 's32[]', space=sflag, size = 0x4, offset = 0, fixed_abs, tag = 'sflag constant byte address 0x0 - dummy sync flag']
  #allocation91 [shape = 's32[]', space=sflag, size = 0x4, offset = 0, fixed_abs, tag = 'sflag constant byte address 0x0 - dummy sync flag']
  #allocation92 [shape = 's32[]', space=sflag, size = 0x4, offset = 0, fixed_abs, tag = 'sflag constant byte address 0x0 - dummy sync flag']
  #allocation93 [shape = 's32[]', space=sflag, size = 0x4, offset = 0, fixed_abs, tag = 'sflag constant byte address 0x0 - dummy sync flag']
  #allocation94 [shape = 's32[]', space=sflag, size = 0x4, offset = 0, fixed_abs, tag = 'sflag constant byte address 0x0 - dummy sync flag']
  #allocation95 [shape = 's32[]', space=sflag, size = 0x4, offset = 0, fixed_abs, tag = 'sflag constant byte address 0x0 - dummy sync flag']
  #allocation96 [shape = 's32[]', space=sflag, size = 0x4, offset = 0, fixed_abs, tag = 'sflag constant byte address 0x0 - dummy sync flag']
  #allocation97 [shape = 's32[]', space=sflag, size = 0x4, offset = 0, fixed_abs, tag = 'sflag constant byte address 0x0 - dummy sync flag']
  #allocation98 [shape = 's32[]', space=sflag, size = 0x4, offset = 0, fixed_abs, tag = 'sflag constant byte address 0x0 - dummy sync flag']
  #allocation99 [shape = 's32[]', space=sflag, size = 0x4, offset = 0, fixed_abs, tag = 'sflag constant byte address 0x0 - dummy sync flag']
  #allocation100 [shape = 's32[]', space=sflag, size = 0x4, offset = 0, fixed_abs, tag = 'sflag constant byte address 0x0 - dummy sync flag']
  #allocation101 [shape = 's32[]', space=sflag, size = 0x4, offset = 0, fixed_abs, tag = 'sflag constant byte address 0x0 - dummy sync flag']
  #allocation102 [shape = 's32[]', space=sflag, size = 0x4, offset = 0, fixed_abs, tag = 'sflag constant byte address 0x0 - dummy sync flag']
  #allocation103 [shape = 's32[]', space=sflag, size = 0x4, offset = 0, fixed_abs, tag = 'sflag constant byte address 0x0 - dummy sync flag']
  #allocation104 [shape = 's32[]', space=sflag, size = 0x4, offset = 0, fixed_abs, tag = 'sflag constant byte address 0x0 - dummy sync flag']
  #allocation105 [shape = 's32[]', space=sflag, size = 0x4, offset = 0, fixed_abs, tag = 'sflag constant byte address 0x0 - dummy sync flag']
  #allocation106 [shape = 's32[]', space=sflag, size = 0x4, offset = 0, fixed_abs, tag = 'sflag constant byte address 0x0 - dummy sync flag']
  #allocation107 [shape = 's32[]', space=sflag, size = 0x4, offset = 0, fixed_abs, tag = 'sflag constant byte address 0x0 - dummy sync flag']
  #allocation108 [shape = 's32[]', space=sflag, size = 0x4, offset = 0, fixed_abs, tag = 'sflag constant byte address 0x0 - dummy sync flag']
  #allocation109 [shape = 's32[]', space=sflag, size = 0x4, offset = 0, fixed_abs, tag = 'sflag constant byte address 0x0 - dummy sync flag']
  #allocation110 [shape = 's32[]', space=sflag, size = 0x4, offset = 0, fixed_abs, tag = 'sflag constant byte address 0x0 - dummy sync flag']
  #allocation111 [shape = 's32[]', space=sflag, size = 0x4, offset = 0, fixed_abs, tag = 'sflag constant byte address 0x0 - dummy sync flag']
  #allocation112 [shape = 's32[]', space=sflag, size = 0x4, offset = 0, fixed_abs, tag = 'sflag constant byte address 0x0 - dummy sync flag']
  #allocation113 [shape = 's32[]', space=sflag, size = 0x4, offset = 0, fixed_abs, tag = 'sflag constant byte address 0x0 - dummy sync flag']
  #allocation114 [shape = 's32[]', space=sflag, size = 0x4, offset = 0, fixed_abs, tag = 'sflag constant byte address 0x0 - dummy sync flag']
  #allocation115 [shape = 's32[]', space=sflag, size = 0x4, offset = 0, fixed_abs, tag = 'sflag constant byte address 0x0 - dummy sync flag']
  #allocation116 [shape = 's32[]', space=sflag, size = 0x4, offset = 0, fixed_abs, tag = 'sflag constant byte address 0x0 - dummy sync flag']
  #allocation117 [shape = 's32[]', space=sflag, size = 0x4, offset = 0, fixed_abs, tag = 'sflag constant byte address 0x0 - dummy sync flag']
  #allocation118 [shape = 's32[]', space=sflag, size = 0x4, offset = 0, fixed_abs, tag = 'sflag constant byte address 0x0 - dummy sync flag']
  #allocation119 [shape = 's32[]', space=sflag, size = 0x4, offset = 0, fixed_abs, tag = 'sflag constant byte address 0x0 - dummy sync flag']
  #allocation120 [shape = 's32[]', space=sflag, size = 0x4, offset = 0, fixed_abs, tag = 'sflag constant byte address 0x0 - dummy sync flag']
  #allocation121 [shape = 's32[]', space=sflag, size = 0x4, offset = 0, fixed_abs, tag = 'sflag constant byte address 0x0 - dummy sync flag']
  #allocation122 [shape = 's32[]', space=sflag, size = 0x4, offset = 0, fixed_abs, tag = 'sflag constant byte address 0x0 - dummy sync flag']
  #allocation123 [shape = 's32[]', space=sflag, size = 0x4, offset = 0, fixed_abs, tag = 'sflag constant byte address 0x0 - dummy sync flag']
  #allocation124 [shape = 's32[]', space=sflag, size = 0x4, offset = 0, fixed_abs, tag = 'sflag constant byte address 0x0 - dummy sync flag']
  #allocation125 [shape = 's32[]', space=sflag, size = 0x4, offset = 0, fixed_abs, tag = 'sflag constant byte address 0x0 - dummy sync flag']
  #allocation126 [shape = 's32[]', space=sflag, size = 0x4, offset = 0, fixed_abs, tag = 'sflag constant byte address 0x0 - dummy sync flag']
  #allocation127 [shape = 's32[]', space=sflag, size = 0x4, offset = 0, fixed_abs, tag = 'sflag constant byte address 0x0 - dummy sync flag']
  #allocation128 [shape = 's32[]', space=sflag, size = 0x4, offset = 0, fixed_abs, tag = 'sflag constant byte address 0x0 - dummy sync flag']
  #allocation129 [shape = 's32[]', space=sflag, size = 0x4, offset = 0, fixed_abs, tag = 'sflag constant byte address 0x0 - dummy sync flag']
  #allocation130 [shape = 's32[]', space=sflag, size = 0x4, offset = 0, fixed_abs, tag = 'sflag constant byte address 0x0 - dummy sync flag']
  #allocation131 [shape = 's32[]', space=sflag, size = 0x4, offset = 0, fixed_abs, tag = 'sflag constant byte address 0x0 - dummy sync flag']
  #allocation132 [shape = 's32[]', space=sflag, size = 0x4, offset = 0, fixed_abs, tag = 'sflag constant byte address 0x0 - dummy sync flag']
  #allocation133 [shape = 's32[]', space=sflag, size = 0x4, offset = 0, fixed_abs, tag = 'sflag constant byte address 0x0 - dummy sync flag']
  #allocation134 [shape = 's32[]', space=sflag, size = 0x4, offset = 0, fixed_abs, tag = 'sflag constant byte address 0x0 - dummy sync flag']
  #allocation135 [shape = 's32[]', space=sflag, size = 0x4, offset = 0, fixed_abs, tag = 'sflag constant byte address 0x0 - dummy sync flag']
  #allocation136 [shape = 's32[]', space=sflag, size = 0x4, offset = 0, fixed_abs, tag = 'sflag constant byte address 0x0 - dummy sync flag']
  #allocation137 [shape = 's32[]', space=sflag, size = 0x4, offset = 0, fixed_abs, tag = 'sflag constant byte address 0x0 - dummy sync flag']
  #allocation138 [shape = 's32[]', space=sflag, size = 0x4, offset = 0, fixed_abs, tag = 'sflag constant byte address 0x0 - dummy sync flag']
  #allocation139 [shape = 's32[]', space=sflag, size = 0x4, offset = 0, fixed_abs, tag = 'sflag constant byte address 0x0 - dummy sync flag']
  #allocation140 [shape = 's32[]', space=sflag, size = 0x4, offset = 0, fixed_abs, tag = 'sflag constant byte address 0x0 - dummy sync flag']
  #allocation141 [shape = 's32[]', space=sflag, size = 0x4, offset = 0, fixed_abs, tag = 'sflag constant byte address 0x0 - dummy sync flag']
  #allocation142 [shape = 's32[]', space=sflag, size = 0x4, offset = 0, fixed_abs, tag = 'sflag constant byte address 0x0 - dummy sync flag']
  #allocation143 [shape = 's32[]', space=sflag, size = 0x4, offset = 0, fixed_abs, tag = 'sflag constant byte address 0x0 - dummy sync flag']
  #allocation144 [shape = 's32[]', space=sflag, size = 0x4, offset = 0, fixed_abs, tag = 'sflag constant byte address 0x0 - dummy sync flag']
  #allocation145 [shape = 's32[]', space=sflag, size = 0x4, offset = 0, fixed_abs, tag = 'sflag constant byte address 0x0 - dummy sync flag']
  #allocation146 [shape = 's32[]', space=sflag, size = 0x4, offset = 0, fixed_abs, tag = 'sflag constant byte address 0x0 - dummy sync flag']
  #allocation147 [shape = 's32[]', space=sflag, size = 0x4, offset = 0, fixed_abs, tag = 'sflag constant byte address 0x0 - dummy sync flag']
  #allocation148 [shape = 's32[]', space=sflag, size = 0x4, offset = 0, fixed_abs, tag = 'sflag constant byte address 0x0 - dummy sync flag']
  #allocation149 [shape = 's32[]', space=sflag, size = 0x4, offset = 0, fixed_abs, tag = 'sflag constant byte address 0x0 - dummy sync flag']
  #allocation150 [shape = 's32[]', space=sflag, size = 0x4, offset = 0, fixed_abs, tag = 'sflag constant byte address 0x0 - dummy sync flag']
  #allocation151 [shape = 's32[]', space=sflag, size = 0x4, offset = 0, fixed_abs, tag = 'sflag constant byte address 0x0 - dummy sync flag']
  #allocation152 [shape = 's32[]', space=sflag, size = 0x4, offset = 0, fixed_abs, tag = 'sflag constant byte address 0x0 - dummy sync flag']
  #allocation153 [shape = 's32[]', space=sflag, size = 0x4, offset = 0, fixed_abs, tag = 'sflag constant byte address 0x0 - dummy sync flag']
  #allocation154 [shape = 's32[]', space=sflag, size = 0x4, offset = 0, fixed_abs, tag = 'sflag constant byte address 0x0 - dummy sync flag']
  #allocation155 [shape = 's32[]', space=sflag, size = 0x4, offset = 0, fixed_abs, tag = 'sflag constant byte address 0x0 - dummy sync flag']
  #allocation156 [shape = 's32[]', space=sflag, size = 0x4, offset = 0, fixed_abs, tag = 'sflag constant byte address 0x0 - dummy sync flag']
  #allocation157 [shape = 's32[]', space=sflag, size = 0x4, offset = 0, fixed_abs, tag = 'sflag constant byte address 0x0 - dummy sync flag']
  #allocation158 [shape = 's32[]', space=sflag, size = 0x4, offset = 0, fixed_abs, tag = 'sflag constant byte address 0x0 - dummy sync flag']
  #allocation159 [shape = 's32[]', space=sflag, size = 0x4, offset = 0, fixed_abs, tag = 'sflag constant byte address 0x0 - dummy sync flag']
  %s0 = inlined_call_operand.hbm [shape: s32[24], index: 0, kind: input, shape index: {}]
  %s1 = inlined_call_operand.vmem [shape: s32[24], index: 1, kind: input, shape index: {}]
  %s2 = inlined_call_operand.vmem [shape: s32[24], index: 2, kind: input, shape index: {}]
  %s3 = inlined_call_operand.vmem [shape: s32[24], index: 3, kind: input, shape index: {}]
  %s4 = inlined_call_operand.vmem [shape: s32[24], index: 4, kind: input, shape index: {}]
  %s5 = inlined_call_operand.hbm [shape: f32[64,128], index: 5, kind: input, shape index: {}]
  %s6 = inlined_call_operand.vmem [shape: f32[16,128], index: 6, kind: input, shape index: {}]
  %s7 = inlined_call_operand.vmem [shape: f32[24,1], index: 7, kind: output, shape index: {}]
  %s8 = sld [smem:[#allocation0]]
  $region769: #{tpu_custom_call.1} parent=0
    _
  %s10 = ssub.s32 1, %s8
  %s11 = scalar_select 0, %s10, %s8
  %13 = dma.hbm_to_smem %s0, 16, [#allocation9], [#allocation8]
  %s14 = sshll.u32 %s1, 4
  %s15 = int_to_ptr.vmem [resolvable:$true] %s14
  %17 = dma.vmem_to_smem %s15, 16, [#allocation10], [#allocation8]
  %s18 = sshll.u32 %s2, 4
  %s19 = int_to_ptr.vmem [resolvable:$true] %s18
  %21 = dma.vmem_to_smem %s19, 16, [#allocation11], [#allocation8]
  %s22 = sshll.u32 %s3, 4
  %s23 = int_to_ptr.vmem [resolvable:$true] %s22
  %25 = dma.vmem_to_smem %s23, 16, [#allocation12], [#allocation8]
  %s26 = sshll.u32 %s4, 4
  %s27 = int_to_ptr.vmem [resolvable:$true] %s26
  %29 = dma.vmem_to_smem %s27, 16, [#allocation13], [#allocation8]
  %30 = dma.done [#allocation8], 80
  %31 = sfence
  loop: start=0, step=1, limit=4
  $region2: #{tpu_custom_call.1} parent=0 // loop_pre_header
    _
  $region3: #{tpu_custom_call.1} parent=0 // loop_header
    %s33 = sphi 0, %s37
    %p34 = scmp.ge.s32.totalorder %s33, 4
    %s42 = sphi 0, %s44
    %s45 = sphi 0, %s42
    %s55 = sphi 0, %s45
  $region4: #{tpu_custom_call.1} parent=0 // loop_header_branch
    %36 = sbr.rel (%p34) target = $region8
  $region5: #{tpu_custom_call.1} parent=0 // loop_body
    %s38 = ssub.s32 %s33, 1
    %s39 = sadd.s32 %s33, 1
    %s40 = ssub.s32 %s33, %s39
    %p41 = scmp.eq.s32.totalorder %s40, 0
    %s43 = sadd.s32 %s42, 1
    %s44 = scalar_select %p41, %s42, %s43
    %p46 = pneg %p41
    %p47 = scmp.eq.s32.totalorder %s33, 2
    %p48 = por %p46, %p47
    %p49 = scmp.ne.s32.totalorder %s42, %s45
    %p50 = scmp.eq.s32.totalorder %s33, 0
    %p51 = por %p49, %p50
    %p52 = scmp.ne.s32.totalorder %s42, %s45
    %p53 = scmp.eq.s32.totalorder %s38, 2
    %p54 = por %p52, %p53
    %p56 = scmp.ne.s32.totalorder %s45, %s55
    %p57 = scmp.eq.s32.totalorder %s38, 0
    %p58 = por %p56, %p57
    %p59 = scmp.lt.s32.totalorder %s33, 3
    // Predicated region
    $region9: #{tpu_custom_call.1} parent=5 // pred_check
      %p60 = pneg %p59
    $region10: #{tpu_custom_call.1} parent=5 // pred_check_branch
      %62 = sbr.rel (%p60) target = $region12
    $region11: #{tpu_custom_call.1} parent=5 // pred_region
      %p63 = pneg %p51
      %p64 = pneg %p48
      %p65 = scmp.lt.s32.totalorder %s33, 2
      %s66 = scalar_select %p65, %s33, 2
      %s67 = smul.addr %s66, 8
      %s68 = scalar_lea.vmem %s7, %s67
      %p69 = scmp.lt.s32.totalorder %s33, 2
      %s70 = scalar_select %p69, %s33, 2
      %s71 = smul.addr %s70, 8
      %s72 = scalar_lea.vmem %s7, %s71
      %p73 = scmp.lt.s32.totalorder %s33, 0
      %s74 = ssub.s32 0, %s33
      %s75 = scalar_select %p73, %s74, %s33
      %s76 = sand.u32 %s75, 1
      %s77 = ssub.s32 0, %s76
      %s78 = scalar_select %p73, %s77, %s76
      %p79 = scmp.ne.s32.totalorder %s78, 0
      %p80 = scmp.lt.s32.totalorder %s78, 0
      %p81 = pnand %p80, %p79
      %p82 = pneg %p81
      %s83 = sadd.s32 %s78, 2
      %s84 = scalar_select %p82, %s83, %s78
      %p85 = scmp.eq.s32.totalorder %s33, 0
      // Predicated region
      $region13: #{tpu_custom_call.1} parent=11 // pred_check
        %p86 = pneg %p85
      $region14: #{tpu_custom_call.1} parent=11 // pred_check_branch
        %88 = sbr.rel (%p86) target = $region16
      $region15: #{tpu_custom_call.1} parent=11 // pred_region
        %s89 = smul.u32 %s33, 8
        %s90 = sld [smem:[#allocation9 + %s89]]
        %s91 = smul.addr %s90, 16
        %s92 = scalar_lea.hbm %s5, %s91
        %s93 = smul.u32 %s84, 8
        %s94 = scalar_lea.vmem [#allocation2], %s93
        %s95 = smul.u32 %s84, 5
        %s96 = scalar_lea.sflag [#allocation7], %s95
        // Predicated region
        $region17: #{tpu_custom_call.1} parent=15 // pred_check
          _
        $region18: #{tpu_custom_call.1} parent=15 // pred_check_branch
          %98 = sbr.rel target = $region20
        $region19: #{tpu_custom_call.1} parent=15 // pred_region
          %99 = sst [smem:[#allocation16]] [#allocation15]
          %100 = sst [smem:[#allocation17]] [#allocation14]
        $region20: #{tpu_custom_call.1} parent=15 // pred_fallthru
          _
        %102 = shalt.err (0)
        %s104 = sshll.u32 %s94, 4
        %s105 = int_to_ptr.vmem [resolvable:$true] %s104
        %107 = dma.hbm_to_vmem [thread:$0]  %s92, 16, %s105, %s96
        %s108 = sadd.s32 %s89, 1
        %s109 = sld [smem:[#allocation9 + %s108]]
        %s110 = smul.addr %s109, 16
        %s111 = scalar_lea.hbm %s5, %s110
        %s112 = sadd.s32 1, %s93
        %s113 = scalar_lea.vmem [#allocation2], %s112
        // Predicated region
        $region21: #{tpu_custom_call.1} parent=15 // pred_check
          _
        $region22: #{tpu_custom_call.1} parent=15 // pred_check_branch
          %115 = sbr.rel target = $region24
        $region23: #{tpu_custom_call.1} parent=15 // pred_region
          %116 = sst [smem:[#allocation16]] [#allocation19]
          %117 = sst [smem:[#allocation17]] [#allocation18]
        $region24: #{tpu_custom_call.1} parent=15 // pred_fallthru
          _
        %119 = shalt.err (0)
        %s121 = sshll.u32 %s113, 4
        %s122 = int_to_ptr.vmem [resolvable:$true] %s121
        %124 = dma.hbm_to_vmem [thread:$0]  %s111, 16, %s122, %s96
        %s125 = sadd.s32 %s89, 2
        %s126 = sld [smem:[#allocation9 + %s125]]
        %s127 = smul.addr %s126, 16
        %s128 = scalar_lea.hbm %s5, %s127
        %s129 = sadd.s32 2, %s93
        %s130 = scalar_lea.vmem [#allocation2], %s129
        // Predicated region
        $region25: #{tpu_custom_call.1} parent=15 // pred_check
          _
        $region26: #{tpu_custom_call.1} parent=15 // pred_check_branch
          %132 = sbr.rel target = $region28
        $region27: #{tpu_custom_call.1} parent=15 // pred_region
          %133 = sst [smem:[#allocation16]] [#allocation21]
          %134 = sst [smem:[#allocation17]] [#allocation20]
        $region28: #{tpu_custom_call.1} parent=15 // pred_fallthru
          _
        %136 = shalt.err (0)
        %s138 = sshll.u32 %s130, 4
        %s139 = int_to_ptr.vmem [resolvable:$true] %s138
        %141 = dma.hbm_to_vmem [thread:$0]  %s128, 16, %s139, %s96
        %s142 = sadd.s32 %s89, 3
        %s143 = sld [smem:[#allocation9 + %s142]]
        %s144 = smul.addr %s143, 16
        %s145 = scalar_lea.hbm %s5, %s144
        %s146 = sadd.s32 3, %s93
        %s147 = scalar_lea.vmem [#allocation2], %s146
        // Predicated region
        $region29: #{tpu_custom_call.1} parent=15 // pred_check
          _
        $region30: #{tpu_custom_call.1} parent=15 // pred_check_branch
          %149 = sbr.rel target = $region32
        $region31: #{tpu_custom_call.1} parent=15 // pred_region
          %150 = sst [smem:[#allocation16]] [#allocation23]
          %151 = sst [smem:[#allocation17]] [#allocation22]
        $region32: #{tpu_custom_call.1} parent=15 // pred_fallthru
          _
        %153 = shalt.err (0)
        %s155 = sshll.u32 %s147, 4
        %s156 = int_to_ptr.vmem [resolvable:$true] %s155
        %158 = dma.hbm_to_vmem [thread:$0]  %s145, 16, %s156, %s96
        %s159 = sadd.s32 %s89, 4
        %s160 = sld [smem:[#allocation9 + %s159]]
        %s161 = smul.addr %s160, 16
        %s162 = scalar_lea.hbm %s5, %s161
        %s163 = sadd.s32 4, %s93
        %s164 = scalar_lea.vmem [#allocation2], %s163
        // Predicated region
        $region33: #{tpu_custom_call.1} parent=15 // pred_check
          _
        $region34: #{tpu_custom_call.1} parent=15 // pred_check_branch
          %166 = sbr.rel target = $region36
        $region35: #{tpu_custom_call.1} parent=15 // pred_region
          %167 = sst [smem:[#allocation16]] [#allocation25]
          %168 = sst [smem:[#allocation17]] [#allocation24]
        $region36: #{tpu_custom_call.1} parent=15 // pred_fallthru
          _
        %170 = shalt.err (0)
        %s172 = sshll.u32 %s164, 4
        %s173 = int_to_ptr.vmem [resolvable:$true] %s172
        %175 = dma.hbm_to_vmem [thread:$0]  %s162, 16, %s173, %s96
        %s176 = sadd.s32 %s89, 5
        %s177 = sld [smem:[#allocation9 + %s176]]
        %s178 = smul.addr %s177, 16
        %s179 = scalar_lea.hbm %s5, %s178
        %s180 = sadd.s32 5, %s93
        %s181 = scalar_lea.vmem [#allocation2], %s180
        // Predicated region
        $region37: #{tpu_custom_call.1} parent=15 // pred_check
          _
        $region38: #{tpu_custom_call.1} parent=15 // pred_check_branch
          %183 = sbr.rel target = $region40
        $region39: #{tpu_custom_call.1} parent=15 // pred_region
          %184 = sst [smem:[#allocation16]] [#allocation27]
          %185 = sst [smem:[#allocation17]] [#allocation26]
        $region40: #{tpu_custom_call.1} parent=15 // pred_fallthru
          _
        %187 = shalt.err (0)
        %s189 = sshll.u32 %s181, 4
        %s190 = int_to_ptr.vmem [resolvable:$true] %s189
        %192 = dma.hbm_to_vmem [thread:$0]  %s179, 16, %s190, %s96
        %s193 = sadd.s32 %s89, 6
        %s194 = sld [smem:[#allocation9 + %s193]]
        %s195 = smul.addr %s194, 16
        %s196 = scalar_lea.hbm %s5, %s195
        %s197 = sadd.s32 6, %s93
        %s198 = scalar_lea.vmem [#allocation2], %s197
        // Predicated region
        $region41: #{tpu_custom_call.1} parent=15 // pred_check
          _
        $region42: #{tpu_custom_call.1} parent=15 // pred_check_branch
          %200 = sbr.rel target = $region44
        $region43: #{tpu_custom_call.1} parent=15 // pred_region
          %201 = sst [smem:[#allocation16]] [#allocation29]
          %202 = sst [smem:[#allocation17]] [#allocation28]
        $region44: #{tpu_custom_call.1} parent=15 // pred_fallthru
          _
        %204 = shalt.err (0)
        %s206 = sshll.u32 %s198, 4
        %s207 = int_to_ptr.vmem [resolvable:$true] %s206
        %209 = dma.hbm_to_vmem [thread:$0]  %s196, 16, %s207, %s96
        %s210 = sadd.s32 %s89, 7
        %s211 = sld [smem:[#allocation9 + %s210]]
        %s212 = smul.addr %s211, 16
        %s213 = scalar_lea.hbm %s5, %s212
        %s214 = sadd.s32 7, %s93
        %s215 = scalar_lea.vmem [#allocation2], %s214
        // Predicated region
        $region45: #{tpu_custom_call.1} parent=15 // pred_check
          _
        $region46: #{tpu_custom_call.1} parent=15 // pred_check_branch
          %217 = sbr.rel target = $region48
        $region47: #{tpu_custom_call.1} parent=15 // pred_region
          %218 = sst [smem:[#allocation16]] [#allocation31]
          %219 = sst [smem:[#allocation17]] [#allocation30]
        $region48: #{tpu_custom_call.1} parent=15 // pred_fallthru
          _
        %221 = shalt.err (0)
        %s223 = sshll.u32 %s215, 4
        %s224 = int_to_ptr.vmem [resolvable:$true] %s223
        %226 = dma.hbm_to_vmem [thread:$0]  %s213, 16, %s224, %s96
        %s227 = sld [smem:[#allocation10 + %s89]]
        %s228 = scalar_lea.vmem %s6, %s227
        %s229 = scalar_lea.vmem [#allocation3], %s93
        %s230 = sadd.s32 1, %s95
        %s231 = scalar_lea.sflag [#allocation7], %s230
        %p233 = scmp.lt.u32.totalorder 1, 8
        %p234 = pneg %p233
        // Predicated region
        $region49: #{tpu_custom_call.1} parent=15 // pred_check
          _
        $region50: #{tpu_custom_call.1} parent=15 // pred_check_branch
          %236 = sbr.rel (%p233) target = $region52
        $region51: #{tpu_custom_call.1} parent=15 // pred_region
          %s251 = sand.u32 1, 7
          %p252 = scmp.eq.s32.totalorder %s251, 0
          %p253 = pneg %p252
          // Predicated region
          $region64: #{tpu_custom_call.1} parent=51 // pred_check
            _
          $region65: #{tpu_custom_call.1} parent=51 // pred_check_branch
            %255 = sbr.rel (%p252) target = $region67
          $region66: #{tpu_custom_call.1} parent=51 // pred_region
            %s256 = sand.u32 1, 7
            %s257 = ssub.s32 1, %s256
            %s258 = scalar_lea.vmem %s228, %s257
            %s259 = ssub.s32 1, %s256
            %s260 = scalar_lea.vmem %s229, %s259 [#allocation3]
            %s261 = sshllo.u32 0, %s256
            loop: start=0, step=1, limit=1
            $region68: #{tpu_custom_call.1} parent=66 // loop_pre_header
              _
            $region69: #{tpu_custom_call.1} parent=66 // loop_header
              %s263 = sphi 0, %s267
              %p264 = scmp.ge.s32.totalorder %s263, 1
              %s268 = sphi %s258, %s258
              %s269 = sphi %s260, %s260
            $region70: #{tpu_custom_call.1} parent=66 // loop_header_branch
              %266 = sbr.rel (%p264) target = $region74
            $region71: #{tpu_custom_call.1} parent=66 // loop_body
              %v270 = vld [vmem:[%s268] sm:%s261]
              %271 = vst [vmem:[%s269] sm:%s261] %v270
            $region72: #{tpu_custom_call.1} parent=66 // loop_footer
              %s267 = sadd.s32 1, %s263
            $region73: #{tpu_custom_call.1} parent=66 // loop_footer_branch
              %262 = sbr.rel target = $region69
            $region74: #{tpu_custom_call.1} parent=66 // loop_exit
              _
          $region67: #{tpu_custom_call.1} parent=51 // pred_fallthru
            _
        $region52: #{tpu_custom_call.1} parent=15 // pred_fallthru
          _
        // Predicated region
        $region53: #{tpu_custom_call.1} parent=15 // pred_check
          %p237 = pneg %p233
        $region54: #{tpu_custom_call.1} parent=15 // pred_check_branch
          %239 = sbr.rel (%p237) target = $region56
        $region55: #{tpu_custom_call.1} parent=15 // pred_region
          %s240 = sshllo.u32 0, 1
          loop: start=0, step=1, limit=1
          $region57: #{tpu_custom_call.1} parent=55 // loop_pre_header
            _
          $region58: #{tpu_custom_call.1} parent=55 // loop_header
            %s242 = sphi 0, %s246
            %p243 = scmp.ge.s32.totalorder %s242, 1
            %s247 = sphi %s228, %s228
            %s248 = sphi %s229, %s229
          $region59: #{tpu_custom_call.1} parent=55 // loop_header_branch
            %245 = sbr.rel (%p243) target = $region63
          $region60: #{tpu_custom_call.1} parent=55 // loop_body
            %v249 = vld [vmem:[%s247] sm:%s240]
            %250 = vst [vmem:[%s248] sm:%s240] %v249
          $region61: #{tpu_custom_call.1} parent=55 // loop_footer
            %s246 = sadd.s32 1, %s242
          $region62: #{tpu_custom_call.1} parent=55 // loop_footer_branch
            %241 = sbr.rel target = $region58
          $region63: #{tpu_custom_call.1} parent=55 // loop_exit
            _
        $region56: #{tpu_custom_call.1} parent=15 // pred_fallthru
          _
        // Predicated region
        $region75: #{tpu_custom_call.1} parent=15 // pred_check
          _
        $region76: #{tpu_custom_call.1} parent=15 // pred_check_branch
          %274 = sbr.rel (0) target = $region78
        $region77: #{tpu_custom_call.1} parent=15 // pred_region
          %275 = vsyncadd %s231, 16
        $region78: #{tpu_custom_call.1} parent=15 // pred_fallthru
          _
        %s276 = sld [smem:[#allocation10 + %s108]]
        %s277 = scalar_lea.vmem %s6, %s276
        %s278 = scalar_lea.vmem [#allocation3], %s112
        %p280 = scmp.lt.u32.totalorder 1, 8
        %p281 = pneg %p280
        // Predicated region
        $region79: #{tpu_custom_call.1} parent=15 // pred_check
          _
        $region80: #{tpu_custom_call.1} parent=15 // pred_check_branch
          %283 = sbr.rel (%p280) target = $region82
        $region81: #{tpu_custom_call.1} parent=15 // pred_region
          %s298 = sand.u32 1, 7
          %p299 = scmp.eq.s32.totalorder %s298, 0
          %p300 = pneg %p299
          // Predicated region
          $region94: #{tpu_custom_call.1} parent=81 // pred_check
            _
          $region95: #{tpu_custom_call.1} parent=81 // pred_check_branch
            %302 = sbr.rel (%p299) target = $region97
          $region96: #{tpu_custom_call.1} parent=81 // pred_region
            %s303 = sand.u32 1, 7
            %s304 = ssub.s32 1, %s303
            %s305 = scalar_lea.vmem %s277, %s304
            %s306 = ssub.s32 1, %s303
            %s307 = scalar_lea.vmem %s278, %s306 [#allocation3]
            %s308 = sshllo.u32 0, %s303
            loop: start=0, step=1, limit=1
            $region98: #{tpu_custom_call.1} parent=96 // loop_pre_header
              _
            $region99: #{tpu_custom_call.1} parent=96 // loop_header
              %s310 = sphi 0, %s314
              %p311 = scmp.ge.s32.totalorder %s310, 1
              %s315 = sphi %s305, %s305
              %s316 = sphi %s307, %s307
            $region100: #{tpu_custom_call.1} parent=96 // loop_header_branch
              %313 = sbr.rel (%p311) target = $region104
            $region101: #{tpu_custom_call.1} parent=96 // loop_body
              %v317 = vld [vmem:[%s315] sm:%s308]
              %318 = vst [vmem:[%s316] sm:%s308] %v317
            $region102: #{tpu_custom_call.1} parent=96 // loop_footer
              %s314 = sadd.s32 1, %s310
            $region103: #{tpu_custom_call.1} parent=96 // loop_footer_branch
              %309 = sbr.rel target = $region99
            $region104: #{tpu_custom_call.1} parent=96 // loop_exit
              _
          $region97: #{tpu_custom_call.1} parent=81 // pred_fallthru
            _
        $region82: #{tpu_custom_call.1} parent=15 // pred_fallthru
          _
        // Predicated region
        $region83: #{tpu_custom_call.1} parent=15 // pred_check
          %p284 = pneg %p280
        $region84: #{tpu_custom_call.1} parent=15 // pred_check_branch
          %286 = sbr.rel (%p284) target = $region86
        $region85: #{tpu_custom_call.1} parent=15 // pred_region
          %s287 = sshllo.u32 0, 1
          loop: start=0, step=1, limit=1
          $region87: #{tpu_custom_call.1} parent=85 // loop_pre_header
            _
          $region88: #{tpu_custom_call.1} parent=85 // loop_header
            %s289 = sphi 0, %s293
            %p290 = scmp.ge.s32.totalorder %s289, 1
            %s294 = sphi %s277, %s277
            %s295 = sphi %s278, %s278
          $region89: #{tpu_custom_call.1} parent=85 // loop_header_branch
            %292 = sbr.rel (%p290) target = $region93
          $region90: #{tpu_custom_call.1} parent=85 // loop_body
            %v296 = vld [vmem:[%s294] sm:%s287]
            %297 = vst [vmem:[%s295] sm:%s287] %v296
          $region91: #{tpu_custom_call.1} parent=85 // loop_footer
            %s293 = sadd.s32 1, %s289
          $region92: #{tpu_custom_call.1} parent=85 // loop_footer_branch
            %288 = sbr.rel target = $region88
          $region93: #{tpu_custom_call.1} parent=85 // loop_exit
            _
        $region86: #{tpu_custom_call.1} parent=15 // pred_fallthru
          _
        // Predicated region
        $region105: #{tpu_custom_call.1} parent=15 // pred_check
          _
        $region106: #{tpu_custom_call.1} parent=15 // pred_check_branch
          %321 = sbr.rel (0) target = $region108
        $region107: #{tpu_custom_call.1} parent=15 // pred_region
          %322 = vsyncadd %s231, 16
        $region108: #{tpu_custom_call.1} parent=15 // pred_fallthru
          _
        %s323 = sld [smem:[#allocation10 + %s125]]
        %s324 = scalar_lea.vmem %s6, %s323
        %s325 = scalar_lea.vmem [#allocation3], %s129
        %p327 = scmp.lt.u32.totalorder 1, 8
        %p328 = pneg %p327
        // Predicated region
        $region109: #{tpu_custom_call.1} parent=15 // pred_check
          _
        $region110: #{tpu_custom_call.1} parent=15 // pred_check_branch
          %330 = sbr.rel (%p327) target = $region112
        $region111: #{tpu_custom_call.1} parent=15 // pred_region
          %s345 = sand.u32 1, 7
          %p346 = scmp.eq.s32.totalorder %s345, 0
          %p347 = pneg %p346
          // Predicated region
          $region124: #{tpu_custom_call.1} parent=111 // pred_check
            _
          $region125: #{tpu_custom_call.1} parent=111 // pred_check_branch
            %349 = sbr.rel (%p346) target = $region127
          $region126: #{tpu_custom_call.1} parent=111 // pred_region
            %s350 = sand.u32 1, 7
            %s351 = ssub.s32 1, %s350
            %s352 = scalar_lea.vmem %s324, %s351
            %s353 = ssub.s32 1, %s350
            %s354 = scalar_lea.vmem %s325, %s353 [#allocation3]
            %s355 = sshllo.u32 0, %s350
            loop: start=0, step=1, limit=1
            $region128: #{tpu_custom_call.1} parent=126 // loop_pre_header
              _
            $region129: #{tpu_custom_call.1} parent=126 // loop_header
              %s357 = sphi 0, %s361
              %p358 = scmp.ge.s32.totalorder %s357, 1
              %s362 = sphi %s352, %s352
              %s363 = sphi %s354, %s354
            $region130: #{tpu_custom_call.1} parent=126 // loop_header_branch
              %360 = sbr.rel (%p358) target = $region134
            $region131: #{tpu_custom_call.1} parent=126 // loop_body
              %v364 = vld [vmem:[%s362] sm:%s355]
              %365 = vst [vmem:[%s363] sm:%s355] %v364
            $region132: #{tpu_custom_call.1} parent=126 // loop_footer
              %s361 = sadd.s32 1, %s357
            $region133: #{tpu_custom_call.1} parent=126 // loop_footer_branch
              %356 = sbr.rel target = $region129
            $region134: #{tpu_custom_call.1} parent=126 // loop_exit
              _
          $region127: #{tpu_custom_call.1} parent=111 // pred_fallthru
            _
        $region112: #{tpu_custom_call.1} parent=15 // pred_fallthru
          _
        // Predicated region
        $region113: #{tpu_custom_call.1} parent=15 // pred_check
          %p331 = pneg %p327
        $region114: #{tpu_custom_call.1} parent=15 // pred_check_branch
          %333 = sbr.rel (%p331) target = $region116
        $region115: #{tpu_custom_call.1} parent=15 // pred_region
          %s334 = sshllo.u32 0, 1
          loop: start=0, step=1, limit=1
          $region117: #{tpu_custom_call.1} parent=115 // loop_pre_header
            _
          $region118: #{tpu_custom_call.1} parent=115 // loop_header
            %s336 = sphi 0, %s340
            %p337 = scmp.ge.s32.totalorder %s336, 1
            %s341 = sphi %s324, %s324
            %s342 = sphi %s325, %s325
          $region119: #{tpu_custom_call.1} parent=115 // loop_header_branch
            %339 = sbr.rel (%p337) target = $region123
          $region120: #{tpu_custom_call.1} parent=115 // loop_body
            %v343 = vld [vmem:[%s341] sm:%s334]
            %344 = vst [vmem:[%s342] sm:%s334] %v343
          $region121: #{tpu_custom_call.1} parent=115 // loop_footer
            %s340 = sadd.s32 1, %s336
          $region122: #{tpu_custom_call.1} parent=115 // loop_footer_branch
            %335 = sbr.rel target = $region118
          $region123: #{tpu_custom_call.1} parent=115 // loop_exit
            _
        $region116: #{tpu_custom_call.1} parent=15 // pred_fallthru
          _
        // Predicated region
        $region135: #{tpu_custom_call.1} parent=15 // pred_check
          _
        $region136: #{tpu_custom_call.1} parent=15 // pred_check_branch
          %368 = sbr.rel (0) target = $region138
        $region137: #{tpu_custom_call.1} parent=15 // pred_region
          %369 = vsyncadd %s231, 16
        $region138: #{tpu_custom_call.1} parent=15 // pred_fallthru
          _
        %s370 = sld [smem:[#allocation10 + %s142]]
        %s371 = scalar_lea.vmem %s6, %s370
        %s372 = scalar_lea.vmem [#allocation3], %s146
        %p374 = scmp.lt.u32.totalorder 1, 8
        %p375 = pneg %p374
        // Predicated region
        $region139: #{tpu_custom_call.1} parent=15 // pred_check
          _
        $region140: #{tpu_custom_call.1} parent=15 // pred_check_branch
          %377 = sbr.rel (%p374) target = $region142
        $region141: #{tpu_custom_call.1} parent=15 // pred_region
          %s392 = sand.u32 1, 7
          %p393 = scmp.eq.s32.totalorder %s392, 0
          %p394 = pneg %p393
          // Predicated region
          $region154: #{tpu_custom_call.1} parent=141 // pred_check
            _
          $region155: #{tpu_custom_call.1} parent=141 // pred_check_branch
            %396 = sbr.rel (%p393) target = $region157
          $region156: #{tpu_custom_call.1} parent=141 // pred_region
            %s397 = sand.u32 1, 7
            %s398 = ssub.s32 1, %s397
            %s399 = scalar_lea.vmem %s371, %s398
            %s400 = ssub.s32 1, %s397
            %s401 = scalar_lea.vmem %s372, %s400 [#allocation3]
            %s402 = sshllo.u32 0, %s397
            loop: start=0, step=1, limit=1
            $region158: #{tpu_custom_call.1} parent=156 // loop_pre_header
              _
            $region159: #{tpu_custom_call.1} parent=156 // loop_header
              %s404 = sphi 0, %s408
              %p405 = scmp.ge.s32.totalorder %s404, 1
              %s409 = sphi %s399, %s399
              %s410 = sphi %s401, %s401
            $region160: #{tpu_custom_call.1} parent=156 // loop_header_branch
              %407 = sbr.rel (%p405) target = $region164
            $region161: #{tpu_custom_call.1} parent=156 // loop_body
              %v411 = vld [vmem:[%s409] sm:%s402]
              %412 = vst [vmem:[%s410] sm:%s402] %v411
            $region162: #{tpu_custom_call.1} parent=156 // loop_footer
              %s408 = sadd.s32 1, %s404
            $region163: #{tpu_custom_call.1} parent=156 // loop_footer_branch
              %403 = sbr.rel target = $region159
            $region164: #{tpu_custom_call.1} parent=156 // loop_exit
              _
          $region157: #{tpu_custom_call.1} parent=141 // pred_fallthru
            _
        $region142: #{tpu_custom_call.1} parent=15 // pred_fallthru
          _
        // Predicated region
        $region143: #{tpu_custom_call.1} parent=15 // pred_check
          %p378 = pneg %p374
        $region144: #{tpu_custom_call.1} parent=15 // pred_check_branch
          %380 = sbr.rel (%p378) target = $region146
        $region145: #{tpu_custom_call.1} parent=15 // pred_region
          %s381 = sshllo.u32 0, 1
          loop: start=0, step=1, limit=1
          $region147: #{tpu_custom_call.1} parent=145 // loop_pre_header
            _
          $region148: #{tpu_custom_call.1} parent=145 // loop_header
            %s383 = sphi 0, %s387
            %p384 = scmp.ge.s32.totalorder %s383, 1
            %s388 = sphi %s371, %s371
            %s389 = sphi %s372, %s372
          $region149: #{tpu_custom_call.1} parent=145 // loop_header_branch
            %386 = sbr.rel (%p384) target = $region153
          $region150: #{tpu_custom_call.1} parent=145 // loop_body
            %v390 = vld [vmem:[%s388] sm:%s381]
            %391 = vst [vmem:[%s389] sm:%s381] %v390
          $region151: #{tpu_custom_call.1} parent=145 // loop_footer
            %s387 = sadd.s32 1, %s383
          $region152: #{tpu_custom_call.1} parent=145 // loop_footer_branch
            %382 = sbr.rel target = $region148
          $region153: #{tpu_custom_call.1} parent=145 // loop_exit
            _
        $region146: #{tpu_custom_call.1} parent=15 // pred_fallthru
          _
        // Predicated region
        $region165: #{tpu_custom_call.1} parent=15 // pred_check
          _
        $region166: #{tpu_custom_call.1} parent=15 // pred_check_branch
          %415 = sbr.rel (0) target = $region168
        $region167: #{tpu_custom_call.1} parent=15 // pred_region
          %416 = vsyncadd %s231, 16
        $region168: #{tpu_custom_call.1} parent=15 // pred_fallthru
          _
        %s417 = sld [smem:[#allocation10 + %s159]]
        %s418 = scalar_lea.vmem %s6, %s417
        %s419 = scalar_lea.vmem [#allocation3], %s163
        %p421 = scmp.lt.u32.totalorder 1, 8
        %p422 = pneg %p421
        // Predicated region
        $region169: #{tpu_custom_call.1} parent=15 // pred_check
          _
        $region170: #{tpu_custom_call.1} parent=15 // pred_check_branch
          %424 = sbr.rel (%p421) target = $region172
        $region171: #{tpu_custom_call.1} parent=15 // pred_region
          %s439 = sand.u32 1, 7
          %p440 = scmp.eq.s32.totalorder %s439, 0
          %p441 = pneg %p440
          // Predicated region
          $region184: #{tpu_custom_call.1} parent=171 // pred_check
            _
          $region185: #{tpu_custom_call.1} parent=171 // pred_check_branch
            %443 = sbr.rel (%p440) target = $region187
          $region186: #{tpu_custom_call.1} parent=171 // pred_region
            %s444 = sand.u32 1, 7
            %s445 = ssub.s32 1, %s444
            %s446 = scalar_lea.vmem %s418, %s445
            %s447 = ssub.s32 1, %s444
            %s448 = scalar_lea.vmem %s419, %s447 [#allocation3]
            %s449 = sshllo.u32 0, %s444
            loop: start=0, step=1, limit=1
            $region188: #{tpu_custom_call.1} parent=186 // loop_pre_header
              _
            $region189: #{tpu_custom_call.1} parent=186 // loop_header
              %s451 = sphi 0, %s455
              %p452 = scmp.ge.s32.totalorder %s451, 1
              %s456 = sphi %s446, %s446
              %s457 = sphi %s448, %s448
            $region190: #{tpu_custom_call.1} parent=186 // loop_header_branch
              %454 = sbr.rel (%p452) target = $region194
            $region191: #{tpu_custom_call.1} parent=186 // loop_body
              %v458 = vld [vmem:[%s456] sm:%s449]
              %459 = vst [vmem:[%s457] sm:%s449] %v458
            $region192: #{tpu_custom_call.1} parent=186 // loop_footer
              %s455 = sadd.s32 1, %s451
            $region193: #{tpu_custom_call.1} parent=186 // loop_footer_branch
              %450 = sbr.rel target = $region189
            $region194: #{tpu_custom_call.1} parent=186 // loop_exit
              _
          $region187: #{tpu_custom_call.1} parent=171 // pred_fallthru
            _
        $region172: #{tpu_custom_call.1} parent=15 // pred_fallthru
          _
        // Predicated region
        $region173: #{tpu_custom_call.1} parent=15 // pred_check
          %p425 = pneg %p421
        $region174: #{tpu_custom_call.1} parent=15 // pred_check_branch
          %427 = sbr.rel (%p425) target = $region176
        $region175: #{tpu_custom_call.1} parent=15 // pred_region
          %s428 = sshllo.u32 0, 1
          loop: start=0, step=1, limit=1
          $region177: #{tpu_custom_call.1} parent=175 // loop_pre_header
            _
          $region178: #{tpu_custom_call.1} parent=175 // loop_header
            %s430 = sphi 0, %s434
            %p431 = scmp.ge.s32.totalorder %s430, 1
            %s435 = sphi %s418, %s418
            %s436 = sphi %s419, %s419
          $region179: #{tpu_custom_call.1} parent=175 // loop_header_branch
            %433 = sbr.rel (%p431) target = $region183
          $region180: #{tpu_custom_call.1} parent=175 // loop_body
            %v437 = vld [vmem:[%s435] sm:%s428]
            %438 = vst [vmem:[%s436] sm:%s428] %v437
          $region181: #{tpu_custom_call.1} parent=175 // loop_footer
            %s434 = sadd.s32 1, %s430
          $region182: #{tpu_custom_call.1} parent=175 // loop_footer_branch
            %429 = sbr.rel target = $region178
          $region183: #{tpu_custom_call.1} parent=175 // loop_exit
            _
        $region176: #{tpu_custom_call.1} parent=15 // pred_fallthru
          _
        // Predicated region
        $region195: #{tpu_custom_call.1} parent=15 // pred_check
          _
        $region196: #{tpu_custom_call.1} parent=15 // pred_check_branch
          %462 = sbr.rel (0) target = $region198
        $region197: #{tpu_custom_call.1} parent=15 // pred_region
          %463 = vsyncadd %s231, 16
        $region198: #{tpu_custom_call.1} parent=15 // pred_fallthru
          _
        %s464 = sld [smem:[#allocation10 + %s176]]
        %s465 = scalar_lea.vmem %s6, %s464
        %s466 = scalar_lea.vmem [#allocation3], %s180
        %p468 = scmp.lt.u32.totalorder 1, 8
        %p469 = pneg %p468
        // Predicated region
        $region199: #{tpu_custom_call.1} parent=15 // pred_check
          _
        $region200: #{tpu_custom_call.1} parent=15 // pred_check_branch
          %471 = sbr.rel (%p468) target = $region202
        $region201: #{tpu_custom_call.1} parent=15 // pred_region
          %s486 = sand.u32 1, 7
          %p487 = scmp.eq.s32.totalorder %s486, 0
          %p488 = pneg %p487
          // Predicated region
          $region214: #{tpu_custom_call.1} parent=201 // pred_check
            _
          $region215: #{tpu_custom_call.1} parent=201 // pred_check_branch
            %490 = sbr.rel (%p487) target = $region217
          $region216: #{tpu_custom_call.1} parent=201 // pred_region
            %s491 = sand.u32 1, 7
            %s492 = ssub.s32 1, %s491
            %s493 = scalar_lea.vmem %s465, %s492
            %s494 = ssub.s32 1, %s491
            %s495 = scalar_lea.vmem %s466, %s494 [#allocation3]
            %s496 = sshllo.u32 0, %s491
            loop: start=0, step=1, limit=1
            $region218: #{tpu_custom_call.1} parent=216 // loop_pre_header
              _
            $region219: #{tpu_custom_call.1} parent=216 // loop_header
              %s498 = sphi 0, %s502
              %p499 = scmp.ge.s32.totalorder %s498, 1
              %s503 = sphi %s493, %s493
              %s504 = sphi %s495, %s495
            $region220: #{tpu_custom_call.1} parent=216 // loop_header_branch
              %501 = sbr.rel (%p499) target = $region224
            $region221: #{tpu_custom_call.1} parent=216 // loop_body
              %v505 = vld [vmem:[%s503] sm:%s496]
              %506 = vst [vmem:[%s504] sm:%s496] %v505
            $region222: #{tpu_custom_call.1} parent=216 // loop_footer
              %s502 = sadd.s32 1, %s498
            $region223: #{tpu_custom_call.1} parent=216 // loop_footer_branch
              %497 = sbr.rel target = $region219
            $region224: #{tpu_custom_call.1} parent=216 // loop_exit
              _
          $region217: #{tpu_custom_call.1} parent=201 // pred_fallthru
            _
        $region202: #{tpu_custom_call.1} parent=15 // pred_fallthru
          _
        // Predicated region
        $region203: #{tpu_custom_call.1} parent=15 // pred_check
          %p472 = pneg %p468
        $region204: #{tpu_custom_call.1} parent=15 // pred_check_branch
          %474 = sbr.rel (%p472) target = $region206
        $region205: #{tpu_custom_call.1} parent=15 // pred_region
          %s475 = sshllo.u32 0, 1
          loop: start=0, step=1, limit=1
          $region207: #{tpu_custom_call.1} parent=205 // loop_pre_header
            _
          $region208: #{tpu_custom_call.1} parent=205 // loop_header
            %s477 = sphi 0, %s481
            %p478 = scmp.ge.s32.totalorder %s477, 1
            %s482 = sphi %s465, %s465
            %s483 = sphi %s466, %s466
          $region209: #{tpu_custom_call.1} parent=205 // loop_header_branch
            %480 = sbr.rel (%p478) target = $region213
          $region210: #{tpu_custom_call.1} parent=205 // loop_body
            %v484 = vld [vmem:[%s482] sm:%s475]
            %485 = vst [vmem:[%s483] sm:%s475] %v484
          $region211: #{tpu_custom_call.1} parent=205 // loop_footer
            %s481 = sadd.s32 1, %s477
          $region212: #{tpu_custom_call.1} parent=205 // loop_footer_branch
            %476 = sbr.rel target = $region208
          $region213: #{tpu_custom_call.1} parent=205 // loop_exit
            _
        $region206: #{tpu_custom_call.1} parent=15 // pred_fallthru
          _
        // Predicated region
        $region225: #{tpu_custom_call.1} parent=15 // pred_check
          _
        $region226: #{tpu_custom_call.1} parent=15 // pred_check_branch
          %509 = sbr.rel (0) target = $region228
        $region227: #{tpu_custom_call.1} parent=15 // pred_region
          %510 = vsyncadd %s231, 16
        $region228: #{tpu_custom_call.1} parent=15 // pred_fallthru
          _
        %s511 = sld [smem:[#allocation10 + %s193]]
        %s512 = scalar_lea.vmem %s6, %s511
        %s513 = scalar_lea.vmem [#allocation3], %s197
        %p515 = scmp.lt.u32.totalorder 1, 8
        %p516 = pneg %p515
        // Predicated region
        $region229: #{tpu_custom_call.1} parent=15 // pred_check
          _
        $region230: #{tpu_custom_call.1} parent=15 // pred_check_branch
          %518 = sbr.rel (%p515) target = $region232
        $region231: #{tpu_custom_call.1} parent=15 // pred_region
          %s533 = sand.u32 1, 7
          %p534 = scmp.eq.s32.totalorder %s533, 0
          %p535 = pneg %p534
          // Predicated region
          $region244: #{tpu_custom_call.1} parent=231 // pred_check
            _
          $region245: #{tpu_custom_call.1} parent=231 // pred_check_branch
            %537 = sbr.rel (%p534) target = $region247
          $region246: #{tpu_custom_call.1} parent=231 // pred_region
            %s538 = sand.u32 1, 7
            %s539 = ssub.s32 1, %s538
            %s540 = scalar_lea.vmem %s512, %s539
            %s541 = ssub.s32 1, %s538
            %s542 = scalar_lea.vmem %s513, %s541 [#allocation3]
            %s543 = sshllo.u32 0, %s538
            loop: start=0, step=1, limit=1
            $region248: #{tpu_custom_call.1} parent=246 // loop_pre_header
              _
            $region249: #{tpu_custom_call.1} parent=246 // loop_header
              %s545 = sphi 0, %s549
              %p546 = scmp.ge.s32.totalorder %s545, 1
              %s550 = sphi %s540, %s540
              %s551 = sphi %s542, %s542
            $region250: #{tpu_custom_call.1} parent=246 // loop_header_branch
              %548 = sbr.rel (%p546) target = $region254
            $region251: #{tpu_custom_call.1} parent=246 // loop_body
              %v552 = vld [vmem:[%s550] sm:%s543]
              %553 = vst [vmem:[%s551] sm:%s543] %v552
            $region252: #{tpu_custom_call.1} parent=246 // loop_footer
              %s549 = sadd.s32 1, %s545
            $region253: #{tpu_custom_call.1} parent=246 // loop_footer_branch
              %544 = sbr.rel target = $region249
            $region254: #{tpu_custom_call.1} parent=246 // loop_exit
              _
          $region247: #{tpu_custom_call.1} parent=231 // pred_fallthru
            _
        $region232: #{tpu_custom_call.1} parent=15 // pred_fallthru
          _
        // Predicated region
        $region233: #{tpu_custom_call.1} parent=15 // pred_check
          %p519 = pneg %p515
        $region234: #{tpu_custom_call.1} parent=15 // pred_check_branch
          %521 = sbr.rel (%p519) target = $region236
        $region235: #{tpu_custom_call.1} parent=15 // pred_region
          %s522 = sshllo.u32 0, 1
          loop: start=0, step=1, limit=1
          $region237: #{tpu_custom_call.1} parent=235 // loop_pre_header
            _
          $region238: #{tpu_custom_call.1} parent=235 // loop_header
            %s524 = sphi 0, %s528
            %p525 = scmp.ge.s32.totalorder %s524, 1
            %s529 = sphi %s512, %s512
            %s530 = sphi %s513, %s513
          $region239: #{tpu_custom_call.1} parent=235 // loop_header_branch
            %527 = sbr.rel (%p525) target = $region243
          $region240: #{tpu_custom_call.1} parent=235 // loop_body
            %v531 = vld [vmem:[%s529] sm:%s522]
            %532 = vst [vmem:[%s530] sm:%s522] %v531
          $region241: #{tpu_custom_call.1} parent=235 // loop_footer
            %s528 = sadd.s32 1, %s524
          $region242: #{tpu_custom_call.1} parent=235 // loop_footer_branch
            %523 = sbr.rel target = $region238
          $region243: #{tpu_custom_call.1} parent=235 // loop_exit
            _
        $region236: #{tpu_custom_call.1} parent=15 // pred_fallthru
          _
        // Predicated region
        $region255: #{tpu_custom_call.1} parent=15 // pred_check
          _
        $region256: #{tpu_custom_call.1} parent=15 // pred_check_branch
          %556 = sbr.rel (0) target = $region258
        $region257: #{tpu_custom_call.1} parent=15 // pred_region
          %557 = vsyncadd %s231, 16
        $region258: #{tpu_custom_call.1} parent=15 // pred_fallthru
          _
        %s558 = sld [smem:[#allocation10 + %s210]]
        %s559 = scalar_lea.vmem %s6, %s558
        %s560 = scalar_lea.vmem [#allocation3], %s214
        %p562 = scmp.lt.u32.totalorder 1, 8
        %p563 = pneg %p562
        // Predicated region
        $region259: #{tpu_custom_call.1} parent=15 // pred_check
          _
        $region260: #{tpu_custom_call.1} parent=15 // pred_check_branch
          %565 = sbr.rel (%p562) target = $region262
        $region261: #{tpu_custom_call.1} parent=15 // pred_region
          %s580 = sand.u32 1, 7
          %p581 = scmp.eq.s32.totalorder %s580, 0
          %p582 = pneg %p581
          // Predicated region
          $region274: #{tpu_custom_call.1} parent=261 // pred_check
            _
          $region275: #{tpu_custom_call.1} parent=261 // pred_check_branch
            %584 = sbr.rel (%p581) target = $region277
          $region276: #{tpu_custom_call.1} parent=261 // pred_region
            %s585 = sand.u32 1, 7
            %s586 = ssub.s32 1, %s585
            %s587 = scalar_lea.vmem %s559, %s586
            %s588 = ssub.s32 1, %s585
            %s589 = scalar_lea.vmem %s560, %s588 [#allocation3]
            %s590 = sshllo.u32 0, %s585
            loop: start=0, step=1, limit=1
            $region278: #{tpu_custom_call.1} parent=276 // loop_pre_header
              _
            $region279: #{tpu_custom_call.1} parent=276 // loop_header
              %s592 = sphi 0, %s596
              %p593 = scmp.ge.s32.totalorder %s592, 1
              %s597 = sphi %s587, %s587
              %s598 = sphi %s589, %s589
            $region280: #{tpu_custom_call.1} parent=276 // loop_header_branch
              %595 = sbr.rel (%p593) target = $region284
            $region281: #{tpu_custom_call.1} parent=276 // loop_body
              %v599 = vld [vmem:[%s597] sm:%s590]
              %600 = vst [vmem:[%s598] sm:%s590] %v599
            $region282: #{tpu_custom_call.1} parent=276 // loop_footer
              %s596 = sadd.s32 1, %s592
            $region283: #{tpu_custom_call.1} parent=276 // loop_footer_branch
              %591 = sbr.rel target = $region279
            $region284: #{tpu_custom_call.1} parent=276 // loop_exit
              _
          $region277: #{tpu_custom_call.1} parent=261 // pred_fallthru
            _
        $region262: #{tpu_custom_call.1} parent=15 // pred_fallthru
          _
        // Predicated region
        $region263: #{tpu_custom_call.1} parent=15 // pred_check
          %p566 = pneg %p562
        $region264: #{tpu_custom_call.1} parent=15 // pred_check_branch
          %568 = sbr.rel (%p566) target = $region266
        $region265: #{tpu_custom_call.1} parent=15 // pred_region
          %s569 = sshllo.u32 0, 1
          loop: start=0, step=1, limit=1
          $region267: #{tpu_custom_call.1} parent=265 // loop_pre_header
            _
          $region268: #{tpu_custom_call.1} parent=265 // loop_header
            %s571 = sphi 0, %s575
            %p572 = scmp.ge.s32.totalorder %s571, 1
            %s576 = sphi %s559, %s559
            %s577 = sphi %s560, %s560
          $region269: #{tpu_custom_call.1} parent=265 // loop_header_branch
            %574 = sbr.rel (%p572) target = $region273
          $region270: #{tpu_custom_call.1} parent=265 // loop_body
            %v578 = vld [vmem:[%s576] sm:%s569]
            %579 = vst [vmem:[%s577] sm:%s569] %v578
          $region271: #{tpu_custom_call.1} parent=265 // loop_footer
            %s575 = sadd.s32 1, %s571
          $region272: #{tpu_custom_call.1} parent=265 // loop_footer_branch
            %570 = sbr.rel target = $region268
          $region273: #{tpu_custom_call.1} parent=265 // loop_exit
            _
        $region266: #{tpu_custom_call.1} parent=15 // pred_fallthru
          _
        // Predicated region
        $region285: #{tpu_custom_call.1} parent=15 // pred_check
          _
        $region286: #{tpu_custom_call.1} parent=15 // pred_check_branch
          %603 = sbr.rel (0) target = $region288
        $region287: #{tpu_custom_call.1} parent=15 // pred_region
          %604 = vsyncadd %s231, 16
        $region288: #{tpu_custom_call.1} parent=15 // pred_fallthru
          _
        %s605 = sld [smem:[#allocation11 + %s89]]
        %s606 = smul.addr %s605, 16
        %s607 = scalar_lea.hbm %s5, %s606
        %s608 = scalar_lea.vmem [#allocation4], %s93
        %s609 = sadd.s32 2, %s95
        %s610 = scalar_lea.sflag [#allocation7], %s609
        // Predicated region
        $region289: #{tpu_custom_call.1} parent=15 // pred_check
          _
        $region290: #{tpu_custom_call.1} parent=15 // pred_check_branch
          %612 = sbr.rel target = $region292
        $region291: #{tpu_custom_call.1} parent=15 // pred_region
          %613 = sst [smem:[#allocation16]] [#allocation41]
          %614 = sst [smem:[#allocation17]] [#allocation40]
        $region292: #{tpu_custom_call.1} parent=15 // pred_fallthru
          _
        %616 = shalt.err (0)
        %s618 = sshll.u32 %s608, 4
        %s619 = int_to_ptr.vmem [resolvable:$true] %s618
        %621 = dma.hbm_to_vmem [thread:$0]  %s607, 16, %s619, %s610
        %s622 = sld [smem:[#allocation11 + %s108]]
        %s623 = smul.addr %s622, 16
        %s624 = scalar_lea.hbm %s5, %s623
        %s625 = scalar_lea.vmem [#allocation4], %s112
        // Predicated region
        $region293: #{tpu_custom_call.1} parent=15 // pred_check
          _
        $region294: #{tpu_custom_call.1} parent=15 // pred_check_branch
          %627 = sbr.rel target = $region296
        $region295: #{tpu_custom_call.1} parent=15 // pred_region
          %628 = sst [smem:[#allocation16]] [#allocation43]
          %629 = sst [smem:[#allocation17]] [#allocation42]
        $region296: #{tpu_custom_call.1} parent=15 // pred_fallthru
          _
        %631 = shalt.err (0)
        %s633 = sshll.u32 %s625, 4
        %s634 = int_to_ptr.vmem [resolvable:$true] %s633
        %636 = dma.hbm_to_vmem [thread:$0]  %s624, 16, %s634, %s610
        %s637 = sld [smem:[#allocation11 + %s125]]
        %s638 = smul.addr %s637, 16
        %s639 = scalar_lea.hbm %s5, %s638
        %s640 = scalar_lea.vmem [#allocation4], %s129
        // Predicated region
        $region297: #{tpu_custom_call.1} parent=15 // pred_check
          _
        $region298: #{tpu_custom_call.1} parent=15 // pred_check_branch
          %642 = sbr.rel target = $region300
        $region299: #{tpu_custom_call.1} parent=15 // pred_region
          %643 = sst [smem:[#allocation16]] [#allocation45]
          %644 = sst [smem:[#allocation17]] [#allocation44]
        $region300: #{tpu_custom_call.1} parent=15 // pred_fallthru
          _
        %646 = shalt.err (0)
        %s648 = sshll.u32 %s640, 4
        %s649 = int_to_ptr.vmem [resolvable:$true] %s648
        %651 = dma.hbm_to_vmem [thread:$0]  %s639, 16, %s649, %s610
        %s652 = sld [smem:[#allocation11 + %s142]]
        %s653 = smul.addr %s652, 16
        %s654 = scalar_lea.hbm %s5, %s653
        %s655 = scalar_lea.vmem [#allocation4], %s146
        // Predicated region
        $region301: #{tpu_custom_call.1} parent=15 // pred_check
          _
        $region302: #{tpu_custom_call.1} parent=15 // pred_check_branch
          %657 = sbr.rel target = $region304
        $region303: #{tpu_custom_call.1} parent=15 // pred_region
          %658 = sst [smem:[#allocation16]] [#allocation47]
          %659 = sst [smem:[#allocation17]] [#allocation46]
        $region304: #{tpu_custom_call.1} parent=15 // pred_fallthru
          _
        %661 = shalt.err (0)
        %s663 = sshll.u32 %s655, 4
        %s664 = int_to_ptr.vmem [resolvable:$true] %s663
        %666 = dma.hbm_to_vmem [thread:$0]  %s654, 16, %s664, %s610
        %s667 = sld [smem:[#allocation11 + %s159]]
        %s668 = smul.addr %s667, 16
        %s669 = scalar_lea.hbm %s5, %s668
        %s670 = scalar_lea.vmem [#allocation4], %s163
        // Predicated region
        $region305: #{tpu_custom_call.1} parent=15 // pred_check
          _
        $region306: #{tpu_custom_call.1} parent=15 // pred_check_branch
          %672 = sbr.rel target = $region308
        $region307: #{tpu_custom_call.1} parent=15 // pred_region
          %673 = sst [smem:[#allocation16]] [#allocation49]
          %674 = sst [smem:[#allocation17]] [#allocation48]
        $region308: #{tpu_custom_call.1} parent=15 // pred_fallthru
          _
        %676 = shalt.err (0)
        %s678 = sshll.u32 %s670, 4
        %s679 = int_to_ptr.vmem [resolvable:$true] %s678
        %681 = dma.hbm_to_vmem [thread:$0]  %s669, 16, %s679, %s610
        %s682 = sld [smem:[#allocation11 + %s176]]
        %s683 = smul.addr %s682, 16
        %s684 = scalar_lea.hbm %s5, %s683
        %s685 = scalar_lea.vmem [#allocation4], %s180
        // Predicated region
        $region309: #{tpu_custom_call.1} parent=15 // pred_check
          _
        $region310: #{tpu_custom_call.1} parent=15 // pred_check_branch
          %687 = sbr.rel target = $region312
        $region311: #{tpu_custom_call.1} parent=15 // pred_region
          %688 = sst [smem:[#allocation16]] [#allocation51]
          %689 = sst [smem:[#allocation17]] [#allocation50]
        $region312: #{tpu_custom_call.1} parent=15 // pred_fallthru
          _
        %691 = shalt.err (0)
        %s693 = sshll.u32 %s685, 4
        %s694 = int_to_ptr.vmem [resolvable:$true] %s693
        %696 = dma.hbm_to_vmem [thread:$0]  %s684, 16, %s694, %s610
        %s697 = sld [smem:[#allocation11 + %s193]]
        %s698 = smul.addr %s697, 16
        %s699 = scalar_lea.hbm %s5, %s698
        %s700 = scalar_lea.vmem [#allocation4], %s197
        // Predicated region
        $region313: #{tpu_custom_call.1} parent=15 // pred_check
          _
        $region314: #{tpu_custom_call.1} parent=15 // pred_check_branch
          %702 = sbr.rel target = $region316
        $region315: #{tpu_custom_call.1} parent=15 // pred_region
          %703 = sst [smem:[#allocation16]] [#allocation53]
          %704 = sst [smem:[#allocation17]] [#allocation52]
        $region316: #{tpu_custom_call.1} parent=15 // pred_fallthru
          _
        %706 = shalt.err (0)
        %s708 = sshll.u32 %s700, 4
        %s709 = int_to_ptr.vmem [resolvable:$true] %s708
        %711 = dma.hbm_to_vmem [thread:$0]  %s699, 16, %s709, %s610
        %s712 = sld [smem:[#allocation11 + %s210]]
        %s713 = smul.addr %s712, 16
        %s714 = scalar_lea.hbm %s5, %s713
        %s715 = scalar_lea.vmem [#allocation4], %s214
        // Predicated region
        $region317: #{tpu_custom_call.1} parent=15 // pred_check
          _
        $region318: #{tpu_custom_call.1} parent=15 // pred_check_branch
          %717 = sbr.rel target = $region320
        $region319: #{tpu_custom_call.1} parent=15 // pred_region
          %718 = sst [smem:[#allocation16]] [#allocation55]
          %719 = sst [smem:[#allocation17]] [#allocation54]
        $region320: #{tpu_custom_call.1} parent=15 // pred_fallthru
          _
        %721 = shalt.err (0)
        %s723 = sshll.u32 %s715, 4
        %s724 = int_to_ptr.vmem [resolvable:$true] %s723
        %726 = dma.hbm_to_vmem [thread:$0]  %s714, 16, %s724, %s610
        %s727 = sld [smem:[#allocation12 + %s89]]
        %s728 = smul.addr %s727, 16
        %s729 = scalar_lea.hbm %s5, %s728
        %s730 = scalar_lea.vmem [#allocation5], %s93
        %s731 = sadd.s32 3, %s95
        %s732 = scalar_lea.sflag [#allocation7], %s731
        // Predicated region
        $region321: #{tpu_custom_call.1} parent=15 // pred_check
          _
        $region322: #{tpu_custom_call.1} parent=15 // pred_check_branch
          %734 = sbr.rel target = $region324
        $region323: #{tpu_custom_call.1} parent=15 // pred_region
          %735 = sst [smem:[#allocation16]] [#allocation57]
          %736 = sst [smem:[#allocation17]] [#allocation56]
        $region324: #{tpu_custom_call.1} parent=15 // pred_fallthru
          _
        %738 = shalt.err (0)
        %s740 = sshll.u32 %s730, 4
        %s741 = int_to_ptr.vmem [resolvable:$true] %s740
        %743 = dma.hbm_to_vmem [thread:$0]  %s729, 16, %s741, %s732
        %s744 = sld [smem:[#allocation12 + %s108]]
        %s745 = smul.addr %s744, 16
        %s746 = scalar_lea.hbm %s5, %s745
        %s747 = scalar_lea.vmem [#allocation5], %s112
        // Predicated region
        $region325: #{tpu_custom_call.1} parent=15 // pred_check
          _
        $region326: #{tpu_custom_call.1} parent=15 // pred_check_branch
          %749 = sbr.rel target = $region328
        $region327: #{tpu_custom_call.1} parent=15 // pred_region
          %750 = sst [smem:[#allocation16]] [#allocation59]
          %751 = sst [smem:[#allocation17]] [#allocation58]
        $region328: #{tpu_custom_call.1} parent=15 // pred_fallthru
          _
        %753 = shalt.err (0)
        %s755 = sshll.u32 %s747, 4
        %s756 = int_to_ptr.vmem [resolvable:$true] %s755
        %758 = dma.hbm_to_vmem [thread:$0]  %s746, 16, %s756, %s732
        %s759 = sld [smem:[#allocation12 + %s125]]
        %s760 = smul.addr %s759, 16
        %s761 = scalar_lea.hbm %s5, %s760
        %s762 = scalar_lea.vmem [#allocation5], %s129
        // Predicated region
        $region329: #{tpu_custom_call.1} parent=15 // pred_check
          _
        $region330: #{tpu_custom_call.1} parent=15 // pred_check_branch
          %764 = sbr.rel target = $region332
        $region331: #{tpu_custom_call.1} parent=15 // pred_region
          %765 = sst [smem:[#allocation16]] [#allocation61]
          %766 = sst [smem:[#allocation17]] [#allocation60]
        $region332: #{tpu_custom_call.1} parent=15 // pred_fallthru
          _
        %768 = shalt.err (0)
        %s770 = sshll.u32 %s762, 4
        %s771 = int_to_ptr.vmem [resolvable:$true] %s770
        %773 = dma.hbm_to_vmem [thread:$0]  %s761, 16, %s771, %s732
        %s774 = sld [smem:[#allocation12 + %s142]]
        %s775 = smul.addr %s774, 16
        %s776 = scalar_lea.hbm %s5, %s775
        %s777 = scalar_lea.vmem [#allocation5], %s146
        // Predicated region
        $region333: #{tpu_custom_call.1} parent=15 // pred_check
          _
        $region334: #{tpu_custom_call.1} parent=15 // pred_check_branch
          %779 = sbr.rel target = $region336
        $region335: #{tpu_custom_call.1} parent=15 // pred_region
          %780 = sst [smem:[#allocation16]] [#allocation63]
          %781 = sst [smem:[#allocation17]] [#allocation62]
        $region336: #{tpu_custom_call.1} parent=15 // pred_fallthru
          _
        %783 = shalt.err (0)
        %s785 = sshll.u32 %s777, 4
        %s786 = int_to_ptr.vmem [resolvable:$true] %s785
        %788 = dma.hbm_to_vmem [thread:$0]  %s776, 16, %s786, %s732
        %s789 = sld [smem:[#allocation12 + %s159]]
        %s790 = smul.addr %s789, 16
        %s791 = scalar_lea.hbm %s5, %s790
        %s792 = scalar_lea.vmem [#allocation5], %s163
        // Predicated region
        $region337: #{tpu_custom_call.1} parent=15 // pred_check
          _
        $region338: #{tpu_custom_call.1} parent=15 // pred_check_branch
          %794 = sbr.rel target = $region340
        $region339: #{tpu_custom_call.1} parent=15 // pred_region
          %795 = sst [smem:[#allocation16]] [#allocation65]
          %796 = sst [smem:[#allocation17]] [#allocation64]
        $region340: #{tpu_custom_call.1} parent=15 // pred_fallthru
          _
        %798 = shalt.err (0)
        %s800 = sshll.u32 %s792, 4
        %s801 = int_to_ptr.vmem [resolvable:$true] %s800
        %803 = dma.hbm_to_vmem [thread:$0]  %s791, 16, %s801, %s732
        %s804 = sld [smem:[#allocation12 + %s176]]
        %s805 = smul.addr %s804, 16
        %s806 = scalar_lea.hbm %s5, %s805
        %s807 = scalar_lea.vmem [#allocation5], %s180
        // Predicated region
        $region341: #{tpu_custom_call.1} parent=15 // pred_check
          _
        $region342: #{tpu_custom_call.1} parent=15 // pred_check_branch
          %809 = sbr.rel target = $region344
        $region343: #{tpu_custom_call.1} parent=15 // pred_region
          %810 = sst [smem:[#allocation16]] [#allocation67]
          %811 = sst [smem:[#allocation17]] [#allocation66]
        $region344: #{tpu_custom_call.1} parent=15 // pred_fallthru
          _
        %813 = shalt.err (0)
        %s815 = sshll.u32 %s807, 4
        %s816 = int_to_ptr.vmem [resolvable:$true] %s815
        %818 = dma.hbm_to_vmem [thread:$0]  %s806, 16, %s816, %s732
        %s819 = sld [smem:[#allocation12 + %s193]]
        %s820 = smul.addr %s819, 16
        %s821 = scalar_lea.hbm %s5, %s820
        %s822 = scalar_lea.vmem [#allocation5], %s197
        // Predicated region
        $region345: #{tpu_custom_call.1} parent=15 // pred_check
          _
        $region346: #{tpu_custom_call.1} parent=15 // pred_check_branch
          %824 = sbr.rel target = $region348
        $region347: #{tpu_custom_call.1} parent=15 // pred_region
          %825 = sst [smem:[#allocation16]] [#allocation69]
          %826 = sst [smem:[#allocation17]] [#allocation68]
        $region348: #{tpu_custom_call.1} parent=15 // pred_fallthru
          _
        %828 = shalt.err (0)
        %s830 = sshll.u32 %s822, 4
        %s831 = int_to_ptr.vmem [resolvable:$true] %s830
        %833 = dma.hbm_to_vmem [thread:$0]  %s821, 16, %s831, %s732
        %s834 = sld [smem:[#allocation12 + %s210]]
        %s835 = smul.addr %s834, 16
        %s836 = scalar_lea.hbm %s5, %s835
        %s837 = scalar_lea.vmem [#allocation5], %s214
        // Predicated region
        $region349: #{tpu_custom_call.1} parent=15 // pred_check
          _
        $region350: #{tpu_custom_call.1} parent=15 // pred_check_branch
          %839 = sbr.rel target = $region352
        $region351: #{tpu_custom_call.1} parent=15 // pred_region
          %840 = sst [smem:[#allocation16]] [#allocation71]
          %841 = sst [smem:[#allocation17]] [#allocation70]
        $region352: #{tpu_custom_call.1} parent=15 // pred_fallthru
          _
        %843 = shalt.err (0)
        %s845 = sshll.u32 %s837, 4
        %s846 = int_to_ptr.vmem [resolvable:$true] %s845
        %848 = dma.hbm_to_vmem [thread:$0]  %s836, 16, %s846, %s732
        %s849 = sld [smem:[#allocation13 + %s89]]
        %s850 = smul.addr %s849, 16
        %s851 = scalar_lea.hbm %s5, %s850
        %s852 = scalar_lea.vmem [#allocation6], %s93
        %s853 = sadd.s32 4, %s95
        %s854 = scalar_lea.sflag [#allocation7], %s853
        // Predicated region
        $region353: #{tpu_custom_call.1} parent=15 // pred_check
          _
        $region354: #{tpu_custom_call.1} parent=15 // pred_check_branch
          %856 = sbr.rel target = $region356
        $region355: #{tpu_custom_call.1} parent=15 // pred_region
          %857 = sst [smem:[#allocation16]] [#allocation73]
          %858 = sst [smem:[#allocation17]] [#allocation72]
        $region356: #{tpu_custom_call.1} parent=15 // pred_fallthru
          _
        %860 = shalt.err (0)
        %s862 = sshll.u32 %s852, 4
        %s863 = int_to_ptr.vmem [resolvable:$true] %s862
        %865 = dma.hbm_to_vmem [thread:$0]  %s851, 16, %s863, %s854
        %s866 = sld [smem:[#allocation13 + %s108]]
        %s867 = smul.addr %s866, 16
        %s868 = scalar_lea.hbm %s5, %s867
        %s869 = scalar_lea.vmem [#allocation6], %s112
        // Predicated region
        $region357: #{tpu_custom_call.1} parent=15 // pred_check
          _
        $region358: #{tpu_custom_call.1} parent=15 // pred_check_branch
          %871 = sbr.rel target = $region360
        $region359: #{tpu_custom_call.1} parent=15 // pred_region
          %872 = sst [smem:[#allocation16]] [#allocation75]
          %873 = sst [smem:[#allocation17]] [#allocation74]
        $region360: #{tpu_custom_call.1} parent=15 // pred_fallthru
          _
        %875 = shalt.err (0)
        %s877 = sshll.u32 %s869, 4
        %s878 = int_to_ptr.vmem [resolvable:$true] %s877
        %880 = dma.hbm_to_vmem [thread:$0]  %s868, 16, %s878, %s854
        %s881 = sld [smem:[#allocation13 + %s125]]
        %s882 = smul.addr %s881, 16
        %s883 = scalar_lea.hbm %s5, %s882
        %s884 = scalar_lea.vmem [#allocation6], %s129
        // Predicated region
        $region361: #{tpu_custom_call.1} parent=15 // pred_check
          _
        $region362: #{tpu_custom_call.1} parent=15 // pred_check_branch
          %886 = sbr.rel target = $region364
        $region363: #{tpu_custom_call.1} parent=15 // pred_region
          %887 = sst [smem:[#allocation16]] [#allocation77]
          %888 = sst [smem:[#allocation17]] [#allocation76]
        $region364: #{tpu_custom_call.1} parent=15 // pred_fallthru
          _
        %890 = shalt.err (0)
        %s892 = sshll.u32 %s884, 4
        %s893 = int_to_ptr.vmem [resolvable:$true] %s892
        %895 = dma.hbm_to_vmem [thread:$0]  %s883, 16, %s893, %s854
        %s896 = sld [smem:[#allocation13 + %s142]]
        %s897 = smul.addr %s896, 16
        %s898 = scalar_lea.hbm %s5, %s897
        %s899 = scalar_lea.vmem [#allocation6], %s146
        // Predicated region
        $region365: #{tpu_custom_call.1} parent=15 // pred_check
          _
        $region366: #{tpu_custom_call.1} parent=15 // pred_check_branch
          %901 = sbr.rel target = $region368
        $region367: #{tpu_custom_call.1} parent=15 // pred_region
          %902 = sst [smem:[#allocation16]] [#allocation79]
          %903 = sst [smem:[#allocation17]] [#allocation78]
        $region368: #{tpu_custom_call.1} parent=15 // pred_fallthru
          _
        %905 = shalt.err (0)
        %s907 = sshll.u32 %s899, 4
        %s908 = int_to_ptr.vmem [resolvable:$true] %s907
        %910 = dma.hbm_to_vmem [thread:$0]  %s898, 16, %s908, %s854
        %s911 = sld [smem:[#allocation13 + %s159]]
        %s912 = smul.addr %s911, 16
        %s913 = scalar_lea.hbm %s5, %s912
        %s914 = scalar_lea.vmem [#allocation6], %s163
        // Predicated region
        $region369: #{tpu_custom_call.1} parent=15 // pred_check
          _
        $region370: #{tpu_custom_call.1} parent=15 // pred_check_branch
          %916 = sbr.rel target = $region372
        $region371: #{tpu_custom_call.1} parent=15 // pred_region
          %917 = sst [smem:[#allocation16]] [#allocation81]
          %918 = sst [smem:[#allocation17]] [#allocation80]
        $region372: #{tpu_custom_call.1} parent=15 // pred_fallthru
          _
        %920 = shalt.err (0)
        %s922 = sshll.u32 %s914, 4
        %s923 = int_to_ptr.vmem [resolvable:$true] %s922
        %925 = dma.hbm_to_vmem [thread:$0]  %s913, 16, %s923, %s854
        %s926 = sld [smem:[#allocation13 + %s176]]
        %s927 = smul.addr %s926, 16
        %s928 = scalar_lea.hbm %s5, %s927
        %s929 = scalar_lea.vmem [#allocation6], %s180
        // Predicated region
        $region373: #{tpu_custom_call.1} parent=15 // pred_check
          _
        $region374: #{tpu_custom_call.1} parent=15 // pred_check_branch
          %931 = sbr.rel target = $region376
        $region375: #{tpu_custom_call.1} parent=15 // pred_region
          %932 = sst [smem:[#allocation16]] [#allocation83]
          %933 = sst [smem:[#allocation17]] [#allocation82]
        $region376: #{tpu_custom_call.1} parent=15 // pred_fallthru
          _
        %935 = shalt.err (0)
        %s937 = sshll.u32 %s929, 4
        %s938 = int_to_ptr.vmem [resolvable:$true] %s937
        %940 = dma.hbm_to_vmem [thread:$0]  %s928, 16, %s938, %s854
        %s941 = sld [smem:[#allocation13 + %s193]]
        %s942 = smul.addr %s941, 16
        %s943 = scalar_lea.hbm %s5, %s942
        %s944 = scalar_lea.vmem [#allocation6], %s197
        // Predicated region
        $region377: #{tpu_custom_call.1} parent=15 // pred_check
          _
        $region378: #{tpu_custom_call.1} parent=15 // pred_check_branch
          %946 = sbr.rel target = $region380
        $region379: #{tpu_custom_call.1} parent=15 // pred_region
          %947 = sst [smem:[#allocation16]] [#allocation85]
          %948 = sst [smem:[#allocation17]] [#allocation84]
        $region380: #{tpu_custom_call.1} parent=15 // pred_fallthru
          _
        %950 = shalt.err (0)
        %s952 = sshll.u32 %s944, 4
        %s953 = int_to_ptr.vmem [resolvable:$true] %s952
        %955 = dma.hbm_to_vmem [thread:$0]  %s943, 16, %s953, %s854
        %s956 = sld [smem:[#allocation13 + %s210]]
        %s957 = smul.addr %s956, 16
        %s958 = scalar_lea.hbm %s5, %s957
        %s959 = scalar_lea.vmem [#allocation6], %s214
        // Predicated region
        $region381: #{tpu_custom_call.1} parent=15 // pred_check
          _
        $region382: #{tpu_custom_call.1} parent=15 // pred_check_branch
          %961 = sbr.rel target = $region384
        $region383: #{tpu_custom_call.1} parent=15 // pred_region
          %962 = sst [smem:[#allocation16]] [#allocation87]
          %963 = sst [smem:[#allocation17]] [#allocation86]
        $region384: #{tpu_custom_call.1} parent=15 // pred_fallthru
          _
        %965 = shalt.err (0)
        %s967 = sshll.u32 %s959, 4
        %s968 = int_to_ptr.vmem [resolvable:$true] %s967
        %970 = dma.hbm_to_vmem [thread:$0]  %s958, 16, %s968, %s854
      $region16: #{tpu_custom_call.1} parent=11 // pred_fallthru
        _
      %s971 = sadd.s32 %s33, 1
      %p972 = scmp.lt.s32.totalorder %s971, 3
      // Predicated region
      $region385: #{tpu_custom_call.1} parent=11 // pred_check
        %p973 = pneg %p972
      $region386: #{tpu_custom_call.1} parent=11 // pred_check_branch
        %975 = sbr.rel (%p973) target = $region388
      $region387: #{tpu_custom_call.1} parent=11 // pred_region
        %s976 = ssub.s32 1, %s84
        %s977 = smul.u32 %s971, 8
        %s978 = sld [smem:[#allocation9 + %s977]]
        %s979 = smul.addr %s978, 16
        %s980 = scalar_lea.hbm %s5, %s979
        %s981 = smul.u32 %s976, 8
        %s982 = scalar_lea.vmem [#allocation2], %s981
        %s983 = smul.u32 %s976, 5
        %s984 = scalar_lea.sflag [#allocation7], %s983
        // Predicated region
        $region389: #{tpu_custom_call.1} parent=387 // pred_check
          _
        $region390: #{tpu_custom_call.1} parent=387 // pred_check_branch
          %986 = sbr.rel target = $region392
        $region391: #{tpu_custom_call.1} parent=387 // pred_region
          %987 = sst [smem:[#allocation16]] [#allocation89]
          %988 = sst [smem:[#allocation17]] [#allocation88]
        $region392: #{tpu_custom_call.1} parent=387 // pred_fallthru
          _
        %990 = shalt.err (0)
        %s992 = sshll.u32 %s982, 4
        %s993 = int_to_ptr.vmem [resolvable:$true] %s992
        %995 = dma.hbm_to_vmem [thread:$0]  %s980, 16, %s993, %s984
        %s996 = sadd.s32 %s977, 1
        %s997 = sld [smem:[#allocation9 + %s996]]
        %s998 = smul.addr %s997, 16
        %s999 = scalar_lea.hbm %s5, %s998
        %s1000 = sadd.s32 1, %s981
        %s1001 = scalar_lea.vmem [#allocation2], %s1000
        // Predicated region
        $region393: #{tpu_custom_call.1} parent=387 // pred_check
          _
        $region394: #{tpu_custom_call.1} parent=387 // pred_check_branch
          %1003 = sbr.rel target = $region396
        $region395: #{tpu_custom_call.1} parent=387 // pred_region
          %1004 = sst [smem:[#allocation16]] [#allocation91]
          %1005 = sst [smem:[#allocation17]] [#allocation90]
        $region396: #{tpu_custom_call.1} parent=387 // pred_fallthru
          _
        %1007 = shalt.err (0)
        %s1009 = sshll.u32 %s1001, 4
        %s1010 = int_to_ptr.vmem [resolvable:$true] %s1009
        %1012 = dma.hbm_to_vmem [thread:$0]  %s999, 16, %s1010, %s984
        %s1013 = sadd.s32 %s977, 2
        %s1014 = sld [smem:[#allocation9 + %s1013]]
        %s1015 = smul.addr %s1014, 16
        %s1016 = scalar_lea.hbm %s5, %s1015
        %s1017 = sadd.s32 2, %s981
        %s1018 = scalar_lea.vmem [#allocation2], %s1017
        // Predicated region
        $region397: #{tpu_custom_call.1} parent=387 // pred_check
          _
        $region398: #{tpu_custom_call.1} parent=387 // pred_check_branch
          %1020 = sbr.rel target = $region400
        $region399: #{tpu_custom_call.1} parent=387 // pred_region
          %1021 = sst [smem:[#allocation16]] [#allocation93]
          %1022 = sst [smem:[#allocation17]] [#allocation92]
        $region400: #{tpu_custom_call.1} parent=387 // pred_fallthru
          _
        %1024 = shalt.err (0)
        %s1026 = sshll.u32 %s1018, 4
        %s1027 = int_to_ptr.vmem [resolvable:$true] %s1026
        %1029 = dma.hbm_to_vmem [thread:$0]  %s1016, 16, %s1027, %s984
        %s1030 = sadd.s32 %s977, 3
        %s1031 = sld [smem:[#allocation9 + %s1030]]
        %s1032 = smul.addr %s1031, 16
        %s1033 = scalar_lea.hbm %s5, %s1032
        %s1034 = sadd.s32 3, %s981
        %s1035 = scalar_lea.vmem [#allocation2], %s1034
        // Predicated region
        $region401: #{tpu_custom_call.1} parent=387 // pred_check
          _
        $region402: #{tpu_custom_call.1} parent=387 // pred_check_branch
          %1037 = sbr.rel target = $region404
        $region403: #{tpu_custom_call.1} parent=387 // pred_region
          %1038 = sst [smem:[#allocation16]] [#allocation95]
          %1039 = sst [smem:[#allocation17]] [#allocation94]
        $region404: #{tpu_custom_call.1} parent=387 // pred_fallthru
          _
        %1041 = shalt.err (0)
        %s1043 = sshll.u32 %s1035, 4
        %s1044 = int_to_ptr.vmem [resolvable:$true] %s1043
        %1046 = dma.hbm_to_vmem [thread:$0]  %s1033, 16, %s1044, %s984
        %s1047 = sadd.s32 %s977, 4
        %s1048 = sld [smem:[#allocation9 + %s1047]]
        %s1049 = smul.addr %s1048, 16
        %s1050 = scalar_lea.hbm %s5, %s1049
        %s1051 = sadd.s32 4, %s981
        %s1052 = scalar_lea.vmem [#allocation2], %s1051
        // Predicated region
        $region405: #{tpu_custom_call.1} parent=387 // pred_check
          _
        $region406: #{tpu_custom_call.1} parent=387 // pred_check_branch
          %1054 = sbr.rel target = $region408
        $region407: #{tpu_custom_call.1} parent=387 // pred_region
          %1055 = sst [smem:[#allocation16]] [#allocation97]
          %1056 = sst [smem:[#allocation17]] [#allocation96]
        $region408: #{tpu_custom_call.1} parent=387 // pred_fallthru
          _
        %1058 = shalt.err (0)
        %s1060 = sshll.u32 %s1052, 4
        %s1061 = int_to_ptr.vmem [resolvable:$true] %s1060
        %1063 = dma.hbm_to_vmem [thread:$0]  %s1050, 16, %s1061, %s984
        %s1064 = sadd.s32 %s977, 5
        %s1065 = sld [smem:[#allocation9 + %s1064]]
        %s1066 = smul.addr %s1065, 16
        %s1067 = scalar_lea.hbm %s5, %s1066
        %s1068 = sadd.s32 5, %s981
        %s1069 = scalar_lea.vmem [#allocation2], %s1068
        // Predicated region
        $region409: #{tpu_custom_call.1} parent=387 // pred_check
          _
        $region410: #{tpu_custom_call.1} parent=387 // pred_check_branch
          %1071 = sbr.rel target = $region412
        $region411: #{tpu_custom_call.1} parent=387 // pred_region
          %1072 = sst [smem:[#allocation16]] [#allocation99]
          %1073 = sst [smem:[#allocation17]] [#allocation98]
        $region412: #{tpu_custom_call.1} parent=387 // pred_fallthru
          _
        %1075 = shalt.err (0)
        %s1077 = sshll.u32 %s1069, 4
        %s1078 = int_to_ptr.vmem [resolvable:$true] %s1077
        %1080 = dma.hbm_to_vmem [thread:$0]  %s1067, 16, %s1078, %s984
        %s1081 = sadd.s32 %s977, 6
        %s1082 = sld [smem:[#allocation9 + %s1081]]
        %s1083 = smul.addr %s1082, 16
        %s1084 = scalar_lea.hbm %s5, %s1083
        %s1085 = sadd.s32 6, %s981
        %s1086 = scalar_lea.vmem [#allocation2], %s1085
        // Predicated region
        $region413: #{tpu_custom_call.1} parent=387 // pred_check
          _
        $region414: #{tpu_custom_call.1} parent=387 // pred_check_branch
          %1088 = sbr.rel target = $region416
        $region415: #{tpu_custom_call.1} parent=387 // pred_region
          %1089 = sst [smem:[#allocation16]] [#allocation101]
          %1090 = sst [smem:[#allocation17]] [#allocation100]
        $region416: #{tpu_custom_call.1} parent=387 // pred_fallthru
          _
        %1092 = shalt.err (0)
        %s1094 = sshll.u32 %s1086, 4
        %s1095 = int_to_ptr.vmem [resolvable:$true] %s1094
        %1097 = dma.hbm_to_vmem [thread:$0]  %s1084, 16, %s1095, %s984
        %s1098 = sadd.s32 %s977, 7
        %s1099 = sld [smem:[#allocation9 + %s1098]]
        %s1100 = smul.addr %s1099, 16
        %s1101 = scalar_lea.hbm %s5, %s1100
        %s1102 = sadd.s32 7, %s981
        %s1103 = scalar_lea.vmem [#allocation2], %s1102
        // Predicated region
        $region417: #{tpu_custom_call.1} parent=387 // pred_check
          _
        $region418: #{tpu_custom_call.1} parent=387 // pred_check_branch
          %1105 = sbr.rel target = $region420
        $region419: #{tpu_custom_call.1} parent=387 // pred_region
          %1106 = sst [smem:[#allocation16]] [#allocation103]
          %1107 = sst [smem:[#allocation17]] [#allocation102]
        $region420: #{tpu_custom_call.1} parent=387 // pred_fallthru
          _
        %1109 = shalt.err (0)
        %s1111 = sshll.u32 %s1103, 4
        %s1112 = int_to_ptr.vmem [resolvable:$true] %s1111
        %1114 = dma.hbm_to_vmem [thread:$0]  %s1101, 16, %s1112, %s984
        %s1115 = sld [smem:[#allocation10 + %s977]]
        %s1116 = scalar_lea.vmem %s6, %s1115
        %s1117 = scalar_lea.vmem [#allocation3], %s981
        %s1118 = sadd.s32 1, %s983
        %s1119 = scalar_lea.sflag [#allocation7], %s1118
        %p1121 = scmp.lt.u32.totalorder 1, 8
        %p1122 = pneg %p1121
        // Predicated region
        $region421: #{tpu_custom_call.1} parent=387 // pred_check
          _
        $region422: #{tpu_custom_call.1} parent=387 // pred_check_branch
          %1124 = sbr.rel (%p1121) target = $region424
        $region423: #{tpu_custom_call.1} parent=387 // pred_region
          %s1139 = sand.u32 1, 7
          %p1140 = scmp.eq.s32.totalorder %s1139, 0
          %p1141 = pneg %p1140
          // Predicated region
          $region436: #{tpu_custom_call.1} parent=423 // pred_check
            _
          $region437: #{tpu_custom_call.1} parent=423 // pred_check_branch
            %1143 = sbr.rel (%p1140) target = $region439
          $region438: #{tpu_custom_call.1} parent=423 // pred_region
            %s1144 = sand.u32 1, 7
            %s1145 = ssub.s32 1, %s1144
            %s1146 = scalar_lea.vmem %s1116, %s1145
            %s1147 = ssub.s32 1, %s1144
            %s1148 = scalar_lea.vmem %s1117, %s1147 [#allocation3]
            %s1149 = sshllo.u32 0, %s1144
            loop: start=0, step=1, limit=1
            $region440: #{tpu_custom_call.1} parent=438 // loop_pre_header
              _
            $region441: #{tpu_custom_call.1} parent=438 // loop_header
              %s1151 = sphi 0, %s1155
              %p1152 = scmp.ge.s32.totalorder %s1151, 1
              %s1156 = sphi %s1146, %s1146
              %s1157 = sphi %s1148, %s1148
            $region442: #{tpu_custom_call.1} parent=438 // loop_header_branch
              %1154 = sbr.rel (%p1152) target = $region446
            $region443: #{tpu_custom_call.1} parent=438 // loop_body
              %v1158 = vld [vmem:[%s1156] sm:%s1149]
              %1159 = vst [vmem:[%s1157] sm:%s1149] %v1158
            $region444: #{tpu_custom_call.1} parent=438 // loop_footer
              %s1155 = sadd.s32 1, %s1151
            $region445: #{tpu_custom_call.1} parent=438 // loop_footer_branch
              %1150 = sbr.rel target = $region441
            $region446: #{tpu_custom_call.1} parent=438 // loop_exit
              _
          $region439: #{tpu_custom_call.1} parent=423 // pred_fallthru
            _
        $region424: #{tpu_custom_call.1} parent=387 // pred_fallthru
          _
        // Predicated region
        $region425: #{tpu_custom_call.1} parent=387 // pred_check
          %p1125 = pneg %p1121
        $region426: #{tpu_custom_call.1} parent=387 // pred_check_branch
          %1127 = sbr.rel (%p1125) target = $region428
        $region427: #{tpu_custom_call.1} parent=387 // pred_region
          %s1128 = sshllo.u32 0, 1
          loop: start=0, step=1, limit=1
          $region429: #{tpu_custom_call.1} parent=427 // loop_pre_header
            _
          $region430: #{tpu_custom_call.1} parent=427 // loop_header
            %s1130 = sphi 0, %s1134
            %p1131 = scmp.ge.s32.totalorder %s1130, 1
            %s1135 = sphi %s1116, %s1116
            %s1136 = sphi %s1117, %s1117
          $region431: #{tpu_custom_call.1} parent=427 // loop_header_branch
            %1133 = sbr.rel (%p1131) target = $region435
          $region432: #{tpu_custom_call.1} parent=427 // loop_body
            %v1137 = vld [vmem:[%s1135] sm:%s1128]
            %1138 = vst [vmem:[%s1136] sm:%s1128] %v1137
          $region433: #{tpu_custom_call.1} parent=427 // loop_footer
            %s1134 = sadd.s32 1, %s1130
          $region434: #{tpu_custom_call.1} parent=427 // loop_footer_branch
            %1129 = sbr.rel target = $region430
          $region435: #{tpu_custom_call.1} parent=427 // loop_exit
            _
        $region428: #{tpu_custom_call.1} parent=387 // pred_fallthru
          _
        // Predicated region
        $region447: #{tpu_custom_call.1} parent=387 // pred_check
          _
        $region448: #{tpu_custom_call.1} parent=387 // pred_check_branch
          %1162 = sbr.rel (0) target = $region450
        $region449: #{tpu_custom_call.1} parent=387 // pred_region
          %1163 = vsyncadd %s1119, 16
        $region450: #{tpu_custom_call.1} parent=387 // pred_fallthru
          _
        %s1164 = sld [smem:[#allocation10 + %s996]]
        %s1165 = scalar_lea.vmem %s6, %s1164
        %s1166 = scalar_lea.vmem [#allocation3], %s1000
        %p1168 = scmp.lt.u32.totalorder 1, 8
        %p1169 = pneg %p1168
        // Predicated region
        $region451: #{tpu_custom_call.1} parent=387 // pred_check
          _
        $region452: #{tpu_custom_call.1} parent=387 // pred_check_branch
          %1171 = sbr.rel (%p1168) target = $region454
        $region453: #{tpu_custom_call.1} parent=387 // pred_region
          %s1186 = sand.u32 1, 7
          %p1187 = scmp.eq.s32.totalorder %s1186, 0
          %p1188 = pneg %p1187
          // Predicated region
          $region466: #{tpu_custom_call.1} parent=453 // pred_check
            _
          $region467: #{tpu_custom_call.1} parent=453 // pred_check_branch
            %1190 = sbr.rel (%p1187) target = $region469
          $region468: #{tpu_custom_call.1} parent=453 // pred_region
            %s1191 = sand.u32 1, 7
            %s1192 = ssub.s32 1, %s1191
            %s1193 = scalar_lea.vmem %s1165, %s1192
            %s1194 = ssub.s32 1, %s1191
            %s1195 = scalar_lea.vmem %s1166, %s1194 [#allocation3]
            %s1196 = sshllo.u32 0, %s1191
            loop: start=0, step=1, limit=1
            $region470: #{tpu_custom_call.1} parent=468 // loop_pre_header
              _
            $region471: #{tpu_custom_call.1} parent=468 // loop_header
              %s1198 = sphi 0, %s1202
              %p1199 = scmp.ge.s32.totalorder %s1198, 1
              %s1203 = sphi %s1193, %s1193
              %s1204 = sphi %s1195, %s1195
            $region472: #{tpu_custom_call.1} parent=468 // loop_header_branch
              %1201 = sbr.rel (%p1199) target = $region476
            $region473: #{tpu_custom_call.1} parent=468 // loop_body
              %v1205 = vld [vmem:[%s1203] sm:%s1196]
              %1206 = vst [vmem:[%s1204] sm:%s1196] %v1205
            $region474: #{tpu_custom_call.1} parent=468 // loop_footer
              %s1202 = sadd.s32 1, %s1198
            $region475: #{tpu_custom_call.1} parent=468 // loop_footer_branch
              %1197 = sbr.rel target = $region471
            $region476: #{tpu_custom_call.1} parent=468 // loop_exit
              _
          $region469: #{tpu_custom_call.1} parent=453 // pred_fallthru
            _
        $region454: #{tpu_custom_call.1} parent=387 // pred_fallthru
          _
        // Predicated region
        $region455: #{tpu_custom_call.1} parent=387 // pred_check
          %p1172 = pneg %p1168
        $region456: #{tpu_custom_call.1} parent=387 // pred_check_branch
          %1174 = sbr.rel (%p1172) target = $region458
        $region457: #{tpu_custom_call.1} parent=387 // pred_region
          %s1175 = sshllo.u32 0, 1
          loop: start=0, step=1, limit=1
          $region459: #{tpu_custom_call.1} parent=457 // loop_pre_header
            _
          $region460: #{tpu_custom_call.1} parent=457 // loop_header
            %s1177 = sphi 0, %s1181
            %p1178 = scmp.ge.s32.totalorder %s1177, 1
            %s1182 = sphi %s1165, %s1165
            %s1183 = sphi %s1166, %s1166
          $region461: #{tpu_custom_call.1} parent=457 // loop_header_branch
            %1180 = sbr.rel (%p1178) target = $region465
          $region462: #{tpu_custom_call.1} parent=457 // loop_body
            %v1184 = vld [vmem:[%s1182] sm:%s1175]
            %1185 = vst [vmem:[%s1183] sm:%s1175] %v1184
          $region463: #{tpu_custom_call.1} parent=457 // loop_footer
            %s1181 = sadd.s32 1, %s1177
          $region464: #{tpu_custom_call.1} parent=457 // loop_footer_branch
            %1176 = sbr.rel target = $region460
          $region465: #{tpu_custom_call.1} parent=457 // loop_exit
            _
        $region458: #{tpu_custom_call.1} parent=387 // pred_fallthru
          _
        // Predicated region
        $region477: #{tpu_custom_call.1} parent=387 // pred_check
          _
        $region478: #{tpu_custom_call.1} parent=387 // pred_check_branch
          %1209 = sbr.rel (0) target = $region480
        $region479: #{tpu_custom_call.1} parent=387 // pred_region
          %1210 = vsyncadd %s1119, 16
        $region480: #{tpu_custom_call.1} parent=387 // pred_fallthru
          _
        %s1211 = sld [smem:[#allocation10 + %s1013]]
        %s1212 = scalar_lea.vmem %s6, %s1211
        %s1213 = scalar_lea.vmem [#allocation3], %s1017
        %p1215 = scmp.lt.u32.totalorder 1, 8
        %p1216 = pneg %p1215
        // Predicated region
        $region481: #{tpu_custom_call.1} parent=387 // pred_check
          _
        $region482: #{tpu_custom_call.1} parent=387 // pred_check_branch
          %1218 = sbr.rel (%p1215) target = $region484
        $region483: #{tpu_custom_call.1} parent=387 // pred_region
          %s1233 = sand.u32 1, 7
          %p1234 = scmp.eq.s32.totalorder %s1233, 0
          %p1235 = pneg %p1234
          // Predicated region
          $region496: #{tpu_custom_call.1} parent=483 // pred_check
            _
          $region497: #{tpu_custom_call.1} parent=483 // pred_check_branch
            %1237 = sbr.rel (%p1234) target = $region499
          $region498: #{tpu_custom_call.1} parent=483 // pred_region
            %s1238 = sand.u32 1, 7
            %s1239 = ssub.s32 1, %s1238
            %s1240 = scalar_lea.vmem %s1212, %s1239
            %s1241 = ssub.s32 1, %s1238
            %s1242 = scalar_lea.vmem %s1213, %s1241 [#allocation3]
            %s1243 = sshllo.u32 0, %s1238
            loop: start=0, step=1, limit=1
            $region500: #{tpu_custom_call.1} parent=498 // loop_pre_header
              _
            $region501: #{tpu_custom_call.1} parent=498 // loop_header
              %s1245 = sphi 0, %s1249
              %p1246 = scmp.ge.s32.totalorder %s1245, 1
              %s1250 = sphi %s1240, %s1240
              %s1251 = sphi %s1242, %s1242
            $region502: #{tpu_custom_call.1} parent=498 // loop_header_branch
              %1248 = sbr.rel (%p1246) target = $region506
            $region503: #{tpu_custom_call.1} parent=498 // loop_body
              %v1252 = vld [vmem:[%s1250] sm:%s1243]
              %1253 = vst [vmem:[%s1251] sm:%s1243] %v1252
            $region504: #{tpu_custom_call.1} parent=498 // loop_footer
              %s1249 = sadd.s32 1, %s1245
            $region505: #{tpu_custom_call.1} parent=498 // loop_footer_branch
              %1244 = sbr.rel target = $region501
            $region506: #{tpu_custom_call.1} parent=498 // loop_exit
              _
          $region499: #{tpu_custom_call.1} parent=483 // pred_fallthru
            _
        $region484: #{tpu_custom_call.1} parent=387 // pred_fallthru
          _
        // Predicated region
        $region485: #{tpu_custom_call.1} parent=387 // pred_check
          %p1219 = pneg %p1215
        $region486: #{tpu_custom_call.1} parent=387 // pred_check_branch
          %1221 = sbr.rel (%p1219) target = $region488
        $region487: #{tpu_custom_call.1} parent=387 // pred_region
          %s1222 = sshllo.u32 0, 1
          loop: start=0, step=1, limit=1
          $region489: #{tpu_custom_call.1} parent=487 // loop_pre_header
            _
          $region490: #{tpu_custom_call.1} parent=487 // loop_header
            %s1224 = sphi 0, %s1228
            %p1225 = scmp.ge.s32.totalorder %s1224, 1
            %s1229 = sphi %s1212, %s1212
            %s1230 = sphi %s1213, %s1213
          $region491: #{tpu_custom_call.1} parent=487 // loop_header_branch
            %1227 = sbr.rel (%p1225) target = $region495
          $region492: #{tpu_custom_call.1} parent=487 // loop_body
            %v1231 = vld [vmem:[%s1229] sm:%s1222]
            %1232 = vst [vmem:[%s1230] sm:%s1222] %v1231
          $region493: #{tpu_custom_call.1} parent=487 // loop_footer
            %s1228 = sadd.s32 1, %s1224
          $region494: #{tpu_custom_call.1} parent=487 // loop_footer_branch
            %1223 = sbr.rel target = $region490
          $region495: #{tpu_custom_call.1} parent=487 // loop_exit
            _
        $region488: #{tpu_custom_call.1} parent=387 // pred_fallthru
          _
        // Predicated region
        $region507: #{tpu_custom_call.1} parent=387 // pred_check
          _
        $region508: #{tpu_custom_call.1} parent=387 // pred_check_branch
          %1256 = sbr.rel (0) target = $region510
        $region509: #{tpu_custom_call.1} parent=387 // pred_region
          %1257 = vsyncadd %s1119, 16
        $region510: #{tpu_custom_call.1} parent=387 // pred_fallthru
          _
        %s1258 = sld [smem:[#allocation10 + %s1030]]
        %s1259 = scalar_lea.vmem %s6, %s1258
        %s1260 = scalar_lea.vmem [#allocation3], %s1034
        %p1262 = scmp.lt.u32.totalorder 1, 8
        %p1263 = pneg %p1262
        // Predicated region
        $region511: #{tpu_custom_call.1} parent=387 // pred_check
          _
        $region512: #{tpu_custom_call.1} parent=387 // pred_check_branch
          %1265 = sbr.rel (%p1262) target = $region514
        $region513: #{tpu_custom_call.1} parent=387 // pred_region
          %s1280 = sand.u32 1, 7
          %p1281 = scmp.eq.s32.totalorder %s1280, 0
          %p1282 = pneg %p1281
          // Predicated region
          $region526: #{tpu_custom_call.1} parent=513 // pred_check
            _
          $region527: #{tpu_custom_call.1} parent=513 // pred_check_branch
            %1284 = sbr.rel (%p1281) target = $region529
          $region528: #{tpu_custom_call.1} parent=513 // pred_region
            %s1285 = sand.u32 1, 7
            %s1286 = ssub.s32 1, %s1285
            %s1287 = scalar_lea.vmem %s1259, %s1286
            %s1288 = ssub.s32 1, %s1285
            %s1289 = scalar_lea.vmem %s1260, %s1288 [#allocation3]
            %s1290 = sshllo.u32 0, %s1285
            loop: start=0, step=1, limit=1
            $region530: #{tpu_custom_call.1} parent=528 // loop_pre_header
              _
            $region531: #{tpu_custom_call.1} parent=528 // loop_header
              %s1292 = sphi 0, %s1296
              %p1293 = scmp.ge.s32.totalorder %s1292, 1
              %s1297 = sphi %s1287, %s1287
              %s1298 = sphi %s1289, %s1289
            $region532: #{tpu_custom_call.1} parent=528 // loop_header_branch
              %1295 = sbr.rel (%p1293) target = $region536
            $region533: #{tpu_custom_call.1} parent=528 // loop_body
              %v1299 = vld [vmem:[%s1297] sm:%s1290]
              %1300 = vst [vmem:[%s1298] sm:%s1290] %v1299
            $region534: #{tpu_custom_call.1} parent=528 // loop_footer
              %s1296 = sadd.s32 1, %s1292
            $region535: #{tpu_custom_call.1} parent=528 // loop_footer_branch
              %1291 = sbr.rel target = $region531
            $region536: #{tpu_custom_call.1} parent=528 // loop_exit
              _
          $region529: #{tpu_custom_call.1} parent=513 // pred_fallthru
            _
        $region514: #{tpu_custom_call.1} parent=387 // pred_fallthru
          _
        // Predicated region
        $region515: #{tpu_custom_call.1} parent=387 // pred_check
          %p1266 = pneg %p1262
        $region516: #{tpu_custom_call.1} parent=387 // pred_check_branch
          %1268 = sbr.rel (%p1266) target = $region518
        $region517: #{tpu_custom_call.1} parent=387 // pred_region
          %s1269 = sshllo.u32 0, 1
          loop: start=0, step=1, limit=1
          $region519: #{tpu_custom_call.1} parent=517 // loop_pre_header
            _
          $region520: #{tpu_custom_call.1} parent=517 // loop_header
            %s1271 = sphi 0, %s1275
            %p1272 = scmp.ge.s32.totalorder %s1271, 1
            %s1276 = sphi %s1259, %s1259
            %s1277 = sphi %s1260, %s1260
          $region521: #{tpu_custom_call.1} parent=517 // loop_header_branch
            %1274 = sbr.rel (%p1272) target = $region525
          $region522: #{tpu_custom_call.1} parent=517 // loop_body
            %v1278 = vld [vmem:[%s1276] sm:%s1269]
            %1279 = vst [vmem:[%s1277] sm:%s1269] %v1278
          $region523: #{tpu_custom_call.1} parent=517 // loop_footer
            %s1275 = sadd.s32 1, %s1271
          $region524: #{tpu_custom_call.1} parent=517 // loop_footer_branch
            %1270 = sbr.rel target = $region520
          $region525: #{tpu_custom_call.1} parent=517 // loop_exit
            _
        $region518: #{tpu_custom_call.1} parent=387 // pred_fallthru
          _
        // Predicated region
        $region537: #{tpu_custom_call.1} parent=387 // pred_check
          _
        $region538: #{tpu_custom_call.1} parent=387 // pred_check_branch
          %1303 = sbr.rel (0) target = $region540
        $region539: #{tpu_custom_call.1} parent=387 // pred_region
          %1304 = vsyncadd %s1119, 16
        $region540: #{tpu_custom_call.1} parent=387 // pred_fallthru
          _
        %s1305 = sld [smem:[#allocation10 + %s1047]]
        %s1306 = scalar_lea.vmem %s6, %s1305
        %s1307 = scalar_lea.vmem [#allocation3], %s1051
        %p1309 = scmp.lt.u32.totalorder 1, 8
        %p1310 = pneg %p1309
        // Predicated region
        $region541: #{tpu_custom_call.1} parent=387 // pred_check
          _
        $region542: #{tpu_custom_call.1} parent=387 // pred_check_branch
          %1312 = sbr.rel (%p1309) target = $region544
        $region543: #{tpu_custom_call.1} parent=387 // pred_region
          %s1327 = sand.u32 1, 7
          %p1328 = scmp.eq.s32.totalorder %s1327, 0
          %p1329 = pneg %p1328
          // Predicated region
          $region556: #{tpu_custom_call.1} parent=543 // pred_check
            _
          $region557: #{tpu_custom_call.1} parent=543 // pred_check_branch
            %1331 = sbr.rel (%p1328) target = $region559
          $region558: #{tpu_custom_call.1} parent=543 // pred_region
            %s1332 = sand.u32 1, 7
            %s1333 = ssub.s32 1, %s1332
            %s1334 = scalar_lea.vmem %s1306, %s1333
            %s1335 = ssub.s32 1, %s1332
            %s1336 = scalar_lea.vmem %s1307, %s1335 [#allocation3]
            %s1337 = sshllo.u32 0, %s1332
            loop: start=0, step=1, limit=1
            $region560: #{tpu_custom_call.1} parent=558 // loop_pre_header
              _
            $region561: #{tpu_custom_call.1} parent=558 // loop_header
              %s1339 = sphi 0, %s1343
              %p1340 = scmp.ge.s32.totalorder %s1339, 1
              %s1344 = sphi %s1334, %s1334
              %s1345 = sphi %s1336, %s1336
            $region562: #{tpu_custom_call.1} parent=558 // loop_header_branch
              %1342 = sbr.rel (%p1340) target = $region566
            $region563: #{tpu_custom_call.1} parent=558 // loop_body
              %v1346 = vld [vmem:[%s1344] sm:%s1337]
              %1347 = vst [vmem:[%s1345] sm:%s1337] %v1346
            $region564: #{tpu_custom_call.1} parent=558 // loop_footer
              %s1343 = sadd.s32 1, %s1339
            $region565: #{tpu_custom_call.1} parent=558 // loop_footer_branch
              %1338 = sbr.rel target = $region561
            $region566: #{tpu_custom_call.1} parent=558 // loop_exit
              _
          $region559: #{tpu_custom_call.1} parent=543 // pred_fallthru
            _
        $region544: #{tpu_custom_call.1} parent=387 // pred_fallthru
          _
        // Predicated region
        $region545: #{tpu_custom_call.1} parent=387 // pred_check
          %p1313 = pneg %p1309
        $region546: #{tpu_custom_call.1} parent=387 // pred_check_branch
          %1315 = sbr.rel (%p1313) target = $region548
        $region547: #{tpu_custom_call.1} parent=387 // pred_region
          %s1316 = sshllo.u32 0, 1
          loop: start=0, step=1, limit=1
          $region549: #{tpu_custom_call.1} parent=547 // loop_pre_header
            _
          $region550: #{tpu_custom_call.1} parent=547 // loop_header
            %s1318 = sphi 0, %s1322
            %p1319 = scmp.ge.s32.totalorder %s1318, 1
            %s1323 = sphi %s1306, %s1306
            %s1324 = sphi %s1307, %s1307
          $region551: #{tpu_custom_call.1} parent=547 // loop_header_branch
            %1321 = sbr.rel (%p1319) target = $region555
          $region552: #{tpu_custom_call.1} parent=547 // loop_body
            %v1325 = vld [vmem:[%s1323] sm:%s1316]
            %1326 = vst [vmem:[%s1324] sm:%s1316] %v1325
          $region553: #{tpu_custom_call.1} parent=547 // loop_footer
            %s1322 = sadd.s32 1, %s1318
          $region554: #{tpu_custom_call.1} parent=547 // loop_footer_branch
            %1317 = sbr.rel target = $region550
          $region555: #{tpu_custom_call.1} parent=547 // loop_exit
            _
        $region548: #{tpu_custom_call.1} parent=387 // pred_fallthru
          _
        // Predicated region
        $region567: #{tpu_custom_call.1} parent=387 // pred_check
          _
        $region568: #{tpu_custom_call.1} parent=387 // pred_check_branch
          %1350 = sbr.rel (0) target = $region570
        $region569: #{tpu_custom_call.1} parent=387 // pred_region
          %1351 = vsyncadd %s1119, 16
        $region570: #{tpu_custom_call.1} parent=387 // pred_fallthru
          _
        %s1352 = sld [smem:[#allocation10 + %s1064]]
        %s1353 = scalar_lea.vmem %s6, %s1352
        %s1354 = scalar_lea.vmem [#allocation3], %s1068
        %p1356 = scmp.lt.u32.totalorder 1, 8
        %p1357 = pneg %p1356
        // Predicated region
        $region571: #{tpu_custom_call.1} parent=387 // pred_check
          _
        $region572: #{tpu_custom_call.1} parent=387 // pred_check_branch
          %1359 = sbr.rel (%p1356) target = $region574
        $region573: #{tpu_custom_call.1} parent=387 // pred_region
          %s1374 = sand.u32 1, 7
          %p1375 = scmp.eq.s32.totalorder %s1374, 0
          %p1376 = pneg %p1375
          // Predicated region
          $region586: #{tpu_custom_call.1} parent=573 // pred_check
            _
          $region587: #{tpu_custom_call.1} parent=573 // pred_check_branch
            %1378 = sbr.rel (%p1375) target = $region589
          $region588: #{tpu_custom_call.1} parent=573 // pred_region
            %s1379 = sand.u32 1, 7
            %s1380 = ssub.s32 1, %s1379
            %s1381 = scalar_lea.vmem %s1353, %s1380
            %s1382 = ssub.s32 1, %s1379
            %s1383 = scalar_lea.vmem %s1354, %s1382 [#allocation3]
            %s1384 = sshllo.u32 0, %s1379
            loop: start=0, step=1, limit=1
            $region590: #{tpu_custom_call.1} parent=588 // loop_pre_header
              _
            $region591: #{tpu_custom_call.1} parent=588 // loop_header
              %s1386 = sphi 0, %s1390
              %p1387 = scmp.ge.s32.totalorder %s1386, 1
              %s1391 = sphi %s1381, %s1381
              %s1392 = sphi %s1383, %s1383
            $region592: #{tpu_custom_call.1} parent=588 // loop_header_branch
              %1389 = sbr.rel (%p1387) target = $region596
            $region593: #{tpu_custom_call.1} parent=588 // loop_body
              %v1393 = vld [vmem:[%s1391] sm:%s1384]
              %1394 = vst [vmem:[%s1392] sm:%s1384] %v1393
            $region594: #{tpu_custom_call.1} parent=588 // loop_footer
              %s1390 = sadd.s32 1, %s1386
            $region595: #{tpu_custom_call.1} parent=588 // loop_footer_branch
              %1385 = sbr.rel target = $region591
            $region596: #{tpu_custom_call.1} parent=588 // loop_exit
              _
          $region589: #{tpu_custom_call.1} parent=573 // pred_fallthru
            _
        $region574: #{tpu_custom_call.1} parent=387 // pred_fallthru
          _
        // Predicated region
        $region575: #{tpu_custom_call.1} parent=387 // pred_check
          %p1360 = pneg %p1356
        $region576: #{tpu_custom_call.1} parent=387 // pred_check_branch
          %1362 = sbr.rel (%p1360) target = $region578
        $region577: #{tpu_custom_call.1} parent=387 // pred_region
          %s1363 = sshllo.u32 0, 1
          loop: start=0, step=1, limit=1
          $region579: #{tpu_custom_call.1} parent=577 // loop_pre_header
            _
          $region580: #{tpu_custom_call.1} parent=577 // loop_header
            %s1365 = sphi 0, %s1369
            %p1366 = scmp.ge.s32.totalorder %s1365, 1
            %s1370 = sphi %s1353, %s1353
            %s1371 = sphi %s1354, %s1354
          $region581: #{tpu_custom_call.1} parent=577 // loop_header_branch
            %1368 = sbr.rel (%p1366) target = $region585
          $region582: #{tpu_custom_call.1} parent=577 // loop_body
            %v1372 = vld [vmem:[%s1370] sm:%s1363]
            %1373 = vst [vmem:[%s1371] sm:%s1363] %v1372
          $region583: #{tpu_custom_call.1} parent=577 // loop_footer
            %s1369 = sadd.s32 1, %s1365
          $region584: #{tpu_custom_call.1} parent=577 // loop_footer_branch
            %1364 = sbr.rel target = $region580
          $region585: #{tpu_custom_call.1} parent=577 // loop_exit
            _
        $region578: #{tpu_custom_call.1} parent=387 // pred_fallthru
          _
        // Predicated region
        $region597: #{tpu_custom_call.1} parent=387 // pred_check
          _
        $region598: #{tpu_custom_call.1} parent=387 // pred_check_branch
          %1397 = sbr.rel (0) target = $region600
        $region599: #{tpu_custom_call.1} parent=387 // pred_region
          %1398 = vsyncadd %s1119, 16
        $region600: #{tpu_custom_call.1} parent=387 // pred_fallthru
          _
        %s1399 = sld [smem:[#allocation10 + %s1081]]
        %s1400 = scalar_lea.vmem %s6, %s1399
        %s1401 = scalar_lea.vmem [#allocation3], %s1085
        %p1403 = scmp.lt.u32.totalorder 1, 8
        %p1404 = pneg %p1403
        // Predicated region
        $region601: #{tpu_custom_call.1} parent=387 // pred_check
          _
        $region602: #{tpu_custom_call.1} parent=387 // pred_check_branch
          %1406 = sbr.rel (%p1403) target = $region604
        $region603: #{tpu_custom_call.1} parent=387 // pred_region
          %s1421 = sand.u32 1, 7
          %p1422 = scmp.eq.s32.totalorder %s1421, 0
          %p1423 = pneg %p1422
          // Predicated region
          $region616: #{tpu_custom_call.1} parent=603 // pred_check
            _
          $region617: #{tpu_custom_call.1} parent=603 // pred_check_branch
            %1425 = sbr.rel (%p1422) target = $region619
          $region618: #{tpu_custom_call.1} parent=603 // pred_region
            %s1426 = sand.u32 1, 7
            %s1427 = ssub.s32 1, %s1426
            %s1428 = scalar_lea.vmem %s1400, %s1427
            %s1429 = ssub.s32 1, %s1426
            %s1430 = scalar_lea.vmem %s1401, %s1429 [#allocation3]
            %s1431 = sshllo.u32 0, %s1426
            loop: start=0, step=1, limit=1
            $region620: #{tpu_custom_call.1} parent=618 // loop_pre_header
              _
            $region621: #{tpu_custom_call.1} parent=618 // loop_header
              %s1433 = sphi 0, %s1437
              %p1434 = scmp.ge.s32.totalorder %s1433, 1
              %s1438 = sphi %s1428, %s1428
              %s1439 = sphi %s1430, %s1430
            $region622: #{tpu_custom_call.1} parent=618 // loop_header_branch
              %1436 = sbr.rel (%p1434) target = $region626
            $region623: #{tpu_custom_call.1} parent=618 // loop_body
              %v1440 = vld [vmem:[%s1438] sm:%s1431]
              %1441 = vst [vmem:[%s1439] sm:%s1431] %v1440
            $region624: #{tpu_custom_call.1} parent=618 // loop_footer
              %s1437 = sadd.s32 1, %s1433
            $region625: #{tpu_custom_call.1} parent=618 // loop_footer_branch
              %1432 = sbr.rel target = $region621
            $region626: #{tpu_custom_call.1} parent=618 // loop_exit
              _
          $region619: #{tpu_custom_call.1} parent=603 // pred_fallthru
            _
        $region604: #{tpu_custom_call.1} parent=387 // pred_fallthru
          _
        // Predicated region
        $region605: #{tpu_custom_call.1} parent=387 // pred_check
          %p1407 = pneg %p1403
        $region606: #{tpu_custom_call.1} parent=387 // pred_check_branch
          %1409 = sbr.rel (%p1407) target = $region608
        $region607: #{tpu_custom_call.1} parent=387 // pred_region
          %s1410 = sshllo.u32 0, 1
          loop: start=0, step=1, limit=1
          $region609: #{tpu_custom_call.1} parent=607 // loop_pre_header
            _
          $region610: #{tpu_custom_call.1} parent=607 // loop_header
            %s1412 = sphi 0, %s1416
            %p1413 = scmp.ge.s32.totalorder %s1412, 1
            %s1417 = sphi %s1400, %s1400
            %s1418 = sphi %s1401, %s1401
          $region611: #{tpu_custom_call.1} parent=607 // loop_header_branch
            %1415 = sbr.rel (%p1413) target = $region615
          $region612: #{tpu_custom_call.1} parent=607 // loop_body
            %v1419 = vld [vmem:[%s1417] sm:%s1410]
            %1420 = vst [vmem:[%s1418] sm:%s1410] %v1419
          $region613: #{tpu_custom_call.1} parent=607 // loop_footer
            %s1416 = sadd.s32 1, %s1412
          $region614: #{tpu_custom_call.1} parent=607 // loop_footer_branch
            %1411 = sbr.rel target = $region610
          $region615: #{tpu_custom_call.1} parent=607 // loop_exit
            _
        $region608: #{tpu_custom_call.1} parent=387 // pred_fallthru
          _
        // Predicated region
        $region627: #{tpu_custom_call.1} parent=387 // pred_check
          _
        $region628: #{tpu_custom_call.1} parent=387 // pred_check_branch
          %1444 = sbr.rel (0) target = $region630
        $region629: #{tpu_custom_call.1} parent=387 // pred_region
          %1445 = vsyncadd %s1119, 16
        $region630: #{tpu_custom_call.1} parent=387 // pred_fallthru
          _
        %s1446 = sld [smem:[#allocation10 + %s1098]]
        %s1447 = scalar_lea.vmem %s6, %s1446
        %s1448 = scalar_lea.vmem [#allocation3], %s1102
        %p1450 = scmp.lt.u32.totalorder 1, 8
        %p1451 = pneg %p1450
        // Predicated region
        $region631: #{tpu_custom_call.1} parent=387 // pred_check
          _
        $region632: #{tpu_custom_call.1} parent=387 // pred_check_branch
          %1453 = sbr.rel (%p1450) target = $region634
        $region633: #{tpu_custom_call.1} parent=387 // pred_region
          %s1468 = sand.u32 1, 7
          %p1469 = scmp.eq.s32.totalorder %s1468, 0
          %p1470 = pneg %p1469
          // Predicated region
          $region646: #{tpu_custom_call.1} parent=633 // pred_check
            _
          $region647: #{tpu_custom_call.1} parent=633 // pred_check_branch
            %1472 = sbr.rel (%p1469) target = $region649
          $region648: #{tpu_custom_call.1} parent=633 // pred_region
            %s1473 = sand.u32 1, 7
            %s1474 = ssub.s32 1, %s1473
            %s1475 = scalar_lea.vmem %s1447, %s1474
            %s1476 = ssub.s32 1, %s1473
            %s1477 = scalar_lea.vmem %s1448, %s1476 [#allocation3]
            %s1478 = sshllo.u32 0, %s1473
            loop: start=0, step=1, limit=1
            $region650: #{tpu_custom_call.1} parent=648 // loop_pre_header
              _
            $region651: #{tpu_custom_call.1} parent=648 // loop_header
              %s1480 = sphi 0, %s1484
              %p1481 = scmp.ge.s32.totalorder %s1480, 1
              %s1485 = sphi %s1475, %s1475
              %s1486 = sphi %s1477, %s1477
            $region652: #{tpu_custom_call.1} parent=648 // loop_header_branch
              %1483 = sbr.rel (%p1481) target = $region656
            $region653: #{tpu_custom_call.1} parent=648 // loop_body
              %v1487 = vld [vmem:[%s1485] sm:%s1478]
              %1488 = vst [vmem:[%s1486] sm:%s1478] %v1487
            $region654: #{tpu_custom_call.1} parent=648 // loop_footer
              %s1484 = sadd.s32 1, %s1480
            $region655: #{tpu_custom_call.1} parent=648 // loop_footer_branch
              %1479 = sbr.rel target = $region651
            $region656: #{tpu_custom_call.1} parent=648 // loop_exit
              _
          $region649: #{tpu_custom_call.1} parent=633 // pred_fallthru
            _
        $region634: #{tpu_custom_call.1} parent=387 // pred_fallthru
          _
        // Predicated region
        $region635: #{tpu_custom_call.1} parent=387 // pred_check
          %p1454 = pneg %p1450
        $region636: #{tpu_custom_call.1} parent=387 // pred_check_branch
          %1456 = sbr.rel (%p1454) target = $region638
        $region637: #{tpu_custom_call.1} parent=387 // pred_region
          %s1457 = sshllo.u32 0, 1
          loop: start=0, step=1, limit=1
          $region639: #{tpu_custom_call.1} parent=637 // loop_pre_header
            _
          $region640: #{tpu_custom_call.1} parent=637 // loop_header
            %s1459 = sphi 0, %s1463
            %p1460 = scmp.ge.s32.totalorder %s1459, 1
            %s1464 = sphi %s1447, %s1447
            %s1465 = sphi %s1448, %s1448
          $region641: #{tpu_custom_call.1} parent=637 // loop_header_branch
            %1462 = sbr.rel (%p1460) target = $region645
          $region642: #{tpu_custom_call.1} parent=637 // loop_body
            %v1466 = vld [vmem:[%s1464] sm:%s1457]
            %1467 = vst [vmem:[%s1465] sm:%s1457] %v1466
          $region643: #{tpu_custom_call.1} parent=637 // loop_footer
            %s1463 = sadd.s32 1, %s1459
          $region644: #{tpu_custom_call.1} parent=637 // loop_footer_branch
            %1458 = sbr.rel target = $region640
          $region645: #{tpu_custom_call.1} parent=637 // loop_exit
            _
        $region638: #{tpu_custom_call.1} parent=387 // pred_fallthru
          _
        // Predicated region
        $region657: #{tpu_custom_call.1} parent=387 // pred_check
          _
        $region658: #{tpu_custom_call.1} parent=387 // pred_check_branch
          %1491 = sbr.rel (0) target = $region660
        $region659: #{tpu_custom_call.1} parent=387 // pred_region
          %1492 = vsyncadd %s1119, 16
        $region660: #{tpu_custom_call.1} parent=387 // pred_fallthru
          _
        %s1493 = sld [smem:[#allocation11 + %s977]]
        %s1494 = smul.addr %s1493, 16
        %s1495 = scalar_lea.hbm %s5, %s1494
        %s1496 = scalar_lea.vmem [#allocation4], %s981
        %s1497 = sadd.s32 2, %s983
        %s1498 = scalar_lea.sflag [#allocation7], %s1497
        // Predicated region
        $region661: #{tpu_custom_call.1} parent=387 // pred_check
          _
        $region662: #{tpu_custom_call.1} parent=387 // pred_check_branch
          %1500 = sbr.rel target = $region664
        $region663: #{tpu_custom_call.1} parent=387 // pred_region
          %1501 = sst [smem:[#allocation16]] [#allocation113]
          %1502 = sst [smem:[#allocation17]] [#allocation112]
        $region664: #{tpu_custom_call.1} parent=387 // pred_fallthru
          _
        %1504 = shalt.err (0)
        %s1506 = sshll.u32 %s1496, 4
        %s1507 = int_to_ptr.vmem [resolvable:$true] %s1506
        %1509 = dma.hbm_to_vmem [thread:$0]  %s1495, 16, %s1507, %s1498
        %s1510 = sld [smem:[#allocation11 + %s996]]
        %s1511 = smul.addr %s1510, 16
        %s1512 = scalar_lea.hbm %s5, %s1511
        %s1513 = scalar_lea.vmem [#allocation4], %s1000
        // Predicated region
        $region665: #{tpu_custom_call.1} parent=387 // pred_check
          _
        $region666: #{tpu_custom_call.1} parent=387 // pred_check_branch
          %1515 = sbr.rel target = $region668
        $region667: #{tpu_custom_call.1} parent=387 // pred_region
          %1516 = sst [smem:[#allocation16]] [#allocation115]
          %1517 = sst [smem:[#allocation17]] [#allocation114]
        $region668: #{tpu_custom_call.1} parent=387 // pred_fallthru
          _
        %1519 = shalt.err (0)
        %s1521 = sshll.u32 %s1513, 4
        %s1522 = int_to_ptr.vmem [resolvable:$true] %s1521
        %1524 = dma.hbm_to_vmem [thread:$0]  %s1512, 16, %s1522, %s1498
        %s1525 = sld [smem:[#allocation11 + %s1013]]
        %s1526 = smul.addr %s1525, 16
        %s1527 = scalar_lea.hbm %s5, %s1526
        %s1528 = scalar_lea.vmem [#allocation4], %s1017
        // Predicated region
        $region669: #{tpu_custom_call.1} parent=387 // pred_check
          _
        $region670: #{tpu_custom_call.1} parent=387 // pred_check_branch
          %1530 = sbr.rel target = $region672
        $region671: #{tpu_custom_call.1} parent=387 // pred_region
          %1531 = sst [smem:[#allocation16]] [#allocation117]
          %1532 = sst [smem:[#allocation17]] [#allocation116]
        $region672: #{tpu_custom_call.1} parent=387 // pred_fallthru
          _
        %1534 = shalt.err (0)
        %s1536 = sshll.u32 %s1528, 4
        %s1537 = int_to_ptr.vmem [resolvable:$true] %s1536
        %1539 = dma.hbm_to_vmem [thread:$0]  %s1527, 16, %s1537, %s1498
        %s1540 = sld [smem:[#allocation11 + %s1030]]
        %s1541 = smul.addr %s1540, 16
        %s1542 = scalar_lea.hbm %s5, %s1541
        %s1543 = scalar_lea.vmem [#allocation4], %s1034
        // Predicated region
        $region673: #{tpu_custom_call.1} parent=387 // pred_check
          _
        $region674: #{tpu_custom_call.1} parent=387 // pred_check_branch
          %1545 = sbr.rel target = $region676
        $region675: #{tpu_custom_call.1} parent=387 // pred_region
          %1546 = sst [smem:[#allocation16]] [#allocation119]
          %1547 = sst [smem:[#allocation17]] [#allocation118]
        $region676: #{tpu_custom_call.1} parent=387 // pred_fallthru
          _
        %1549 = shalt.err (0)
        %s1551 = sshll.u32 %s1543, 4
        %s1552 = int_to_ptr.vmem [resolvable:$true] %s1551
        %1554 = dma.hbm_to_vmem [thread:$0]  %s1542, 16, %s1552, %s1498
        %s1555 = sld [smem:[#allocation11 + %s1047]]
        %s1556 = smul.addr %s1555, 16
        %s1557 = scalar_lea.hbm %s5, %s1556
        %s1558 = scalar_lea.vmem [#allocation4], %s1051
        // Predicated region
        $region677: #{tpu_custom_call.1} parent=387 // pred_check
          _
        $region678: #{tpu_custom_call.1} parent=387 // pred_check_branch
          %1560 = sbr.rel target = $region680
        $region679: #{tpu_custom_call.1} parent=387 // pred_region
          %1561 = sst [smem:[#allocation16]] [#allocation121]
          %1562 = sst [smem:[#allocation17]] [#allocation120]
        $region680: #{tpu_custom_call.1} parent=387 // pred_fallthru
          _
        %1564 = shalt.err (0)
        %s1566 = sshll.u32 %s1558, 4
        %s1567 = int_to_ptr.vmem [resolvable:$true] %s1566
        %1569 = dma.hbm_to_vmem [thread:$0]  %s1557, 16, %s1567, %s1498
        %s1570 = sld [smem:[#allocation11 + %s1064]]
        %s1571 = smul.addr %s1570, 16
        %s1572 = scalar_lea.hbm %s5, %s1571
        %s1573 = scalar_lea.vmem [#allocation4], %s1068
        // Predicated region
        $region681: #{tpu_custom_call.1} parent=387 // pred_check
          _
        $region682: #{tpu_custom_call.1} parent=387 // pred_check_branch
          %1575 = sbr.rel target = $region684
        $region683: #{tpu_custom_call.1} parent=387 // pred_region
          %1576 = sst [smem:[#allocation16]] [#allocation123]
          %1577 = sst [smem:[#allocation17]] [#allocation122]
        $region684: #{tpu_custom_call.1} parent=387 // pred_fallthru
          _
        %1579 = shalt.err (0)
        %s1581 = sshll.u32 %s1573, 4
        %s1582 = int_to_ptr.vmem [resolvable:$true] %s1581
        %1584 = dma.hbm_to_vmem [thread:$0]  %s1572, 16, %s1582, %s1498
        %s1585 = sld [smem:[#allocation11 + %s1081]]
        %s1586 = smul.addr %s1585, 16
        %s1587 = scalar_lea.hbm %s5, %s1586
        %s1588 = scalar_lea.vmem [#allocation4], %s1085
        // Predicated region
        $region685: #{tpu_custom_call.1} parent=387 // pred_check
          _
        $region686: #{tpu_custom_call.1} parent=387 // pred_check_branch
          %1590 = sbr.rel target = $region688
        $region687: #{tpu_custom_call.1} parent=387 // pred_region
          %1591 = sst [smem:[#allocation16]] [#allocation125]
          %1592 = sst [smem:[#allocation17]] [#allocation124]
        $region688: #{tpu_custom_call.1} parent=387 // pred_fallthru
          _
        %1594 = shalt.err (0)
        %s1596 = sshll.u32 %s1588, 4
        %s1597 = int_to_ptr.vmem [resolvable:$true] %s1596
        %1599 = dma.hbm_to_vmem [thread:$0]  %s1587, 16, %s1597, %s1498
        %s1600 = sld [smem:[#allocation11 + %s1098]]
        %s1601 = smul.addr %s1600, 16
        %s1602 = scalar_lea.hbm %s5, %s1601
        %s1603 = scalar_lea.vmem [#allocation4], %s1102
        // Predicated region
        $region689: #{tpu_custom_call.1} parent=387 // pred_check
          _
        $region690: #{tpu_custom_call.1} parent=387 // pred_check_branch
          %1605 = sbr.rel target = $region692
        $region691: #{tpu_custom_call.1} parent=387 // pred_region
          %1606 = sst [smem:[#allocation16]] [#allocation127]
          %1607 = sst [smem:[#allocation17]] [#allocation126]
        $region692: #{tpu_custom_call.1} parent=387 // pred_fallthru
          _
        %1609 = shalt.err (0)
        %s1611 = sshll.u32 %s1603, 4
        %s1612 = int_to_ptr.vmem [resolvable:$true] %s1611
        %1614 = dma.hbm_to_vmem [thread:$0]  %s1602, 16, %s1612, %s1498
        %s1615 = sld [smem:[#allocation12 + %s977]]
        %s1616 = smul.addr %s1615, 16
        %s1617 = scalar_lea.hbm %s5, %s1616
        %s1618 = scalar_lea.vmem [#allocation5], %s981
        %s1619 = sadd.s32 3, %s983
        %s1620 = scalar_lea.sflag [#allocation7], %s1619
        // Predicated region
        $region693: #{tpu_custom_call.1} parent=387 // pred_check
          _
        $region694: #{tpu_custom_call.1} parent=387 // pred_check_branch
          %1622 = sbr.rel target = $region696
        $region695: #{tpu_custom_call.1} parent=387 // pred_region
          %1623 = sst [smem:[#allocation16]] [#allocation129]
          %1624 = sst [smem:[#allocation17]] [#allocation128]
        $region696: #{tpu_custom_call.1} parent=387 // pred_fallthru
          _
        %1626 = shalt.err (0)
        %s1628 = sshll.u32 %s1618, 4
        %s1629 = int_to_ptr.vmem [resolvable:$true] %s1628
        %1631 = dma.hbm_to_vmem [thread:$0]  %s1617, 16, %s1629, %s1620
        %s1632 = sld [smem:[#allocation12 + %s996]]
        %s1633 = smul.addr %s1632, 16
        %s1634 = scalar_lea.hbm %s5, %s1633
        %s1635 = scalar_lea.vmem [#allocation5], %s1000
        // Predicated region
        $region697: #{tpu_custom_call.1} parent=387 // pred_check
          _
        $region698: #{tpu_custom_call.1} parent=387 // pred_check_branch
          %1637 = sbr.rel target = $region700
        $region699: #{tpu_custom_call.1} parent=387 // pred_region
          %1638 = sst [smem:[#allocation16]] [#allocation131]
          %1639 = sst [smem:[#allocation17]] [#allocation130]
        $region700: #{tpu_custom_call.1} parent=387 // pred_fallthru
          _
        %1641 = shalt.err (0)
        %s1643 = sshll.u32 %s1635, 4
        %s1644 = int_to_ptr.vmem [resolvable:$true] %s1643
        %1646 = dma.hbm_to_vmem [thread:$0]  %s1634, 16, %s1644, %s1620
        %s1647 = sld [smem:[#allocation12 + %s1013]]
        %s1648 = smul.addr %s1647, 16
        %s1649 = scalar_lea.hbm %s5, %s1648
        %s1650 = scalar_lea.vmem [#allocation5], %s1017
        // Predicated region
        $region701: #{tpu_custom_call.1} parent=387 // pred_check
          _
        $region702: #{tpu_custom_call.1} parent=387 // pred_check_branch
          %1652 = sbr.rel target = $region704
        $region703: #{tpu_custom_call.1} parent=387 // pred_region
          %1653 = sst [smem:[#allocation16]] [#allocation133]
          %1654 = sst [smem:[#allocation17]] [#allocation132]
        $region704: #{tpu_custom_call.1} parent=387 // pred_fallthru
          _
        %1656 = shalt.err (0)
        %s1658 = sshll.u32 %s1650, 4
        %s1659 = int_to_ptr.vmem [resolvable:$true] %s1658
        %1661 = dma.hbm_to_vmem [thread:$0]  %s1649, 16, %s1659, %s1620
        %s1662 = sld [smem:[#allocation12 + %s1030]]
        %s1663 = smul.addr %s1662, 16
        %s1664 = scalar_lea.hbm %s5, %s1663
        %s1665 = scalar_lea.vmem [#allocation5], %s1034
        // Predicated region
        $region705: #{tpu_custom_call.1} parent=387 // pred_check
          _
        $region706: #{tpu_custom_call.1} parent=387 // pred_check_branch
          %1667 = sbr.rel target = $region708
        $region707: #{tpu_custom_call.1} parent=387 // pred_region
          %1668 = sst [smem:[#allocation16]] [#allocation135]
          %1669 = sst [smem:[#allocation17]] [#allocation134]
        $region708: #{tpu_custom_call.1} parent=387 // pred_fallthru
          _
        %1671 = shalt.err (0)
        %s1673 = sshll.u32 %s1665, 4
        %s1674 = int_to_ptr.vmem [resolvable:$true] %s1673
        %1676 = dma.hbm_to_vmem [thread:$0]  %s1664, 16, %s1674, %s1620
        %s1677 = sld [smem:[#allocation12 + %s1047]]
        %s1678 = smul.addr %s1677, 16
        %s1679 = scalar_lea.hbm %s5, %s1678
        %s1680 = scalar_lea.vmem [#allocation5], %s1051
        // Predicated region
        $region709: #{tpu_custom_call.1} parent=387 // pred_check
          _
        $region710: #{tpu_custom_call.1} parent=387 // pred_check_branch
          %1682 = sbr.rel target = $region712
        $region711: #{tpu_custom_call.1} parent=387 // pred_region
          %1683 = sst [smem:[#allocation16]] [#allocation137]
          %1684 = sst [smem:[#allocation17]] [#allocation136]
        $region712: #{tpu_custom_call.1} parent=387 // pred_fallthru
          _
        %1686 = shalt.err (0)
        %s1688 = sshll.u32 %s1680, 4
        %s1689 = int_to_ptr.vmem [resolvable:$true] %s1688
        %1691 = dma.hbm_to_vmem [thread:$0]  %s1679, 16, %s1689, %s1620
        %s1692 = sld [smem:[#allocation12 + %s1064]]
        %s1693 = smul.addr %s1692, 16
        %s1694 = scalar_lea.hbm %s5, %s1693
        %s1695 = scalar_lea.vmem [#allocation5], %s1068
        // Predicated region
        $region713: #{tpu_custom_call.1} parent=387 // pred_check
          _
        $region714: #{tpu_custom_call.1} parent=387 // pred_check_branch
          %1697 = sbr.rel target = $region716
        $region715: #{tpu_custom_call.1} parent=387 // pred_region
          %1698 = sst [smem:[#allocation16]] [#allocation139]
          %1699 = sst [smem:[#allocation17]] [#allocation138]
        $region716: #{tpu_custom_call.1} parent=387 // pred_fallthru
          _
        %1701 = shalt.err (0)
        %s1703 = sshll.u32 %s1695, 4
        %s1704 = int_to_ptr.vmem [resolvable:$true] %s1703
        %1706 = dma.hbm_to_vmem [thread:$0]  %s1694, 16, %s1704, %s1620
        %s1707 = sld [smem:[#allocation12 + %s1081]]
        %s1708 = smul.addr %s1707, 16
        %s1709 = scalar_lea.hbm %s5, %s1708
        %s1710 = scalar_lea.vmem [#allocation5], %s1085
        // Predicated region
        $region717: #{tpu_custom_call.1} parent=387 // pred_check
          _
        $region718: #{tpu_custom_call.1} parent=387 // pred_check_branch
          %1712 = sbr.rel target = $region720
        $region719: #{tpu_custom_call.1} parent=387 // pred_region
          %1713 = sst [smem:[#allocation16]] [#allocation141]
          %1714 = sst [smem:[#allocation17]] [#allocation140]
        $region720: #{tpu_custom_call.1} parent=387 // pred_fallthru
          _
        %1716 = shalt.err (0)
        %s1718 = sshll.u32 %s1710, 4
        %s1719 = int_to_ptr.vmem [resolvable:$true] %s1718
        %1721 = dma.hbm_to_vmem [thread:$0]  %s1709, 16, %s1719, %s1620
        %s1722 = sld [smem:[#allocation12 + %s1098]]
        %s1723 = smul.addr %s1722, 16
        %s1724 = scalar_lea.hbm %s5, %s1723
        %s1725 = scalar_lea.vmem [#allocation5], %s1102
        // Predicated region
        $region721: #{tpu_custom_call.1} parent=387 // pred_check
          _
        $region722: #{tpu_custom_call.1} parent=387 // pred_check_branch
          %1727 = sbr.rel target = $region724
        $region723: #{tpu_custom_call.1} parent=387 // pred_region
          %1728 = sst [smem:[#allocation16]] [#allocation143]
          %1729 = sst [smem:[#allocation17]] [#allocation142]
        $region724: #{tpu_custom_call.1} parent=387 // pred_fallthru
          _
        %1731 = shalt.err (0)
        %s1733 = sshll.u32 %s1725, 4
        %s1734 = int_to_ptr.vmem [resolvable:$true] %s1733
        %1736 = dma.hbm_to_vmem [thread:$0]  %s1724, 16, %s1734, %s1620
        %s1737 = sld [smem:[#allocation13 + %s977]]
        %s1738 = smul.addr %s1737, 16
        %s1739 = scalar_lea.hbm %s5, %s1738
        %s1740 = scalar_lea.vmem [#allocation6], %s981
        %s1741 = sadd.s32 4, %s983
        %s1742 = scalar_lea.sflag [#allocation7], %s1741
        // Predicated region
        $region725: #{tpu_custom_call.1} parent=387 // pred_check
          _
        $region726: #{tpu_custom_call.1} parent=387 // pred_check_branch
          %1744 = sbr.rel target = $region728
        $region727: #{tpu_custom_call.1} parent=387 // pred_region
          %1745 = sst [smem:[#allocation16]] [#allocation145]
          %1746 = sst [smem:[#allocation17]] [#allocation144]
        $region728: #{tpu_custom_call.1} parent=387 // pred_fallthru
          _
        %1748 = shalt.err (0)
        %s1750 = sshll.u32 %s1740, 4
        %s1751 = int_to_ptr.vmem [resolvable:$true] %s1750
        %1753 = dma.hbm_to_vmem [thread:$0]  %s1739, 16, %s1751, %s1742
        %s1754 = sld [smem:[#allocation13 + %s996]]
        %s1755 = smul.addr %s1754, 16
        %s1756 = scalar_lea.hbm %s5, %s1755
        %s1757 = scalar_lea.vmem [#allocation6], %s1000
        // Predicated region
        $region729: #{tpu_custom_call.1} parent=387 // pred_check
          _
        $region730: #{tpu_custom_call.1} parent=387 // pred_check_branch
          %1759 = sbr.rel target = $region732
        $region731: #{tpu_custom_call.1} parent=387 // pred_region
          %1760 = sst [smem:[#allocation16]] [#allocation147]
          %1761 = sst [smem:[#allocation17]] [#allocation146]
        $region732: #{tpu_custom_call.1} parent=387 // pred_fallthru
          _
        %1763 = shalt.err (0)
        %s1765 = sshll.u32 %s1757, 4
        %s1766 = int_to_ptr.vmem [resolvable:$true] %s1765
        %1768 = dma.hbm_to_vmem [thread:$0]  %s1756, 16, %s1766, %s1742
        %s1769 = sld [smem:[#allocation13 + %s1013]]
        %s1770 = smul.addr %s1769, 16
        %s1771 = scalar_lea.hbm %s5, %s1770
        %s1772 = scalar_lea.vmem [#allocation6], %s1017
        // Predicated region
        $region733: #{tpu_custom_call.1} parent=387 // pred_check
          _
        $region734: #{tpu_custom_call.1} parent=387 // pred_check_branch
          %1774 = sbr.rel target = $region736
        $region735: #{tpu_custom_call.1} parent=387 // pred_region
          %1775 = sst [smem:[#allocation16]] [#allocation149]
          %1776 = sst [smem:[#allocation17]] [#allocation148]
        $region736: #{tpu_custom_call.1} parent=387 // pred_fallthru
          _
        %1778 = shalt.err (0)
        %s1780 = sshll.u32 %s1772, 4
        %s1781 = int_to_ptr.vmem [resolvable:$true] %s1780
        %1783 = dma.hbm_to_vmem [thread:$0]  %s1771, 16, %s1781, %s1742
        %s1784 = sld [smem:[#allocation13 + %s1030]]
        %s1785 = smul.addr %s1784, 16
        %s1786 = scalar_lea.hbm %s5, %s1785
        %s1787 = scalar_lea.vmem [#allocation6], %s1034
        // Predicated region
        $region737: #{tpu_custom_call.1} parent=387 // pred_check
          _
        $region738: #{tpu_custom_call.1} parent=387 // pred_check_branch
          %1789 = sbr.rel target = $region740
        $region739: #{tpu_custom_call.1} parent=387 // pred_region
          %1790 = sst [smem:[#allocation16]] [#allocation151]
          %1791 = sst [smem:[#allocation17]] [#allocation150]
        $region740: #{tpu_custom_call.1} parent=387 // pred_fallthru
          _
        %1793 = shalt.err (0)
        %s1795 = sshll.u32 %s1787, 4
        %s1796 = int_to_ptr.vmem [resolvable:$true] %s1795
        %1798 = dma.hbm_to_vmem [thread:$0]  %s1786, 16, %s1796, %s1742
        %s1799 = sld [smem:[#allocation13 + %s1047]]
        %s1800 = smul.addr %s1799, 16
        %s1801 = scalar_lea.hbm %s5, %s1800
        %s1802 = scalar_lea.vmem [#allocation6], %s1051
        // Predicated region
        $region741: #{tpu_custom_call.1} parent=387 // pred_check
          _
        $region742: #{tpu_custom_call.1} parent=387 // pred_check_branch
          %1804 = sbr.rel target = $region744
        $region743: #{tpu_custom_call.1} parent=387 // pred_region
          %1805 = sst [smem:[#allocation16]] [#allocation153]
          %1806 = sst [smem:[#allocation17]] [#allocation152]
        $region744: #{tpu_custom_call.1} parent=387 // pred_fallthru
          _
        %1808 = shalt.err (0)
        %s1810 = sshll.u32 %s1802, 4
        %s1811 = int_to_ptr.vmem [resolvable:$true] %s1810
        %1813 = dma.hbm_to_vmem [thread:$0]  %s1801, 16, %s1811, %s1742
        %s1814 = sld [smem:[#allocation13 + %s1064]]
        %s1815 = smul.addr %s1814, 16
        %s1816 = scalar_lea.hbm %s5, %s1815
        %s1817 = scalar_lea.vmem [#allocation6], %s1068
        // Predicated region
        $region745: #{tpu_custom_call.1} parent=387 // pred_check
          _
        $region746: #{tpu_custom_call.1} parent=387 // pred_check_branch
          %1819 = sbr.rel target = $region748
        $region747: #{tpu_custom_call.1} parent=387 // pred_region
          %1820 = sst [smem:[#allocation16]] [#allocation155]
          %1821 = sst [smem:[#allocation17]] [#allocation154]
        $region748: #{tpu_custom_call.1} parent=387 // pred_fallthru
          _
        %1823 = shalt.err (0)
        %s1825 = sshll.u32 %s1817, 4
        %s1826 = int_to_ptr.vmem [resolvable:$true] %s1825
        %1828 = dma.hbm_to_vmem [thread:$0]  %s1816, 16, %s1826, %s1742
        %s1829 = sld [smem:[#allocation13 + %s1081]]
        %s1830 = smul.addr %s1829, 16
        %s1831 = scalar_lea.hbm %s5, %s1830
        %s1832 = scalar_lea.vmem [#allocation6], %s1085
        // Predicated region
        $region749: #{tpu_custom_call.1} parent=387 // pred_check
          _
        $region750: #{tpu_custom_call.1} parent=387 // pred_check_branch
          %1834 = sbr.rel target = $region752
        $region751: #{tpu_custom_call.1} parent=387 // pred_region
          %1835 = sst [smem:[#allocation16]] [#allocation157]
          %1836 = sst [smem:[#allocation17]] [#allocation156]
        $region752: #{tpu_custom_call.1} parent=387 // pred_fallthru
          _
        %1838 = shalt.err (0)
        %s1840 = sshll.u32 %s1832, 4
        %s1841 = int_to_ptr.vmem [resolvable:$true] %s1840
        %1843 = dma.hbm_to_vmem [thread:$0]  %s1831, 16, %s1841, %s1742
        %s1844 = sld [smem:[#allocation13 + %s1098]]
        %s1845 = smul.addr %s1844, 16
        %s1846 = scalar_lea.hbm %s5, %s1845
        %s1847 = scalar_lea.vmem [#allocation6], %s1102
        // Predicated region
        $region753: #{tpu_custom_call.1} parent=387 // pred_check
          _
        $region754: #{tpu_custom_call.1} parent=387 // pred_check_branch
          %1849 = sbr.rel target = $region756
        $region755: #{tpu_custom_call.1} parent=387 // pred_region
          %1850 = sst [smem:[#allocation16]] [#allocation159]
          %1851 = sst [smem:[#allocation17]] [#allocation158]
        $region756: #{tpu_custom_call.1} parent=387 // pred_fallthru
          _
        %1853 = shalt.err (0)
        %s1855 = sshll.u32 %s1847, 4
        %s1856 = int_to_ptr.vmem [resolvable:$true] %s1855
        %1858 = dma.hbm_to_vmem [thread:$0]  %s1846, 16, %s1856, %s1742
      $region388: #{tpu_custom_call.1} parent=11 // pred_fallthru
        _
      %s1859 = smul.u32 %s84, 5
      %s1860 = scalar_lea.sflag [#allocation7], %s1859
      %1862 = dma.done %s1860, 16
      %1864 = dma.done %s1860, 16
      %1866 = dma.done %s1860, 16
      %1868 = dma.done %s1860, 16
      %1870 = dma.done %s1860, 16
      %1872 = dma.done %s1860, 16
      %1874 = dma.done %s1860, 16
      %1876 = dma.done %s1860, 16
      %s1877 = sadd.s32 1, %s1859
      %s1878 = scalar_lea.sflag [#allocation7], %s1877
      %1880 = dma.done %s1878, 16
      %1882 = dma.done %s1878, 16
      %1884 = dma.done %s1878, 16
      %1886 = dma.done %s1878, 16
      %1888 = dma.done %s1878, 16
      %1890 = dma.done %s1878, 16
      %1892 = dma.done %s1878, 16
      %1894 = dma.done %s1878, 16
      %s1895 = sadd.s32 2, %s1859
      %s1896 = scalar_lea.sflag [#allocation7], %s1895
      %1898 = dma.done %s1896, 16
      %1900 = dma.done %s1896, 16
      %1902 = dma.done %s1896, 16
      %1904 = dma.done %s1896, 16
      %1906 = dma.done %s1896, 16
      %1908 = dma.done %s1896, 16
      %1910 = dma.done %s1896, 16
      %1912 = dma.done %s1896, 16
      %s1913 = sadd.s32 3, %s1859
      %s1914 = scalar_lea.sflag [#allocation7], %s1913
      %1916 = dma.done %s1914, 16
      %1918 = dma.done %s1914, 16
      %1920 = dma.done %s1914, 16
      %1922 = dma.done %s1914, 16
      %1924 = dma.done %s1914, 16
      %1926 = dma.done %s1914, 16
      %1928 = dma.done %s1914, 16
      %1930 = dma.done %s1914, 16
      %s1931 = sadd.s32 4, %s1859
      %s1932 = scalar_lea.sflag [#allocation7], %s1931
      %1934 = dma.done %s1932, 16
      %1936 = dma.done %s1932, 16
      %1938 = dma.done %s1932, 16
      %1940 = dma.done %s1932, 16
      %1942 = dma.done %s1932, 16
      %1944 = dma.done %s1932, 16
      %1946 = dma.done %s1932, 16
      %1948 = dma.done %s1932, 16
      %s1949 = smul.u32 %s84, 8
      %s1950 = scalar_lea.vmem [#allocation2], %s1949
      %v1951 = vld [vmem:[%s1950] sm:$0xff]
      %s1952 = scalar_lea.vmem [#allocation3], %s1949
      %v1953 = vld [vmem:[%s1952] sm:$0xff]
      %v1954 = vadd.f32 %v1951, %v1953
      %s1955 = scalar_lea.vmem [#allocation4], %s1949
      %v1956 = vld [vmem:[%s1955] sm:$0xff]
      %v1957 = vsub.f32 %v1954, %v1956
      %s1958 = scalar_lea.vmem [#allocation5], %s1949
      %v1959 = vld [vmem:[%s1958] sm:$0xff]
      %v1960 = vadd.f32 %v1959, %v1953
      %s1961 = scalar_lea.vmem [#allocation6], %s1949
      %v1962 = vld [vmem:[%s1961] sm:$0xff]
      %v1963 = vsub.f32 %v1960, %v1962
      %v1964 = vand.u32 2147483647, %v1957
      %v1965 = vand.u32 2147483647, %v1963
      %v1966 = vsub.f32 %v1964, %v1965
      %1967 = vadd.xlane.f32.xlu0 %v1966
      %v1968 = vpop.xlane.xlu0 %1967
      %v1969 = vadd.f32 %v1968, 3.0
      %v1970 = vmax.f32 %v1969, 0.0
      %vm1971 = vcmask 7168
      %1972 = vst.msk [vmem:[%s72] sm:$0xff] %vm1971, %v1970
      %p1973 = scmp.lt.s32.totalorder %s33, 2
      %s1974 = scalar_select %p1973, %s33, 2
      %s1975 = smul.addr %s1974, 8
      %s1976 = scalar_lea.vmem %s7, %s1975
      // Predicated region
      $region757: #{tpu_custom_call.1} parent=11 // pred_check
        %p1977 = pneg %p48
      $region758: #{tpu_custom_call.1} parent=11 // pred_check_branch
        %1979 = sbr.rel (%p1977) target = $region760
      $region759: #{tpu_custom_call.1} parent=11 // pred_region
        _
      $region760: #{tpu_custom_call.1} parent=11 // pred_fallthru
        _
    $region12: #{tpu_custom_call.1} parent=5 // pred_fallthru
      _
    %p1980 = scmp.le.s32.totalorder 1, %s33
    // Predicated region
    $region761: #{tpu_custom_call.1} parent=5 // pred_check
      %p1981 = pneg %p1980
    $region762: #{tpu_custom_call.1} parent=5 // pred_check_branch
      %1983 = sbr.rel (%p1981) target = $region764
    $region763: #{tpu_custom_call.1} parent=5 // pred_region
      %s1984 = ssub.s32 %s33, 1
      // Predicated region
      $region765: #{tpu_custom_call.1} parent=763 // pred_check
        %p1985 = pneg %p54
      $region766: #{tpu_custom_call.1} parent=763 // pred_check_branch
        %1987 = sbr.rel (%p1985) target = $region768
      $region767: #{tpu_custom_call.1} parent=763 // pred_region
        %p1988 = scmp.lt.s32.totalorder %s38, 2
        %s1989 = scalar_select %p1988, %s38, 2
        %s1990 = smul.addr %s1989, 8
        %s1991 = scalar_lea.vmem %s7, %s1990
      $region768: #{tpu_custom_call.1} parent=763 // pred_fallthru
        _
    $region764: #{tpu_custom_call.1} parent=5 // pred_fallthru
      _
  $region6: #{tpu_custom_call.1} parent=0 // loop_footer
    %s37 = sadd.s32 1, %s33
  $region7: #{tpu_custom_call.1} parent=0 // loop_footer_branch
    %32 = sbr.rel target = $region3
  $region8: #{tpu_custom_call.1} parent=0 // loop_exit
    _
  %1992 = vsyncmov [#allocation7]
  %s1993 = vpop.sfrf %1992
  %p1994 = scmp.eq.s32.totalorder %s1993, 0
  %p1995 = pneg %p1994
  %1997 = shalt.err (%p1995)
  %s1998 = scalar_lea.sflag [#allocation7], 1
  %1999 = vsyncmov %s1998
  %s2000 = vpop.sfrf %1999
  %p2001 = scmp.eq.s32.totalorder %s2000, 0
  %p2002 = pneg %p2001
  %2004 = shalt.err (%p2002)
  %s2005 = scalar_lea.sflag [#allocation7], 2
  %2006 = vsyncmov %s2005
  %s2007 = vpop.sfrf %2006
  %p2008 = scmp.eq.s32.totalorder %s2007, 0
  %p2009 = pneg %p2008
  %2011 = shalt.err (%p2009)
  %s2012 = scalar_lea.sflag [#allocation7], 3
  %2013 = vsyncmov %s2012
  %s2014 = vpop.sfrf %2013
  %p2015 = scmp.eq.s32.totalorder %s2014, 0
  %p2016 = pneg %p2015
  %2018 = shalt.err (%p2016)
  %s2019 = scalar_lea.sflag [#allocation7], 4
  %2020 = vsyncmov %s2019
  %s2021 = vpop.sfrf %2020
  %p2022 = scmp.eq.s32.totalorder %s2021, 0
  %p2023 = pneg %p2022
  %2025 = shalt.err (%p2023)
  %s2026 = scalar_lea.sflag [#allocation7], 5
  %2027 = vsyncmov %s2026
  %s2028 = vpop.sfrf %2027
  %p2029 = scmp.eq.s32.totalorder %s2028, 0
  %p2030 = pneg %p2029
  %2032 = shalt.err (%p2030)
  %s2033 = scalar_lea.sflag [#allocation7], 6
  %2034 = vsyncmov %s2033
  %s2035 = vpop.sfrf %2034
  %p2036 = scmp.eq.s32.totalorder %s2035, 0
  %p2037 = pneg %p2036
  %2039 = shalt.err (%p2037)
  %s2040 = scalar_lea.sflag [#allocation7], 7
  %2041 = vsyncmov %s2040
  %s2042 = vpop.sfrf %2041
  %p2043 = scmp.eq.s32.totalorder %s2042, 0
  %p2044 = pneg %p2043
  %2046 = shalt.err (%p2044)
  %s2047 = scalar_lea.sflag [#allocation7], 8
  %2048 = vsyncmov %s2047
  %s2049 = vpop.sfrf %2048
  %p2050 = scmp.eq.s32.totalorder %s2049, 0
  %p2051 = pneg %p2050
  %2053 = shalt.err (%p2051)
  %s2054 = scalar_lea.sflag [#allocation7], 9
  %2055 = vsyncmov %s2054
  %s2056 = vpop.sfrf %2055
  %p2057 = scmp.eq.s32.totalorder %s2056, 0
  %p2058 = pneg %p2057
  %2060 = shalt.err (%p2058)

</llo_original>
